<compile_context>
chip_gen: v7x
topology: tpu7x:2x2x1
jax: 0.10.0
libtpu: 0.0.40
codegen_flags: <defaults>
</compile_context>

<pallas_src>
import functools
import math

import numpy as np
import jax
import jax.numpy as jnp
from jax.experimental import pallas as pl
from jax.experimental.pallas import tpu as pltpu


def _silu(x):
    return x * jax.nn.sigmoid(x)


def _round_up(v, m):
    return (v + m - 1) // m * m


# ------------------------------ fused kernel --------------------------------


def _fused_kernel(*args, H, W, cfg):
    """Whole HeartTCN forward for one image, channels on sublanes."""
    HW = H * W
    f32 = jnp.float32
    bf16 = jnp.bfloat16

    *in_refs, o_ref, cpad_ref, taps_ref = args
    x_ref, cm_ref = in_refs[0], in_refs[1]
    head_ref = in_refs[-1]

    act = x_ref[...].astype(f32)                        # (Cin0, HW)
    pi = 2
    for bc in cfg:
        (wp_ref, ab_ref, w2_ref, bn2_ref, wse1_ref, wse2t_ref,
         bse1_ref, bse2_ref, w3_ref, bn3_ref) = in_refs[pi:pi + 10]
        pi += 10
        offs_r, offs_c, mrows = bc["offs_r"], bc["offs_c"], bc["mrows"]
        tc, tr, tcp = len(offs_c), len(offs_r), bc["tcp"]
        base, padn = bc["base"], bc["padn"]
        T = tr * tc

        # --- conv1(+bn1) and the residual 1x1 conv share one matmul ---------
        if bc["cin"] == 1:
            z = wp_ref[...].astype(f32) * act           # (8+Cout,1)*(1,HW)
        else:
            z = jnp.dot(wp_ref[...], act.astype(bf16),
                        preferred_element_type=f32)     # (8+Cout, HW)
        ab = ab_ref[...]                                # (8+Cout, 2)
        z = z * ab[:, 0:1] + ab[:, 1:2]
        h1 = _silu(z[0:8, :])                           # (8, HW)
        res = z[8:, :]                                  # (Cout, HW)

        # --- dilated 9x9 'same' conv as a single im2col matmul --------------
        if T == 1:                                      # centre tap = 1x1 conv
            acc = jnp.dot(w2_ref[...], h1.astype(bf16),
                          preferred_element_type=f32)
        else:
            src = 8 * tcp                               # sublane row of shift source
            # zero only the row-halo lanes (interior is overwritten below)
            if base > 0:
                cpad_ref[0:src + 8, 0:base] = jnp.zeros((src + 8, base), f32)
            if padn - base - HW > 0:
                cpad_ref[0:src + 8, base + HW:padn] = jnp.zeros(
                    (src + 8, padn - base - HW), f32)
            if tcp > tc:                                # dummy zero-weight columns
                cpad_ref[8 * tc:src, base:base + HW] = jnp.zeros(
                    (8 * (tcp - tc), HW), f32)
            cpad_ref[src:src + 8, base:base + HW] = h1
            # column shifts: T_c lane-slices of the source row, column-masked
            for j, ow in enumerate(offs_c):
                cs = cpad_ref[src:src + 8, base + ow:base + ow + HW]
                if mrows[j] is not None:
                    cs = cs * cm_ref[mrows[j]]          # (8, HW) 0/1 mask
                cpad_ref[8 * j:8 * j + 8, base:base + HW] = cs
            # row shifts: one wide lane-slice per row offset (covers all cols)
            for r, oh in enumerate(offs_r):
                grp = cpad_ref[0:src, base + oh * W:base + oh * W + HW]
                taps_ref[r * src:(r + 1) * src, :] = grp.astype(bf16)
            acc = jnp.dot(w2_ref[...], taps_ref[0:src * tr, :],
                          preferred_element_type=f32)   # (8, HW)

        bn2 = bn2_ref[...]                              # (8, 2)
        h2 = _silu(acc * bn2[:, 0:1] + bn2[:, 1:2])     # (8, HW)

        # --- squeeze-excitation on VPU/XLU (no MXU on the gate path) --------
        pooled = jnp.mean(h2, axis=1, keepdims=True)    # (8, 1)
        s1 = jnp.sum(wse1_ref[...] * pooled, axis=0, keepdims=True) + bse1_ref[...]
        s1 = jnp.maximum(s1, 0.0)                       # (1, 8)
        s2 = jnp.sum(wse2t_ref[...] * s1, axis=1, keepdims=True) + bse2_ref[...]
        h2 = h2 * jax.nn.sigmoid(s2)                    # gate (8,1) over lanes

        # --- conv3(+bn3) + residual add + SiLU -------------------------------
        h3 = jnp.dot(w3_ref[...], h2.astype(bf16), preferred_element_type=f32)
        bn3 = bn3_ref[...]                              # (Cout, 2)
        act = _silu(h3 * bn3[:, 0:1] + bn3[:, 1:2] + res)   # (Cout, HW)

    # --- head: global average pool first, 1x1 conv on the VPU ----------------
    head = head_ref[...]                                # (8, 2): [w | b,0..]
    pooled = jnp.mean(act, axis=1, keepdims=True)       # (8, 1)
    y = jnp.sum(head[:, 0:1] * pooled, axis=0, keepdims=True) + head[0:1, 1:2]
    o_ref[...] = y                                      # (1, 1)


# ------------------------------- wrapper -------------------------------------


def _wspec(shape):
    nd = len(shape)
    return pl.BlockSpec(tuple(shape), lambda b: (0,) * nd)


def heart_tcn_forward(x_nchw, params):
    x = x_nchw.astype(jnp.float32)
    B, C0, H, W = x.shape
    HW = H * W
    xr = x.reshape(B, C0, HW)              # channels on sublanes, pixels on lanes

    dils = (1, 2, 4, 8, 16)
    w_of_lane = np.arange(HW) % W
    mask_rows, mask_list = {}, []
    cfg, blocks_ops = [], []
    max_rows, max_padn, max_k = 8, 128, 16

    for pb, d in zip(params["blocks"], dils):
        cin = pb["wp"].shape[0]
        khs = [k for k in range(9) if abs((k - 4) * d) < H]
        kws = [k for k in range(9) if abs((k - 4) * d) < W]
        offs_r = [(k - 4) * d for k in khs]
        offs_c = [(k - 4) * d for k in kws]
        tr, tc = len(offs_r), len(offs_c)
        T = tr * tc
        idx = np.array([kh * 9 + kw for kh in khs for kw in kws], np.int32)

        if T == 1:
            w2f = jnp.transpose(pb["w2"][int(idx[0])]).astype(jnp.bfloat16)
            tcp, base, padn, mrows = 1, 0, HW, [None]
        else:
            tcp = tc + (tc % 2)                     # bf16 16-row tile alignment
            prw = max(offs_r) * W
            base = _round_up(max(prw, max(offs_c), 1), 128)
            padn = base + HW + prw
            mrows = []
            for ow in offs_c:
                if ow == 0:
                    mrows.append(None)
                else:
                    if ow not in mask_rows:
                        mask_rows[ow] = len(mask_list)
                        valid = ((w_of_lane + ow >= 0) & (w_of_lane + ow < W))
                        mask_list.append(np.broadcast_to(
                            valid.astype(np.float32), (8, HW)).copy())
                    mrows.append(mask_rows[ow])
            w2s = pb["w2"][idx].reshape(tr, tc, 8, 8)     # (tr, tc, 8in, 8out)
            w2g = jnp.transpose(w2s, (3, 0, 1, 2))        # (8out, tr, tc, 8in)
            if tcp > tc:
                w2g = jnp.pad(w2g, ((0, 0), (0, 0), (0, tcp - tc), (0, 0)))
            w2f = w2g.reshape(8, tr * tcp * 8).astype(jnp.bfloat16)
            max_rows = max(max_rows, 8 * tcp + 8)
            max_padn = max(max_padn, padn)
            max_k = max(max_k, 8 * tcp * tr)

        wp_t = jnp.transpose(pb["wp"])                    # (8+cout, cin)
        if cin > 1:
            wp_t = wp_t.astype(jnp.bfloat16)
        blk = [wp_t,
               jnp.transpose(pb["ab"]),                   # (8+cout, 2)
               w2f,                                       # (8, 8*T')
               jnp.transpose(pb["bn2"]),                  # (8, 2)
               pb["wse"][:8],                             # (8in, 8hid)
               jnp.transpose(pb["wse"][8:]),              # (8out, 8hid)
               pb["bse"][0:1, :],                         # (1, 8)
               jnp.transpose(pb["bse"][1:2, :]),          # (8, 1)
               jnp.transpose(pb["w3"]).astype(jnp.bfloat16),   # (cout, 8)
               jnp.transpose(pb["bn3"])]                  # (cout, 2)
        blocks_ops.append(blk)
        cfg.append(dict(cin=cin, offs_r=offs_r, offs_c=offs_c, mrows=mrows,
                        tcp=tcp, base=base, padn=padn))

    if not mask_list:
        mask_list.append(np.ones((8, HW), np.float32))
    colmask = jnp.asarray(np.stack(mask_list))            # (M, 8, HW)
    head_t = jnp.transpose(params["head"])                # (8, 2)

    ops = [xr, colmask]
    in_specs = [pl.BlockSpec((None, C0, HW), lambda b: (b, 0, 0)),
                _wspec(colmask.shape)]
    for blk in blocks_ops:
        ops += blk
        in_specs += [_wspec(a.shape) for a in blk]
    ops.append(head_t)
    in_specs.append(_wspec(head_t.shape))

    out = pl.pallas_call(
        functools.partial(_fused_kernel, H=H, W=W, cfg=cfg),
        out_shape=jax.ShapeDtypeStruct((B, 1, 1), jnp.float32),
        grid=(B,),
        in_specs=in_specs,
        out_specs=pl.BlockSpec((None, 1, 1), lambda b: (b, 0, 0)),
        scratch_shapes=[pltpu.VMEM((max_rows, max_padn), jnp.float32),
                        pltpu.VMEM((max_k, HW), jnp.bfloat16)],
        compiler_params=pltpu.CompilerParams(
            dimension_semantics=("parallel",)),
    )(*ops)
    return out.reshape(B, 1)


# --------------------------- parameter construction --------------------------


def _fold_bn(gamma, beta, mean, var, conv_bias, eps=1e-5):
    scale = gamma / jnp.sqrt(var + eps)
    shift = beta - mean * scale + conv_bias * scale
    return scale, shift


def _bn_params(key, c):
    k1, k2, k3, k4 = jax.random.split(key, 4)
    gamma = 1.0 + 0.1 * jax.random.normal(k1, (c,), jnp.float32)
    beta = 0.05 * jax.random.normal(k2, (c,), jnp.float32)
    mean = 0.05 * jax.random.normal(k3, (c,), jnp.float32)
    var = 0.5 + jax.random.uniform(k4, (c,), jnp.float32)
    return gamma, beta, mean, var


def _init_block(key, cin, cout):
    ks = jax.random.split(key, 16)
    w1 = jax.random.normal(ks[0], (cin, 8), jnp.float32) / math.sqrt(cin)
    b1 = 0.05 * jax.random.normal(ks[1], (8,), jnp.float32)
    s1, t1 = _fold_bn(*_bn_params(ks[2], 8), b1)

    w2 = jax.random.normal(ks[3], (81, 8, 8), jnp.float32) / math.sqrt(8 * 81)
    b2 = 0.05 * jax.random.normal(ks[4], (8,), jnp.float32)
    s2, t2 = _fold_bn(*_bn_params(ks[5], 8), b2)

    wse1 = jax.random.normal(ks[6], (8, 8), jnp.float32) / math.sqrt(8)
    bse1 = 0.05 * jax.random.normal(ks[7], (8,), jnp.float32)
    wse2 = jax.random.normal(ks[8], (8, 8), jnp.float32) / math.sqrt(8)
    bse2 = 0.05 * jax.random.normal(ks[9], (8,), jnp.float32)

    w3 = jax.random.normal(ks[10], (8, cout), jnp.float32) / math.sqrt(8)
    b3 = 0.05 * jax.random.normal(ks[11], (cout,), jnp.float32)
    s3, t3 = _fold_bn(*_bn_params(ks[12], cout), b3)

    wres = jax.random.normal(ks[13], (cin, cout), jnp.float32) / math.sqrt(cin)
    bres = 0.05 * jax.random.normal(ks[14], (cout,), jnp.float32)

    return {
        "wp": jnp.concatenate([w1, wres], axis=1),                      # (cin, 8+cout)
        "ab": jnp.stack([jnp.concatenate([s1, jnp.ones((cout,), jnp.float32)]),
                         jnp.concatenate([t1, bres])]),                 # (2, 8+cout)
        "w2": w2,                                                       # (81, 8, 8)
        "bn2": jnp.stack([s2, t2]),                                     # (2, 8)
        "wse": jnp.concatenate([wse1, wse2], axis=0),                   # (16, 8)
        "bse": jnp.stack([bse1, bse2]),                                 # (2, 8)
        "w3": w3,                                                       # (8, cout)
        "bn3": jnp.stack([s3, t3]),                                     # (2, cout)
    }


def init_heart_tcn_params(key, input_channel=1, output_channel=32):
    specs = ([(input_channel, output_channel)]
             + [(output_channel, output_channel)] * 3
             + [(output_channel, 8)])
    keys = jax.random.split(key, len(specs) + 2)
    blocks = [_init_block(keys[i], cin, cout) for i, (cin, cout) in enumerate(specs)]
    conv_w = jax.random.normal(keys[-2], (8,), jnp.float32) / math.sqrt(8.0)
    conv_b = 0.05 * jax.random.normal(keys[-1], (), jnp.float32)
    head = jnp.stack([conv_w,
                      jnp.concatenate([conv_b.reshape(1),
                                       jnp.zeros((7,), jnp.float32)])])  # (2, 8)
    return {"blocks": blocks, "head": head}


# --------------------------- pure-JAX reference ------------------------------


def _reference_forward(x_nchw, params):
    hi = jax.lax.Precision.HIGHEST
    x = x_nchw.astype(jnp.float32)
    B, C0, H, W = x.shape
    a = jnp.transpose(x.reshape(B, C0, H * W), (0, 2, 1))
    for pb, d in zip(params["blocks"], (1, 2, 4, 8, 16)):
        z = jnp.einsum("bpc,cd->bpd", a, pb["wp"], precision=hi)
        z = z * pb["ab"][0] + pb["ab"][1]
        h1 = _silu(z[..., :8]).reshape(B, H, W, 8)
        res = z[..., 8:]
        pad = 4 * d
        hp = jnp.pad(h1, ((0, 0), (pad, pad), (pad, pad), (0, 0)))
        acc = jnp.zeros((B, H * W, 8), jnp.float32)
        for kh in range(9):
            for kw in range(9):
                win = hp[:, kh * d:kh * d + H, kw * d:kw * d + W, :]
                acc = acc + jnp.einsum("bpc,cd->bpd",
                                       win.reshape(B, H * W, 8),
                                       pb["w2"][kh * 9 + kw], precision=hi)
        h2 = _silu(acc * pb["bn2"][0] + pb["bn2"][1])
        pooled = jnp.mean(h2, axis=1, keepdims=True)
        se = jnp.maximum(jnp.einsum("bpc,cd->bpd", pooled, pb["wse"][:8],
                                    precision=hi) + pb["bse"][0], 0.0)
        se = jax.nn.sigmoid(jnp.einsum("bpc,cd->bpd", se, pb["wse"][8:],
                                       precision=hi) + pb["bse"][1])
        h2 = h2 * se
        h3 = (jnp.einsum("bpc,cd->bpd", h2, pb["w3"], precision=hi)
              * pb["bn3"][0] + pb["bn3"][1])
        a = _silu(h3 + res)
    pooled = jnp.mean(a, axis=1)                                        # (B, 8)
    return (jnp.sum(pooled * params["head"][0], axis=1, keepdims=True)
            + params["head"][1, 0])


# ----------------------------------- main -------------------------------------

if __name__ == "__main__":
    key = jax.random.PRNGKey(0)
    kp, kx = jax.random.split(key)
    params = init_heart_tcn_params(kp, input_channel=1, output_channel=32)

    # NCHW input like the PyTorch module (input_channel=1), spatial 16x16.
    x = jax.random.normal(kx, (2, 1, 16, 16), jnp.float32)

    out = jax.jit(heart_tcn_forward)(x, params)
    out = jax.block_until_ready(out)
    assert out.shape == (2, 1) and out.dtype == jnp.float32

    # Kernel uses bf16 MXU operands with f32 accumulation -> compare against
    # the f32 (HIGHEST precision) reference with a correspondingly loose tol.
    ref = _reference_forward(x, params)
    assert jnp.allclose(out, ref, rtol=4e-2, atol=4e-2), (out, ref)
    print("KERNEL_OK")
</pallas_src>

<mosaic_0001>
module attributes {stable_mosaic.version = 11 : i64} {
  func.func @_fused_kernel(%arg0: i32, %arg1: memref<1x1x256xf32, #tpu.memory_space<vmem>>, %arg2: memref<14x8x256xf32, #tpu.memory_space<vmem>>, %arg3: memref<40x1xf32, #tpu.memory_space<vmem>>, %arg4: memref<40x2xf32, #tpu.memory_space<vmem>>, %arg5: memref<8x720xbf16, #tpu.memory_space<vmem>>, %arg6: memref<8x2xf32, #tpu.memory_space<vmem>>, %arg7: memref<8x8xf32, #tpu.memory_space<vmem>>, %arg8: memref<8x8xf32, #tpu.memory_space<vmem>>, %arg9: memref<1x8xf32, #tpu.memory_space<vmem>>, %arg10: memref<8x1xf32, #tpu.memory_space<vmem>>, %arg11: memref<32x8xbf16, #tpu.memory_space<vmem>>, %arg12: memref<32x2xf32, #tpu.memory_space<vmem>>, %arg13: memref<40x32xbf16, #tpu.memory_space<vmem>>, %arg14: memref<40x2xf32, #tpu.memory_space<vmem>>, %arg15: memref<8x720xbf16, #tpu.memory_space<vmem>>, %arg16: memref<8x2xf32, #tpu.memory_space<vmem>>, %arg17: memref<8x8xf32, #tpu.memory_space<vmem>>, %arg18: memref<8x8xf32, #tpu.memory_space<vmem>>, %arg19: memref<1x8xf32, #tpu.memory_space<vmem>>, %arg20: memref<8x1xf32, #tpu.memory_space<vmem>>, %arg21: memref<32x8xbf16, #tpu.memory_space<vmem>>, %arg22: memref<32x2xf32, #tpu.memory_space<vmem>>, %arg23: memref<40x32xbf16, #tpu.memory_space<vmem>>, %arg24: memref<40x2xf32, #tpu.memory_space<vmem>>, %arg25: memref<8x448xbf16, #tpu.memory_space<vmem>>, %arg26: memref<8x2xf32, #tpu.memory_space<vmem>>, %arg27: memref<8x8xf32, #tpu.memory_space<vmem>>, %arg28: memref<8x8xf32, #tpu.memory_space<vmem>>, %arg29: memref<1x8xf32, #tpu.memory_space<vmem>>, %arg30: memref<8x1xf32, #tpu.memory_space<vmem>>, %arg31: memref<32x8xbf16, #tpu.memory_space<vmem>>, %arg32: memref<32x2xf32, #tpu.memory_space<vmem>>, %arg33: memref<40x32xbf16, #tpu.memory_space<vmem>>, %arg34: memref<40x2xf32, #tpu.memory_space<vmem>>, %arg35: memref<8x96xbf16, #tpu.memory_space<vmem>>, %arg36: memref<8x2xf32, #tpu.memory_space<vmem>>, %arg37: memref<8x8xf32, #tpu.memory_space<vmem>>, %arg38: memref<8x8xf32, #tpu.memory_space<vmem>>, %arg39: memref<1x8xf32, #tpu.memory_space<vmem>>, %arg40: memref<8x1xf32, #tpu.memory_space<vmem>>, %arg41: memref<32x8xbf16, #tpu.memory_space<vmem>>, %arg42: memref<32x2xf32, #tpu.memory_space<vmem>>, %arg43: memref<16x32xbf16, #tpu.memory_space<vmem>>, %arg44: memref<16x2xf32, #tpu.memory_space<vmem>>, %arg45: memref<8x8xbf16, #tpu.memory_space<vmem>>, %arg46: memref<8x2xf32, #tpu.memory_space<vmem>>, %arg47: memref<8x8xf32, #tpu.memory_space<vmem>>, %arg48: memref<8x8xf32, #tpu.memory_space<vmem>>, %arg49: memref<1x8xf32, #tpu.memory_space<vmem>>, %arg50: memref<8x1xf32, #tpu.memory_space<vmem>>, %arg51: memref<8x8xbf16, #tpu.memory_space<vmem>>, %arg52: memref<8x2xf32, #tpu.memory_space<vmem>>, %arg53: memref<8x2xf32, #tpu.memory_space<vmem>>, %arg54: memref<1x1x1xf32, #tpu.memory_space<vmem>>, %arg55: memref<88x704xf32, #tpu.memory_space<vmem>>, %arg56: memref<720x256xbf16, #tpu.memory_space<vmem>>) attributes {dimension_semantics = [#tpu.dimension_semantics<parallel>], iteration_bounds = array<i64: 2>, scalar_prefetch = 0 : i64, scratch_operands = 2 : i64, tpu.core_type = #tpu.core_type<tc>, window_params = [{transform_indices = @transform_0, window_bounds = array<i64: 1, 1, 256>}, {pipeline_mode = #tpu.pipeline_mode<synchronous>, transform_indices = @transform_1, window_bounds = array<i64: 14, 8, 256>}, {pipeline_mode = #tpu.pipeline_mode<synchronous>, transform_indices = @transform_2, window_bounds = array<i64: 40, 1>}, {pipeline_mode = #tpu.pipeline_mode<synchronous>, transform_indices = @transform_3, window_bounds = array<i64: 40, 2>}, {pipeline_mode = #tpu.pipeline_mode<synchronous>, transform_indices = @transform_4, window_bounds = array<i64: 8, 720>}, {pipeline_mode = #tpu.pipeline_mode<synchronous>, transform_indices = @transform_5, window_bounds = array<i64: 8, 2>}, {pipeline_mode = #tpu.pipeline_mode<synchronous>, transform_indices = @transform_6, window_bounds = array<i64: 8, 8>}, {pipeline_mode = #tpu.pipeline_mode<synchronous>, transform_indices = @transform_7, window_bounds = array<i64: 8, 8>}, {pipeline_mode = #tpu.pipeline_mode<synchronous>, transform_indices = @transform_8, window_bounds = array<i64: 1, 8>}, {pipeline_mode = #tpu.pipeline_mode<synchronous>, transform_indices = @transform_9, window_bounds = array<i64: 8, 1>}, {pipeline_mode = #tpu.pipeline_mode<synchronous>, transform_indices = @transform_10, window_bounds = array<i64: 32, 8>}, {pipeline_mode = #tpu.pipeline_mode<synchronous>, transform_indices = @transform_11, window_bounds = array<i64: 32, 2>}, {pipeline_mode = #tpu.pipeline_mode<synchronous>, transform_indices = @transform_12, window_bounds = array<i64: 40, 32>}, {pipeline_mode = #tpu.pipeline_mode<synchronous>, transform_indices = @transform_13, window_bounds = array<i64: 40, 2>}, {pipeline_mode = #tpu.pipeline_mode<synchronous>, transform_indices = @transform_14, window_bounds = array<i64: 8, 720>}, {pipeline_mode = #tpu.pipeline_mode<synchronous>, transform_indices = @transform_15, window_bounds = array<i64: 8, 2>}, {pipeline_mode = #tpu.pipeline_mode<synchronous>, transform_indices = @transform_16, window_bounds = array<i64: 8, 8>}, {pipeline_mode = #tpu.pipeline_mode<synchronous>, transform_indices = @transform_17, window_bounds = array<i64: 8, 8>}, {pipeline_mode = #tpu.pipeline_mode<synchronous>, transform_indices = @transform_18, window_bounds = array<i64: 1, 8>}, {pipeline_mode = #tpu.pipeline_mode<synchronous>, transform_indices = @transform_19, window_bounds = array<i64: 8, 1>}, {pipeline_mode = #tpu.pipeline_mode<synchronous>, transform_indices = @transform_20, window_bounds = array<i64: 32, 8>}, {pipeline_mode = #tpu.pipeline_mode<synchronous>, transform_indices = @transform_21, window_bounds = array<i64: 32, 2>}, {pipeline_mode = #tpu.pipeline_mode<synchronous>, transform_indices = @transform_22, window_bounds = array<i64: 40, 32>}, {pipeline_mode = #tpu.pipeline_mode<synchronous>, transform_indices = @transform_23, window_bounds = array<i64: 40, 2>}, {pipeline_mode = #tpu.pipeline_mode<synchronous>, transform_indices = @transform_24, window_bounds = array<i64: 8, 448>}, {pipeline_mode = #tpu.pipeline_mode<synchronous>, transform_indices = @transform_25, window_bounds = array<i64: 8, 2>}, {pipeline_mode = #tpu.pipeline_mode<synchronous>, transform_indices = @transform_26, window_bounds = array<i64: 8, 8>}, {pipeline_mode = #tpu.pipeline_mode<synchronous>, transform_indices = @transform_27, window_bounds = array<i64: 8, 8>}, {pipeline_mode = #tpu.pipeline_mode<synchronous>, transform_indices = @transform_28, window_bounds = array<i64: 1, 8>}, {pipeline_mode = #tpu.pipeline_mode<synchronous>, transform_indices = @transform_29, window_bounds = array<i64: 8, 1>}, {pipeline_mode = #tpu.pipeline_mode<synchronous>, transform_indices = @transform_30, window_bounds = array<i64: 32, 8>}, {pipeline_mode = #tpu.pipeline_mode<synchronous>, transform_indices = @transform_31, window_bounds = array<i64: 32, 2>}, {pipeline_mode = #tpu.pipeline_mode<synchronous>, transform_indices = @transform_32, window_bounds = array<i64: 40, 32>}, {pipeline_mode = #tpu.pipeline_mode<synchronous>, transform_indices = @transform_33, window_bounds = array<i64: 40, 2>}, {pipeline_mode = #tpu.pipeline_mode<synchronous>, transform_indices = @transform_34, window_bounds = array<i64: 8, 96>}, {pipeline_mode = #tpu.pipeline_mode<synchronous>, transform_indices = @transform_35, window_bounds = array<i64: 8, 2>}, {pipeline_mode = #tpu.pipeline_mode<synchronous>, transform_indices = @transform_36, window_bounds = array<i64: 8, 8>}, {pipeline_mode = #tpu.pipeline_mode<synchronous>, transform_indices = @transform_37, window_bounds = array<i64: 8, 8>}, {pipeline_mode = #tpu.pipeline_mode<synchronous>, transform_indices = @transform_38, window_bounds = array<i64: 1, 8>}, {pipeline_mode = #tpu.pipeline_mode<synchronous>, transform_indices = @transform_39, window_bounds = array<i64: 8, 1>}, {pipeline_mode = #tpu.pipeline_mode<synchronous>, transform_indices = @transform_40, window_bounds = array<i64: 32, 8>}, {pipeline_mode = #tpu.pipeline_mode<synchronous>, transform_indices = @transform_41, window_bounds = array<i64: 32, 2>}, {pipeline_mode = #tpu.pipeline_mode<synchronous>, transform_indices = @transform_42, window_bounds = array<i64: 16, 32>}, {pipeline_mode = #tpu.pipeline_mode<synchronous>, transform_indices = @transform_43, window_bounds = array<i64: 16, 2>}, {pipeline_mode = #tpu.pipeline_mode<synchronous>, transform_indices = @transform_44, window_bounds = array<i64: 8, 8>}, {pipeline_mode = #tpu.pipeline_mode<synchronous>, transform_indices = @transform_45, window_bounds = array<i64: 8, 2>}, {pipeline_mode = #tpu.pipeline_mode<synchronous>, transform_indices = @transform_46, window_bounds = array<i64: 8, 8>}, {pipeline_mode = #tpu.pipeline_mode<synchronous>, transform_indices = @transform_47, window_bounds = array<i64: 8, 8>}, {pipeline_mode = #tpu.pipeline_mode<synchronous>, transform_indices = @transform_48, window_bounds = array<i64: 1, 8>}, {pipeline_mode = #tpu.pipeline_mode<synchronous>, transform_indices = @transform_49, window_bounds = array<i64: 8, 1>}, {pipeline_mode = #tpu.pipeline_mode<synchronous>, transform_indices = @transform_50, window_bounds = array<i64: 8, 8>}, {pipeline_mode = #tpu.pipeline_mode<synchronous>, transform_indices = @transform_51, window_bounds = array<i64: 8, 2>}, {pipeline_mode = #tpu.pipeline_mode<synchronous>, transform_indices = @transform_52, window_bounds = array<i64: 8, 2>}, {transform_indices = @transform_53, window_bounds = array<i64: 1, 1, 1>}]} {
    %c0 = arith.constant 0 : index
    %c0_0 = arith.constant 0 : index
    %c0_1 = arith.constant 0 : index
    %0 = vector.load %arg1[%c0, %c0_0, %c0_1] : memref<1x1x256xf32, #tpu.memory_space<vmem>>, vector<1x1x256xf32>
    %1 = vector.shape_cast %0 : vector<1x1x256xf32> to vector<1x256xf32>
    %c0_2 = arith.constant 0 : index
    %c0_3 = arith.constant 0 : index
    %2 = vector.load %arg3[%c0_2, %c0_3] : memref<40x1xf32, #tpu.memory_space<vmem>>, vector<40x1xf32>
    %3 = vector.broadcast %2 : vector<40x1xf32> to vector<40x256xf32>
    %4 = vector.broadcast %1 : vector<1x256xf32> to vector<40x256xf32>
    %5 = arith.mulf %3, %4 : vector<40x256xf32>
    %c0_4 = arith.constant 0 : index
    %c0_5 = arith.constant 0 : index
    %6 = vector.load %arg4[%c0_4, %c0_5] : memref<40x2xf32, #tpu.memory_space<vmem>>, vector<40x2xf32>
    %7 = vector.extract_strided_slice %6 {offsets = [0, 0], sizes = [40, 1], strides = [1, 1]} : vector<40x2xf32> to vector<40x1xf32>
    %8 = vector.broadcast %7 : vector<40x1xf32> to vector<40x256xf32>
    %9 = arith.mulf %5, %8 : vector<40x256xf32>
    %10 = vector.extract_strided_slice %6 {offsets = [0, 1], sizes = [40, 1], strides = [1, 1]} : vector<40x2xf32> to vector<40x1xf32>
    %11 = vector.broadcast %10 : vector<40x1xf32> to vector<40x256xf32>
    %12 = arith.addf %9, %11 : vector<40x256xf32>
    %13 = vector.extract_strided_slice %12 {offsets = [0, 0], sizes = [8, 256], strides = [1, 1]} : vector<40x256xf32> to vector<8x256xf32>
    %14 = arith.negf %13 : vector<8x256xf32>
    %15 = math.exp %14 : vector<8x256xf32>
    %cst = arith.constant 1.000000e+00 : f32
    %16 = vector.broadcast %cst : f32 to vector<8x256xf32>
    %17 = arith.addf %16, %15 : vector<8x256xf32>
    %18 = arith.divf %16, %17 : vector<8x256xf32>
    %19 = arith.mulf %13, %18 : vector<8x256xf32>
    %20 = vector.extract_strided_slice %12 {offsets = [8, 0], sizes = [32, 256], strides = [1, 1]} : vector<40x256xf32> to vector<32x256xf32>
    %cst_6 = arith.constant 0.000000e+00 : f32
    %21 = vector.broadcast %cst_6 : f32 to vector<88x128xf32>
    %c0_7 = arith.constant 0 : index
    %c0_8 = arith.constant 0 : index
    %22 = vector.load %arg55[%c0_7, %c0_8] : memref<88x704xf32, #tpu.memory_space<vmem>>, vector<88x128xf32>
    tpu.vector_store %arg55[%c0_7, %c0_8], %21 {strides = array<i32>} : memref<88x704xf32, #tpu.memory_space<vmem>>, vector<88x128xf32>,
    %cst_9 = arith.constant 0.000000e+00 : f32
    %23 = vector.broadcast %cst_9 : f32 to vector<88x64xf32>
    %c0_10 = arith.constant 0 : index
    %c384 = arith.constant 384 : index
    %24 = vector.load %arg55[%c0_10, %c384] : memref<88x704xf32, #tpu.memory_space<vmem>>, vector<88x64xf32>
    tpu.vector_store %arg55[%c0_10, %c384], %23 {strides = array<i32>} : memref<88x704xf32, #tpu.memory_space<vmem>>, vector<88x64xf32>,
    %cst_11 = arith.constant 0.000000e+00 : f32
    %25 = vector.broadcast %cst_11 : f32 to vector<8x256xf32>
    %c72 = arith.constant 72 : index
    %c128 = arith.constant 128 : index
    %26 = vector.load %arg55[%c72, %c128] : memref<88x704xf32, #tpu.memory_space<vmem>>, vector<8x256xf32>
    tpu.vector_store %arg55[%c72, %c128], %25 {strides = array<i32>} : memref<88x704xf32, #tpu.memory_space<vmem>>, vector<8x256xf32>,
    %c80 = arith.constant 80 : index
    %c128_12 = arith.constant 128 : index
    %27 = vector.load %arg55[%c80, %c128_12] : memref<88x704xf32, #tpu.memory_space<vmem>>, vector<8x256xf32>
    tpu.vector_store %arg55[%c80, %c128_12], %19 {strides = array<i32>} : memref<88x704xf32, #tpu.memory_space<vmem>>, vector<8x256xf32>,
    %c80_13 = arith.constant 80 : index
    %c124 = arith.constant 124 : index
    %28 = vector.load %arg55[%c80_13, %c124] : memref<88x704xf32, #tpu.memory_space<vmem>>, vector<8x256xf32>
    %c0_14 = arith.constant 0 : index
    %c0_15 = arith.constant 0 : index
    %c0_16 = arith.constant 0 : index
    %29 = vector.load %arg2[%c0_14, %c0_15, %c0_16] : memref<14x8x256xf32, #tpu.memory_space<vmem>>, vector<1x8x256xf32>
    %30 = vector.shape_cast %29 : vector<1x8x256xf32> to vector<8x256xf32>
    %31 = arith.mulf %28, %30 : vector<8x256xf32>
    %c0_17 = arith.constant 0 : index
    %c128_18 = arith.constant 128 : index
    %32 = vector.load %arg55[%c0_17, %c128_18] : memref<88x704xf32, #tpu.memory_space<vmem>>, vector<8x256xf32>
    tpu.vector_store %arg55[%c0_17, %c128_18], %31 {strides = array<i32>} : memref<88x704xf32, #tpu.memory_space<vmem>>, vector<8x256xf32>,
    %c80_19 = arith.constant 80 : index
    %c125 = arith.constant 125 : index
    %33 = vector.load %arg55[%c80_19, %c125] : memref<88x704xf32, #tpu.memory_space<vmem>>, vector<8x256xf32>
    %c1 = arith.constant 1 : index
    %c0_20 = arith.constant 0 : index
    %c0_21 = arith.constant 0 : index
    %34 = vector.load %arg2[%c1, %c0_20, %c0_21] : memref<14x8x256xf32, #tpu.memory_space<vmem>>, vector<1x8x256xf32>
    %35 = vector.shape_cast %34 : vector<1x8x256xf32> to vector<8x256xf32>
    %36 = arith.mulf %33, %35 : vector<8x256xf32>
    %c8 = arith.constant 8 : index
    %c128_22 = arith.constant 128 : index
    %37 = vector.load %arg55[%c8, %c128_22] : memref<88x704xf32, #tpu.memory_space<vmem>>, vector<8x256xf32>
    tpu.vector_store %arg55[%c8, %c128_22], %36 {strides = array<i32>} : memref<88x704xf32, #tpu.memory_space<vmem>>, vector<8x256xf32>,
    %c80_23 = arith.constant 80 : index
    %c126 = arith.constant 126 : index
    %38 = vector.load %arg55[%c80_23, %c126] : memref<88x704xf32, #tpu.memory_space<vmem>>, vector<8x256xf32>
    %c2 = arith.constant 2 : index
    %c0_24 = arith.constant 0 : index
    %c0_25 = arith.constant 0 : index
    %39 = vector.load %arg2[%c2, %c0_24, %c0_25] : memref<14x8x256xf32, #tpu.memory_space<vmem>>, vector<1x8x256xf32>
    %40 = vector.shape_cast %39 : vector<1x8x256xf32> to vector<8x256xf32>
    %41 = arith.mulf %38, %40 : vector<8x256xf32>
    %c16 = arith.constant 16 : index
    %c128_26 = arith.constant 128 : index
    %42 = vector.load %arg55[%c16, %c128_26] : memref<88x704xf32, #tpu.memory_space<vmem>>, vector<8x256xf32>
    tpu.vector_store %arg55[%c16, %c128_26], %41 {strides = array<i32>} : memref<88x704xf32, #tpu.memory_space<vmem>>, vector<8x256xf32>,
    %c80_27 = arith.constant 80 : index
    %c127 = arith.constant 127 : index
    %43 = vector.load %arg55[%c80_27, %c127] : memref<88x704xf32, #tpu.memory_space<vmem>>, vector<8x256xf32>
    %c3 = arith.constant 3 : index
    %c0_28 = arith.constant 0 : index
    %c0_29 = arith.constant 0 : index
    %44 = vector.load %arg2[%c3, %c0_28, %c0_29] : memref<14x8x256xf32, #tpu.memory_space<vmem>>, vector<1x8x256xf32>
    %45 = vector.shape_cast %44 : vector<1x8x256xf32> to vector<8x256xf32>
    %46 = arith.mulf %43, %45 : vector<8x256xf32>
    %c24 = arith.constant 24 : index
    %c128_30 = arith.constant 128 : index
    %47 = vector.load %arg55[%c24, %c128_30] : memref<88x704xf32, #tpu.memory_space<vmem>>, vector<8x256xf32>
    tpu.vector_store %arg55[%c24, %c128_30], %46 {strides = array<i32>} : memref<88x704xf32, #tpu.memory_space<vmem>>, vector<8x256xf32>,
    %c80_31 = arith.constant 80 : index
    %c128_32 = arith.constant 128 : index
    %48 = vector.load %arg55[%c80_31, %c128_32] : memref<88x704xf32, #tpu.memory_space<vmem>>, vector<8x256xf32>
    %c32 = arith.constant 32 : index
    %c128_33 = arith.constant 128 : index
    %49 = vector.load %arg55[%c32, %c128_33] : memref<88x704xf32, #tpu.memory_space<vmem>>, vector<8x256xf32>
    tpu.vector_store %arg55[%c32, %c128_33], %48 {strides = array<i32>} : memref<88x704xf32, #tpu.memory_space<vmem>>, vector<8x256xf32>,
    %c80_34 = arith.constant 80 : index
    %c129 = arith.constant 129 : index
    %50 = vector.load %arg55[%c80_34, %c129] : memref<88x704xf32, #tpu.memory_space<vmem>>, vector<8x256xf32>
    %c4 = arith.constant 4 : index
    %c0_35 = arith.constant 0 : index
    %c0_36 = arith.constant 0 : index
    %51 = vector.load %arg2[%c4, %c0_35, %c0_36] : memref<14x8x256xf32, #tpu.memory_space<vmem>>, vector<1x8x256xf32>
    %52 = vector.shape_cast %51 : vector<1x8x256xf32> to vector<8x256xf32>
    %53 = arith.mulf %50, %52 : vector<8x256xf32>
    %c40 = arith.constant 40 : index
    %c128_37 = arith.constant 128 : index
    %54 = vector.load %arg55[%c40, %c128_37] : memref<88x704xf32, #tpu.memory_space<vmem>>, vector<8x256xf32>
    tpu.vector_store %arg55[%c40, %c128_37], %53 {strides = array<i32>} : memref<88x704xf32, #tpu.memory_space<vmem>>, vector<8x256xf32>,
    %c80_38 = arith.constant 80 : index
    %c130 = arith.constant 130 : index
    %55 = vector.load %arg55[%c80_38, %c130] : memref<88x704xf32, #tpu.memory_space<vmem>>, vector<8x256xf32>
    %c5 = arith.constant 5 : index
    %c0_39 = arith.constant 0 : index
    %c0_40 = arith.constant 0 : index
    %56 = vector.load %arg2[%c5, %c0_39, %c0_40] : memref<14x8x256xf32, #tpu.memory_space<vmem>>, vector<1x8x256xf32>
    %57 = vector.shape_cast %56 : vector<1x8x256xf32> to vector<8x256xf32>
    %58 = arith.mulf %55, %57 : vector<8x256xf32>
    %c48 = arith.constant 48 : index
    %c128_41 = arith.constant 128 : index
    %59 = vector.load %arg55[%c48, %c128_41] : memref<88x704xf32, #tpu.memory_space<vmem>>, vector<8x256xf32>
    tpu.vector_store %arg55[%c48, %c128_41], %58 {strides = array<i32>} : memref<88x704xf32, #tpu.memory_space<vmem>>, vector<8x256xf32>,
    %c80_42 = arith.constant 80 : index
    %c131 = arith.constant 131 : index
    %60 = vector.load %arg55[%c80_42, %c131] : memref<88x704xf32, #tpu.memory_space<vmem>>, vector<8x256xf32>
    %c6 = arith.constant 6 : index
    %c0_43 = arith.constant 0 : index
    %c0_44 = arith.constant 0 : index
    %61 = vector.load %arg2[%c6, %c0_43, %c0_44] : memref<14x8x256xf32, #tpu.memory_space<vmem>>, vector<1x8x256xf32>
    %62 = vector.shape_cast %61 : vector<1x8x256xf32> to vector<8x256xf32>
    %63 = arith.mulf %60, %62 : vector<8x256xf32>
    %c56 = arith.constant 56 : index
    %c128_45 = arith.constant 128 : index
    %64 = vector.load %arg55[%c56, %c128_45] : memref<88x704xf32, #tpu.memory_space<vmem>>, vector<8x256xf32>
    tpu.vector_store %arg55[%c56, %c128_45], %63 {strides = array<i32>} : memref<88x704xf32, #tpu.memory_space<vmem>>, vector<8x256xf32>,
    %c80_46 = arith.constant 80 : index
    %c132 = arith.constant 132 : index
    %65 = vector.load %arg55[%c80_46, %c132] : memref<88x704xf32, #tpu.memory_space<vmem>>, vector<8x256xf32>
    %c7 = arith.constant 7 : index
    %c0_47 = arith.constant 0 : index
    %c0_48 = arith.constant 0 : index
    %66 = vector.load %arg2[%c7, %c0_47, %c0_48] : memref<14x8x256xf32, #tpu.memory_space<vmem>>, vector<1x8x256xf32>
    %67 = vector.shape_cast %66 : vector<1x8x256xf32> to vector<8x256xf32>
    %68 = arith.mulf %65, %67 : vector<8x256xf32>
    %c64 = arith.constant 64 : index
    %c128_49 = arith.constant 128 : index
    %69 = vector.load %arg55[%c64, %c128_49] : memref<88x704xf32, #tpu.memory_space<vmem>>, vector<8x256xf32>
    tpu.vector_store %arg55[%c64, %c128_49], %68 {strides = array<i32>} : memref<88x704xf32, #tpu.memory_space<vmem>>, vector<8x256xf32>,
    %c0_50 = arith.constant 0 : index
    %c64_51 = arith.constant 64 : index
    %70 = vector.load %arg55[%c0_50, %c64_51] : memref<88x704xf32, #tpu.memory_space<vmem>>, vector<80x256xf32>
    %71 = arith.truncf %70 : vector<80x256xf32> to vector<80x256xbf16>
    %c0_52 = arith.constant 0 : index
    %c0_53 = arith.constant 0 : index
    %72 = vector.load %arg56[%c0_52, %c0_53] : memref<720x256xbf16, #tpu.memory_space<vmem>>, vector<80x256xbf16>
    tpu.vector_store %arg56[%c0_52, %c0_53], %71 {strides = array<i32>} : memref<720x256xbf16, #tpu.memory_space<vmem>>, vector<80x256xbf16>,
    %c0_54 = arith.constant 0 : index
    %c80_55 = arith.constant 80 : index
    %73 = vector.load %arg55[%c0_54, %c80_55] : memref<88x704xf32, #tpu.memory_space<vmem>>, vector<80x256xf32>
    %74 = arith.truncf %73 : vector<80x256xf32> to vector<80x256xbf16>
    %c80_56 = arith.constant 80 : index
    %c0_57 = arith.constant 0 : index
    %75 = vector.load %arg56[%c80_56, %c0_57] : memref<720x256xbf16, #tpu.memory_space<vmem>>, vector<80x256xbf16>
    tpu.vector_store %arg56[%c80_56, %c0_57], %74 {strides = array<i32>} : memref<720x256xbf16, #tpu.memory_space<vmem>>, vector<80x256xbf16>,
    %c0_58 = arith.constant 0 : index
    %c96 = arith.constant 96 : index
    %76 = vector.load %arg55[%c0_58, %c96] : memref<88x704xf32, #tpu.memory_space<vmem>>, vector<80x256xf32>
    %77 = arith.truncf %76 : vector<80x256xf32> to vector<80x256xbf16>
    %c160 = arith.constant 160 : index
    %c0_59 = arith.constant 0 : index
    %78 = vector.load %arg56[%c160, %c0_59] : memref<720x256xbf16, #tpu.memory_space<vmem>>, vector<80x256xbf16>
    tpu.vector_store %arg56[%c160, %c0_59], %77 {strides = array<i32>} : memref<720x256xbf16, #tpu.memory_space<vmem>>, vector<80x256xbf16>,
    %c0_60 = arith.constant 0 : index
    %c112 = arith.constant 112 : index
    %79 = vector.load %arg55[%c0_60, %c112] : memref<88x704xf32, #tpu.memory_space<vmem>>, vector<80x256xf32>
    %80 = arith.truncf %79 : vector<80x256xf32> to vector<80x256xbf16>
    %c240 = arith.constant 240 : index
    %c0_61 = arith.constant 0 : index
    %81 = vector.load %arg56[%c240, %c0_61] : memref<720x256xbf16, #tpu.memory_space<vmem>>, vector<80x256xbf16>
    tpu.vector_store %arg56[%c240, %c0_61], %80 {strides = array<i32>} : memref<720x256xbf16, #tpu.memory_space<vmem>>, vector<80x256xbf16>,
    %c0_62 = arith.constant 0 : index
    %c128_63 = arith.constant 128 : index
    %82 = vector.load %arg55[%c0_62, %c128_63] : memref<88x704xf32, #tpu.memory_space<vmem>>, vector<80x256xf32>
    %83 = arith.truncf %82 : vector<80x256xf32> to vector<80x256xbf16>
    %c320 = arith.constant 320 : index
    %c0_64 = arith.constant 0 : index
    %84 = vector.load %arg56[%c320, %c0_64] : memref<720x256xbf16, #tpu.memory_space<vmem>>, vector<80x256xbf16>
    tpu.vector_store %arg56[%c320, %c0_64], %83 {strides = array<i32>} : memref<720x256xbf16, #tpu.memory_space<vmem>>, vector<80x256xbf16>,
    %c0_65 = arith.constant 0 : index
    %c144 = arith.constant 144 : index
    %85 = vector.load %arg55[%c0_65, %c144] : memref<88x704xf32, #tpu.memory_space<vmem>>, vector<80x256xf32>
    %86 = arith.truncf %85 : vector<80x256xf32> to vector<80x256xbf16>
    %c400 = arith.constant 400 : index
    %c0_66 = arith.constant 0 : index
    %87 = vector.load %arg56[%c400, %c0_66] : memref<720x256xbf16, #tpu.memory_space<vmem>>, vector<80x256xbf16>
    tpu.vector_store %arg56[%c400, %c0_66], %86 {strides = array<i32>} : memref<720x256xbf16, #tpu.memory_space<vmem>>, vector<80x256xbf16>,
    %c0_67 = arith.constant 0 : index
    %c160_68 = arith.constant 160 : index
    %88 = vector.load %arg55[%c0_67, %c160_68] : memref<88x704xf32, #tpu.memory_space<vmem>>, vector<80x256xf32>
    %89 = arith.truncf %88 : vector<80x256xf32> to vector<80x256xbf16>
    %c480 = arith.constant 480 : index
    %c0_69 = arith.constant 0 : index
    %90 = vector.load %arg56[%c480, %c0_69] : memref<720x256xbf16, #tpu.memory_space<vmem>>, vector<80x256xbf16>
    tpu.vector_store %arg56[%c480, %c0_69], %89 {strides = array<i32>} : memref<720x256xbf16, #tpu.memory_space<vmem>>, vector<80x256xbf16>,
    %c0_70 = arith.constant 0 : index
    %c176 = arith.constant 176 : index
    %91 = vector.load %arg55[%c0_70, %c176] : memref<88x704xf32, #tpu.memory_space<vmem>>, vector<80x256xf32>
    %92 = arith.truncf %91 : vector<80x256xf32> to vector<80x256xbf16>
    %c560 = arith.constant 560 : index
    %c0_71 = arith.constant 0 : index
    %93 = vector.load %arg56[%c560, %c0_71] : memref<720x256xbf16, #tpu.memory_space<vmem>>, vector<80x256xbf16>
    tpu.vector_store %arg56[%c560, %c0_71], %92 {strides = array<i32>} : memref<720x256xbf16, #tpu.memory_space<vmem>>, vector<80x256xbf16>,
    %c0_72 = arith.constant 0 : index
    %c192 = arith.constant 192 : index
    %94 = vector.load %arg55[%c0_72, %c192] : memref<88x704xf32, #tpu.memory_space<vmem>>, vector<80x256xf32>
    %95 = arith.truncf %94 : vector<80x256xf32> to vector<80x256xbf16>
    %c640 = arith.constant 640 : index
    %c0_73 = arith.constant 0 : index
    %96 = vector.load %arg56[%c640, %c0_73] : memref<720x256xbf16, #tpu.memory_space<vmem>>, vector<80x256xbf16>
    tpu.vector_store %arg56[%c640, %c0_73], %95 {strides = array<i32>} : memref<720x256xbf16, #tpu.memory_space<vmem>>, vector<80x256xbf16>,
    %c0_74 = arith.constant 0 : index
    %c0_75 = arith.constant 0 : index
    %97 = vector.load %arg5[%c0_74, %c0_75] : memref<8x720xbf16, #tpu.memory_space<vmem>>, vector<8x720xbf16>
    %c0_76 = arith.constant 0 : index
    %c0_77 = arith.constant 0 : index
    %98 = vector.load %arg56[%c0_76, %c0_77] : memref<720x256xbf16, #tpu.memory_space<vmem>>, vector<720x256xbf16>
    %cst_78 = arith.constant dense<0.000000e+00> : vector<8x256xf32>
    %99 = tpu.matmul %97, %98, %cst_78 {dimension_numbers = #tpu.dot_dimension_numbers<[1], [0], [0], [1], [0, 0, 1, 1], [], []>} : vector<8x720xbf16>, vector<720x256xbf16>, vector<8x256xf32> -> vector<8x256xf32>
    %c0_79 = arith.constant 0 : index
    %c0_80 = arith.constant 0 : index
    %100 = vector.load %arg6[%c0_79, %c0_80] : memref<8x2xf32, #tpu.memory_space<vmem>>, vector<8x2xf32>
    %101 = vector.extract_strided_slice %100 {offsets = [0, 0], sizes = [8, 1], strides = [1, 1]} : vector<8x2xf32> to vector<8x1xf32>
    %102 = vector.broadcast %101 : vector<8x1xf32> to vector<8x256xf32>
    %103 = arith.mulf %99, %102 : vector<8x256xf32>
    %104 = vector.extract_strided_slice %100 {offsets = [0, 1], sizes = [8, 1], strides = [1, 1]} : vector<8x2xf32> to vector<8x1xf32>
    %105 = vector.broadcast %104 : vector<8x1xf32> to vector<8x256xf32>
    %106 = arith.addf %103, %105 : vector<8x256xf32>
    %107 = arith.negf %106 : vector<8x256xf32>
    %108 = math.exp %107 : vector<8x256xf32>
    %cst_81 = arith.constant 1.000000e+00 : f32
    %109 = vector.broadcast %cst_81 : f32 to vector<8x256xf32>
    %110 = arith.addf %109, %108 : vector<8x256xf32>
    %111 = arith.divf %109, %110 : vector<8x256xf32>
    %112 = arith.mulf %106, %111 : vector<8x256xf32>
    %cst_82 = arith.constant dense<0.000000e+00> : vector<8xf32>
    %113 = vector.multi_reduction <add>, %112, %cst_82 [1] : vector<8x256xf32> to vector<8xf32>
    %114 = vector.shape_cast %113 : vector<8xf32> to vector<8x1xf32>
    %cst_83 = arith.constant 2.560000e+02 : f32
    %115 = vector.broadcast %cst_83 : f32 to vector<8x1xf32>
    %116 = arith.divf %114, %115 : vector<8x1xf32>
    %c0_84 = arith.constant 0 : index
    %c0_85 = arith.constant 0 : index
    %117 = vector.load %arg7[%c0_84, %c0_85] : memref<8x8xf32, #tpu.memory_space<vmem>>, vector<8x8xf32>
    %118 = vector.broadcast %116 : vector<8x1xf32> to vector<8x8xf32>
    %119 = arith.mulf %117, %118 : vector<8x8xf32>
    %cst_86 = arith.constant dense<0.000000e+00> : vector<8xf32>
    %120 = vector.multi_reduction <add>, %119, %cst_86 [0] : vector<8x8xf32> to vector<8xf32>
    %121 = vector.shape_cast %120 : vector<8xf32> to vector<1x8xf32>
    %c0_87 = arith.constant 0 : index
    %c0_88 = arith.constant 0 : index
    %122 = vector.load %arg9[%c0_87, %c0_88] : memref<1x8xf32, #tpu.memory_space<vmem>>, vector<1x8xf32>
    %123 = arith.addf %121, %122 : vector<1x8xf32>
    %cst_89 = arith.constant 0.000000e+00 : f32
    %124 = vector.broadcast %cst_89 : f32 to vector<1x8xf32>
    %125 = arith.maximumf %123, %124 : vector<1x8xf32>
    %c0_90 = arith.constant 0 : index
    %c0_91 = arith.constant 0 : index
    %126 = vector.load %arg8[%c0_90, %c0_91] : memref<8x8xf32, #tpu.memory_space<vmem>>, vector<8x8xf32>
    %127 = vector.broadcast %125 : vector<1x8xf32> to vector<8x8xf32>
    %128 = arith.mulf %126, %127 : vector<8x8xf32>
    %cst_92 = arith.constant dense<0.000000e+00> : vector<8xf32>
    %129 = vector.multi_reduction <add>, %128, %cst_92 [1] : vector<8x8xf32> to vector<8xf32>
    %130 = vector.shape_cast %129 : vector<8xf32> to vector<8x1xf32>
    %c0_93 = arith.constant 0 : index
    %c0_94 = arith.constant 0 : index
    %131 = vector.load %arg10[%c0_93, %c0_94] : memref<8x1xf32, #tpu.memory_space<vmem>>, vector<8x1xf32>
    %132 = arith.addf %130, %131 : vector<8x1xf32>
    %133 = arith.negf %132 : vector<8x1xf32>
    %134 = math.exp %133 : vector<8x1xf32>
    %cst_95 = arith.constant 1.000000e+00 : f32
    %135 = vector.broadcast %cst_95 : f32 to vector<8x1xf32>
    %136 = arith.addf %135, %134 : vector<8x1xf32>
    %137 = arith.divf %135, %136 : vector<8x1xf32>
    %138 = vector.broadcast %137 : vector<8x1xf32> to vector<8x256xf32>
    %139 = arith.mulf %112, %138 : vector<8x256xf32>
    %c0_96 = arith.constant 0 : index
    %c0_97 = arith.constant 0 : index
    %140 = vector.load %arg11[%c0_96, %c0_97] : memref<32x8xbf16, #tpu.memory_space<vmem>>, vector<32x8xbf16>
    %141 = arith.truncf %139 : vector<8x256xf32> to vector<8x256xbf16>
    %cst_98 = arith.constant dense<0.000000e+00> : vector<32x256xf32>
    %142 = tpu.matmul %140, %141, %cst_98 {dimension_numbers = #tpu.dot_dimension_numbers<[1], [0], [0], [1], [0, 0, 1, 1], [], []>} : vector<32x8xbf16>, vector<8x256xbf16>, vector<32x256xf32> -> vector<32x256xf32>
    %c0_99 = arith.constant 0 : index
    %c0_100 = arith.constant 0 : index
    %143 = vector.load %arg12[%c0_99, %c0_100] : memref<32x2xf32, #tpu.memory_space<vmem>>, vector<32x2xf32>
    %144 = vector.extract_strided_slice %143 {offsets = [0, 0], sizes = [32, 1], strides = [1, 1]} : vector<32x2xf32> to vector<32x1xf32>
    %145 = vector.broadcast %144 : vector<32x1xf32> to vector<32x256xf32>
    %146 = arith.mulf %142, %145 : vector<32x256xf32>
    %147 = vector.extract_strided_slice %143 {offsets = [0, 1], sizes = [32, 1], strides = [1, 1]} : vector<32x2xf32> to vector<32x1xf32>
    %148 = vector.broadcast %147 : vector<32x1xf32> to vector<32x256xf32>
    %149 = arith.addf %146, %148 : vector<32x256xf32>
    %150 = arith.addf %149, %20 : vector<32x256xf32>
    %151 = arith.negf %150 : vector<32x256xf32>
    %152 = math.exp %151 : vector<32x256xf32>
    %cst_101 = arith.constant 1.000000e+00 : f32
    %153 = vector.broadcast %cst_101 : f32 to vector<32x256xf32>
    %154 = arith.addf %153, %152 : vector<32x256xf32>
    %155 = arith.divf %153, %154 : vector<32x256xf32>
    %156 = arith.mulf %150, %155 : vector<32x256xf32>
    %c0_102 = arith.constant 0 : index
    %c0_103 = arith.constant 0 : index
    %157 = vector.load %arg13[%c0_102, %c0_103] : memref<40x32xbf16, #tpu.memory_space<vmem>>, vector<40x32xbf16>
    %158 = arith.truncf %156 : vector<32x256xf32> to vector<32x256xbf16>
    %cst_104 = arith.constant dense<0.000000e+00> : vector<40x256xf32>
    %159 = tpu.matmul %157, %158, %cst_104 {dimension_numbers = #tpu.dot_dimension_numbers<[1], [0], [0], [1], [0, 0, 1, 1], [], []>} : vector<40x32xbf16>, vector<32x256xbf16>, vector<40x256xf32> -> vector<40x256xf32>
    %c0_105 = arith.constant 0 : index
    %c0_106 = arith.constant 0 : index
    %160 = vector.load %arg14[%c0_105, %c0_106] : memref<40x2xf32, #tpu.memory_space<vmem>>, vector<40x2xf32>
    %161 = vector.extract_strided_slice %160 {offsets = [0, 0], sizes = [40, 1], strides = [1, 1]} : vector<40x2xf32> to vector<40x1xf32>
    %162 = vector.broadcast %161 : vector<40x1xf32> to vector<40x256xf32>
    %163 = arith.mulf %159, %162 : vector<40x256xf32>
    %164 = vector.extract_strided_slice %160 {offsets = [0, 1], sizes = [40, 1], strides = [1, 1]} : vector<40x2xf32> to vector<40x1xf32>
    %165 = vector.broadcast %164 : vector<40x1xf32> to vector<40x256xf32>
    %166 = arith.addf %163, %165 : vector<40x256xf32>
    %167 = vector.extract_strided_slice %166 {offsets = [0, 0], sizes = [8, 256], strides = [1, 1]} : vector<40x256xf32> to vector<8x256xf32>
    %168 = arith.negf %167 : vector<8x256xf32>
    %169 = math.exp %168 : vector<8x256xf32>
    %cst_107 = arith.constant 1.000000e+00 : f32
    %170 = vector.broadcast %cst_107 : f32 to vector<8x256xf32>
    %171 = arith.addf %170, %169 : vector<8x256xf32>
    %172 = arith.divf %170, %171 : vector<8x256xf32>
    %173 = arith.mulf %167, %172 : vector<8x256xf32>
    %174 = vector.extract_strided_slice %166 {offsets = [8, 0], sizes = [32, 256], strides = [1, 1]} : vector<40x256xf32> to vector<32x256xf32>
    %cst_108 = arith.constant 0.000000e+00 : f32
    %175 = vector.broadcast %cst_108 : f32 to vector<88x128xf32>
    %c0_109 = arith.constant 0 : index
    %c0_110 = arith.constant 0 : index
    %176 = vector.load %arg55[%c0_109, %c0_110] : memref<88x704xf32, #tpu.memory_space<vmem>>, vector<88x128xf32>
    tpu.vector_store %arg55[%c0_109, %c0_110], %175 {strides = array<i32>} : memref<88x704xf32, #tpu.memory_space<vmem>>, vector<88x128xf32>,
    %cst_111 = arith.constant 0.000000e+00 : f32
    %177 = vector.broadcast %cst_111 : f32 to vector<88x128xf32>
    %c0_112 = arith.constant 0 : index
    %c384_113 = arith.constant 384 : index
    %178 = vector.load %arg55[%c0_112, %c384_113] : memref<88x704xf32, #tpu.memory_space<vmem>>, vector<88x128xf32>
    tpu.vector_store %arg55[%c0_112, %c384_113], %177 {strides = array<i32>} : memref<88x704xf32, #tpu.memory_space<vmem>>, vector<88x128xf32>,
    %cst_114 = arith.constant 0.000000e+00 : f32
    %179 = vector.broadcast %cst_114 : f32 to vector<8x256xf32>
    %c72_115 = arith.constant 72 : index
    %c128_116 = arith.constant 128 : index
    %180 = vector.load %arg55[%c72_115, %c128_116] : memref<88x704xf32, #tpu.memory_space<vmem>>, vector<8x256xf32>
    tpu.vector_store %arg55[%c72_115, %c128_116], %179 {strides = array<i32>} : memref<88x704xf32, #tpu.memory_space<vmem>>, vector<8x256xf32>,
    %c80_117 = arith.constant 80 : index
    %c128_118 = arith.constant 128 : index
    %181 = vector.load %arg55[%c80_117, %c128_118] : memref<88x704xf32, #tpu.memory_space<vmem>>, vector<8x256xf32>
    tpu.vector_store %arg55[%c80_117, %c128_118], %173 {strides = array<i32>} : memref<88x704xf32, #tpu.memory_space<vmem>>, vector<8x256xf32>,
    %c80_119 = arith.constant 80 : index
    %c120 = arith.constant 120 : index
    %182 = vector.load %arg55[%c80_119, %c120] : memref<88x704xf32, #tpu.memory_space<vmem>>, vector<8x256xf32>
    %c8_120 = arith.constant 8 : index
    %c0_121 = arith.constant 0 : index
    %c0_122 = arith.constant 0 : index
    %183 = vector.load %arg2[%c8_120, %c0_121, %c0_122] : memref<14x8x256xf32, #tpu.memory_space<vmem>>, vector<1x8x256xf32>
    %184 = vector.shape_cast %183 : vector<1x8x256xf32> to vector<8x256xf32>
    %185 = arith.mulf %182, %184 : vector<8x256xf32>
    %c0_123 = arith.constant 0 : index
    %c128_124 = arith.constant 128 : index
    %186 = vector.load %arg55[%c0_123, %c128_124] : memref<88x704xf32, #tpu.memory_space<vmem>>, vector<8x256xf32>
    tpu.vector_store %arg55[%c0_123, %c128_124], %185 {strides = array<i32>} : memref<88x704xf32, #tpu.memory_space<vmem>>, vector<8x256xf32>,
    %c80_125 = arith.constant 80 : index
    %c122 = arith.constant 122 : index
    %187 = vector.load %arg55[%c80_125, %c122] : memref<88x704xf32, #tpu.memory_space<vmem>>, vector<8x256xf32>
    %c9 = arith.constant 9 : index
    %c0_126 = arith.constant 0 : index
    %c0_127 = arith.constant 0 : index
    %188 = vector.load %arg2[%c9, %c0_126, %c0_127] : memref<14x8x256xf32, #tpu.memory_space<vmem>>, vector<1x8x256xf32>
    %189 = vector.shape_cast %188 : vector<1x8x256xf32> to vector<8x256xf32>
    %190 = arith.mulf %187, %189 : vector<8x256xf32>
    %c8_128 = arith.constant 8 : index
    %c128_129 = arith.constant 128 : index
    %191 = vector.load %arg55[%c8_128, %c128_129] : memref<88x704xf32, #tpu.memory_space<vmem>>, vector<8x256xf32>
    tpu.vector_store %arg55[%c8_128, %c128_129], %190 {strides = array<i32>} : memref<88x704xf32, #tpu.memory_space<vmem>>, vector<8x256xf32>,
    %c80_130 = arith.constant 80 : index
    %c124_131 = arith.constant 124 : index
    %192 = vector.load %arg55[%c80_130, %c124_131] : memref<88x704xf32, #tpu.memory_space<vmem>>, vector<8x256xf32>
    %c0_132 = arith.constant 0 : index
    %c0_133 = arith.constant 0 : index
    %c0_134 = arith.constant 0 : index
    %193 = vector.load %arg2[%c0_132, %c0_133, %c0_134] : memref<14x8x256xf32, #tpu.memory_space<vmem>>, vector<1x8x256xf32>
    %194 = vector.shape_cast %193 : vector<1x8x256xf32> to vector<8x256xf32>
    %195 = arith.mulf %192, %194 : vector<8x256xf32>
    %c16_135 = arith.constant 16 : index
    %c128_136 = arith.constant 128 : index
    %196 = vector.load %arg55[%c16_135, %c128_136] : memref<88x704xf32, #tpu.memory_space<vmem>>, vector<8x256xf32>
    tpu.vector_store %arg55[%c16_135, %c128_136], %195 {strides = array<i32>} : memref<88x704xf32, #tpu.memory_space<vmem>>, vector<8x256xf32>,
    %c80_137 = arith.constant 80 : index
    %c126_138 = arith.constant 126 : index
    %197 = vector.load %arg55[%c80_137, %c126_138] : memref<88x704xf32, #tpu.memory_space<vmem>>, vector<8x256xf32>
    %c2_139 = arith.constant 2 : index
    %c0_140 = arith.constant 0 : index
    %c0_141 = arith.constant 0 : index
    %198 = vector.load %arg2[%c2_139, %c0_140, %c0_141] : memref<14x8x256xf32, #tpu.memory_space<vmem>>, vector<1x8x256xf32>
    %199 = vector.shape_cast %198 : vector<1x8x256xf32> to vector<8x256xf32>
    %200 = arith.mulf %197, %199 : vector<8x256xf32>
    %c24_142 = arith.constant 24 : index
    %c128_143 = arith.constant 128 : index
    %201 = vector.load %arg55[%c24_142, %c128_143] : memref<88x704xf32, #tpu.memory_space<vmem>>, vector<8x256xf32>
    tpu.vector_store %arg55[%c24_142, %c128_143], %200 {strides = array<i32>} : memref<88x704xf32, #tpu.memory_space<vmem>>, vector<8x256xf32>,
    %c80_144 = arith.constant 80 : index
    %c128_145 = arith.constant 128 : index
    %202 = vector.load %arg55[%c80_144, %c128_145] : memref<88x704xf32, #tpu.memory_space<vmem>>, vector<8x256xf32>
    %c32_146 = arith.constant 32 : index
    %c128_147 = arith.constant 128 : index
    %203 = vector.load %arg55[%c32_146, %c128_147] : memref<88x704xf32, #tpu.memory_space<vmem>>, vector<8x256xf32>
    tpu.vector_store %arg55[%c32_146, %c128_147], %202 {strides = array<i32>} : memref<88x704xf32, #tpu.memory_space<vmem>>, vector<8x256xf32>,
    %c80_148 = arith.constant 80 : index
    %c130_149 = arith.constant 130 : index
    %204 = vector.load %arg55[%c80_148, %c130_149] : memref<88x704xf32, #tpu.memory_space<vmem>>, vector<8x256xf32>
    %c5_150 = arith.constant 5 : index
    %c0_151 = arith.constant 0 : index
    %c0_152 = arith.constant 0 : index
    %205 = vector.load %arg2[%c5_150, %c0_151, %c0_152] : memref<14x8x256xf32, #tpu.memory_space<vmem>>, vector<1x8x256xf32>
    %206 = vector.shape_cast %205 : vector<1x8x256xf32> to vector<8x256xf32>
    %207 = arith.mulf %204, %206 : vector<8x256xf32>
    %c40_153 = arith.constant 40 : index
    %c128_154 = arith.constant 128 : index
    %208 = vector.load %arg55[%c40_153, %c128_154] : memref<88x704xf32, #tpu.memory_space<vmem>>, vector<8x256xf32>
    tpu.vector_store %arg55[%c40_153, %c128_154], %207 {strides = array<i32>} : memref<88x704xf32, #tpu.memory_space<vmem>>, vector<8x256xf32>,
    %c80_155 = arith.constant 80 : index
    %c132_156 = arith.constant 132 : index
    %209 = vector.load %arg55[%c80_155, %c132_156] : memref<88x704xf32, #tpu.memory_space<vmem>>, vector<8x256xf32>
    %c7_157 = arith.constant 7 : index
    %c0_158 = arith.constant 0 : index
    %c0_159 = arith.constant 0 : index
    %210 = vector.load %arg2[%c7_157, %c0_158, %c0_159] : memref<14x8x256xf32, #tpu.memory_space<vmem>>, vector<1x8x256xf32>
    %211 = vector.shape_cast %210 : vector<1x8x256xf32> to vector<8x256xf32>
    %212 = arith.mulf %209, %211 : vector<8x256xf32>
    %c48_160 = arith.constant 48 : index
    %c128_161 = arith.constant 128 : index
    %213 = vector.load %arg55[%c48_160, %c128_161] : memref<88x704xf32, #tpu.memory_space<vmem>>, vector<8x256xf32>
    tpu.vector_store %arg55[%c48_160, %c128_161], %212 {strides = array<i32>} : memref<88x704xf32, #tpu.memory_space<vmem>>, vector<8x256xf32>,
    %c80_162 = arith.constant 80 : index
    %c134 = arith.constant 134 : index
    %214 = vector.load %arg55[%c80_162, %c134] : memref<88x704xf32, #tpu.memory_space<vmem>>, vector<8x256xf32>
    %c10 = arith.constant 10 : index
    %c0_163 = arith.constant 0 : index
    %c0_164 = arith.constant 0 : index
    %215 = vector.load %arg2[%c10, %c0_163, %c0_164] : memref<14x8x256xf32, #tpu.memory_space<vmem>>, vector<1x8x256xf32>
    %216 = vector.shape_cast %215 : vector<1x8x256xf32> to vector<8x256xf32>
    %217 = arith.mulf %214, %216 : vector<8x256xf32>
    %c56_165 = arith.constant 56 : index
    %c128_166 = arith.constant 128 : index
    %218 = vector.load %arg55[%c56_165, %c128_166] : memref<88x704xf32, #tpu.memory_space<vmem>>, vector<8x256xf32>
    tpu.vector_store %arg55[%c56_165, %c128_166], %217 {strides = array<i32>} : memref<88x704xf32, #tpu.memory_space<vmem>>, vector<8x256xf32>,
    %c80_167 = arith.constant 80 : index
    %c136 = arith.constant 136 : index
    %219 = vector.load %arg55[%c80_167, %c136] : memref<88x704xf32, #tpu.memory_space<vmem>>, vector<8x256xf32>
    %c11 = arith.constant 11 : index
    %c0_168 = arith.constant 0 : index
    %c0_169 = arith.constant 0 : index
    %220 = vector.load %arg2[%c11, %c0_168, %c0_169] : memref<14x8x256xf32, #tpu.memory_space<vmem>>, vector<1x8x256xf32>
    %221 = vector.shape_cast %220 : vector<1x8x256xf32> to vector<8x256xf32>
    %222 = arith.mulf %219, %221 : vector<8x256xf32>
    %c64_170 = arith.constant 64 : index
    %c128_171 = arith.constant 128 : index
    %223 = vector.load %arg55[%c64_170, %c128_171] : memref<88x704xf32, #tpu.memory_space<vmem>>, vector<8x256xf32>
    tpu.vector_store %arg55[%c64_170, %c128_171], %222 {strides = array<i32>} : memref<88x704xf32, #tpu.memory_space<vmem>>, vector<8x256xf32>,
    %c0_172 = arith.constant 0 : index
    %c0_173 = arith.constant 0 : index
    %224 = vector.load %arg55[%c0_172, %c0_173] : memref<88x704xf32, #tpu.memory_space<vmem>>, vector<80x256xf32>
    %225 = arith.truncf %224 : vector<80x256xf32> to vector<80x256xbf16>
    %c0_174 = arith.constant 0 : index
    %c0_175 = arith.constant 0 : index
    %226 = vector.load %arg56[%c0_174, %c0_175] : memref<720x256xbf16, #tpu.memory_space<vmem>>, vector<80x256xbf16>
    tpu.vector_store %arg56[%c0_174, %c0_175], %225 {strides = array<i32>} : memref<720x256xbf16, #tpu.memory_space<vmem>>, vector<80x256xbf16>,
    %c0_176 = arith.constant 0 : index
    %c32_177 = arith.constant 32 : index
    %227 = vector.load %arg55[%c0_176, %c32_177] : memref<88x704xf32, #tpu.memory_space<vmem>>, vector<80x256xf32>
    %228 = arith.truncf %227 : vector<80x256xf32> to vector<80x256xbf16>
    %c80_178 = arith.constant 80 : index
    %c0_179 = arith.constant 0 : index
    %229 = vector.load %arg56[%c80_178, %c0_179] : memref<720x256xbf16, #tpu.memory_space<vmem>>, vector<80x256xbf16>
    tpu.vector_store %arg56[%c80_178, %c0_179], %228 {strides = array<i32>} : memref<720x256xbf16, #tpu.memory_space<vmem>>, vector<80x256xbf16>,
    %c0_180 = arith.constant 0 : index
    %c64_181 = arith.constant 64 : index
    %230 = vector.load %arg55[%c0_180, %c64_181] : memref<88x704xf32, #tpu.memory_space<vmem>>, vector<80x256xf32>
    %231 = arith.truncf %230 : vector<80x256xf32> to vector<80x256xbf16>
    %c160_182 = arith.constant 160 : index
    %c0_183 = arith.constant 0 : index
    %232 = vector.load %arg56[%c160_182, %c0_183] : memref<720x256xbf16, #tpu.memory_space<vmem>>, vector<80x256xbf16>
    tpu.vector_store %arg56[%c160_182, %c0_183], %231 {strides = array<i32>} : memref<720x256xbf16, #tpu.memory_space<vmem>>, vector<80x256xbf16>,
    %c0_184 = arith.constant 0 : index
    %c96_185 = arith.constant 96 : index
    %233 = vector.load %arg55[%c0_184, %c96_185] : memref<88x704xf32, #tpu.memory_space<vmem>>, vector<80x256xf32>
    %234 = arith.truncf %233 : vector<80x256xf32> to vector<80x256xbf16>
    %c240_186 = arith.constant 240 : index
    %c0_187 = arith.constant 0 : index
    %235 = vector.load %arg56[%c240_186, %c0_187] : memref<720x256xbf16, #tpu.memory_space<vmem>>, vector<80x256xbf16>
    tpu.vector_store %arg56[%c240_186, %c0_187], %234 {strides = array<i32>} : memref<720x256xbf16, #tpu.memory_space<vmem>>, vector<80x256xbf16>,
    %c0_188 = arith.constant 0 : index
    %c128_189 = arith.constant 128 : index
    %236 = vector.load %arg55[%c0_188, %c128_189] : memref<88x704xf32, #tpu.memory_space<vmem>>, vector<80x256xf32>
    %237 = arith.truncf %236 : vector<80x256xf32> to vector<80x256xbf16>
    %c320_190 = arith.constant 320 : index
    %c0_191 = arith.constant 0 : index
    %238 = vector.load %arg56[%c320_190, %c0_191] : memref<720x256xbf16, #tpu.memory_space<vmem>>, vector<80x256xbf16>
    tpu.vector_store %arg56[%c320_190, %c0_191], %237 {strides = array<i32>} : memref<720x256xbf16, #tpu.memory_space<vmem>>, vector<80x256xbf16>,
    %c0_192 = arith.constant 0 : index
    %c160_193 = arith.constant 160 : index
    %239 = vector.load %arg55[%c0_192, %c160_193] : memref<88x704xf32, #tpu.memory_space<vmem>>, vector<80x256xf32>
    %240 = arith.truncf %239 : vector<80x256xf32> to vector<80x256xbf16>
    %c400_194 = arith.constant 400 : index
    %c0_195 = arith.constant 0 : index
    %241 = vector.load %arg56[%c400_194, %c0_195] : memref<720x256xbf16, #tpu.memory_space<vmem>>, vector<80x256xbf16>
    tpu.vector_store %arg56[%c400_194, %c0_195], %240 {strides = array<i32>} : memref<720x256xbf16, #tpu.memory_space<vmem>>, vector<80x256xbf16>,
    %c0_196 = arith.constant 0 : index
    %c192_197 = arith.constant 192 : index
    %242 = vector.load %arg55[%c0_196, %c192_197] : memref<88x704xf32, #tpu.memory_space<vmem>>, vector<80x256xf32>
    %243 = arith.truncf %242 : vector<80x256xf32> to vector<80x256xbf16>
    %c480_198 = arith.constant 480 : index
    %c0_199 = arith.constant 0 : index
    %244 = vector.load %arg56[%c480_198, %c0_199] : memref<720x256xbf16, #tpu.memory_space<vmem>>, vector<80x256xbf16>
    tpu.vector_store %arg56[%c480_198, %c0_199], %243 {strides = array<i32>} : memref<720x256xbf16, #tpu.memory_space<vmem>>, vector<80x256xbf16>,
    %c0_200 = arith.constant 0 : index
    %c224 = arith.constant 224 : index
    %245 = vector.load %arg55[%c0_200, %c224] : memref<88x704xf32, #tpu.memory_space<vmem>>, vector<80x256xf32>
    %246 = arith.truncf %245 : vector<80x256xf32> to vector<80x256xbf16>
    %c560_201 = arith.constant 560 : index
    %c0_202 = arith.constant 0 : index
    %247 = vector.load %arg56[%c560_201, %c0_202] : memref<720x256xbf16, #tpu.memory_space<vmem>>, vector<80x256xbf16>
    tpu.vector_store %arg56[%c560_201, %c0_202], %246 {strides = array<i32>} : memref<720x256xbf16, #tpu.memory_space<vmem>>, vector<80x256xbf16>,
    %c0_203 = arith.constant 0 : index
    %c256 = arith.constant 256 : index
    %248 = vector.load %arg55[%c0_203, %c256] : memref<88x704xf32, #tpu.memory_space<vmem>>, vector<80x256xf32>
    %249 = arith.truncf %248 : vector<80x256xf32> to vector<80x256xbf16>
    %c640_204 = arith.constant 640 : index
    %c0_205 = arith.constant 0 : index
    %250 = vector.load %arg56[%c640_204, %c0_205] : memref<720x256xbf16, #tpu.memory_space<vmem>>, vector<80x256xbf16>
    tpu.vector_store %arg56[%c640_204, %c0_205], %249 {strides = array<i32>} : memref<720x256xbf16, #tpu.memory_space<vmem>>, vector<80x256xbf16>,
    %c0_206 = arith.constant 0 : index
    %c0_207 = arith.constant 0 : index
    %251 = vector.load %arg15[%c0_206, %c0_207] : memref<8x720xbf16, #tpu.memory_space<vmem>>, vector<8x720xbf16>
    %c0_208 = arith.constant 0 : index
    %c0_209 = arith.constant 0 : index
    %252 = vector.load %arg56[%c0_208, %c0_209] : memref<720x256xbf16, #tpu.memory_space<vmem>>, vector<720x256xbf16>
    %cst_210 = arith.constant dense<0.000000e+00> : vector<8x256xf32>
    %253 = tpu.matmul %251, %252, %cst_210 {dimension_numbers = #tpu.dot_dimension_numbers<[1], [0], [0], [1], [0, 0, 1, 1], [], []>} : vector<8x720xbf16>, vector<720x256xbf16>, vector<8x256xf32> -> vector<8x256xf32>
    %c0_211 = arith.constant 0 : index
    %c0_212 = arith.constant 0 : index
    %254 = vector.load %arg16[%c0_211, %c0_212] : memref<8x2xf32, #tpu.memory_space<vmem>>, vector<8x2xf32>
    %255 = vector.extract_strided_slice %254 {offsets = [0, 0], sizes = [8, 1], strides = [1, 1]} : vector<8x2xf32> to vector<8x1xf32>
    %256 = vector.broadcast %255 : vector<8x1xf32> to vector<8x256xf32>
    %257 = arith.mulf %253, %256 : vector<8x256xf32>
    %258 = vector.extract_strided_slice %254 {offsets = [0, 1], sizes = [8, 1], strides = [1, 1]} : vector<8x2xf32> to vector<8x1xf32>
    %259 = vector.broadcast %258 : vector<8x1xf32> to vector<8x256xf32>
    %260 = arith.addf %257, %259 : vector<8x256xf32>
    %261 = arith.negf %260 : vector<8x256xf32>
    %262 = math.exp %261 : vector<8x256xf32>
    %cst_213 = arith.constant 1.000000e+00 : f32
    %263 = vector.broadcast %cst_213 : f32 to vector<8x256xf32>
    %264 = arith.addf %263, %262 : vector<8x256xf32>
    %265 = arith.divf %263, %264 : vector<8x256xf32>
    %266 = arith.mulf %260, %265 : vector<8x256xf32>
    %cst_214 = arith.constant dense<0.000000e+00> : vector<8xf32>
    %267 = vector.multi_reduction <add>, %266, %cst_214 [1] : vector<8x256xf32> to vector<8xf32>
    %268 = vector.shape_cast %267 : vector<8xf32> to vector<8x1xf32>
    %cst_215 = arith.constant 2.560000e+02 : f32
    %269 = vector.broadcast %cst_215 : f32 to vector<8x1xf32>
    %270 = arith.divf %268, %269 : vector<8x1xf32>
    %c0_216 = arith.constant 0 : index
    %c0_217 = arith.constant 0 : index
    %271 = vector.load %arg17[%c0_216, %c0_217] : memref<8x8xf32, #tpu.memory_space<vmem>>, vector<8x8xf32>
    %272 = vector.broadcast %270 : vector<8x1xf32> to vector<8x8xf32>
    %273 = arith.mulf %271, %272 : vector<8x8xf32>
    %cst_218 = arith.constant dense<0.000000e+00> : vector<8xf32>
    %274 = vector.multi_reduction <add>, %273, %cst_218 [0] : vector<8x8xf32> to vector<8xf32>
    %275 = vector.shape_cast %274 : vector<8xf32> to vector<1x8xf32>
    %c0_219 = arith.constant 0 : index
    %c0_220 = arith.constant 0 : index
    %276 = vector.load %arg19[%c0_219, %c0_220] : memref<1x8xf32, #tpu.memory_space<vmem>>, vector<1x8xf32>
    %277 = arith.addf %275, %276 : vector<1x8xf32>
    %cst_221 = arith.constant 0.000000e+00 : f32
    %278 = vector.broadcast %cst_221 : f32 to vector<1x8xf32>
    %279 = arith.maximumf %277, %278 : vector<1x8xf32>
    %c0_222 = arith.constant 0 : index
    %c0_223 = arith.constant 0 : index
    %280 = vector.load %arg18[%c0_222, %c0_223] : memref<8x8xf32, #tpu.memory_space<vmem>>, vector<8x8xf32>
    %281 = vector.broadcast %279 : vector<1x8xf32> to vector<8x8xf32>
    %282 = arith.mulf %280, %281 : vector<8x8xf32>
    %cst_224 = arith.constant dense<0.000000e+00> : vector<8xf32>
    %283 = vector.multi_reduction <add>, %282, %cst_224 [1] : vector<8x8xf32> to vector<8xf32>
    %284 = vector.shape_cast %283 : vector<8xf32> to vector<8x1xf32>
    %c0_225 = arith.constant 0 : index
    %c0_226 = arith.constant 0 : index
    %285 = vector.load %arg20[%c0_225, %c0_226] : memref<8x1xf32, #tpu.memory_space<vmem>>, vector<8x1xf32>
    %286 = arith.addf %284, %285 : vector<8x1xf32>
    %287 = arith.negf %286 : vector<8x1xf32>
    %288 = math.exp %287 : vector<8x1xf32>
    %cst_227 = arith.constant 1.000000e+00 : f32
    %289 = vector.broadcast %cst_227 : f32 to vector<8x1xf32>
    %290 = arith.addf %289, %288 : vector<8x1xf32>
    %291 = arith.divf %289, %290 : vector<8x1xf32>
    %292 = vector.broadcast %291 : vector<8x1xf32> to vector<8x256xf32>
    %293 = arith.mulf %266, %292 : vector<8x256xf32>
    %c0_228 = arith.constant 0 : index
    %c0_229 = arith.constant 0 : index
    %294 = vector.load %arg21[%c0_228, %c0_229] : memref<32x8xbf16, #tpu.memory_space<vmem>>, vector<32x8xbf16>
    %295 = arith.truncf %293 : vector<8x256xf32> to vector<8x256xbf16>
    %cst_230 = arith.constant dense<0.000000e+00> : vector<32x256xf32>
    %296 = tpu.matmul %294, %295, %cst_230 {dimension_numbers = #tpu.dot_dimension_numbers<[1], [0], [0], [1], [0, 0, 1, 1], [], []>} : vector<32x8xbf16>, vector<8x256xbf16>, vector<32x256xf32> -> vector<32x256xf32>
    %c0_231 = arith.constant 0 : index
    %c0_232 = arith.constant 0 : index
    %297 = vector.load %arg22[%c0_231, %c0_232] : memref<32x2xf32, #tpu.memory_space<vmem>>, vector<32x2xf32>
    %298 = vector.extract_strided_slice %297 {offsets = [0, 0], sizes = [32, 1], strides = [1, 1]} : vector<32x2xf32> to vector<32x1xf32>
    %299 = vector.broadcast %298 : vector<32x1xf32> to vector<32x256xf32>
    %300 = arith.mulf %296, %299 : vector<32x256xf32>
    %301 = vector.extract_strided_slice %297 {offsets = [0, 1], sizes = [32, 1], strides = [1, 1]} : vector<32x2xf32> to vector<32x1xf32>
    %302 = vector.broadcast %301 : vector<32x1xf32> to vector<32x256xf32>
    %303 = arith.addf %300, %302 : vector<32x256xf32>
    %304 = arith.addf %303, %174 : vector<32x256xf32>
    %305 = arith.negf %304 : vector<32x256xf32>
    %306 = math.exp %305 : vector<32x256xf32>
    %cst_233 = arith.constant 1.000000e+00 : f32
    %307 = vector.broadcast %cst_233 : f32 to vector<32x256xf32>
    %308 = arith.addf %307, %306 : vector<32x256xf32>
    %309 = arith.divf %307, %308 : vector<32x256xf32>
    %310 = arith.mulf %304, %309 : vector<32x256xf32>
    %c0_234 = arith.constant 0 : index
    %c0_235 = arith.constant 0 : index
    %311 = vector.load %arg23[%c0_234, %c0_235] : memref<40x32xbf16, #tpu.memory_space<vmem>>, vector<40x32xbf16>
    %312 = arith.truncf %310 : vector<32x256xf32> to vector<32x256xbf16>
    %cst_236 = arith.constant dense<0.000000e+00> : vector<40x256xf32>
    %313 = tpu.matmul %311, %312, %cst_236 {dimension_numbers = #tpu.dot_dimension_numbers<[1], [0], [0], [1], [0, 0, 1, 1], [], []>} : vector<40x32xbf16>, vector<32x256xbf16>, vector<40x256xf32> -> vector<40x256xf32>
    %c0_237 = arith.constant 0 : index
    %c0_238 = arith.constant 0 : index
    %314 = vector.load %arg24[%c0_237, %c0_238] : memref<40x2xf32, #tpu.memory_space<vmem>>, vector<40x2xf32>
    %315 = vector.extract_strided_slice %314 {offsets = [0, 0], sizes = [40, 1], strides = [1, 1]} : vector<40x2xf32> to vector<40x1xf32>
    %316 = vector.broadcast %315 : vector<40x1xf32> to vector<40x256xf32>
    %317 = arith.mulf %313, %316 : vector<40x256xf32>
    %318 = vector.extract_strided_slice %314 {offsets = [0, 1], sizes = [40, 1], strides = [1, 1]} : vector<40x2xf32> to vector<40x1xf32>
    %319 = vector.broadcast %318 : vector<40x1xf32> to vector<40x256xf32>
    %320 = arith.addf %317, %319 : vector<40x256xf32>
    %321 = vector.extract_strided_slice %320 {offsets = [0, 0], sizes = [8, 256], strides = [1, 1]} : vector<40x256xf32> to vector<8x256xf32>
    %322 = arith.negf %321 : vector<8x256xf32>
    %323 = math.exp %322 : vector<8x256xf32>
    %cst_239 = arith.constant 1.000000e+00 : f32
    %324 = vector.broadcast %cst_239 : f32 to vector<8x256xf32>
    %325 = arith.addf %324, %323 : vector<8x256xf32>
    %326 = arith.divf %324, %325 : vector<8x256xf32>
    %327 = arith.mulf %321, %326 : vector<8x256xf32>
    %328 = vector.extract_strided_slice %320 {offsets = [8, 0], sizes = [32, 256], strides = [1, 1]} : vector<40x256xf32> to vector<32x256xf32>
    %cst_240 = arith.constant 0.000000e+00 : f32
    %329 = vector.broadcast %cst_240 : f32 to vector<72x256xf32>
    %c0_241 = arith.constant 0 : index
    %c0_242 = arith.constant 0 : index
    %330 = vector.load %arg55[%c0_241, %c0_242] : memref<88x704xf32, #tpu.memory_space<vmem>>, vector<72x256xf32>
    tpu.vector_store %arg55[%c0_241, %c0_242], %329 {strides = array<i32>} : memref<88x704xf32, #tpu.memory_space<vmem>>, vector<72x256xf32>,
    %cst_243 = arith.constant 0.000000e+00 : f32
    %331 = vector.broadcast %cst_243 : f32 to vector<72x192xf32>
    %c0_244 = arith.constant 0 : index
    %c512 = arith.constant 512 : index
    %332 = vector.load %arg55[%c0_244, %c512] : memref<88x704xf32, #tpu.memory_space<vmem>>, vector<72x192xf32>
    tpu.vector_store %arg55[%c0_244, %c512], %331 {strides = array<i32>} : memref<88x704xf32, #tpu.memory_space<vmem>>, vector<72x192xf32>,
    %cst_245 = arith.constant 0.000000e+00 : f32
    %333 = vector.broadcast %cst_245 : f32 to vector<8x256xf32>
    %c56_246 = arith.constant 56 : index
    %c256_247 = arith.constant 256 : index
    %334 = vector.load %arg55[%c56_246, %c256_247] : memref<88x704xf32, #tpu.memory_space<vmem>>, vector<8x256xf32>
    tpu.vector_store %arg55[%c56_246, %c256_247], %333 {strides = array<i32>} : memref<88x704xf32, #tpu.memory_space<vmem>>, vector<8x256xf32>,
    %c64_248 = arith.constant 64 : index
    %c256_249 = arith.constant 256 : index
    %335 = vector.load %arg55[%c64_248, %c256_249] : memref<88x704xf32, #tpu.memory_space<vmem>>, vector<8x256xf32>
    tpu.vector_store %arg55[%c64_248, %c256_249], %327 {strides = array<i32>} : memref<88x704xf32, #tpu.memory_space<vmem>>, vector<8x256xf32>,
    %c64_250 = arith.constant 64 : index
    %c244 = arith.constant 244 : index
    %336 = vector.load %arg55[%c64_250, %c244] : memref<88x704xf32, #tpu.memory_space<vmem>>, vector<8x256xf32>
    %c12 = arith.constant 12 : index
    %c0_251 = arith.constant 0 : index
    %c0_252 = arith.constant 0 : index
    %337 = vector.load %arg2[%c12, %c0_251, %c0_252] : memref<14x8x256xf32, #tpu.memory_space<vmem>>, vector<1x8x256xf32>
    %338 = vector.shape_cast %337 : vector<1x8x256xf32> to vector<8x256xf32>
    %339 = arith.mulf %336, %338 : vector<8x256xf32>
    %c0_253 = arith.constant 0 : index
    %c256_254 = arith.constant 256 : index
    %340 = vector.load %arg55[%c0_253, %c256_254] : memref<88x704xf32, #tpu.memory_space<vmem>>, vector<8x256xf32>
    tpu.vector_store %arg55[%c0_253, %c256_254], %339 {strides = array<i32>} : memref<88x704xf32, #tpu.memory_space<vmem>>, vector<8x256xf32>,
    %c64_255 = arith.constant 64 : index
    %c248 = arith.constant 248 : index
    %341 = vector.load %arg55[%c64_255, %c248] : memref<88x704xf32, #tpu.memory_space<vmem>>, vector<8x256xf32>
    %c8_256 = arith.constant 8 : index
    %c0_257 = arith.constant 0 : index
    %c0_258 = arith.constant 0 : index
    %342 = vector.load %arg2[%c8_256, %c0_257, %c0_258] : memref<14x8x256xf32, #tpu.memory_space<vmem>>, vector<1x8x256xf32>
    %343 = vector.shape_cast %342 : vector<1x8x256xf32> to vector<8x256xf32>
    %344 = arith.mulf %341, %343 : vector<8x256xf32>
    %c8_259 = arith.constant 8 : index
    %c256_260 = arith.constant 256 : index
    %345 = vector.load %arg55[%c8_259, %c256_260] : memref<88x704xf32, #tpu.memory_space<vmem>>, vector<8x256xf32>
    tpu.vector_store %arg55[%c8_259, %c256_260], %344 {strides = array<i32>} : memref<88x704xf32, #tpu.memory_space<vmem>>, vector<8x256xf32>,
    %c64_261 = arith.constant 64 : index
    %c252 = arith.constant 252 : index
    %346 = vector.load %arg55[%c64_261, %c252] : memref<88x704xf32, #tpu.memory_space<vmem>>, vector<8x256xf32>
    %c0_262 = arith.constant 0 : index
    %c0_263 = arith.constant 0 : index
    %c0_264 = arith.constant 0 : index
    %347 = vector.load %arg2[%c0_262, %c0_263, %c0_264] : memref<14x8x256xf32, #tpu.memory_space<vmem>>, vector<1x8x256xf32>
    %348 = vector.shape_cast %347 : vector<1x8x256xf32> to vector<8x256xf32>
    %349 = arith.mulf %346, %348 : vector<8x256xf32>
    %c16_265 = arith.constant 16 : index
    %c256_266 = arith.constant 256 : index
    %350 = vector.load %arg55[%c16_265, %c256_266] : memref<88x704xf32, #tpu.memory_space<vmem>>, vector<8x256xf32>
    tpu.vector_store %arg55[%c16_265, %c256_266], %349 {strides = array<i32>} : memref<88x704xf32, #tpu.memory_space<vmem>>, vector<8x256xf32>,
    %c64_267 = arith.constant 64 : index
    %c256_268 = arith.constant 256 : index
    %351 = vector.load %arg55[%c64_267, %c256_268] : memref<88x704xf32, #tpu.memory_space<vmem>>, vector<8x256xf32>
    %c24_269 = arith.constant 24 : index
    %c256_270 = arith.constant 256 : index
    %352 = vector.load %arg55[%c24_269, %c256_270] : memref<88x704xf32, #tpu.memory_space<vmem>>, vector<8x256xf32>
    tpu.vector_store %arg55[%c24_269, %c256_270], %351 {strides = array<i32>} : memref<88x704xf32, #tpu.memory_space<vmem>>, vector<8x256xf32>,
    %c64_271 = arith.constant 64 : index
    %c260 = arith.constant 260 : index
    %353 = vector.load %arg55[%c64_271, %c260] : memref<88x704xf32, #tpu.memory_space<vmem>>, vector<8x256xf32>
    %c7_272 = arith.constant 7 : index
    %c0_273 = arith.constant 0 : index
    %c0_274 = arith.constant 0 : index
    %354 = vector.load %arg2[%c7_272, %c0_273, %c0_274] : memref<14x8x256xf32, #tpu.memory_space<vmem>>, vector<1x8x256xf32>
    %355 = vector.shape_cast %354 : vector<1x8x256xf32> to vector<8x256xf32>
    %356 = arith.mulf %353, %355 : vector<8x256xf32>
    %c32_275 = arith.constant 32 : index
    %c256_276 = arith.constant 256 : index
    %357 = vector.load %arg55[%c32_275, %c256_276] : memref<88x704xf32, #tpu.memory_space<vmem>>, vector<8x256xf32>
    tpu.vector_store %arg55[%c32_275, %c256_276], %356 {strides = array<i32>} : memref<88x704xf32, #tpu.memory_space<vmem>>, vector<8x256xf32>,
    %c64_277 = arith.constant 64 : index
    %c264 = arith.constant 264 : index
    %358 = vector.load %arg55[%c64_277, %c264] : memref<88x704xf32, #tpu.memory_space<vmem>>, vector<8x256xf32>
    %c11_278 = arith.constant 11 : index
    %c0_279 = arith.constant 0 : index
    %c0_280 = arith.constant 0 : index
    %359 = vector.load %arg2[%c11_278, %c0_279, %c0_280] : memref<14x8x256xf32, #tpu.memory_space<vmem>>, vector<1x8x256xf32>
    %360 = vector.shape_cast %359 : vector<1x8x256xf32> to vector<8x256xf32>
    %361 = arith.mulf %358, %360 : vector<8x256xf32>
    %c40_281 = arith.constant 40 : index
    %c256_282 = arith.constant 256 : index
    %362 = vector.load %arg55[%c40_281, %c256_282] : memref<88x704xf32, #tpu.memory_space<vmem>>, vector<8x256xf32>
    tpu.vector_store %arg55[%c40_281, %c256_282], %361 {strides = array<i32>} : memref<88x704xf32, #tpu.memory_space<vmem>>, vector<8x256xf32>,
    %c64_283 = arith.constant 64 : index
    %c268 = arith.constant 268 : index
    %363 = vector.load %arg55[%c64_283, %c268] : memref<88x704xf32, #tpu.memory_space<vmem>>, vector<8x256xf32>
    %c13 = arith.constant 13 : index
    %c0_284 = arith.constant 0 : index
    %c0_285 = arith.constant 0 : index
    %364 = vector.load %arg2[%c13, %c0_284, %c0_285] : memref<14x8x256xf32, #tpu.memory_space<vmem>>, vector<1x8x256xf32>
    %365 = vector.shape_cast %364 : vector<1x8x256xf32> to vector<8x256xf32>
    %366 = arith.mulf %363, %365 : vector<8x256xf32>
    %c48_286 = arith.constant 48 : index
    %c256_287 = arith.constant 256 : index
    %367 = vector.load %arg55[%c48_286, %c256_287] : memref<88x704xf32, #tpu.memory_space<vmem>>, vector<8x256xf32>
    tpu.vector_store %arg55[%c48_286, %c256_287], %366 {strides = array<i32>} : memref<88x704xf32, #tpu.memory_space<vmem>>, vector<8x256xf32>,
    %c0_288 = arith.constant 0 : index
    %c64_289 = arith.constant 64 : index
    %368 = vector.load %arg55[%c0_288, %c64_289] : memref<88x704xf32, #tpu.memory_space<vmem>>, vector<64x256xf32>
    %369 = arith.truncf %368 : vector<64x256xf32> to vector<64x256xbf16>
    %c0_290 = arith.constant 0 : index
    %c0_291 = arith.constant 0 : index
    %370 = vector.load %arg56[%c0_290, %c0_291] : memref<720x256xbf16, #tpu.memory_space<vmem>>, vector<64x256xbf16>
    tpu.vector_store %arg56[%c0_290, %c0_291], %369 {strides = array<i32>} : memref<720x256xbf16, #tpu.memory_space<vmem>>, vector<64x256xbf16>,
    %c0_292 = arith.constant 0 : index
    %c128_293 = arith.constant 128 : index
    %371 = vector.load %arg55[%c0_292, %c128_293] : memref<88x704xf32, #tpu.memory_space<vmem>>, vector<64x256xf32>
    %372 = arith.truncf %371 : vector<64x256xf32> to vector<64x256xbf16>
    %c64_294 = arith.constant 64 : index
    %c0_295 = arith.constant 0 : index
    %373 = vector.load %arg56[%c64_294, %c0_295] : memref<720x256xbf16, #tpu.memory_space<vmem>>, vector<64x256xbf16>
    tpu.vector_store %arg56[%c64_294, %c0_295], %372 {strides = array<i32>} : memref<720x256xbf16, #tpu.memory_space<vmem>>, vector<64x256xbf16>,
    %c0_296 = arith.constant 0 : index
    %c192_297 = arith.constant 192 : index
    %374 = vector.load %arg55[%c0_296, %c192_297] : memref<88x704xf32, #tpu.memory_space<vmem>>, vector<64x256xf32>
    %375 = arith.truncf %374 : vector<64x256xf32> to vector<64x256xbf16>
    %c128_298 = arith.constant 128 : index
    %c0_299 = arith.constant 0 : index
    %376 = vector.load %arg56[%c128_298, %c0_299] : memref<720x256xbf16, #tpu.memory_space<vmem>>, vector<64x256xbf16>
    tpu.vector_store %arg56[%c128_298, %c0_299], %375 {strides = array<i32>} : memref<720x256xbf16, #tpu.memory_space<vmem>>, vector<64x256xbf16>,
    %c0_300 = arith.constant 0 : index
    %c256_301 = arith.constant 256 : index
    %377 = vector.load %arg55[%c0_300, %c256_301] : memref<88x704xf32, #tpu.memory_space<vmem>>, vector<64x256xf32>
    %378 = arith.truncf %377 : vector<64x256xf32> to vector<64x256xbf16>
    %c192_302 = arith.constant 192 : index
    %c0_303 = arith.constant 0 : index
    %379 = vector.load %arg56[%c192_302, %c0_303] : memref<720x256xbf16, #tpu.memory_space<vmem>>, vector<64x256xbf16>
    tpu.vector_store %arg56[%c192_302, %c0_303], %378 {strides = array<i32>} : memref<720x256xbf16, #tpu.memory_space<vmem>>, vector<64x256xbf16>,
    %c0_304 = arith.constant 0 : index
    %c320_305 = arith.constant 320 : index
    %380 = vector.load %arg55[%c0_304, %c320_305] : memref<88x704xf32, #tpu.memory_space<vmem>>, vector<64x256xf32>
    %381 = arith.truncf %380 : vector<64x256xf32> to vector<64x256xbf16>
    %c256_306 = arith.constant 256 : index
    %c0_307 = arith.constant 0 : index
    %382 = vector.load %arg56[%c256_306, %c0_307] : memref<720x256xbf16, #tpu.memory_space<vmem>>, vector<64x256xbf16>
    tpu.vector_store %arg56[%c256_306, %c0_307], %381 {strides = array<i32>} : memref<720x256xbf16, #tpu.memory_space<vmem>>, vector<64x256xbf16>,
    %c0_308 = arith.constant 0 : index
    %c384_309 = arith.constant 384 : index
    %383 = vector.load %arg55[%c0_308, %c384_309] : memref<88x704xf32, #tpu.memory_space<vmem>>, vector<64x256xf32>
    %384 = arith.truncf %383 : vector<64x256xf32> to vector<64x256xbf16>
    %c320_310 = arith.constant 320 : index
    %c0_311 = arith.constant 0 : index
    %385 = vector.load %arg56[%c320_310, %c0_311] : memref<720x256xbf16, #tpu.memory_space<vmem>>, vector<64x256xbf16>
    tpu.vector_store %arg56[%c320_310, %c0_311], %384 {strides = array<i32>} : memref<720x256xbf16, #tpu.memory_space<vmem>>, vector<64x256xbf16>,
    %c0_312 = arith.constant 0 : index
    %c448 = arith.constant 448 : index
    %386 = vector.load %arg55[%c0_312, %c448] : memref<88x704xf32, #tpu.memory_space<vmem>>, vector<64x256xf32>
    %387 = arith.truncf %386 : vector<64x256xf32> to vector<64x256xbf16>
    %c384_313 = arith.constant 384 : index
    %c0_314 = arith.constant 0 : index
    %388 = vector.load %arg56[%c384_313, %c0_314] : memref<720x256xbf16, #tpu.memory_space<vmem>>, vector<64x256xbf16>
    tpu.vector_store %arg56[%c384_313, %c0_314], %387 {strides = array<i32>} : memref<720x256xbf16, #tpu.memory_space<vmem>>, vector<64x256xbf16>,
    %c0_315 = arith.constant 0 : index
    %c0_316 = arith.constant 0 : index
    %389 = vector.load %arg25[%c0_315, %c0_316] : memref<8x448xbf16, #tpu.memory_space<vmem>>, vector<8x448xbf16>
    %c0_317 = arith.constant 0 : index
    %c0_318 = arith.constant 0 : index
    %390 = vector.load %arg56[%c0_317, %c0_318] : memref<720x256xbf16, #tpu.memory_space<vmem>>, vector<448x256xbf16>
    %cst_319 = arith.constant dense<0.000000e+00> : vector<8x256xf32>
    %391 = tpu.matmul %389, %390, %cst_319 {dimension_numbers = #tpu.dot_dimension_numbers<[1], [0], [0], [1], [0, 0, 1, 1], [], []>} : vector<8x448xbf16>, vector<448x256xbf16>, vector<8x256xf32> -> vector<8x256xf32>
    %c0_320 = arith.constant 0 : index
    %c0_321 = arith.constant 0 : index
    %392 = vector.load %arg26[%c0_320, %c0_321] : memref<8x2xf32, #tpu.memory_space<vmem>>, vector<8x2xf32>
    %393 = vector.extract_strided_slice %392 {offsets = [0, 0], sizes = [8, 1], strides = [1, 1]} : vector<8x2xf32> to vector<8x1xf32>
    %394 = vector.broadcast %393 : vector<8x1xf32> to vector<8x256xf32>
    %395 = arith.mulf %391, %394 : vector<8x256xf32>
    %396 = vector.extract_strided_slice %392 {offsets = [0, 1], sizes = [8, 1], strides = [1, 1]} : vector<8x2xf32> to vector<8x1xf32>
    %397 = vector.broadcast %396 : vector<8x1xf32> to vector<8x256xf32>
    %398 = arith.addf %395, %397 : vector<8x256xf32>
    %399 = arith.negf %398 : vector<8x256xf32>
    %400 = math.exp %399 : vector<8x256xf32>
    %cst_322 = arith.constant 1.000000e+00 : f32
    %401 = vector.broadcast %cst_322 : f32 to vector<8x256xf32>
    %402 = arith.addf %401, %400 : vector<8x256xf32>
    %403 = arith.divf %401, %402 : vector<8x256xf32>
    %404 = arith.mulf %398, %403 : vector<8x256xf32>
    %cst_323 = arith.constant dense<0.000000e+00> : vector<8xf32>
    %405 = vector.multi_reduction <add>, %404, %cst_323 [1] : vector<8x256xf32> to vector<8xf32>
    %406 = vector.shape_cast %405 : vector<8xf32> to vector<8x1xf32>
    %cst_324 = arith.constant 2.560000e+02 : f32
    %407 = vector.broadcast %cst_324 : f32 to vector<8x1xf32>
    %408 = arith.divf %406, %407 : vector<8x1xf32>
    %c0_325 = arith.constant 0 : index
    %c0_326 = arith.constant 0 : index
    %409 = vector.load %arg27[%c0_325, %c0_326] : memref<8x8xf32, #tpu.memory_space<vmem>>, vector<8x8xf32>
    %410 = vector.broadcast %408 : vector<8x1xf32> to vector<8x8xf32>
    %411 = arith.mulf %409, %410 : vector<8x8xf32>
    %cst_327 = arith.constant dense<0.000000e+00> : vector<8xf32>
    %412 = vector.multi_reduction <add>, %411, %cst_327 [0] : vector<8x8xf32> to vector<8xf32>
    %413 = vector.shape_cast %412 : vector<8xf32> to vector<1x8xf32>
    %c0_328 = arith.constant 0 : index
    %c0_329 = arith.constant 0 : index
    %414 = vector.load %arg29[%c0_328, %c0_329] : memref<1x8xf32, #tpu.memory_space<vmem>>, vector<1x8xf32>
    %415 = arith.addf %413, %414 : vector<1x8xf32>
    %cst_330 = arith.constant 0.000000e+00 : f32
    %416 = vector.broadcast %cst_330 : f32 to vector<1x8xf32>
    %417 = arith.maximumf %415, %416 : vector<1x8xf32>
    %c0_331 = arith.constant 0 : index
    %c0_332 = arith.constant 0 : index
    %418 = vector.load %arg28[%c0_331, %c0_332] : memref<8x8xf32, #tpu.memory_space<vmem>>, vector<8x8xf32>
    %419 = vector.broadcast %417 : vector<1x8xf32> to vector<8x8xf32>
    %420 = arith.mulf %418, %419 : vector<8x8xf32>
    %cst_333 = arith.constant dense<0.000000e+00> : vector<8xf32>
    %421 = vector.multi_reduction <add>, %420, %cst_333 [1] : vector<8x8xf32> to vector<8xf32>
    %422 = vector.shape_cast %421 : vector<8xf32> to vector<8x1xf32>
    %c0_334 = arith.constant 0 : index
    %c0_335 = arith.constant 0 : index
    %423 = vector.load %arg30[%c0_334, %c0_335] : memref<8x1xf32, #tpu.memory_space<vmem>>, vector<8x1xf32>
    %424 = arith.addf %422, %423 : vector<8x1xf32>
    %425 = arith.negf %424 : vector<8x1xf32>
    %426 = math.exp %425 : vector<8x1xf32>
    %cst_336 = arith.constant 1.000000e+00 : f32
    %427 = vector.broadcast %cst_336 : f32 to vector<8x1xf32>
    %428 = arith.addf %427, %426 : vector<8x1xf32>
    %429 = arith.divf %427, %428 : vector<8x1xf32>
    %430 = vector.broadcast %429 : vector<8x1xf32> to vector<8x256xf32>
    %431 = arith.mulf %404, %430 : vector<8x256xf32>
    %c0_337 = arith.constant 0 : index
    %c0_338 = arith.constant 0 : index
    %432 = vector.load %arg31[%c0_337, %c0_338] : memref<32x8xbf16, #tpu.memory_space<vmem>>, vector<32x8xbf16>
    %433 = arith.truncf %431 : vector<8x256xf32> to vector<8x256xbf16>
    %cst_339 = arith.constant dense<0.000000e+00> : vector<32x256xf32>
    %434 = tpu.matmul %432, %433, %cst_339 {dimension_numbers = #tpu.dot_dimension_numbers<[1], [0], [0], [1], [0, 0, 1, 1], [], []>} : vector<32x8xbf16>, vector<8x256xbf16>, vector<32x256xf32> -> vector<32x256xf32>
    %c0_340 = arith.constant 0 : index
    %c0_341 = arith.constant 0 : index
    %435 = vector.load %arg32[%c0_340, %c0_341] : memref<32x2xf32, #tpu.memory_space<vmem>>, vector<32x2xf32>
    %436 = vector.extract_strided_slice %435 {offsets = [0, 0], sizes = [32, 1], strides = [1, 1]} : vector<32x2xf32> to vector<32x1xf32>
    %437 = vector.broadcast %436 : vector<32x1xf32> to vector<32x256xf32>
    %438 = arith.mulf %434, %437 : vector<32x256xf32>
    %439 = vector.extract_strided_slice %435 {offsets = [0, 1], sizes = [32, 1], strides = [1, 1]} : vector<32x2xf32> to vector<32x1xf32>
    %440 = vector.broadcast %439 : vector<32x1xf32> to vector<32x256xf32>
    %441 = arith.addf %438, %440 : vector<32x256xf32>
    %442 = arith.addf %441, %328 : vector<32x256xf32>
    %443 = arith.negf %442 : vector<32x256xf32>
    %444 = math.exp %443 : vector<32x256xf32>
    %cst_342 = arith.constant 1.000000e+00 : f32
    %445 = vector.broadcast %cst_342 : f32 to vector<32x256xf32>
    %446 = arith.addf %445, %444 : vector<32x256xf32>
    %447 = arith.divf %445, %446 : vector<32x256xf32>
    %448 = arith.mulf %442, %447 : vector<32x256xf32>
    %c0_343 = arith.constant 0 : index
    %c0_344 = arith.constant 0 : index
    %449 = vector.load %arg33[%c0_343, %c0_344] : memref<40x32xbf16, #tpu.memory_space<vmem>>, vector<40x32xbf16>
    %450 = arith.truncf %448 : vector<32x256xf32> to vector<32x256xbf16>
    %cst_345 = arith.constant dense<0.000000e+00> : vector<40x256xf32>
    %451 = tpu.matmul %449, %450, %cst_345 {dimension_numbers = #tpu.dot_dimension_numbers<[1], [0], [0], [1], [0, 0, 1, 1], [], []>} : vector<40x32xbf16>, vector<32x256xbf16>, vector<40x256xf32> -> vector<40x256xf32>
    %c0_346 = arith.constant 0 : index
    %c0_347 = arith.constant 0 : index
    %452 = vector.load %arg34[%c0_346, %c0_347] : memref<40x2xf32, #tpu.memory_space<vmem>>, vector<40x2xf32>
    %453 = vector.extract_strided_slice %452 {offsets = [0, 0], sizes = [40, 1], strides = [1, 1]} : vector<40x2xf32> to vector<40x1xf32>
    %454 = vector.broadcast %453 : vector<40x1xf32> to vector<40x256xf32>
    %455 = arith.mulf %451, %454 : vector<40x256xf32>
    %456 = vector.extract_strided_slice %452 {offsets = [0, 1], sizes = [40, 1], strides = [1, 1]} : vector<40x2xf32> to vector<40x1xf32>
    %457 = vector.broadcast %456 : vector<40x1xf32> to vector<40x256xf32>
    %458 = arith.addf %455, %457 : vector<40x256xf32>
    %459 = vector.extract_strided_slice %458 {offsets = [0, 0], sizes = [8, 256], strides = [1, 1]} : vector<40x256xf32> to vector<8x256xf32>
    %460 = arith.negf %459 : vector<8x256xf32>
    %461 = math.exp %460 : vector<8x256xf32>
    %cst_348 = arith.constant 1.000000e+00 : f32
    %462 = vector.broadcast %cst_348 : f32 to vector<8x256xf32>
    %463 = arith.addf %462, %461 : vector<8x256xf32>
    %464 = arith.divf %462, %463 : vector<8x256xf32>
    %465 = arith.mulf %459, %464 : vector<8x256xf32>
    %466 = vector.extract_strided_slice %458 {offsets = [8, 0], sizes = [32, 256], strides = [1, 1]} : vector<40x256xf32> to vector<32x256xf32>
    %cst_349 = arith.constant 0.000000e+00 : f32
    %467 = vector.broadcast %cst_349 : f32 to vector<40x128xf32>
    %c0_350 = arith.constant 0 : index
    %c0_351 = arith.constant 0 : index
    %468 = vector.load %arg55[%c0_350, %c0_351] : memref<88x704xf32, #tpu.memory_space<vmem>>, vector<40x128xf32>
    tpu.vector_store %arg55[%c0_350, %c0_351], %467 {strides = array<i32>} : memref<88x704xf32, #tpu.memory_space<vmem>>, vector<40x128xf32>,
    %cst_352 = arith.constant 0.000000e+00 : f32
    %469 = vector.broadcast %cst_352 : f32 to vector<40x128xf32>
    %c0_353 = arith.constant 0 : index
    %c384_354 = arith.constant 384 : index
    %470 = vector.load %arg55[%c0_353, %c384_354] : memref<88x704xf32, #tpu.memory_space<vmem>>, vector<40x128xf32>
    tpu.vector_store %arg55[%c0_353, %c384_354], %469 {strides = array<i32>} : memref<88x704xf32, #tpu.memory_space<vmem>>, vector<40x128xf32>,
    %cst_355 = arith.constant 0.000000e+00 : f32
    %471 = vector.broadcast %cst_355 : f32 to vector<8x256xf32>
    %c24_356 = arith.constant 24 : index
    %c128_357 = arith.constant 128 : index
    %472 = vector.load %arg55[%c24_356, %c128_357] : memref<88x704xf32, #tpu.memory_space<vmem>>, vector<8x256xf32>
    tpu.vector_store %arg55[%c24_356, %c128_357], %471 {strides = array<i32>} : memref<88x704xf32, #tpu.memory_space<vmem>>, vector<8x256xf32>,
    %c32_358 = arith.constant 32 : index
    %c128_359 = arith.constant 128 : index
    %473 = vector.load %arg55[%c32_358, %c128_359] : memref<88x704xf32, #tpu.memory_space<vmem>>, vector<8x256xf32>
    tpu.vector_store %arg55[%c32_358, %c128_359], %465 {strides = array<i32>} : memref<88x704xf32, #tpu.memory_space<vmem>>, vector<8x256xf32>,
    %c32_360 = arith.constant 32 : index
    %c120_361 = arith.constant 120 : index
    %474 = vector.load %arg55[%c32_360, %c120_361] : memref<88x704xf32, #tpu.memory_space<vmem>>, vector<8x256xf32>
    %c8_362 = arith.constant 8 : index
    %c0_363 = arith.constant 0 : index
    %c0_364 = arith.constant 0 : index
    %475 = vector.load %arg2[%c8_362, %c0_363, %c0_364] : memref<14x8x256xf32, #tpu.memory_space<vmem>>, vector<1x8x256xf32>
    %476 = vector.shape_cast %475 : vector<1x8x256xf32> to vector<8x256xf32>
    %477 = arith.mulf %474, %476 : vector<8x256xf32>
    %c0_365 = arith.constant 0 : index
    %c128_366 = arith.constant 128 : index
    %478 = vector.load %arg55[%c0_365, %c128_366] : memref<88x704xf32, #tpu.memory_space<vmem>>, vector<8x256xf32>
    tpu.vector_store %arg55[%c0_365, %c128_366], %477 {strides = array<i32>} : memref<88x704xf32, #tpu.memory_space<vmem>>, vector<8x256xf32>,
    %c32_367 = arith.constant 32 : index
    %c128_368 = arith.constant 128 : index
    %479 = vector.load %arg55[%c32_367, %c128_368] : memref<88x704xf32, #tpu.memory_space<vmem>>, vector<8x256xf32>
    %c8_369 = arith.constant 8 : index
    %c128_370 = arith.constant 128 : index
    %480 = vector.load %arg55[%c8_369, %c128_370] : memref<88x704xf32, #tpu.memory_space<vmem>>, vector<8x256xf32>
    tpu.vector_store %arg55[%c8_369, %c128_370], %479 {strides = array<i32>} : memref<88x704xf32, #tpu.memory_space<vmem>>, vector<8x256xf32>,
    %c32_371 = arith.constant 32 : index
    %c136_372 = arith.constant 136 : index
    %481 = vector.load %arg55[%c32_371, %c136_372] : memref<88x704xf32, #tpu.memory_space<vmem>>, vector<8x256xf32>
    %c11_373 = arith.constant 11 : index
    %c0_374 = arith.constant 0 : index
    %c0_375 = arith.constant 0 : index
    %482 = vector.load %arg2[%c11_373, %c0_374, %c0_375] : memref<14x8x256xf32, #tpu.memory_space<vmem>>, vector<1x8x256xf32>
    %483 = vector.shape_cast %482 : vector<1x8x256xf32> to vector<8x256xf32>
    %484 = arith.mulf %481, %483 : vector<8x256xf32>
    %c16_376 = arith.constant 16 : index
    %c128_377 = arith.constant 128 : index
    %485 = vector.load %arg55[%c16_376, %c128_377] : memref<88x704xf32, #tpu.memory_space<vmem>>, vector<8x256xf32>
    tpu.vector_store %arg55[%c16_376, %c128_377], %484 {strides = array<i32>} : memref<88x704xf32, #tpu.memory_space<vmem>>, vector<8x256xf32>,
    %c0_378 = arith.constant 0 : index
    %c0_379 = arith.constant 0 : index
    %486 = vector.load %arg55[%c0_378, %c0_379] : memref<88x704xf32, #tpu.memory_space<vmem>>, vector<32x256xf32>
    %487 = arith.truncf %486 : vector<32x256xf32> to vector<32x256xbf16>
    %c0_380 = arith.constant 0 : index
    %c0_381 = arith.constant 0 : index
    %488 = vector.load %arg56[%c0_380, %c0_381] : memref<720x256xbf16, #tpu.memory_space<vmem>>, vector<32x256xbf16>
    tpu.vector_store %arg56[%c0_380, %c0_381], %487 {strides = array<i32>} : memref<720x256xbf16, #tpu.memory_space<vmem>>, vector<32x256xbf16>,
    %c0_382 = arith.constant 0 : index
    %c128_383 = arith.constant 128 : index
    %489 = vector.load %arg55[%c0_382, %c128_383] : memref<88x704xf32, #tpu.memory_space<vmem>>, vector<32x256xf32>
    %490 = arith.truncf %489 : vector<32x256xf32> to vector<32x256xbf16>
    %c32_384 = arith.constant 32 : index
    %c0_385 = arith.constant 0 : index
    %491 = vector.load %arg56[%c32_384, %c0_385] : memref<720x256xbf16, #tpu.memory_space<vmem>>, vector<32x256xbf16>
    tpu.vector_store %arg56[%c32_384, %c0_385], %490 {strides = array<i32>} : memref<720x256xbf16, #tpu.memory_space<vmem>>, vector<32x256xbf16>,
    %c0_386 = arith.constant 0 : index
    %c256_387 = arith.constant 256 : index
    %492 = vector.load %arg55[%c0_386, %c256_387] : memref<88x704xf32, #tpu.memory_space<vmem>>, vector<32x256xf32>
    %493 = arith.truncf %492 : vector<32x256xf32> to vector<32x256xbf16>
    %c64_388 = arith.constant 64 : index
    %c0_389 = arith.constant 0 : index
    %494 = vector.load %arg56[%c64_388, %c0_389] : memref<720x256xbf16, #tpu.memory_space<vmem>>, vector<32x256xbf16>
    tpu.vector_store %arg56[%c64_388, %c0_389], %493 {strides = array<i32>} : memref<720x256xbf16, #tpu.memory_space<vmem>>, vector<32x256xbf16>,
    %c0_390 = arith.constant 0 : index
    %c0_391 = arith.constant 0 : index
    %495 = vector.load %arg35[%c0_390, %c0_391] : memref<8x96xbf16, #tpu.memory_space<vmem>>, vector<8x96xbf16>
    %c0_392 = arith.constant 0 : index
    %c0_393 = arith.constant 0 : index
    %496 = vector.load %arg56[%c0_392, %c0_393] : memref<720x256xbf16, #tpu.memory_space<vmem>>, vector<96x256xbf16>
    %cst_394 = arith.constant dense<0.000000e+00> : vector<8x256xf32>
    %497 = tpu.matmul %495, %496, %cst_394 {dimension_numbers = #tpu.dot_dimension_numbers<[1], [0], [0], [1], [0, 0, 1, 1], [], []>} : vector<8x96xbf16>, vector<96x256xbf16>, vector<8x256xf32> -> vector<8x256xf32>
    %c0_395 = arith.constant 0 : index
    %c0_396 = arith.constant 0 : index
    %498 = vector.load %arg36[%c0_395, %c0_396] : memref<8x2xf32, #tpu.memory_space<vmem>>, vector<8x2xf32>
    %499 = vector.extract_strided_slice %498 {offsets = [0, 0], sizes = [8, 1], strides = [1, 1]} : vector<8x2xf32> to vector<8x1xf32>
    %500 = vector.broadcast %499 : vector<8x1xf32> to vector<8x256xf32>
    %501 = arith.mulf %497, %500 : vector<8x256xf32>
    %502 = vector.extract_strided_slice %498 {offsets = [0, 1], sizes = [8, 1], strides = [1, 1]} : vector<8x2xf32> to vector<8x1xf32>
    %503 = vector.broadcast %502 : vector<8x1xf32> to vector<8x256xf32>
    %504 = arith.addf %501, %503 : vector<8x256xf32>
    %505 = arith.negf %504 : vector<8x256xf32>
    %506 = math.exp %505 : vector<8x256xf32>
    %cst_397 = arith.constant 1.000000e+00 : f32
    %507 = vector.broadcast %cst_397 : f32 to vector<8x256xf32>
    %508 = arith.addf %507, %506 : vector<8x256xf32>
    %509 = arith.divf %507, %508 : vector<8x256xf32>
    %510 = arith.mulf %504, %509 : vector<8x256xf32>
    %cst_398 = arith.constant dense<0.000000e+00> : vector<8xf32>
    %511 = vector.multi_reduction <add>, %510, %cst_398 [1] : vector<8x256xf32> to vector<8xf32>
    %512 = vector.shape_cast %511 : vector<8xf32> to vector<8x1xf32>
    %cst_399 = arith.constant 2.560000e+02 : f32
    %513 = vector.broadcast %cst_399 : f32 to vector<8x1xf32>
    %514 = arith.divf %512, %513 : vector<8x1xf32>
    %c0_400 = arith.constant 0 : index
    %c0_401 = arith.constant 0 : index
    %515 = vector.load %arg37[%c0_400, %c0_401] : memref<8x8xf32, #tpu.memory_space<vmem>>, vector<8x8xf32>
    %516 = vector.broadcast %514 : vector<8x1xf32> to vector<8x8xf32>
    %517 = arith.mulf %515, %516 : vector<8x8xf32>
    %cst_402 = arith.constant dense<0.000000e+00> : vector<8xf32>
    %518 = vector.multi_reduction <add>, %517, %cst_402 [0] : vector<8x8xf32> to vector<8xf32>
    %519 = vector.shape_cast %518 : vector<8xf32> to vector<1x8xf32>
    %c0_403 = arith.constant 0 : index
    %c0_404 = arith.constant 0 : index
    %520 = vector.load %arg39[%c0_403, %c0_404] : memref<1x8xf32, #tpu.memory_space<vmem>>, vector<1x8xf32>
    %521 = arith.addf %519, %520 : vector<1x8xf32>
    %cst_405 = arith.constant 0.000000e+00 : f32
    %522 = vector.broadcast %cst_405 : f32 to vector<1x8xf32>
    %523 = arith.maximumf %521, %522 : vector<1x8xf32>
    %c0_406 = arith.constant 0 : index
    %c0_407 = arith.constant 0 : index
    %524 = vector.load %arg38[%c0_406, %c0_407] : memref<8x8xf32, #tpu.memory_space<vmem>>, vector<8x8xf32>
    %525 = vector.broadcast %523 : vector<1x8xf32> to vector<8x8xf32>
    %526 = arith.mulf %524, %525 : vector<8x8xf32>
    %cst_408 = arith.constant dense<0.000000e+00> : vector<8xf32>
    %527 = vector.multi_reduction <add>, %526, %cst_408 [1] : vector<8x8xf32> to vector<8xf32>
    %528 = vector.shape_cast %527 : vector<8xf32> to vector<8x1xf32>
    %c0_409 = arith.constant 0 : index
    %c0_410 = arith.constant 0 : index
    %529 = vector.load %arg40[%c0_409, %c0_410] : memref<8x1xf32, #tpu.memory_space<vmem>>, vector<8x1xf32>
    %530 = arith.addf %528, %529 : vector<8x1xf32>
    %531 = arith.negf %530 : vector<8x1xf32>
    %532 = math.exp %531 : vector<8x1xf32>
    %cst_411 = arith.constant 1.000000e+00 : f32
    %533 = vector.broadcast %cst_411 : f32 to vector<8x1xf32>
    %534 = arith.addf %533, %532 : vector<8x1xf32>
    %535 = arith.divf %533, %534 : vector<8x1xf32>
    %536 = vector.broadcast %535 : vector<8x1xf32> to vector<8x256xf32>
    %537 = arith.mulf %510, %536 : vector<8x256xf32>
    %c0_412 = arith.constant 0 : index
    %c0_413 = arith.constant 0 : index
    %538 = vector.load %arg41[%c0_412, %c0_413] : memref<32x8xbf16, #tpu.memory_space<vmem>>, vector<32x8xbf16>
    %539 = arith.truncf %537 : vector<8x256xf32> to vector<8x256xbf16>
    %cst_414 = arith.constant dense<0.000000e+00> : vector<32x256xf32>
    %540 = tpu.matmul %538, %539, %cst_414 {dimension_numbers = #tpu.dot_dimension_numbers<[1], [0], [0], [1], [0, 0, 1, 1], [], []>} : vector<32x8xbf16>, vector<8x256xbf16>, vector<32x256xf32> -> vector<32x256xf32>
    %c0_415 = arith.constant 0 : index
    %c0_416 = arith.constant 0 : index
    %541 = vector.load %arg42[%c0_415, %c0_416] : memref<32x2xf32, #tpu.memory_space<vmem>>, vector<32x2xf32>
    %542 = vector.extract_strided_slice %541 {offsets = [0, 0], sizes = [32, 1], strides = [1, 1]} : vector<32x2xf32> to vector<32x1xf32>
    %543 = vector.broadcast %542 : vector<32x1xf32> to vector<32x256xf32>
    %544 = arith.mulf %540, %543 : vector<32x256xf32>
    %545 = vector.extract_strided_slice %541 {offsets = [0, 1], sizes = [32, 1], strides = [1, 1]} : vector<32x2xf32> to vector<32x1xf32>
    %546 = vector.broadcast %545 : vector<32x1xf32> to vector<32x256xf32>
    %547 = arith.addf %544, %546 : vector<32x256xf32>
    %548 = arith.addf %547, %466 : vector<32x256xf32>
    %549 = arith.negf %548 : vector<32x256xf32>
    %550 = math.exp %549 : vector<32x256xf32>
    %cst_417 = arith.constant 1.000000e+00 : f32
    %551 = vector.broadcast %cst_417 : f32 to vector<32x256xf32>
    %552 = arith.addf %551, %550 : vector<32x256xf32>
    %553 = arith.divf %551, %552 : vector<32x256xf32>
    %554 = arith.mulf %548, %553 : vector<32x256xf32>
    %c0_418 = arith.constant 0 : index
    %c0_419 = arith.constant 0 : index
    %555 = vector.load %arg43[%c0_418, %c0_419] : memref<16x32xbf16, #tpu.memory_space<vmem>>, vector<16x32xbf16>
    %556 = arith.truncf %554 : vector<32x256xf32> to vector<32x256xbf16>
    %cst_420 = arith.constant dense<0.000000e+00> : vector<16x256xf32>
    %557 = tpu.matmul %555, %556, %cst_420 {dimension_numbers = #tpu.dot_dimension_numbers<[1], [0], [0], [1], [0, 0, 1, 1], [], []>} : vector<16x32xbf16>, vector<32x256xbf16>, vector<16x256xf32> -> vector<16x256xf32>
    %c0_421 = arith.constant 0 : index
    %c0_422 = arith.constant 0 : index
    %558 = vector.load %arg44[%c0_421, %c0_422] : memref<16x2xf32, #tpu.memory_space<vmem>>, vector<16x2xf32>
    %559 = vector.extract_strided_slice %558 {offsets = [0, 0], sizes = [16, 1], strides = [1, 1]} : vector<16x2xf32> to vector<16x1xf32>
    %560 = vector.broadcast %559 : vector<16x1xf32> to vector<16x256xf32>
    %561 = arith.mulf %557, %560 : vector<16x256xf32>
    %562 = vector.extract_strided_slice %558 {offsets = [0, 1], sizes = [16, 1], strides = [1, 1]} : vector<16x2xf32> to vector<16x1xf32>
    %563 = vector.broadcast %562 : vector<16x1xf32> to vector<16x256xf32>
    %564 = arith.addf %561, %563 : vector<16x256xf32>
    %565 = vector.extract_strided_slice %564 {offsets = [0, 0], sizes = [8, 256], strides = [1, 1]} : vector<16x256xf32> to vector<8x256xf32>
    %566 = arith.negf %565 : vector<8x256xf32>
    %567 = math.exp %566 : vector<8x256xf32>
    %cst_423 = arith.constant 1.000000e+00 : f32
    %568 = vector.broadcast %cst_423 : f32 to vector<8x256xf32>
    %569 = arith.addf %568, %567 : vector<8x256xf32>
    %570 = arith.divf %568, %569 : vector<8x256xf32>
    %571 = arith.mulf %565, %570 : vector<8x256xf32>
    %572 = vector.extract_strided_slice %564 {offsets = [8, 0], sizes = [8, 256], strides = [1, 1]} : vector<16x256xf32> to vector<8x256xf32>
    %c0_424 = arith.constant 0 : index
    %c0_425 = arith.constant 0 : index
    %573 = vector.load %arg45[%c0_424, %c0_425] : memref<8x8xbf16, #tpu.memory_space<vmem>>, vector<8x8xbf16>
    %574 = arith.truncf %571 : vector<8x256xf32> to vector<8x256xbf16>
    %cst_426 = arith.constant dense<0.000000e+00> : vector<8x256xf32>
    %575 = tpu.matmul %573, %574, %cst_426 {dimension_numbers = #tpu.dot_dimension_numbers<[1], [0], [0], [1], [0, 0, 1, 1], [], []>} : vector<8x8xbf16>, vector<8x256xbf16>, vector<8x256xf32> -> vector<8x256xf32>
    %c0_427 = arith.constant 0 : index
    %c0_428 = arith.constant 0 : index
    %576 = vector.load %arg46[%c0_427, %c0_428] : memref<8x2xf32, #tpu.memory_space<vmem>>, vector<8x2xf32>
    %577 = vector.extract_strided_slice %576 {offsets = [0, 0], sizes = [8, 1], strides = [1, 1]} : vector<8x2xf32> to vector<8x1xf32>
    %578 = vector.broadcast %577 : vector<8x1xf32> to vector<8x256xf32>
    %579 = arith.mulf %575, %578 : vector<8x256xf32>
    %580 = vector.extract_strided_slice %576 {offsets = [0, 1], sizes = [8, 1], strides = [1, 1]} : vector<8x2xf32> to vector<8x1xf32>
    %581 = vector.broadcast %580 : vector<8x1xf32> to vector<8x256xf32>
    %582 = arith.addf %579, %581 : vector<8x256xf32>
    %583 = arith.negf %582 : vector<8x256xf32>
    %584 = math.exp %583 : vector<8x256xf32>
    %cst_429 = arith.constant 1.000000e+00 : f32
    %585 = vector.broadcast %cst_429 : f32 to vector<8x256xf32>
    %586 = arith.addf %585, %584 : vector<8x256xf32>
    %587 = arith.divf %585, %586 : vector<8x256xf32>
    %588 = arith.mulf %582, %587 : vector<8x256xf32>
    %cst_430 = arith.constant dense<0.000000e+00> : vector<8xf32>
    %589 = vector.multi_reduction <add>, %588, %cst_430 [1] : vector<8x256xf32> to vector<8xf32>
    %590 = vector.shape_cast %589 : vector<8xf32> to vector<8x1xf32>
    %cst_431 = arith.constant 2.560000e+02 : f32
    %591 = vector.broadcast %cst_431 : f32 to vector<8x1xf32>
    %592 = arith.divf %590, %591 : vector<8x1xf32>
    %c0_432 = arith.constant 0 : index
    %c0_433 = arith.constant 0 : index
    %593 = vector.load %arg47[%c0_432, %c0_433] : memref<8x8xf32, #tpu.memory_space<vmem>>, vector<8x8xf32>
    %594 = vector.broadcast %592 : vector<8x1xf32> to vector<8x8xf32>
    %595 = arith.mulf %593, %594 : vector<8x8xf32>
    %cst_434 = arith.constant dense<0.000000e+00> : vector<8xf32>
    %596 = vector.multi_reduction <add>, %595, %cst_434 [0] : vector<8x8xf32> to vector<8xf32>
    %597 = vector.shape_cast %596 : vector<8xf32> to vector<1x8xf32>
    %c0_435 = arith.constant 0 : index
    %c0_436 = arith.constant 0 : index
    %598 = vector.load %arg49[%c0_435, %c0_436] : memref<1x8xf32, #tpu.memory_space<vmem>>, vector<1x8xf32>
    %599 = arith.addf %597, %598 : vector<1x8xf32>
    %cst_437 = arith.constant 0.000000e+00 : f32
    %600 = vector.broadcast %cst_437 : f32 to vector<1x8xf32>
    %601 = arith.maximumf %599, %600 : vector<1x8xf32>
    %c0_438 = arith.constant 0 : index
    %c0_439 = arith.constant 0 : index
    %602 = vector.load %arg48[%c0_438, %c0_439] : memref<8x8xf32, #tpu.memory_space<vmem>>, vector<8x8xf32>
    %603 = vector.broadcast %601 : vector<1x8xf32> to vector<8x8xf32>
    %604 = arith.mulf %602, %603 : vector<8x8xf32>
    %cst_440 = arith.constant dense<0.000000e+00> : vector<8xf32>
    %605 = vector.multi_reduction <add>, %604, %cst_440 [1] : vector<8x8xf32> to vector<8xf32>
    %606 = vector.shape_cast %605 : vector<8xf32> to vector<8x1xf32>
    %c0_441 = arith.constant 0 : index
    %c0_442 = arith.constant 0 : index
    %607 = vector.load %arg50[%c0_441, %c0_442] : memref<8x1xf32, #tpu.memory_space<vmem>>, vector<8x1xf32>
    %608 = arith.addf %606, %607 : vector<8x1xf32>
    %609 = arith.negf %608 : vector<8x1xf32>
    %610 = math.exp %609 : vector<8x1xf32>
    %cst_443 = arith.constant 1.000000e+00 : f32
    %611 = vector.broadcast %cst_443 : f32 to vector<8x1xf32>
    %612 = arith.addf %611, %610 : vector<8x1xf32>
    %613 = arith.divf %611, %612 : vector<8x1xf32>
    %614 = vector.broadcast %613 : vector<8x1xf32> to vector<8x256xf32>
    %615 = arith.mulf %588, %614 : vector<8x256xf32>
    %c0_444 = arith.constant 0 : index
    %c0_445 = arith.constant 0 : index
    %616 = vector.load %arg51[%c0_444, %c0_445] : memref<8x8xbf16, #tpu.memory_space<vmem>>, vector<8x8xbf16>
    %617 = arith.truncf %615 : vector<8x256xf32> to vector<8x256xbf16>
    %cst_446 = arith.constant dense<0.000000e+00> : vector<8x256xf32>
    %618 = tpu.matmul %616, %617, %cst_446 {dimension_numbers = #tpu.dot_dimension_numbers<[1], [0], [0], [1], [0, 0, 1, 1], [], []>} : vector<8x8xbf16>, vector<8x256xbf16>, vector<8x256xf32> -> vector<8x256xf32>
    %c0_447 = arith.constant 0 : index
    %c0_448 = arith.constant 0 : index
    %619 = vector.load %arg52[%c0_447, %c0_448] : memref<8x2xf32, #tpu.memory_space<vmem>>, vector<8x2xf32>
    %620 = vector.extract_strided_slice %619 {offsets = [0, 0], sizes = [8, 1], strides = [1, 1]} : vector<8x2xf32> to vector<8x1xf32>
    %621 = vector.broadcast %620 : vector<8x1xf32> to vector<8x256xf32>
    %622 = arith.mulf %618, %621 : vector<8x256xf32>
    %623 = vector.extract_strided_slice %619 {offsets = [0, 1], sizes = [8, 1], strides = [1, 1]} : vector<8x2xf32> to vector<8x1xf32>
    %624 = vector.broadcast %623 : vector<8x1xf32> to vector<8x256xf32>
    %625 = arith.addf %622, %624 : vector<8x256xf32>
    %626 = arith.addf %625, %572 : vector<8x256xf32>
    %627 = arith.negf %626 : vector<8x256xf32>
    %628 = math.exp %627 : vector<8x256xf32>
    %cst_449 = arith.constant 1.000000e+00 : f32
    %629 = vector.broadcast %cst_449 : f32 to vector<8x256xf32>
    %630 = arith.addf %629, %628 : vector<8x256xf32>
    %631 = arith.divf %629, %630 : vector<8x256xf32>
    %632 = arith.mulf %626, %631 : vector<8x256xf32>
    %c0_450 = arith.constant 0 : index
    %c0_451 = arith.constant 0 : index
    %633 = vector.load %arg53[%c0_450, %c0_451] : memref<8x2xf32, #tpu.memory_space<vmem>>, vector<8x2xf32>
    %cst_452 = arith.constant dense<0.000000e+00> : vector<8xf32>
    %634 = vector.multi_reduction <add>, %632, %cst_452 [1] : vector<8x256xf32> to vector<8xf32>
    %635 = vector.shape_cast %634 : vector<8xf32> to vector<8x1xf32>
    %cst_453 = arith.constant 2.560000e+02 : f32
    %636 = vector.broadcast %cst_453 : f32 to vector<8x1xf32>
    %637 = arith.divf %635, %636 : vector<8x1xf32>
    %638 = vector.extract_strided_slice %633 {offsets = [0, 0], sizes = [8, 1], strides = [1, 1]} : vector<8x2xf32> to vector<8x1xf32>
    %639 = arith.mulf %638, %637 : vector<8x1xf32>
    %cst_454 = arith.constant dense<0.000000e+00> : vector<1xf32>
    %640 = vector.multi_reduction <add>, %639, %cst_454 [0] : vector<8x1xf32> to vector<1xf32>
    %641 = vector.shape_cast %640 : vector<1xf32> to vector<1x1xf32>
    %642 = vector.extract_strided_slice %633 {offsets = [0, 1], sizes = [1, 1], strides = [1, 1]} : vector<8x2xf32> to vector<1x1xf32>
    %643 = arith.addf %641, %642 : vector<1x1xf32>
    %c0_455 = arith.constant 0 : index
    %c0_456 = arith.constant 0 : index
    %c0_457 = arith.constant 0 : index
    %644 = vector.load %arg54[%c0_455, %c0_456, %c0_457] : memref<1x1x1xf32, #tpu.memory_space<vmem>>, vector<1x1x1xf32>
    %645 = vector.shape_cast %644 : vector<1x1x1xf32> to vector<1x1xf32>
    %646 = vector.shape_cast %643 : vector<1x1xf32> to vector<1x1x1xf32>
    tpu.vector_store %arg54[%c0_455, %c0_456, %c0_457], %646 {strides = array<i32>} : memref<1x1x1xf32, #tpu.memory_space<vmem>>, vector<1x1x1xf32>,
    return
  }
  func.func @transform_0(%arg0: i32) -> (i32, i32, i32) {
    %c0_i32 = arith.constant 0 : i32
    %c0_i32_0 = arith.constant 0 : i32
    %c0_i32_1 = arith.constant 0 : i32
    return %arg0, %c0_i32, %c0_i32_0 : i32, i32, i32
  }
  func.func @transform_1(%arg0: i32) -> (i32, i32, i32) {
    %c0_i32 = arith.constant 0 : i32
    %c0_i32_0 = arith.constant 0 : i32
    %c0_i32_1 = arith.constant 0 : i32
    %c0_i32_2 = arith.constant 0 : i32
    return %c0_i32, %c0_i32_0, %c0_i32_1 : i32, i32, i32
  }
  func.func @transform_2(%arg0: i32) -> (i32, i32) {
    %c0_i32 = arith.constant 0 : i32
    %c0_i32_0 = arith.constant 0 : i32
    %c0_i32_1 = arith.constant 0 : i32
    return %c0_i32, %c0_i32_0 : i32, i32
  }
  func.func @transform_3(%arg0: i32) -> (i32, i32) {
    %c0_i32 = arith.constant 0 : i32
    %c0_i32_0 = arith.constant 0 : i32
    %c0_i32_1 = arith.constant 0 : i32
    return %c0_i32, %c0_i32_0 : i32, i32
  }
  func.func @transform_4(%arg0: i32) -> (i32, i32) {
    %c0_i32 = arith.constant 0 : i32
    %c0_i32_0 = arith.constant 0 : i32
    %c0_i32_1 = arith.constant 0 : i32
    return %c0_i32, %c0_i32_0 : i32, i32
  }
  func.func @transform_5(%arg0: i32) -> (i32, i32) {
    %c0_i32 = arith.constant 0 : i32
    %c0_i32_0 = arith.constant 0 : i32
    %c0_i32_1 = arith.constant 0 : i32
    return %c0_i32, %c0_i32_0 : i32, i32
  }
  func.func @transform_6(%arg0: i32) -> (i32, i32) {
    %c0_i32 = arith.constant 0 : i32
    %c0_i32_0 = arith.constant 0 : i32
    %c0_i32_1 = arith.constant 0 : i32
    return %c0_i32, %c0_i32_0 : i32, i32
  }
  func.func @transform_7(%arg0: i32) -> (i32, i32) {
    %c0_i32 = arith.constant 0 : i32
    %c0_i32_0 = arith.constant 0 : i32
    %c0_i32_1 = arith.constant 0 : i32
    return %c0_i32, %c0_i32_0 : i32, i32
  }
  func.func @transform_8(%arg0: i32) -> (i32, i32) {
    %c0_i32 = arith.constant 0 : i32
    %c0_i32_0 = arith.constant 0 : i32
    %c0_i32_1 = arith.constant 0 : i32
    return %c0_i32, %c0_i32_0 : i32, i32
  }
  func.func @transform_9(%arg0: i32) -> (i32, i32) {
    %c0_i32 = arith.constant 0 : i32
    %c0_i32_0 = arith.constant 0 : i32
    %c0_i32_1 = arith.constant 0 : i32
    return %c0_i32, %c0_i32_0 : i32, i32
  }
  func.func @transform_10(%arg0: i32) -> (i32, i32) {
    %c0_i32 = arith.constant 0 : i32
    %c0_i32_0 = arith.constant 0 : i32
    %c0_i32_1 = arith.constant 0 : i32
    return %c0_i32, %c0_i32_0 : i32, i32
  }
  func.func @transform_11(%arg0: i32) -> (i32, i32) {
    %c0_i32 = arith.constant 0 : i32
    %c0_i32_0 = arith.constant 0 : i32
    %c0_i32_1 = arith.constant 0 : i32
    return %c0_i32, %c0_i32_0 : i32, i32
  }
  func.func @transform_12(%arg0: i32) -> (i32, i32) {
    %c0_i32 = arith.constant 0 : i32
    %c0_i32_0 = arith.constant 0 : i32
    %c0_i32_1 = arith.constant 0 : i32
    return %c0_i32, %c0_i32_0 : i32, i32
  }
  func.func @transform_13(%arg0: i32) -> (i32, i32) {
    %c0_i32 = arith.constant 0 : i32
    %c0_i32_0 = arith.constant 0 : i32
    %c0_i32_1 = arith.constant 0 : i32
    return %c0_i32, %c0_i32_0 : i32, i32
  }
  func.func @transform_14(%arg0: i32) -> (i32, i32) {
    %c0_i32 = arith.constant 0 : i32
    %c0_i32_0 = arith.constant 0 : i32
    %c0_i32_1 = arith.constant 0 : i32
    return %c0_i32, %c0_i32_0 : i32, i32
  }
  func.func @transform_15(%arg0: i32) -> (i32, i32) {
    %c0_i32 = arith.constant 0 : i32
    %c0_i32_0 = arith.constant 0 : i32
    %c0_i32_1 = arith.constant 0 : i32
    return %c0_i32, %c0_i32_0 : i32, i32
  }
  func.func @transform_16(%arg0: i32) -> (i32, i32) {
    %c0_i32 = arith.constant 0 : i32
    %c0_i32_0 = arith.constant 0 : i32
    %c0_i32_1 = arith.constant 0 : i32
    return %c0_i32, %c0_i32_0 : i32, i32
  }
  func.func @transform_17(%arg0: i32) -> (i32, i32) {
    %c0_i32 = arith.constant 0 : i32
    %c0_i32_0 = arith.constant 0 : i32
    %c0_i32_1 = arith.constant 0 : i32
    return %c0_i32, %c0_i32_0 : i32, i32
  }
  func.func @transform_18(%arg0: i32) -> (i32, i32) {
    %c0_i32 = arith.constant 0 : i32
    %c0_i32_0 = arith.constant 0 : i32
    %c0_i32_1 = arith.constant 0 : i32
    return %c0_i32, %c0_i32_0 : i32, i32
  }
  func.func @transform_19(%arg0: i32) -> (i32, i32) {
    %c0_i32 = arith.constant 0 : i32
    %c0_i32_0 = arith.constant 0 : i32
    %c0_i32_1 = arith.constant 0 : i32
    return %c0_i32, %c0_i32_0 : i32, i32
  }
  func.func @transform_20(%arg0: i32) -> (i32, i32) {
    %c0_i32 = arith.constant 0 : i32
    %c0_i32_0 = arith.constant 0 : i32
    %c0_i32_1 = arith.constant 0 : i32
    return %c0_i32, %c0_i32_0 : i32, i32
  }
  func.func @transform_21(%arg0: i32) -> (i32, i32) {
    %c0_i32 = arith.constant 0 : i32
    %c0_i32_0 = arith.constant 0 : i32
    %c0_i32_1 = arith.constant 0 : i32
    return %c0_i32, %c0_i32_0 : i32, i32
  }
  func.func @transform_22(%arg0: i32) -> (i32, i32) {
    %c0_i32 = arith.constant 0 : i32
    %c0_i32_0 = arith.constant 0 : i32
    %c0_i32_1 = arith.constant 0 : i32
    return %c0_i32, %c0_i32_0 : i32, i32
  }
  func.func @transform_23(%arg0: i32) -> (i32, i32) {
    %c0_i32 = arith.constant 0 : i32
    %c0_i32_0 = arith.constant 0 : i32
    %c0_i32_1 = arith.constant 0 : i32
    return %c0_i32, %c0_i32_0 : i32, i32
  }
  func.func @transform_24(%arg0: i32) -> (i32, i32) {
    %c0_i32 = arith.constant 0 : i32
    %c0_i32_0 = arith.constant 0 : i32
    %c0_i32_1 = arith.constant 0 : i32
    return %c0_i32, %c0_i32_0 : i32, i32
  }
  func.func @transform_25(%arg0: i32) -> (i32, i32) {
    %c0_i32 = arith.constant 0 : i32
    %c0_i32_0 = arith.constant 0 : i32
    %c0_i32_1 = arith.constant 0 : i32
    return %c0_i32, %c0_i32_0 : i32, i32
  }
  func.func @transform_26(%arg0: i32) -> (i32, i32) {
    %c0_i32 = arith.constant 0 : i32
    %c0_i32_0 = arith.constant 0 : i32
    %c0_i32_1 = arith.constant 0 : i32
    return %c0_i32, %c0_i32_0 : i32, i32
  }
  func.func @transform_27(%arg0: i32) -> (i32, i32) {
    %c0_i32 = arith.constant 0 : i32
    %c0_i32_0 = arith.constant 0 : i32
    %c0_i32_1 = arith.constant 0 : i32
    return %c0_i32, %c0_i32_0 : i32, i32
  }
  func.func @transform_28(%arg0: i32) -> (i32, i32) {
    %c0_i32 = arith.constant 0 : i32
    %c0_i32_0 = arith.constant 0 : i32
    %c0_i32_1 = arith.constant 0 : i32
    return %c0_i32, %c0_i32_0 : i32, i32
  }
  func.func @transform_29(%arg0: i32) -> (i32, i32) {
    %c0_i32 = arith.constant 0 : i32
    %c0_i32_0 = arith.constant 0 : i32
    %c0_i32_1 = arith.constant 0 : i32
    return %c0_i32, %c0_i32_0 : i32, i32
  }
  func.func @transform_30(%arg0: i32) -> (i32, i32) {
    %c0_i32 = arith.constant 0 : i32
    %c0_i32_0 = arith.constant 0 : i32
    %c0_i32_1 = arith.constant 0 : i32
    return %c0_i32, %c0_i32_0 : i32, i32
  }
  func.func @transform_31(%arg0: i32) -> (i32, i32) {
    %c0_i32 = arith.constant 0 : i32
    %c0_i32_0 = arith.constant 0 : i32
    %c0_i32_1 = arith.constant 0 : i32
    return %c0_i32, %c0_i32_0 : i32, i32
  }
  func.func @transform_32(%arg0: i32) -> (i32, i32) {
    %c0_i32 = arith.constant 0 : i32
    %c0_i32_0 = arith.constant 0 : i32
    %c0_i32_1 = arith.constant 0 : i32
    return %c0_i32, %c0_i32_0 : i32, i32
  }
  func.func @transform_33(%arg0: i32) -> (i32, i32) {
    %c0_i32 = arith.constant 0 : i32
    %c0_i32_0 = arith.constant 0 : i32
    %c0_i32_1 = arith.constant 0 : i32
    return %c0_i32, %c0_i32_0 : i32, i32
  }
  func.func @transform_34(%arg0: i32) -> (i32, i32) {
    %c0_i32 = arith.constant 0 : i32
    %c0_i32_0 = arith.constant 0 : i32
    %c0_i32_1 = arith.constant 0 : i32
    return %c0_i32, %c0_i32_0 : i32, i32
  }
  func.func @transform_35(%arg0: i32) -> (i32, i32) {
    %c0_i32 = arith.constant 0 : i32
    %c0_i32_0 = arith.constant 0 : i32
    %c0_i32_1 = arith.constant 0 : i32
    return %c0_i32, %c0_i32_0 : i32, i32
  }
  func.func @transform_36(%arg0: i32) -> (i32, i32) {
    %c0_i32 = arith.constant 0 : i32
    %c0_i32_0 = arith.constant 0 : i32
    %c0_i32_1 = arith.constant 0 : i32
    return %c0_i32, %c0_i32_0 : i32, i32
  }
  func.func @transform_37(%arg0: i32) -> (i32, i32) {
    %c0_i32 = arith.constant 0 : i32
    %c0_i32_0 = arith.constant 0 : i32
    %c0_i32_1 = arith.constant 0 : i32
    return %c0_i32, %c0_i32_0 : i32, i32
  }
  func.func @transform_38(%arg0: i32) -> (i32, i32) {
    %c0_i32 = arith.constant 0 : i32
    %c0_i32_0 = arith.constant 0 : i32
    %c0_i32_1 = arith.constant 0 : i32
    return %c0_i32, %c0_i32_0 : i32, i32
  }
  func.func @transform_39(%arg0: i32) -> (i32, i32) {
    %c0_i32 = arith.constant 0 : i32
    %c0_i32_0 = arith.constant 0 : i32
    %c0_i32_1 = arith.constant 0 : i32
    return %c0_i32, %c0_i32_0 : i32, i32
  }
  func.func @transform_40(%arg0: i32) -> (i32, i32) {
    %c0_i32 = arith.constant 0 : i32
    %c0_i32_0 = arith.constant 0 : i32
    %c0_i32_1 = arith.constant 0 : i32
    return %c0_i32, %c0_i32_0 : i32, i32
  }
  func.func @transform_41(%arg0: i32) -> (i32, i32) {
    %c0_i32 = arith.constant 0 : i32
    %c0_i32_0 = arith.constant 0 : i32
    %c0_i32_1 = arith.constant 0 : i32
    return %c0_i32, %c0_i32_0 : i32, i32
  }
  func.func @transform_42(%arg0: i32) -> (i32, i32) {
    %c0_i32 = arith.constant 0 : i32
    %c0_i32_0 = arith.constant 0 : i32
    %c0_i32_1 = arith.constant 0 : i32
    return %c0_i32, %c0_i32_0 : i32, i32
  }
  func.func @transform_43(%arg0: i32) -> (i32, i32) {
    %c0_i32 = arith.constant 0 : i32
    %c0_i32_0 = arith.constant 0 : i32
    %c0_i32_1 = arith.constant 0 : i32
    return %c0_i32, %c0_i32_0 : i32, i32
  }
  func.func @transform_44(%arg0: i32) -> (i32, i32) {
    %c0_i32 = arith.constant 0 : i32
    %c0_i32_0 = arith.constant 0 : i32
    %c0_i32_1 = arith.constant 0 : i32
    return %c0_i32, %c0_i32_0 : i32, i32
  }
  func.func @transform_45(%arg0: i32) -> (i32, i32) {
    %c0_i32 = arith.constant 0 : i32
    %c0_i32_0 = arith.constant 0 : i32
    %c0_i32_1 = arith.constant 0 : i32
    return %c0_i32, %c0_i32_0 : i32, i32
  }
  func.func @transform_46(%arg0: i32) -> (i32, i32) {
    %c0_i32 = arith.constant 0 : i32
    %c0_i32_0 = arith.constant 0 : i32
    %c0_i32_1 = arith.constant 0 : i32
    return %c0_i32, %c0_i32_0 : i32, i32
  }
  func.func @transform_47(%arg0: i32) -> (i32, i32) {
    %c0_i32 = arith.constant 0 : i32
    %c0_i32_0 = arith.constant 0 : i32
    %c0_i32_1 = arith.constant 0 : i32
    return %c0_i32, %c0_i32_0 : i32, i32
  }
  func.func @transform_48(%arg0: i32) -> (i32, i32) {
    %c0_i32 = arith.constant 0 : i32
    %c0_i32_0 = arith.constant 0 : i32
    %c0_i32_1 = arith.constant 0 : i32
    return %c0_i32, %c0_i32_0 : i32, i32
  }
  func.func @transform_49(%arg0: i32) -> (i32, i32) {
    %c0_i32 = arith.constant 0 : i32
    %c0_i32_0 = arith.constant 0 : i32
    %c0_i32_1 = arith.constant 0 : i32
    return %c0_i32, %c0_i32_0 : i32, i32
  }
  func.func @transform_50(%arg0: i32) -> (i32, i32) {
    %c0_i32 = arith.constant 0 : i32
    %c0_i32_0 = arith.constant 0 : i32
    %c0_i32_1 = arith.constant 0 : i32
    return %c0_i32, %c0_i32_0 : i32, i32
  }
  func.func @transform_51(%arg0: i32) -> (i32, i32) {
    %c0_i32 = arith.constant 0 : i32
    %c0_i32_0 = arith.constant 0 : i32
    %c0_i32_1 = arith.constant 0 : i32
    return %c0_i32, %c0_i32_0 : i32, i32
  }
  func.func @transform_52(%arg0: i32) -> (i32, i32) {
    %c0_i32 = arith.constant 0 : i32
    %c0_i32_0 = arith.constant 0 : i32
    %c0_i32_1 = arith.constant 0 : i32
    return %c0_i32, %c0_i32_0 : i32, i32
  }
  func.func @transform_53(%arg0: i32) -> (i32, i32, i32) {
    %c0_i32 = arith.constant 0 : i32
    %c0_i32_0 = arith.constant 0 : i32
    %c0_i32_1 = arith.constant 0 : i32
    return %arg0, %c0_i32, %c0_i32_0 : i32, i32, i32
  }
}

</mosaic_0001>

<llo_original>
// kernel: heart_tcn_forward.1
$region0: #{heart_tcn_forward.1}
  #allocation0 [shape = 'u32[]', space=smem, size = 0x4, offset = 0x4, fixed_abs, tag = 'smem constant byte address 0x4 - core index']
  #allocation1 [shape = 'u32[144,128]{1,0:T(1,128)}', space=vmem, size = 0x12000, scoped, tag = 'internal scratch']
  #allocation2 [shape = 'f32[88,704]{1,0:T(8,128)}', space=vmem, size = 0x42000, scoped, tag = 'scratch operand']
  #allocation3 [shape = 'bf16[720,256]{1,0:T(16,128)(2,1)}', space=vmem, size = 0x5a000, scoped, tag = 'scratch operand']
  %s0 = inlined_call_operand.smem [shape: u32[54], index: -1, kind: input, shape index: {}]
  %s1 = sld [smem:[%s0]]
  %s2 = scalar_lea.smem %s0, 1
  %s3 = sld [smem:[%s2]]
  %s4 = scalar_lea.smem %s0, 2
  %s5 = sld [smem:[%s4]]
  %s6 = scalar_lea.smem %s0, 3
  %s7 = sld [smem:[%s6]]
  %s8 = scalar_lea.smem %s0, 4
  %s9 = sld [smem:[%s8]]
  %s10 = scalar_lea.smem %s0, 5
  %s11 = sld [smem:[%s10]]
  %s12 = scalar_lea.smem %s0, 6
  %s13 = sld [smem:[%s12]]
  %s14 = scalar_lea.smem %s0, 7
  %s15 = sld [smem:[%s14]]
  %s16 = scalar_lea.smem %s0, 8
  %s17 = sld [smem:[%s16]]
  %s18 = scalar_lea.smem %s0, 9
  %s19 = sld [smem:[%s18]]
  %s20 = scalar_lea.smem %s0, 10
  %s21 = sld [smem:[%s20]]
  %s22 = scalar_lea.smem %s0, 11
  %s23 = sld [smem:[%s22]]
  %s24 = scalar_lea.smem %s0, 12
  %s25 = sld [smem:[%s24]]
  %s26 = scalar_lea.smem %s0, 13
  %s27 = sld [smem:[%s26]]
  %s28 = scalar_lea.smem %s0, 14
  %s29 = sld [smem:[%s28]]
  %s30 = scalar_lea.smem %s0, 15
  %s31 = sld [smem:[%s30]]
  %s32 = scalar_lea.smem %s0, 16
  %s33 = sld [smem:[%s32]]
  %s34 = scalar_lea.smem %s0, 17
  %s35 = sld [smem:[%s34]]
  %s36 = scalar_lea.smem %s0, 18
  %s37 = sld [smem:[%s36]]
  %s38 = scalar_lea.smem %s0, 19
  %s39 = sld [smem:[%s38]]
  %s40 = scalar_lea.smem %s0, 20
  %s41 = sld [smem:[%s40]]
  %s42 = scalar_lea.smem %s0, 21
  %s43 = sld [smem:[%s42]]
  %s44 = scalar_lea.smem %s0, 22
  %s45 = sld [smem:[%s44]]
  %s46 = scalar_lea.smem %s0, 23
  %s47 = sld [smem:[%s46]]
  %s48 = scalar_lea.smem %s0, 24
  %s49 = sld [smem:[%s48]]
  %s50 = scalar_lea.smem %s0, 25
  %s51 = sld [smem:[%s50]]
  %s52 = scalar_lea.smem %s0, 26
  %s53 = sld [smem:[%s52]]
  %s54 = scalar_lea.smem %s0, 27
  %s55 = sld [smem:[%s54]]
  %s56 = scalar_lea.smem %s0, 28
  %s57 = sld [smem:[%s56]]
  %s58 = scalar_lea.smem %s0, 29
  %s59 = sld [smem:[%s58]]
  %s60 = scalar_lea.smem %s0, 30
  %s61 = sld [smem:[%s60]]
  %s62 = scalar_lea.smem %s0, 31
  %s63 = sld [smem:[%s62]]
  %s64 = scalar_lea.smem %s0, 32
  %s65 = sld [smem:[%s64]]
  %s66 = scalar_lea.smem %s0, 33
  %s67 = sld [smem:[%s66]]
  %s68 = scalar_lea.smem %s0, 34
  %s69 = sld [smem:[%s68]]
  %s70 = scalar_lea.smem %s0, 35
  %s71 = sld [smem:[%s70]]
  %s72 = scalar_lea.smem %s0, 36
  %s73 = sld [smem:[%s72]]
  %s74 = scalar_lea.smem %s0, 37
  %s75 = sld [smem:[%s74]]
  %s76 = scalar_lea.smem %s0, 38
  %s77 = sld [smem:[%s76]]
  %s78 = scalar_lea.smem %s0, 39
  %s79 = sld [smem:[%s78]]
  %s80 = scalar_lea.smem %s0, 40
  %s81 = sld [smem:[%s80]]
  %s82 = scalar_lea.smem %s0, 41
  %s83 = sld [smem:[%s82]]
  %s84 = scalar_lea.smem %s0, 42
  %s85 = sld [smem:[%s84]]
  %s86 = scalar_lea.smem %s0, 43
  %s87 = sld [smem:[%s86]]
  %s88 = scalar_lea.smem %s0, 44
  %s89 = sld [smem:[%s88]]
  %s90 = scalar_lea.smem %s0, 45
  %s91 = sld [smem:[%s90]]
  %s92 = scalar_lea.smem %s0, 46
  %s93 = sld [smem:[%s92]]
  %s94 = scalar_lea.smem %s0, 47
  %s95 = sld [smem:[%s94]]
  %s96 = scalar_lea.smem %s0, 48
  %s97 = sld [smem:[%s96]]
  %s98 = scalar_lea.smem %s0, 49
  %s99 = sld [smem:[%s98]]
  %s100 = scalar_lea.smem %s0, 50
  %s101 = sld [smem:[%s100]]
  %s102 = scalar_lea.smem %s0, 51
  %s103 = sld [smem:[%s102]]
  %s104 = scalar_lea.smem %s0, 52
  %s105 = sld [smem:[%s104]]
  %s106 = scalar_lea.smem %s0, 53
  %s107 = sld [smem:[%s106]]
  %s108 = sld [smem:[#allocation0]]
  $region245: #{heart_tcn_forward.1} parent=0
    _
  %s110 = ssub.s32 1, %s108
  %s111 = scalar_select 0, %s110, %s108
  loop: start=0, step=1, limit=4
  $region2: #{heart_tcn_forward.1} parent=0 // loop_pre_header
    _
  $region3: #{heart_tcn_forward.1} parent=0 // loop_header
    %s113 = sphi 0, %s117
    %p114 = scmp.ge.s32.totalorder %s113, 4
    %s123 = sphi 0, %s125
    %s126 = sphi 0, %s123
    %s127 = sphi 0, %s126
    %s143 = sphi 0, %s127
    %s147 = sphi 0, %s147
    %s149 = sphi 0, %s147
    %s150 = sphi 0, %s149
    %s164 = sphi 0, %s150
    %s168 = sphi 0, %s168
    %s170 = sphi 0, %s168
    %s171 = sphi 0, %s170
    %s185 = sphi 0, %s171
    %s189 = sphi 0, %s189
    %s191 = sphi 0, %s189
    %s192 = sphi 0, %s191
    %s206 = sphi 0, %s192
    %s210 = sphi 0, %s210
    %s212 = sphi 0, %s210
    %s213 = sphi 0, %s212
    %s227 = sphi 0, %s213
    %s231 = sphi 0, %s231
    %s233 = sphi 0, %s231
    %s234 = sphi 0, %s233
    %s248 = sphi 0, %s234
    %s252 = sphi 0, %s252
    %s254 = sphi 0, %s252
    %s255 = sphi 0, %s254
    %s269 = sphi 0, %s255
    %s273 = sphi 0, %s273
    %s275 = sphi 0, %s273
    %s276 = sphi 0, %s275
    %s290 = sphi 0, %s276
    %s294 = sphi 0, %s294
    %s296 = sphi 0, %s294
    %s297 = sphi 0, %s296
    %s311 = sphi 0, %s297
    %s315 = sphi 0, %s315
    %s317 = sphi 0, %s315
    %s318 = sphi 0, %s317
    %s332 = sphi 0, %s318
    %s336 = sphi 0, %s336
    %s338 = sphi 0, %s336
    %s339 = sphi 0, %s338
    %s353 = sphi 0, %s339
    %s357 = sphi 0, %s357
    %s359 = sphi 0, %s357
    %s360 = sphi 0, %s359
    %s374 = sphi 0, %s360
    %s378 = sphi 0, %s378
    %s380 = sphi 0, %s378
    %s381 = sphi 0, %s380
    %s395 = sphi 0, %s381
    %s399 = sphi 0, %s399
    %s401 = sphi 0, %s399
    %s402 = sphi 0, %s401
    %s416 = sphi 0, %s402
    %s420 = sphi 0, %s420
    %s422 = sphi 0, %s420
    %s423 = sphi 0, %s422
    %s437 = sphi 0, %s423
    %s441 = sphi 0, %s441
    %s443 = sphi 0, %s441
    %s444 = sphi 0, %s443
    %s458 = sphi 0, %s444
    %s462 = sphi 0, %s462
    %s464 = sphi 0, %s462
    %s465 = sphi 0, %s464
    %s479 = sphi 0, %s465
    %s483 = sphi 0, %s483
    %s485 = sphi 0, %s483
    %s486 = sphi 0, %s485
    %s500 = sphi 0, %s486
    %s504 = sphi 0, %s504
    %s506 = sphi 0, %s504
    %s507 = sphi 0, %s506
    %s521 = sphi 0, %s507
    %s525 = sphi 0, %s525
    %s527 = sphi 0, %s525
    %s528 = sphi 0, %s527
    %s542 = sphi 0, %s528
    %s546 = sphi 0, %s546
    %s548 = sphi 0, %s546
    %s549 = sphi 0, %s548
    %s563 = sphi 0, %s549
    %s567 = sphi 0, %s567
    %s569 = sphi 0, %s567
    %s570 = sphi 0, %s569
    %s584 = sphi 0, %s570
    %s588 = sphi 0, %s588
    %s590 = sphi 0, %s588
    %s591 = sphi 0, %s590
    %s605 = sphi 0, %s591
    %s609 = sphi 0, %s609
    %s611 = sphi 0, %s609
    %s612 = sphi 0, %s611
    %s626 = sphi 0, %s612
    %s630 = sphi 0, %s630
    %s632 = sphi 0, %s630
    %s633 = sphi 0, %s632
    %s647 = sphi 0, %s633
    %s651 = sphi 0, %s651
    %s653 = sphi 0, %s651
    %s654 = sphi 0, %s653
    %s668 = sphi 0, %s654
    %s672 = sphi 0, %s672
    %s674 = sphi 0, %s672
    %s675 = sphi 0, %s674
    %s689 = sphi 0, %s675
    %s693 = sphi 0, %s693
    %s695 = sphi 0, %s693
    %s696 = sphi 0, %s695
    %s710 = sphi 0, %s696
    %s714 = sphi 0, %s714
    %s716 = sphi 0, %s714
    %s717 = sphi 0, %s716
    %s731 = sphi 0, %s717
    %s735 = sphi 0, %s735
    %s737 = sphi 0, %s735
    %s738 = sphi 0, %s737
    %s752 = sphi 0, %s738
    %s756 = sphi 0, %s756
    %s758 = sphi 0, %s756
    %s759 = sphi 0, %s758
    %s773 = sphi 0, %s759
    %s777 = sphi 0, %s777
    %s779 = sphi 0, %s777
    %s780 = sphi 0, %s779
    %s794 = sphi 0, %s780
    %s798 = sphi 0, %s798
    %s800 = sphi 0, %s798
    %s801 = sphi 0, %s800
    %s815 = sphi 0, %s801
    %s819 = sphi 0, %s819
    %s821 = sphi 0, %s819
    %s822 = sphi 0, %s821
    %s836 = sphi 0, %s822
    %s840 = sphi 0, %s840
    %s842 = sphi 0, %s840
    %s843 = sphi 0, %s842
    %s857 = sphi 0, %s843
    %s861 = sphi 0, %s861
    %s863 = sphi 0, %s861
    %s864 = sphi 0, %s863
    %s878 = sphi 0, %s864
    %s882 = sphi 0, %s882
    %s884 = sphi 0, %s882
    %s885 = sphi 0, %s884
    %s899 = sphi 0, %s885
    %s903 = sphi 0, %s903
    %s905 = sphi 0, %s903
    %s906 = sphi 0, %s905
    %s920 = sphi 0, %s906
    %s924 = sphi 0, %s924
    %s926 = sphi 0, %s924
    %s927 = sphi 0, %s926
    %s941 = sphi 0, %s927
    %s945 = sphi 0, %s945
    %s947 = sphi 0, %s945
    %s948 = sphi 0, %s947
    %s962 = sphi 0, %s948
    %s966 = sphi 0, %s966
    %s968 = sphi 0, %s966
    %s969 = sphi 0, %s968
    %s983 = sphi 0, %s969
    %s987 = sphi 0, %s987
    %s989 = sphi 0, %s987
    %s990 = sphi 0, %s989
    %s1004 = sphi 0, %s990
    %s1008 = sphi 0, %s1008
    %s1010 = sphi 0, %s1008
    %s1011 = sphi 0, %s1010
    %s1025 = sphi 0, %s1011
    %s1029 = sphi 0, %s1029
    %s1031 = sphi 0, %s1029
    %s1032 = sphi 0, %s1031
    %s1046 = sphi 0, %s1032
    %s1050 = sphi 0, %s1050
    %s1052 = sphi 0, %s1050
    %s1053 = sphi 0, %s1052
    %s1067 = sphi 0, %s1053
    %s1071 = sphi 0, %s1071
    %s1073 = sphi 0, %s1071
    %s1074 = sphi 0, %s1073
    %s1088 = sphi 0, %s1074
    %s1092 = sphi 0, %s1092
    %s1094 = sphi 0, %s1092
    %s1095 = sphi 0, %s1094
    %s1109 = sphi 0, %s1095
    %s1113 = sphi 0, %s1113
    %s1115 = sphi 0, %s1113
    %s1116 = sphi 0, %s1115
    %s1130 = sphi 0, %s1116
    %s1134 = sphi 0, %s1134
    %s1136 = sphi 0, %s1134
    %s1137 = sphi 0, %s1136
    %s1151 = sphi 0, %s1137
    %s1155 = sphi 0, %s1155
    %s1157 = sphi 0, %s1155
    %s1158 = sphi 0, %s1157
    %s1172 = sphi 0, %s1158
    %s1176 = sphi 0, %s1176
    %s1178 = sphi 0, %s1176
    %s1179 = sphi 0, %s1178
    %s1193 = sphi 0, %s1179
    %s1197 = sphi 0, %s1197
    %s1199 = sphi 0, %s1197
    %s1200 = sphi 0, %s1199
    %s1214 = sphi 0, %s1200
    %s1218 = sphi 0, %s1218
    %s1220 = sphi 0, %s1218
    %s1221 = sphi 0, %s1220
    %s1235 = sphi 0, %s1221
    %s1241 = sphi 0, %s1243
    %s1244 = sphi 0, %s1241
    %s1245 = sphi 0, %s1244
    %s1261 = sphi 0, %s1245
  $region4: #{heart_tcn_forward.1} parent=0 // loop_header_branch
    %116 = sbr.rel (%p114) target = $region8
  $region5: #{heart_tcn_forward.1} parent=0 // loop_body
    %s118 = ssub.s32 %s113, 1
    %s119 = ssub.s32 %s113, 2
    %s120 = sadd.s32 %s113, 1
    %s121 = ssub.s32 %s113, %s120
    %p122 = scmp.eq.s32.totalorder %s121, 0
    %s124 = sadd.s32 %s123, 1
    %s125 = scalar_select %p122, %s123, %s124
    %p128 = pneg %p122
    %p129 = scmp.eq.s32.totalorder %s113, 1
    %p130 = por %p128, %p129
    %p131 = scmp.ne.s32.totalorder %s123, %s126
    %p132 = scmp.eq.s32.totalorder %s113, 0
    %p133 = por %p131, %p132
    %p134 = scmp.ne.s32.totalorder %s123, %s126
    %p135 = scmp.eq.s32.totalorder %s118, 1
    %p136 = por %p134, %p135
    %p137 = scmp.ne.s32.totalorder %s126, %s127
    %p138 = scmp.eq.s32.totalorder %s118, 0
    %p139 = por %p137, %p138
    %p140 = scmp.ne.s32.totalorder %s126, %s127
    %p141 = scmp.eq.s32.totalorder %s119, 1
    %p142 = por %p140, %p141
    %p144 = scmp.ne.s32.totalorder %s127, %s143
    %p145 = scmp.eq.s32.totalorder %s119, 0
    %p146 = por %p144, %p145
    %s148 = sadd.s32 %s147, 1
    %p151 = scmp.eq.s32.totalorder %s113, 1
    %p152 = scmp.ne.s32.totalorder %s147, %s149
    %p153 = scmp.eq.s32.totalorder %s113, 0
    %p154 = por %p152, %p153
    %p155 = scmp.ne.s32.totalorder %s147, %s149
    %p156 = scmp.eq.s32.totalorder %s118, 1
    %p157 = por %p155, %p156
    %p158 = scmp.ne.s32.totalorder %s149, %s150
    %p159 = scmp.eq.s32.totalorder %s118, 0
    %p160 = por %p158, %p159
    %p161 = scmp.ne.s32.totalorder %s149, %s150
    %p162 = scmp.eq.s32.totalorder %s119, 1
    %p163 = por %p161, %p162
    %p165 = scmp.ne.s32.totalorder %s150, %s164
    %p166 = scmp.eq.s32.totalorder %s119, 0
    %p167 = por %p165, %p166
    %s169 = sadd.s32 %s168, 1
    %p172 = scmp.eq.s32.totalorder %s113, 1
    %p173 = scmp.ne.s32.totalorder %s168, %s170
    %p174 = scmp.eq.s32.totalorder %s113, 0
    %p175 = por %p173, %p174
    %p176 = scmp.ne.s32.totalorder %s168, %s170
    %p177 = scmp.eq.s32.totalorder %s118, 1
    %p178 = por %p176, %p177
    %p179 = scmp.ne.s32.totalorder %s170, %s171
    %p180 = scmp.eq.s32.totalorder %s118, 0
    %p181 = por %p179, %p180
    %p182 = scmp.ne.s32.totalorder %s170, %s171
    %p183 = scmp.eq.s32.totalorder %s119, 1
    %p184 = por %p182, %p183
    %p186 = scmp.ne.s32.totalorder %s171, %s185
    %p187 = scmp.eq.s32.totalorder %s119, 0
    %p188 = por %p186, %p187
    %s190 = sadd.s32 %s189, 1
    %p193 = scmp.eq.s32.totalorder %s113, 1
    %p194 = scmp.ne.s32.totalorder %s189, %s191
    %p195 = scmp.eq.s32.totalorder %s113, 0
    %p196 = por %p194, %p195
    %p197 = scmp.ne.s32.totalorder %s189, %s191
    %p198 = scmp.eq.s32.totalorder %s118, 1
    %p199 = por %p197, %p198
    %p200 = scmp.ne.s32.totalorder %s191, %s192
    %p201 = scmp.eq.s32.totalorder %s118, 0
    %p202 = por %p200, %p201
    %p203 = scmp.ne.s32.totalorder %s191, %s192
    %p204 = scmp.eq.s32.totalorder %s119, 1
    %p205 = por %p203, %p204
    %p207 = scmp.ne.s32.totalorder %s192, %s206
    %p208 = scmp.eq.s32.totalorder %s119, 0
    %p209 = por %p207, %p208
    %s211 = sadd.s32 %s210, 1
    %p214 = scmp.eq.s32.totalorder %s113, 1
    %p215 = scmp.ne.s32.totalorder %s210, %s212
    %p216 = scmp.eq.s32.totalorder %s113, 0
    %p217 = por %p215, %p216
    %p218 = scmp.ne.s32.totalorder %s210, %s212
    %p219 = scmp.eq.s32.totalorder %s118, 1
    %p220 = por %p218, %p219
    %p221 = scmp.ne.s32.totalorder %s212, %s213
    %p222 = scmp.eq.s32.totalorder %s118, 0
    %p223 = por %p221, %p222
    %p224 = scmp.ne.s32.totalorder %s212, %s213
    %p225 = scmp.eq.s32.totalorder %s119, 1
    %p226 = por %p224, %p225
    %p228 = scmp.ne.s32.totalorder %s213, %s227
    %p229 = scmp.eq.s32.totalorder %s119, 0
    %p230 = por %p228, %p229
    %s232 = sadd.s32 %s231, 1
    %p235 = scmp.eq.s32.totalorder %s113, 1
    %p236 = scmp.ne.s32.totalorder %s231, %s233
    %p237 = scmp.eq.s32.totalorder %s113, 0
    %p238 = por %p236, %p237
    %p239 = scmp.ne.s32.totalorder %s231, %s233
    %p240 = scmp.eq.s32.totalorder %s118, 1
    %p241 = por %p239, %p240
    %p242 = scmp.ne.s32.totalorder %s233, %s234
    %p243 = scmp.eq.s32.totalorder %s118, 0
    %p244 = por %p242, %p243
    %p245 = scmp.ne.s32.totalorder %s233, %s234
    %p246 = scmp.eq.s32.totalorder %s119, 1
    %p247 = por %p245, %p246
    %p249 = scmp.ne.s32.totalorder %s234, %s248
    %p250 = scmp.eq.s32.totalorder %s119, 0
    %p251 = por %p249, %p250
    %s253 = sadd.s32 %s252, 1
    %p256 = scmp.eq.s32.totalorder %s113, 1
    %p257 = scmp.ne.s32.totalorder %s252, %s254
    %p258 = scmp.eq.s32.totalorder %s113, 0
    %p259 = por %p257, %p258
    %p260 = scmp.ne.s32.totalorder %s252, %s254
    %p261 = scmp.eq.s32.totalorder %s118, 1
    %p262 = por %p260, %p261
    %p263 = scmp.ne.s32.totalorder %s254, %s255
    %p264 = scmp.eq.s32.totalorder %s118, 0
    %p265 = por %p263, %p264
    %p266 = scmp.ne.s32.totalorder %s254, %s255
    %p267 = scmp.eq.s32.totalorder %s119, 1
    %p268 = por %p266, %p267
    %p270 = scmp.ne.s32.totalorder %s255, %s269
    %p271 = scmp.eq.s32.totalorder %s119, 0
    %p272 = por %p270, %p271
    %s274 = sadd.s32 %s273, 1
    %p277 = scmp.eq.s32.totalorder %s113, 1
    %p278 = scmp.ne.s32.totalorder %s273, %s275
    %p279 = scmp.eq.s32.totalorder %s113, 0
    %p280 = por %p278, %p279
    %p281 = scmp.ne.s32.totalorder %s273, %s275
    %p282 = scmp.eq.s32.totalorder %s118, 1
    %p283 = por %p281, %p282
    %p284 = scmp.ne.s32.totalorder %s275, %s276
    %p285 = scmp.eq.s32.totalorder %s118, 0
    %p286 = por %p284, %p285
    %p287 = scmp.ne.s32.totalorder %s275, %s276
    %p288 = scmp.eq.s32.totalorder %s119, 1
    %p289 = por %p287, %p288
    %p291 = scmp.ne.s32.totalorder %s276, %s290
    %p292 = scmp.eq.s32.totalorder %s119, 0
    %p293 = por %p291, %p292
    %s295 = sadd.s32 %s294, 1
    %p298 = scmp.eq.s32.totalorder %s113, 1
    %p299 = scmp.ne.s32.totalorder %s294, %s296
    %p300 = scmp.eq.s32.totalorder %s113, 0
    %p301 = por %p299, %p300
    %p302 = scmp.ne.s32.totalorder %s294, %s296
    %p303 = scmp.eq.s32.totalorder %s118, 1
    %p304 = por %p302, %p303
    %p305 = scmp.ne.s32.totalorder %s296, %s297
    %p306 = scmp.eq.s32.totalorder %s118, 0
    %p307 = por %p305, %p306
    %p308 = scmp.ne.s32.totalorder %s296, %s297
    %p309 = scmp.eq.s32.totalorder %s119, 1
    %p310 = por %p308, %p309
    %p312 = scmp.ne.s32.totalorder %s297, %s311
    %p313 = scmp.eq.s32.totalorder %s119, 0
    %p314 = por %p312, %p313
    %s316 = sadd.s32 %s315, 1
    %p319 = scmp.eq.s32.totalorder %s113, 1
    %p320 = scmp.ne.s32.totalorder %s315, %s317
    %p321 = scmp.eq.s32.totalorder %s113, 0
    %p322 = por %p320, %p321
    %p323 = scmp.ne.s32.totalorder %s315, %s317
    %p324 = scmp.eq.s32.totalorder %s118, 1
    %p325 = por %p323, %p324
    %p326 = scmp.ne.s32.totalorder %s317, %s318
    %p327 = scmp.eq.s32.totalorder %s118, 0
    %p328 = por %p326, %p327
    %p329 = scmp.ne.s32.totalorder %s317, %s318
    %p330 = scmp.eq.s32.totalorder %s119, 1
    %p331 = por %p329, %p330
    %p333 = scmp.ne.s32.totalorder %s318, %s332
    %p334 = scmp.eq.s32.totalorder %s119, 0
    %p335 = por %p333, %p334
    %s337 = sadd.s32 %s336, 1
    %p340 = scmp.eq.s32.totalorder %s113, 1
    %p341 = scmp.ne.s32.totalorder %s336, %s338
    %p342 = scmp.eq.s32.totalorder %s113, 0
    %p343 = por %p341, %p342
    %p344 = scmp.ne.s32.totalorder %s336, %s338
    %p345 = scmp.eq.s32.totalorder %s118, 1
    %p346 = por %p344, %p345
    %p347 = scmp.ne.s32.totalorder %s338, %s339
    %p348 = scmp.eq.s32.totalorder %s118, 0
    %p349 = por %p347, %p348
    %p350 = scmp.ne.s32.totalorder %s338, %s339
    %p351 = scmp.eq.s32.totalorder %s119, 1
    %p352 = por %p350, %p351
    %p354 = scmp.ne.s32.totalorder %s339, %s353
    %p355 = scmp.eq.s32.totalorder %s119, 0
    %p356 = por %p354, %p355
    %s358 = sadd.s32 %s357, 1
    %p361 = scmp.eq.s32.totalorder %s113, 1
    %p362 = scmp.ne.s32.totalorder %s357, %s359
    %p363 = scmp.eq.s32.totalorder %s113, 0
    %p364 = por %p362, %p363
    %p365 = scmp.ne.s32.totalorder %s357, %s359
    %p366 = scmp.eq.s32.totalorder %s118, 1
    %p367 = por %p365, %p366
    %p368 = scmp.ne.s32.totalorder %s359, %s360
    %p369 = scmp.eq.s32.totalorder %s118, 0
    %p370 = por %p368, %p369
    %p371 = scmp.ne.s32.totalorder %s359, %s360
    %p372 = scmp.eq.s32.totalorder %s119, 1
    %p373 = por %p371, %p372
    %p375 = scmp.ne.s32.totalorder %s360, %s374
    %p376 = scmp.eq.s32.totalorder %s119, 0
    %p377 = por %p375, %p376
    %s379 = sadd.s32 %s378, 1
    %p382 = scmp.eq.s32.totalorder %s113, 1
    %p383 = scmp.ne.s32.totalorder %s378, %s380
    %p384 = scmp.eq.s32.totalorder %s113, 0
    %p385 = por %p383, %p384
    %p386 = scmp.ne.s32.totalorder %s378, %s380
    %p387 = scmp.eq.s32.totalorder %s118, 1
    %p388 = por %p386, %p387
    %p389 = scmp.ne.s32.totalorder %s380, %s381
    %p390 = scmp.eq.s32.totalorder %s118, 0
    %p391 = por %p389, %p390
    %p392 = scmp.ne.s32.totalorder %s380, %s381
    %p393 = scmp.eq.s32.totalorder %s119, 1
    %p394 = por %p392, %p393
    %p396 = scmp.ne.s32.totalorder %s381, %s395
    %p397 = scmp.eq.s32.totalorder %s119, 0
    %p398 = por %p396, %p397
    %s400 = sadd.s32 %s399, 1
    %p403 = scmp.eq.s32.totalorder %s113, 1
    %p404 = scmp.ne.s32.totalorder %s399, %s401
    %p405 = scmp.eq.s32.totalorder %s113, 0
    %p406 = por %p404, %p405
    %p407 = scmp.ne.s32.totalorder %s399, %s401
    %p408 = scmp.eq.s32.totalorder %s118, 1
    %p409 = por %p407, %p408
    %p410 = scmp.ne.s32.totalorder %s401, %s402
    %p411 = scmp.eq.s32.totalorder %s118, 0
    %p412 = por %p410, %p411
    %p413 = scmp.ne.s32.totalorder %s401, %s402
    %p414 = scmp.eq.s32.totalorder %s119, 1
    %p415 = por %p413, %p414
    %p417 = scmp.ne.s32.totalorder %s402, %s416
    %p418 = scmp.eq.s32.totalorder %s119, 0
    %p419 = por %p417, %p418
    %s421 = sadd.s32 %s420, 1
    %p424 = scmp.eq.s32.totalorder %s113, 1
    %p425 = scmp.ne.s32.totalorder %s420, %s422
    %p426 = scmp.eq.s32.totalorder %s113, 0
    %p427 = por %p425, %p426
    %p428 = scmp.ne.s32.totalorder %s420, %s422
    %p429 = scmp.eq.s32.totalorder %s118, 1
    %p430 = por %p428, %p429
    %p431 = scmp.ne.s32.totalorder %s422, %s423
    %p432 = scmp.eq.s32.totalorder %s118, 0
    %p433 = por %p431, %p432
    %p434 = scmp.ne.s32.totalorder %s422, %s423
    %p435 = scmp.eq.s32.totalorder %s119, 1
    %p436 = por %p434, %p435
    %p438 = scmp.ne.s32.totalorder %s423, %s437
    %p439 = scmp.eq.s32.totalorder %s119, 0
    %p440 = por %p438, %p439
    %s442 = sadd.s32 %s441, 1
    %p445 = scmp.eq.s32.totalorder %s113, 1
    %p446 = scmp.ne.s32.totalorder %s441, %s443
    %p447 = scmp.eq.s32.totalorder %s113, 0
    %p448 = por %p446, %p447
    %p449 = scmp.ne.s32.totalorder %s441, %s443
    %p450 = scmp.eq.s32.totalorder %s118, 1
    %p451 = por %p449, %p450
    %p452 = scmp.ne.s32.totalorder %s443, %s444
    %p453 = scmp.eq.s32.totalorder %s118, 0
    %p454 = por %p452, %p453
    %p455 = scmp.ne.s32.totalorder %s443, %s444
    %p456 = scmp.eq.s32.totalorder %s119, 1
    %p457 = por %p455, %p456
    %p459 = scmp.ne.s32.totalorder %s444, %s458
    %p460 = scmp.eq.s32.totalorder %s119, 0
    %p461 = por %p459, %p460
    %s463 = sadd.s32 %s462, 1
    %p466 = scmp.eq.s32.totalorder %s113, 1
    %p467 = scmp.ne.s32.totalorder %s462, %s464
    %p468 = scmp.eq.s32.totalorder %s113, 0
    %p469 = por %p467, %p468
    %p470 = scmp.ne.s32.totalorder %s462, %s464
    %p471 = scmp.eq.s32.totalorder %s118, 1
    %p472 = por %p470, %p471
    %p473 = scmp.ne.s32.totalorder %s464, %s465
    %p474 = scmp.eq.s32.totalorder %s118, 0
    %p475 = por %p473, %p474
    %p476 = scmp.ne.s32.totalorder %s464, %s465
    %p477 = scmp.eq.s32.totalorder %s119, 1
    %p478 = por %p476, %p477
    %p480 = scmp.ne.s32.totalorder %s465, %s479
    %p481 = scmp.eq.s32.totalorder %s119, 0
    %p482 = por %p480, %p481
    %s484 = sadd.s32 %s483, 1
    %p487 = scmp.eq.s32.totalorder %s113, 1
    %p488 = scmp.ne.s32.totalorder %s483, %s485
    %p489 = scmp.eq.s32.totalorder %s113, 0
    %p490 = por %p488, %p489
    %p491 = scmp.ne.s32.totalorder %s483, %s485
    %p492 = scmp.eq.s32.totalorder %s118, 1
    %p493 = por %p491, %p492
    %p494 = scmp.ne.s32.totalorder %s485, %s486
    %p495 = scmp.eq.s32.totalorder %s118, 0
    %p496 = por %p494, %p495
    %p497 = scmp.ne.s32.totalorder %s485, %s486
    %p498 = scmp.eq.s32.totalorder %s119, 1
    %p499 = por %p497, %p498
    %p501 = scmp.ne.s32.totalorder %s486, %s500
    %p502 = scmp.eq.s32.totalorder %s119, 0
    %p503 = por %p501, %p502
    %s505 = sadd.s32 %s504, 1
    %p508 = scmp.eq.s32.totalorder %s113, 1
    %p509 = scmp.ne.s32.totalorder %s504, %s506
    %p510 = scmp.eq.s32.totalorder %s113, 0
    %p511 = por %p509, %p510
    %p512 = scmp.ne.s32.totalorder %s504, %s506
    %p513 = scmp.eq.s32.totalorder %s118, 1
    %p514 = por %p512, %p513
    %p515 = scmp.ne.s32.totalorder %s506, %s507
    %p516 = scmp.eq.s32.totalorder %s118, 0
    %p517 = por %p515, %p516
    %p518 = scmp.ne.s32.totalorder %s506, %s507
    %p519 = scmp.eq.s32.totalorder %s119, 1
    %p520 = por %p518, %p519
    %p522 = scmp.ne.s32.totalorder %s507, %s521
    %p523 = scmp.eq.s32.totalorder %s119, 0
    %p524 = por %p522, %p523
    %s526 = sadd.s32 %s525, 1
    %p529 = scmp.eq.s32.totalorder %s113, 1
    %p530 = scmp.ne.s32.totalorder %s525, %s527
    %p531 = scmp.eq.s32.totalorder %s113, 0
    %p532 = por %p530, %p531
    %p533 = scmp.ne.s32.totalorder %s525, %s527
    %p534 = scmp.eq.s32.totalorder %s118, 1
    %p535 = por %p533, %p534
    %p536 = scmp.ne.s32.totalorder %s527, %s528
    %p537 = scmp.eq.s32.totalorder %s118, 0
    %p538 = por %p536, %p537
    %p539 = scmp.ne.s32.totalorder %s527, %s528
    %p540 = scmp.eq.s32.totalorder %s119, 1
    %p541 = por %p539, %p540
    %p543 = scmp.ne.s32.totalorder %s528, %s542
    %p544 = scmp.eq.s32.totalorder %s119, 0
    %p545 = por %p543, %p544
    %s547 = sadd.s32 %s546, 1
    %p550 = scmp.eq.s32.totalorder %s113, 1
    %p551 = scmp.ne.s32.totalorder %s546, %s548
    %p552 = scmp.eq.s32.totalorder %s113, 0
    %p553 = por %p551, %p552
    %p554 = scmp.ne.s32.totalorder %s546, %s548
    %p555 = scmp.eq.s32.totalorder %s118, 1
    %p556 = por %p554, %p555
    %p557 = scmp.ne.s32.totalorder %s548, %s549
    %p558 = scmp.eq.s32.totalorder %s118, 0
    %p559 = por %p557, %p558
    %p560 = scmp.ne.s32.totalorder %s548, %s549
    %p561 = scmp.eq.s32.totalorder %s119, 1
    %p562 = por %p560, %p561
    %p564 = scmp.ne.s32.totalorder %s549, %s563
    %p565 = scmp.eq.s32.totalorder %s119, 0
    %p566 = por %p564, %p565
    %s568 = sadd.s32 %s567, 1
    %p571 = scmp.eq.s32.totalorder %s113, 1
    %p572 = scmp.ne.s32.totalorder %s567, %s569
    %p573 = scmp.eq.s32.totalorder %s113, 0
    %p574 = por %p572, %p573
    %p575 = scmp.ne.s32.totalorder %s567, %s569
    %p576 = scmp.eq.s32.totalorder %s118, 1
    %p577 = por %p575, %p576
    %p578 = scmp.ne.s32.totalorder %s569, %s570
    %p579 = scmp.eq.s32.totalorder %s118, 0
    %p580 = por %p578, %p579
    %p581 = scmp.ne.s32.totalorder %s569, %s570
    %p582 = scmp.eq.s32.totalorder %s119, 1
    %p583 = por %p581, %p582
    %p585 = scmp.ne.s32.totalorder %s570, %s584
    %p586 = scmp.eq.s32.totalorder %s119, 0
    %p587 = por %p585, %p586
    %s589 = sadd.s32 %s588, 1
    %p592 = scmp.eq.s32.totalorder %s113, 1
    %p593 = scmp.ne.s32.totalorder %s588, %s590
    %p594 = scmp.eq.s32.totalorder %s113, 0
    %p595 = por %p593, %p594
    %p596 = scmp.ne.s32.totalorder %s588, %s590
    %p597 = scmp.eq.s32.totalorder %s118, 1
    %p598 = por %p596, %p597
    %p599 = scmp.ne.s32.totalorder %s590, %s591
    %p600 = scmp.eq.s32.totalorder %s118, 0
    %p601 = por %p599, %p600
    %p602 = scmp.ne.s32.totalorder %s590, %s591
    %p603 = scmp.eq.s32.totalorder %s119, 1
    %p604 = por %p602, %p603
    %p606 = scmp.ne.s32.totalorder %s591, %s605
    %p607 = scmp.eq.s32.totalorder %s119, 0
    %p608 = por %p606, %p607
    %s610 = sadd.s32 %s609, 1
    %p613 = scmp.eq.s32.totalorder %s113, 1
    %p614 = scmp.ne.s32.totalorder %s609, %s611
    %p615 = scmp.eq.s32.totalorder %s113, 0
    %p616 = por %p614, %p615
    %p617 = scmp.ne.s32.totalorder %s609, %s611
    %p618 = scmp.eq.s32.totalorder %s118, 1
    %p619 = por %p617, %p618
    %p620 = scmp.ne.s32.totalorder %s611, %s612
    %p621 = scmp.eq.s32.totalorder %s118, 0
    %p622 = por %p620, %p621
    %p623 = scmp.ne.s32.totalorder %s611, %s612
    %p624 = scmp.eq.s32.totalorder %s119, 1
    %p625 = por %p623, %p624
    %p627 = scmp.ne.s32.totalorder %s612, %s626
    %p628 = scmp.eq.s32.totalorder %s119, 0
    %p629 = por %p627, %p628
    %s631 = sadd.s32 %s630, 1
    %p634 = scmp.eq.s32.totalorder %s113, 1
    %p635 = scmp.ne.s32.totalorder %s630, %s632
    %p636 = scmp.eq.s32.totalorder %s113, 0
    %p637 = por %p635, %p636
    %p638 = scmp.ne.s32.totalorder %s630, %s632
    %p639 = scmp.eq.s32.totalorder %s118, 1
    %p640 = por %p638, %p639
    %p641 = scmp.ne.s32.totalorder %s632, %s633
    %p642 = scmp.eq.s32.totalorder %s118, 0
    %p643 = por %p641, %p642
    %p644 = scmp.ne.s32.totalorder %s632, %s633
    %p645 = scmp.eq.s32.totalorder %s119, 1
    %p646 = por %p644, %p645
    %p648 = scmp.ne.s32.totalorder %s633, %s647
    %p649 = scmp.eq.s32.totalorder %s119, 0
    %p650 = por %p648, %p649
    %s652 = sadd.s32 %s651, 1
    %p655 = scmp.eq.s32.totalorder %s113, 1
    %p656 = scmp.ne.s32.totalorder %s651, %s653
    %p657 = scmp.eq.s32.totalorder %s113, 0
    %p658 = por %p656, %p657
    %p659 = scmp.ne.s32.totalorder %s651, %s653
    %p660 = scmp.eq.s32.totalorder %s118, 1
    %p661 = por %p659, %p660
    %p662 = scmp.ne.s32.totalorder %s653, %s654
    %p663 = scmp.eq.s32.totalorder %s118, 0
    %p664 = por %p662, %p663
    %p665 = scmp.ne.s32.totalorder %s653, %s654
    %p666 = scmp.eq.s32.totalorder %s119, 1
    %p667 = por %p665, %p666
    %p669 = scmp.ne.s32.totalorder %s654, %s668
    %p670 = scmp.eq.s32.totalorder %s119, 0
    %p671 = por %p669, %p670
    %s673 = sadd.s32 %s672, 1
    %p676 = scmp.eq.s32.totalorder %s113, 1
    %p677 = scmp.ne.s32.totalorder %s672, %s674
    %p678 = scmp.eq.s32.totalorder %s113, 0
    %p679 = por %p677, %p678
    %p680 = scmp.ne.s32.totalorder %s672, %s674
    %p681 = scmp.eq.s32.totalorder %s118, 1
    %p682 = por %p680, %p681
    %p683 = scmp.ne.s32.totalorder %s674, %s675
    %p684 = scmp.eq.s32.totalorder %s118, 0
    %p685 = por %p683, %p684
    %p686 = scmp.ne.s32.totalorder %s674, %s675
    %p687 = scmp.eq.s32.totalorder %s119, 1
    %p688 = por %p686, %p687
    %p690 = scmp.ne.s32.totalorder %s675, %s689
    %p691 = scmp.eq.s32.totalorder %s119, 0
    %p692 = por %p690, %p691
    %s694 = sadd.s32 %s693, 1
    %p697 = scmp.eq.s32.totalorder %s113, 1
    %p698 = scmp.ne.s32.totalorder %s693, %s695
    %p699 = scmp.eq.s32.totalorder %s113, 0
    %p700 = por %p698, %p699
    %p701 = scmp.ne.s32.totalorder %s693, %s695
    %p702 = scmp.eq.s32.totalorder %s118, 1
    %p703 = por %p701, %p702
    %p704 = scmp.ne.s32.totalorder %s695, %s696
    %p705 = scmp.eq.s32.totalorder %s118, 0
    %p706 = por %p704, %p705
    %p707 = scmp.ne.s32.totalorder %s695, %s696
    %p708 = scmp.eq.s32.totalorder %s119, 1
    %p709 = por %p707, %p708
    %p711 = scmp.ne.s32.totalorder %s696, %s710
    %p712 = scmp.eq.s32.totalorder %s119, 0
    %p713 = por %p711, %p712
    %s715 = sadd.s32 %s714, 1
    %p718 = scmp.eq.s32.totalorder %s113, 1
    %p719 = scmp.ne.s32.totalorder %s714, %s716
    %p720 = scmp.eq.s32.totalorder %s113, 0
    %p721 = por %p719, %p720
    %p722 = scmp.ne.s32.totalorder %s714, %s716
    %p723 = scmp.eq.s32.totalorder %s118, 1
    %p724 = por %p722, %p723
    %p725 = scmp.ne.s32.totalorder %s716, %s717
    %p726 = scmp.eq.s32.totalorder %s118, 0
    %p727 = por %p725, %p726
    %p728 = scmp.ne.s32.totalorder %s716, %s717
    %p729 = scmp.eq.s32.totalorder %s119, 1
    %p730 = por %p728, %p729
    %p732 = scmp.ne.s32.totalorder %s717, %s731
    %p733 = scmp.eq.s32.totalorder %s119, 0
    %p734 = por %p732, %p733
    %s736 = sadd.s32 %s735, 1
    %p739 = scmp.eq.s32.totalorder %s113, 1
    %p740 = scmp.ne.s32.totalorder %s735, %s737
    %p741 = scmp.eq.s32.totalorder %s113, 0
    %p742 = por %p740, %p741
    %p743 = scmp.ne.s32.totalorder %s735, %s737
    %p744 = scmp.eq.s32.totalorder %s118, 1
    %p745 = por %p743, %p744
    %p746 = scmp.ne.s32.totalorder %s737, %s738
    %p747 = scmp.eq.s32.totalorder %s118, 0
    %p748 = por %p746, %p747
    %p749 = scmp.ne.s32.totalorder %s737, %s738
    %p750 = scmp.eq.s32.totalorder %s119, 1
    %p751 = por %p749, %p750
    %p753 = scmp.ne.s32.totalorder %s738, %s752
    %p754 = scmp.eq.s32.totalorder %s119, 0
    %p755 = por %p753, %p754
    %s757 = sadd.s32 %s756, 1
    %p760 = scmp.eq.s32.totalorder %s113, 1
    %p761 = scmp.ne.s32.totalorder %s756, %s758
    %p762 = scmp.eq.s32.totalorder %s113, 0
    %p763 = por %p761, %p762
    %p764 = scmp.ne.s32.totalorder %s756, %s758
    %p765 = scmp.eq.s32.totalorder %s118, 1
    %p766 = por %p764, %p765
    %p767 = scmp.ne.s32.totalorder %s758, %s759
    %p768 = scmp.eq.s32.totalorder %s118, 0
    %p769 = por %p767, %p768
    %p770 = scmp.ne.s32.totalorder %s758, %s759
    %p771 = scmp.eq.s32.totalorder %s119, 1
    %p772 = por %p770, %p771
    %p774 = scmp.ne.s32.totalorder %s759, %s773
    %p775 = scmp.eq.s32.totalorder %s119, 0
    %p776 = por %p774, %p775
    %s778 = sadd.s32 %s777, 1
    %p781 = scmp.eq.s32.totalorder %s113, 1
    %p782 = scmp.ne.s32.totalorder %s777, %s779
    %p783 = scmp.eq.s32.totalorder %s113, 0
    %p784 = por %p782, %p783
    %p785 = scmp.ne.s32.totalorder %s777, %s779
    %p786 = scmp.eq.s32.totalorder %s118, 1
    %p787 = por %p785, %p786
    %p788 = scmp.ne.s32.totalorder %s779, %s780
    %p789 = scmp.eq.s32.totalorder %s118, 0
    %p790 = por %p788, %p789
    %p791 = scmp.ne.s32.totalorder %s779, %s780
    %p792 = scmp.eq.s32.totalorder %s119, 1
    %p793 = por %p791, %p792
    %p795 = scmp.ne.s32.totalorder %s780, %s794
    %p796 = scmp.eq.s32.totalorder %s119, 0
    %p797 = por %p795, %p796
    %s799 = sadd.s32 %s798, 1
    %p802 = scmp.eq.s32.totalorder %s113, 1
    %p803 = scmp.ne.s32.totalorder %s798, %s800
    %p804 = scmp.eq.s32.totalorder %s113, 0
    %p805 = por %p803, %p804
    %p806 = scmp.ne.s32.totalorder %s798, %s800
    %p807 = scmp.eq.s32.totalorder %s118, 1
    %p808 = por %p806, %p807
    %p809 = scmp.ne.s32.totalorder %s800, %s801
    %p810 = scmp.eq.s32.totalorder %s118, 0
    %p811 = por %p809, %p810
    %p812 = scmp.ne.s32.totalorder %s800, %s801
    %p813 = scmp.eq.s32.totalorder %s119, 1
    %p814 = por %p812, %p813
    %p816 = scmp.ne.s32.totalorder %s801, %s815
    %p817 = scmp.eq.s32.totalorder %s119, 0
    %p818 = por %p816, %p817
    %s820 = sadd.s32 %s819, 1
    %p823 = scmp.eq.s32.totalorder %s113, 1
    %p824 = scmp.ne.s32.totalorder %s819, %s821
    %p825 = scmp.eq.s32.totalorder %s113, 0
    %p826 = por %p824, %p825
    %p827 = scmp.ne.s32.totalorder %s819, %s821
    %p828 = scmp.eq.s32.totalorder %s118, 1
    %p829 = por %p827, %p828
    %p830 = scmp.ne.s32.totalorder %s821, %s822
    %p831 = scmp.eq.s32.totalorder %s118, 0
    %p832 = por %p830, %p831
    %p833 = scmp.ne.s32.totalorder %s821, %s822
    %p834 = scmp.eq.s32.totalorder %s119, 1
    %p835 = por %p833, %p834
    %p837 = scmp.ne.s32.totalorder %s822, %s836
    %p838 = scmp.eq.s32.totalorder %s119, 0
    %p839 = por %p837, %p838
    %s841 = sadd.s32 %s840, 1
    %p844 = scmp.eq.s32.totalorder %s113, 1
    %p845 = scmp.ne.s32.totalorder %s840, %s842
    %p846 = scmp.eq.s32.totalorder %s113, 0
    %p847 = por %p845, %p846
    %p848 = scmp.ne.s32.totalorder %s840, %s842
    %p849 = scmp.eq.s32.totalorder %s118, 1
    %p850 = por %p848, %p849
    %p851 = scmp.ne.s32.totalorder %s842, %s843
    %p852 = scmp.eq.s32.totalorder %s118, 0
    %p853 = por %p851, %p852
    %p854 = scmp.ne.s32.totalorder %s842, %s843
    %p855 = scmp.eq.s32.totalorder %s119, 1
    %p856 = por %p854, %p855
    %p858 = scmp.ne.s32.totalorder %s843, %s857
    %p859 = scmp.eq.s32.totalorder %s119, 0
    %p860 = por %p858, %p859
    %s862 = sadd.s32 %s861, 1
    %p865 = scmp.eq.s32.totalorder %s113, 1
    %p866 = scmp.ne.s32.totalorder %s861, %s863
    %p867 = scmp.eq.s32.totalorder %s113, 0
    %p868 = por %p866, %p867
    %p869 = scmp.ne.s32.totalorder %s861, %s863
    %p870 = scmp.eq.s32.totalorder %s118, 1
    %p871 = por %p869, %p870
    %p872 = scmp.ne.s32.totalorder %s863, %s864
    %p873 = scmp.eq.s32.totalorder %s118, 0
    %p874 = por %p872, %p873
    %p875 = scmp.ne.s32.totalorder %s863, %s864
    %p876 = scmp.eq.s32.totalorder %s119, 1
    %p877 = por %p875, %p876
    %p879 = scmp.ne.s32.totalorder %s864, %s878
    %p880 = scmp.eq.s32.totalorder %s119, 0
    %p881 = por %p879, %p880
    %s883 = sadd.s32 %s882, 1
    %p886 = scmp.eq.s32.totalorder %s113, 1
    %p887 = scmp.ne.s32.totalorder %s882, %s884
    %p888 = scmp.eq.s32.totalorder %s113, 0
    %p889 = por %p887, %p888
    %p890 = scmp.ne.s32.totalorder %s882, %s884
    %p891 = scmp.eq.s32.totalorder %s118, 1
    %p892 = por %p890, %p891
    %p893 = scmp.ne.s32.totalorder %s884, %s885
    %p894 = scmp.eq.s32.totalorder %s118, 0
    %p895 = por %p893, %p894
    %p896 = scmp.ne.s32.totalorder %s884, %s885
    %p897 = scmp.eq.s32.totalorder %s119, 1
    %p898 = por %p896, %p897
    %p900 = scmp.ne.s32.totalorder %s885, %s899
    %p901 = scmp.eq.s32.totalorder %s119, 0
    %p902 = por %p900, %p901
    %s904 = sadd.s32 %s903, 1
    %p907 = scmp.eq.s32.totalorder %s113, 1
    %p908 = scmp.ne.s32.totalorder %s903, %s905
    %p909 = scmp.eq.s32.totalorder %s113, 0
    %p910 = por %p908, %p909
    %p911 = scmp.ne.s32.totalorder %s903, %s905
    %p912 = scmp.eq.s32.totalorder %s118, 1
    %p913 = por %p911, %p912
    %p914 = scmp.ne.s32.totalorder %s905, %s906
    %p915 = scmp.eq.s32.totalorder %s118, 0
    %p916 = por %p914, %p915
    %p917 = scmp.ne.s32.totalorder %s905, %s906
    %p918 = scmp.eq.s32.totalorder %s119, 1
    %p919 = por %p917, %p918
    %p921 = scmp.ne.s32.totalorder %s906, %s920
    %p922 = scmp.eq.s32.totalorder %s119, 0
    %p923 = por %p921, %p922
    %s925 = sadd.s32 %s924, 1
    %p928 = scmp.eq.s32.totalorder %s113, 1
    %p929 = scmp.ne.s32.totalorder %s924, %s926
    %p930 = scmp.eq.s32.totalorder %s113, 0
    %p931 = por %p929, %p930
    %p932 = scmp.ne.s32.totalorder %s924, %s926
    %p933 = scmp.eq.s32.totalorder %s118, 1
    %p934 = por %p932, %p933
    %p935 = scmp.ne.s32.totalorder %s926, %s927
    %p936 = scmp.eq.s32.totalorder %s118, 0
    %p937 = por %p935, %p936
    %p938 = scmp.ne.s32.totalorder %s926, %s927
    %p939 = scmp.eq.s32.totalorder %s119, 1
    %p940 = por %p938, %p939
    %p942 = scmp.ne.s32.totalorder %s927, %s941
    %p943 = scmp.eq.s32.totalorder %s119, 0
    %p944 = por %p942, %p943
    %s946 = sadd.s32 %s945, 1
    %p949 = scmp.eq.s32.totalorder %s113, 1
    %p950 = scmp.ne.s32.totalorder %s945, %s947
    %p951 = scmp.eq.s32.totalorder %s113, 0
    %p952 = por %p950, %p951
    %p953 = scmp.ne.s32.totalorder %s945, %s947
    %p954 = scmp.eq.s32.totalorder %s118, 1
    %p955 = por %p953, %p954
    %p956 = scmp.ne.s32.totalorder %s947, %s948
    %p957 = scmp.eq.s32.totalorder %s118, 0
    %p958 = por %p956, %p957
    %p959 = scmp.ne.s32.totalorder %s947, %s948
    %p960 = scmp.eq.s32.totalorder %s119, 1
    %p961 = por %p959, %p960
    %p963 = scmp.ne.s32.totalorder %s948, %s962
    %p964 = scmp.eq.s32.totalorder %s119, 0
    %p965 = por %p963, %p964
    %s967 = sadd.s32 %s966, 1
    %p970 = scmp.eq.s32.totalorder %s113, 1
    %p971 = scmp.ne.s32.totalorder %s966, %s968
    %p972 = scmp.eq.s32.totalorder %s113, 0
    %p973 = por %p971, %p972
    %p974 = scmp.ne.s32.totalorder %s966, %s968
    %p975 = scmp.eq.s32.totalorder %s118, 1
    %p976 = por %p974, %p975
    %p977 = scmp.ne.s32.totalorder %s968, %s969
    %p978 = scmp.eq.s32.totalorder %s118, 0
    %p979 = por %p977, %p978
    %p980 = scmp.ne.s32.totalorder %s968, %s969
    %p981 = scmp.eq.s32.totalorder %s119, 1
    %p982 = por %p980, %p981
    %p984 = scmp.ne.s32.totalorder %s969, %s983
    %p985 = scmp.eq.s32.totalorder %s119, 0
    %p986 = por %p984, %p985
    %s988 = sadd.s32 %s987, 1
    %p991 = scmp.eq.s32.totalorder %s113, 1
    %p992 = scmp.ne.s32.totalorder %s987, %s989
    %p993 = scmp.eq.s32.totalorder %s113, 0
    %p994 = por %p992, %p993
    %p995 = scmp.ne.s32.totalorder %s987, %s989
    %p996 = scmp.eq.s32.totalorder %s118, 1
    %p997 = por %p995, %p996
    %p998 = scmp.ne.s32.totalorder %s989, %s990
    %p999 = scmp.eq.s32.totalorder %s118, 0
    %p1000 = por %p998, %p999
    %p1001 = scmp.ne.s32.totalorder %s989, %s990
    %p1002 = scmp.eq.s32.totalorder %s119, 1
    %p1003 = por %p1001, %p1002
    %p1005 = scmp.ne.s32.totalorder %s990, %s1004
    %p1006 = scmp.eq.s32.totalorder %s119, 0
    %p1007 = por %p1005, %p1006
    %s1009 = sadd.s32 %s1008, 1
    %p1012 = scmp.eq.s32.totalorder %s113, 1
    %p1013 = scmp.ne.s32.totalorder %s1008, %s1010
    %p1014 = scmp.eq.s32.totalorder %s113, 0
    %p1015 = por %p1013, %p1014
    %p1016 = scmp.ne.s32.totalorder %s1008, %s1010
    %p1017 = scmp.eq.s32.totalorder %s118, 1
    %p1018 = por %p1016, %p1017
    %p1019 = scmp.ne.s32.totalorder %s1010, %s1011
    %p1020 = scmp.eq.s32.totalorder %s118, 0
    %p1021 = por %p1019, %p1020
    %p1022 = scmp.ne.s32.totalorder %s1010, %s1011
    %p1023 = scmp.eq.s32.totalorder %s119, 1
    %p1024 = por %p1022, %p1023
    %p1026 = scmp.ne.s32.totalorder %s1011, %s1025
    %p1027 = scmp.eq.s32.totalorder %s119, 0
    %p1028 = por %p1026, %p1027
    %s1030 = sadd.s32 %s1029, 1
    %p1033 = scmp.eq.s32.totalorder %s113, 1
    %p1034 = scmp.ne.s32.totalorder %s1029, %s1031
    %p1035 = scmp.eq.s32.totalorder %s113, 0
    %p1036 = por %p1034, %p1035
    %p1037 = scmp.ne.s32.totalorder %s1029, %s1031
    %p1038 = scmp.eq.s32.totalorder %s118, 1
    %p1039 = por %p1037, %p1038
    %p1040 = scmp.ne.s32.totalorder %s1031, %s1032
    %p1041 = scmp.eq.s32.totalorder %s118, 0
    %p1042 = por %p1040, %p1041
    %p1043 = scmp.ne.s32.totalorder %s1031, %s1032
    %p1044 = scmp.eq.s32.totalorder %s119, 1
    %p1045 = por %p1043, %p1044
    %p1047 = scmp.ne.s32.totalorder %s1032, %s1046
    %p1048 = scmp.eq.s32.totalorder %s119, 0
    %p1049 = por %p1047, %p1048
    %s1051 = sadd.s32 %s1050, 1
    %p1054 = scmp.eq.s32.totalorder %s113, 1
    %p1055 = scmp.ne.s32.totalorder %s1050, %s1052
    %p1056 = scmp.eq.s32.totalorder %s113, 0
    %p1057 = por %p1055, %p1056
    %p1058 = scmp.ne.s32.totalorder %s1050, %s1052
    %p1059 = scmp.eq.s32.totalorder %s118, 1
    %p1060 = por %p1058, %p1059
    %p1061 = scmp.ne.s32.totalorder %s1052, %s1053
    %p1062 = scmp.eq.s32.totalorder %s118, 0
    %p1063 = por %p1061, %p1062
    %p1064 = scmp.ne.s32.totalorder %s1052, %s1053
    %p1065 = scmp.eq.s32.totalorder %s119, 1
    %p1066 = por %p1064, %p1065
    %p1068 = scmp.ne.s32.totalorder %s1053, %s1067
    %p1069 = scmp.eq.s32.totalorder %s119, 0
    %p1070 = por %p1068, %p1069
    %s1072 = sadd.s32 %s1071, 1
    %p1075 = scmp.eq.s32.totalorder %s113, 1
    %p1076 = scmp.ne.s32.totalorder %s1071, %s1073
    %p1077 = scmp.eq.s32.totalorder %s113, 0
    %p1078 = por %p1076, %p1077
    %p1079 = scmp.ne.s32.totalorder %s1071, %s1073
    %p1080 = scmp.eq.s32.totalorder %s118, 1
    %p1081 = por %p1079, %p1080
    %p1082 = scmp.ne.s32.totalorder %s1073, %s1074
    %p1083 = scmp.eq.s32.totalorder %s118, 0
    %p1084 = por %p1082, %p1083
    %p1085 = scmp.ne.s32.totalorder %s1073, %s1074
    %p1086 = scmp.eq.s32.totalorder %s119, 1
    %p1087 = por %p1085, %p1086
    %p1089 = scmp.ne.s32.totalorder %s1074, %s1088
    %p1090 = scmp.eq.s32.totalorder %s119, 0
    %p1091 = por %p1089, %p1090
    %s1093 = sadd.s32 %s1092, 1
    %p1096 = scmp.eq.s32.totalorder %s113, 1
    %p1097 = scmp.ne.s32.totalorder %s1092, %s1094
    %p1098 = scmp.eq.s32.totalorder %s113, 0
    %p1099 = por %p1097, %p1098
    %p1100 = scmp.ne.s32.totalorder %s1092, %s1094
    %p1101 = scmp.eq.s32.totalorder %s118, 1
    %p1102 = por %p1100, %p1101
    %p1103 = scmp.ne.s32.totalorder %s1094, %s1095
    %p1104 = scmp.eq.s32.totalorder %s118, 0
    %p1105 = por %p1103, %p1104
    %p1106 = scmp.ne.s32.totalorder %s1094, %s1095
    %p1107 = scmp.eq.s32.totalorder %s119, 1
    %p1108 = por %p1106, %p1107
    %p1110 = scmp.ne.s32.totalorder %s1095, %s1109
    %p1111 = scmp.eq.s32.totalorder %s119, 0
    %p1112 = por %p1110, %p1111
    %s1114 = sadd.s32 %s1113, 1
    %p1117 = scmp.eq.s32.totalorder %s113, 1
    %p1118 = scmp.ne.s32.totalorder %s1113, %s1115
    %p1119 = scmp.eq.s32.totalorder %s113, 0
    %p1120 = por %p1118, %p1119
    %p1121 = scmp.ne.s32.totalorder %s1113, %s1115
    %p1122 = scmp.eq.s32.totalorder %s118, 1
    %p1123 = por %p1121, %p1122
    %p1124 = scmp.ne.s32.totalorder %s1115, %s1116
    %p1125 = scmp.eq.s32.totalorder %s118, 0
    %p1126 = por %p1124, %p1125
    %p1127 = scmp.ne.s32.totalorder %s1115, %s1116
    %p1128 = scmp.eq.s32.totalorder %s119, 1
    %p1129 = por %p1127, %p1128
    %p1131 = scmp.ne.s32.totalorder %s1116, %s1130
    %p1132 = scmp.eq.s32.totalorder %s119, 0
    %p1133 = por %p1131, %p1132
    %s1135 = sadd.s32 %s1134, 1
    %p1138 = scmp.eq.s32.totalorder %s113, 1
    %p1139 = scmp.ne.s32.totalorder %s1134, %s1136
    %p1140 = scmp.eq.s32.totalorder %s113, 0
    %p1141 = por %p1139, %p1140
    %p1142 = scmp.ne.s32.totalorder %s1134, %s1136
    %p1143 = scmp.eq.s32.totalorder %s118, 1
    %p1144 = por %p1142, %p1143
    %p1145 = scmp.ne.s32.totalorder %s1136, %s1137
    %p1146 = scmp.eq.s32.totalorder %s118, 0
    %p1147 = por %p1145, %p1146
    %p1148 = scmp.ne.s32.totalorder %s1136, %s1137
    %p1149 = scmp.eq.s32.totalorder %s119, 1
    %p1150 = por %p1148, %p1149
    %p1152 = scmp.ne.s32.totalorder %s1137, %s1151
    %p1153 = scmp.eq.s32.totalorder %s119, 0
    %p1154 = por %p1152, %p1153
    %s1156 = sadd.s32 %s1155, 1
    %p1159 = scmp.eq.s32.totalorder %s113, 1
    %p1160 = scmp.ne.s32.totalorder %s1155, %s1157
    %p1161 = scmp.eq.s32.totalorder %s113, 0
    %p1162 = por %p1160, %p1161
    %p1163 = scmp.ne.s32.totalorder %s1155, %s1157
    %p1164 = scmp.eq.s32.totalorder %s118, 1
    %p1165 = por %p1163, %p1164
    %p1166 = scmp.ne.s32.totalorder %s1157, %s1158
    %p1167 = scmp.eq.s32.totalorder %s118, 0
    %p1168 = por %p1166, %p1167
    %p1169 = scmp.ne.s32.totalorder %s1157, %s1158
    %p1170 = scmp.eq.s32.totalorder %s119, 1
    %p1171 = por %p1169, %p1170
    %p1173 = scmp.ne.s32.totalorder %s1158, %s1172
    %p1174 = scmp.eq.s32.totalorder %s119, 0
    %p1175 = por %p1173, %p1174
    %s1177 = sadd.s32 %s1176, 1
    %p1180 = scmp.eq.s32.totalorder %s113, 1
    %p1181 = scmp.ne.s32.totalorder %s1176, %s1178
    %p1182 = scmp.eq.s32.totalorder %s113, 0
    %p1183 = por %p1181, %p1182
    %p1184 = scmp.ne.s32.totalorder %s1176, %s1178
    %p1185 = scmp.eq.s32.totalorder %s118, 1
    %p1186 = por %p1184, %p1185
    %p1187 = scmp.ne.s32.totalorder %s1178, %s1179
    %p1188 = scmp.eq.s32.totalorder %s118, 0
    %p1189 = por %p1187, %p1188
    %p1190 = scmp.ne.s32.totalorder %s1178, %s1179
    %p1191 = scmp.eq.s32.totalorder %s119, 1
    %p1192 = por %p1190, %p1191
    %p1194 = scmp.ne.s32.totalorder %s1179, %s1193
    %p1195 = scmp.eq.s32.totalorder %s119, 0
    %p1196 = por %p1194, %p1195
    %s1198 = sadd.s32 %s1197, 1
    %p1201 = scmp.eq.s32.totalorder %s113, 1
    %p1202 = scmp.ne.s32.totalorder %s1197, %s1199
    %p1203 = scmp.eq.s32.totalorder %s113, 0
    %p1204 = por %p1202, %p1203
    %p1205 = scmp.ne.s32.totalorder %s1197, %s1199
    %p1206 = scmp.eq.s32.totalorder %s118, 1
    %p1207 = por %p1205, %p1206
    %p1208 = scmp.ne.s32.totalorder %s1199, %s1200
    %p1209 = scmp.eq.s32.totalorder %s118, 0
    %p1210 = por %p1208, %p1209
    %p1211 = scmp.ne.s32.totalorder %s1199, %s1200
    %p1212 = scmp.eq.s32.totalorder %s119, 1
    %p1213 = por %p1211, %p1212
    %p1215 = scmp.ne.s32.totalorder %s1200, %s1214
    %p1216 = scmp.eq.s32.totalorder %s119, 0
    %p1217 = por %p1215, %p1216
    %s1219 = sadd.s32 %s1218, 1
    %p1222 = scmp.eq.s32.totalorder %s113, 1
    %p1223 = scmp.ne.s32.totalorder %s1218, %s1220
    %p1224 = scmp.eq.s32.totalorder %s113, 0
    %p1225 = por %p1223, %p1224
    %p1226 = scmp.ne.s32.totalorder %s1218, %s1220
    %p1227 = scmp.eq.s32.totalorder %s118, 1
    %p1228 = por %p1226, %p1227
    %p1229 = scmp.ne.s32.totalorder %s1220, %s1221
    %p1230 = scmp.eq.s32.totalorder %s118, 0
    %p1231 = por %p1229, %p1230
    %p1232 = scmp.ne.s32.totalorder %s1220, %s1221
    %p1233 = scmp.eq.s32.totalorder %s119, 1
    %p1234 = por %p1232, %p1233
    %p1236 = scmp.ne.s32.totalorder %s1221, %s1235
    %p1237 = scmp.eq.s32.totalorder %s119, 0
    %p1238 = por %p1236, %p1237
    %s1239 = ssub.s32 %s113, %s120
    %p1240 = scmp.eq.s32.totalorder %s1239, 0
    %s1242 = sadd.s32 %s1241, 1
    %s1243 = scalar_select %p1240, %s1241, %s1242
    %p1246 = pneg %p1240
    %p1247 = scmp.eq.s32.totalorder %s113, 1
    %p1248 = por %p1246, %p1247
    %p1249 = scmp.ne.s32.totalorder %s1241, %s1244
    %p1250 = scmp.eq.s32.totalorder %s113, 0
    %p1251 = por %p1249, %p1250
    %p1252 = scmp.ne.s32.totalorder %s1241, %s1244
    %p1253 = scmp.eq.s32.totalorder %s118, 1
    %p1254 = por %p1252, %p1253
    %p1255 = scmp.ne.s32.totalorder %s1244, %s1245
    %p1256 = scmp.eq.s32.totalorder %s118, 0
    %p1257 = por %p1255, %p1256
    %p1258 = scmp.ne.s32.totalorder %s1244, %s1245
    %p1259 = scmp.eq.s32.totalorder %s119, 1
    %p1260 = por %p1258, %p1259
    %p1262 = scmp.ne.s32.totalorder %s1245, %s1261
    %p1263 = scmp.eq.s32.totalorder %s119, 0
    %p1264 = por %p1262, %p1263
    %p1265 = scmp.le.s32.totalorder 1, %s113
    %p1266 = scmp.lt.s32.totalorder %s113, 3
    %p1267 = pnand %p1265, %p1266
    %p1268 = pneg %p1267
    // Predicated region
    $region9: #{heart_tcn_forward.1} parent=5 // pred_check
      _
    $region10: #{heart_tcn_forward.1} parent=5 // pred_check_branch
      %1270 = sbr.rel (%p1267) target = $region12
    $region11: #{heart_tcn_forward.1} parent=5 // pred_region
      %s1271 = ssub.s32 %s113, 1
      // Predicated region
      $region13: #{heart_tcn_forward.1} parent=11 // pred_check
        %p1272 = pneg %p160
      $region14: #{heart_tcn_forward.1} parent=11 // pred_check_branch
        %1274 = sbr.rel (%p1272) target = $region16
      $region15: #{heart_tcn_forward.1} parent=11 // pred_region
        _
      $region16: #{heart_tcn_forward.1} parent=11 // pred_fallthru
        _
      // Predicated region
      $region17: #{heart_tcn_forward.1} parent=11 // pred_check
        %p1275 = pneg %p181
      $region18: #{heart_tcn_forward.1} parent=11 // pred_check_branch
        %1277 = sbr.rel (%p1275) target = $region20
      $region19: #{heart_tcn_forward.1} parent=11 // pred_region
        _
      $region20: #{heart_tcn_forward.1} parent=11 // pred_fallthru
        _
      // Predicated region
      $region21: #{heart_tcn_forward.1} parent=11 // pred_check
        %p1278 = pneg %p202
      $region22: #{heart_tcn_forward.1} parent=11 // pred_check_branch
        %1280 = sbr.rel (%p1278) target = $region24
      $region23: #{heart_tcn_forward.1} parent=11 // pred_region
        _
      $region24: #{heart_tcn_forward.1} parent=11 // pred_fallthru
        _
      // Predicated region
      $region25: #{heart_tcn_forward.1} parent=11 // pred_check
        %p1281 = pneg %p223
      $region26: #{heart_tcn_forward.1} parent=11 // pred_check_branch
        %1283 = sbr.rel (%p1281) target = $region28
      $region27: #{heart_tcn_forward.1} parent=11 // pred_region
        _
      $region28: #{heart_tcn_forward.1} parent=11 // pred_fallthru
        _
      // Predicated region
      $region29: #{heart_tcn_forward.1} parent=11 // pred_check
        %p1284 = pneg %p244
      $region30: #{heart_tcn_forward.1} parent=11 // pred_check_branch
        %1286 = sbr.rel (%p1284) target = $region32
      $region31: #{heart_tcn_forward.1} parent=11 // pred_region
        _
      $region32: #{heart_tcn_forward.1} parent=11 // pred_fallthru
        _
      // Predicated region
      $region33: #{heart_tcn_forward.1} parent=11 // pred_check
        %p1287 = pneg %p265
      $region34: #{heart_tcn_forward.1} parent=11 // pred_check_branch
        %1289 = sbr.rel (%p1287) target = $region36
      $region35: #{heart_tcn_forward.1} parent=11 // pred_region
        _
      $region36: #{heart_tcn_forward.1} parent=11 // pred_fallthru
        _
      // Predicated region
      $region37: #{heart_tcn_forward.1} parent=11 // pred_check
        %p1290 = pneg %p286
      $region38: #{heart_tcn_forward.1} parent=11 // pred_check_branch
        %1292 = sbr.rel (%p1290) target = $region40
      $region39: #{heart_tcn_forward.1} parent=11 // pred_region
        _
      $region40: #{heart_tcn_forward.1} parent=11 // pred_fallthru
        _
      // Predicated region
      $region41: #{heart_tcn_forward.1} parent=11 // pred_check
        %p1293 = pneg %p307
      $region42: #{heart_tcn_forward.1} parent=11 // pred_check_branch
        %1295 = sbr.rel (%p1293) target = $region44
      $region43: #{heart_tcn_forward.1} parent=11 // pred_region
        _
      $region44: #{heart_tcn_forward.1} parent=11 // pred_fallthru
        _
      // Predicated region
      $region45: #{heart_tcn_forward.1} parent=11 // pred_check
        %p1296 = pneg %p328
      $region46: #{heart_tcn_forward.1} parent=11 // pred_check_branch
        %1298 = sbr.rel (%p1296) target = $region48
      $region47: #{heart_tcn_forward.1} parent=11 // pred_region
        _
      $region48: #{heart_tcn_forward.1} parent=11 // pred_fallthru
        _
      // Predicated region
      $region49: #{heart_tcn_forward.1} parent=11 // pred_check
        %p1299 = pneg %p349
      $region50: #{heart_tcn_forward.1} parent=11 // pred_check_branch
        %1301 = sbr.rel (%p1299) target = $region52
      $region51: #{heart_tcn_forward.1} parent=11 // pred_region
        _
      $region52: #{heart_tcn_forward.1} parent=11 // pred_fallthru
        _
      // Predicated region
      $region53: #{heart_tcn_forward.1} parent=11 // pred_check
        %p1302 = pneg %p370
      $region54: #{heart_tcn_forward.1} parent=11 // pred_check_branch
        %1304 = sbr.rel (%p1302) target = $region56
      $region55: #{heart_tcn_forward.1} parent=11 // pred_region
        _
      $region56: #{heart_tcn_forward.1} parent=11 // pred_fallthru
        _
      // Predicated region
      $region57: #{heart_tcn_forward.1} parent=11 // pred_check
        %p1305 = pneg %p391
      $region58: #{heart_tcn_forward.1} parent=11 // pred_check_branch
        %1307 = sbr.rel (%p1305) target = $region60
      $region59: #{heart_tcn_forward.1} parent=11 // pred_region
        _
      $region60: #{heart_tcn_forward.1} parent=11 // pred_fallthru
        _
      // Predicated region
      $region61: #{heart_tcn_forward.1} parent=11 // pred_check
        %p1308 = pneg %p412
      $region62: #{heart_tcn_forward.1} parent=11 // pred_check_branch
        %1310 = sbr.rel (%p1308) target = $region64
      $region63: #{heart_tcn_forward.1} parent=11 // pred_region
        _
      $region64: #{heart_tcn_forward.1} parent=11 // pred_fallthru
        _
      // Predicated region
      $region65: #{heart_tcn_forward.1} parent=11 // pred_check
        %p1311 = pneg %p433
      $region66: #{heart_tcn_forward.1} parent=11 // pred_check_branch
        %1313 = sbr.rel (%p1311) target = $region68
      $region67: #{heart_tcn_forward.1} parent=11 // pred_region
        _
      $region68: #{heart_tcn_forward.1} parent=11 // pred_fallthru
        _
      // Predicated region
      $region69: #{heart_tcn_forward.1} parent=11 // pred_check
        %p1314 = pneg %p454
      $region70: #{heart_tcn_forward.1} parent=11 // pred_check_branch
        %1316 = sbr.rel (%p1314) target = $region72
      $region71: #{heart_tcn_forward.1} parent=11 // pred_region
        _
      $region72: #{heart_tcn_forward.1} parent=11 // pred_fallthru
        _
      // Predicated region
      $region73: #{heart_tcn_forward.1} parent=11 // pred_check
        %p1317 = pneg %p475
      $region74: #{heart_tcn_forward.1} parent=11 // pred_check_branch
        %1319 = sbr.rel (%p1317) target = $region76
      $region75: #{heart_tcn_forward.1} parent=11 // pred_region
        _
      $region76: #{heart_tcn_forward.1} parent=11 // pred_fallthru
        _
      // Predicated region
      $region77: #{heart_tcn_forward.1} parent=11 // pred_check
        %p1320 = pneg %p496
      $region78: #{heart_tcn_forward.1} parent=11 // pred_check_branch
        %1322 = sbr.rel (%p1320) target = $region80
      $region79: #{heart_tcn_forward.1} parent=11 // pred_region
        _
      $region80: #{heart_tcn_forward.1} parent=11 // pred_fallthru
        _
      // Predicated region
      $region81: #{heart_tcn_forward.1} parent=11 // pred_check
        %p1323 = pneg %p517
      $region82: #{heart_tcn_forward.1} parent=11 // pred_check_branch
        %1325 = sbr.rel (%p1323) target = $region84
      $region83: #{heart_tcn_forward.1} parent=11 // pred_region
        _
      $region84: #{heart_tcn_forward.1} parent=11 // pred_fallthru
        _
      // Predicated region
      $region85: #{heart_tcn_forward.1} parent=11 // pred_check
        %p1326 = pneg %p538
      $region86: #{heart_tcn_forward.1} parent=11 // pred_check_branch
        %1328 = sbr.rel (%p1326) target = $region88
      $region87: #{heart_tcn_forward.1} parent=11 // pred_region
        _
      $region88: #{heart_tcn_forward.1} parent=11 // pred_fallthru
        _
      // Predicated region
      $region89: #{heart_tcn_forward.1} parent=11 // pred_check
        %p1329 = pneg %p559
      $region90: #{heart_tcn_forward.1} parent=11 // pred_check_branch
        %1331 = sbr.rel (%p1329) target = $region92
      $region91: #{heart_tcn_forward.1} parent=11 // pred_region
        _
      $region92: #{heart_tcn_forward.1} parent=11 // pred_fallthru
        _
      // Predicated region
      $region93: #{heart_tcn_forward.1} parent=11 // pred_check
        %p1332 = pneg %p580
      $region94: #{heart_tcn_forward.1} parent=11 // pred_check_branch
        %1334 = sbr.rel (%p1332) target = $region96
      $region95: #{heart_tcn_forward.1} parent=11 // pred_region
        _
      $region96: #{heart_tcn_forward.1} parent=11 // pred_fallthru
        _
      // Predicated region
      $region97: #{heart_tcn_forward.1} parent=11 // pred_check
        %p1335 = pneg %p601
      $region98: #{heart_tcn_forward.1} parent=11 // pred_check_branch
        %1337 = sbr.rel (%p1335) target = $region100
      $region99: #{heart_tcn_forward.1} parent=11 // pred_region
        _
      $region100: #{heart_tcn_forward.1} parent=11 // pred_fallthru
        _
      // Predicated region
      $region101: #{heart_tcn_forward.1} parent=11 // pred_check
        %p1338 = pneg %p622
      $region102: #{heart_tcn_forward.1} parent=11 // pred_check_branch
        %1340 = sbr.rel (%p1338) target = $region104
      $region103: #{heart_tcn_forward.1} parent=11 // pred_region
        _
      $region104: #{heart_tcn_forward.1} parent=11 // pred_fallthru
        _
      // Predicated region
      $region105: #{heart_tcn_forward.1} parent=11 // pred_check
        %p1341 = pneg %p643
      $region106: #{heart_tcn_forward.1} parent=11 // pred_check_branch
        %1343 = sbr.rel (%p1341) target = $region108
      $region107: #{heart_tcn_forward.1} parent=11 // pred_region
        _
      $region108: #{heart_tcn_forward.1} parent=11 // pred_fallthru
        _
      // Predicated region
      $region109: #{heart_tcn_forward.1} parent=11 // pred_check
        %p1344 = pneg %p664
      $region110: #{heart_tcn_forward.1} parent=11 // pred_check_branch
        %1346 = sbr.rel (%p1344) target = $region112
      $region111: #{heart_tcn_forward.1} parent=11 // pred_region
        _
      $region112: #{heart_tcn_forward.1} parent=11 // pred_fallthru
        _
      // Predicated region
      $region113: #{heart_tcn_forward.1} parent=11 // pred_check
        %p1347 = pneg %p685
      $region114: #{heart_tcn_forward.1} parent=11 // pred_check_branch
        %1349 = sbr.rel (%p1347) target = $region116
      $region115: #{heart_tcn_forward.1} parent=11 // pred_region
        _
      $region116: #{heart_tcn_forward.1} parent=11 // pred_fallthru
        _
      // Predicated region
      $region117: #{heart_tcn_forward.1} parent=11 // pred_check
        %p1350 = pneg %p706
      $region118: #{heart_tcn_forward.1} parent=11 // pred_check_branch
        %1352 = sbr.rel (%p1350) target = $region120
      $region119: #{heart_tcn_forward.1} parent=11 // pred_region
        _
      $region120: #{heart_tcn_forward.1} parent=11 // pred_fallthru
        _
      // Predicated region
      $region121: #{heart_tcn_forward.1} parent=11 // pred_check
        %p1353 = pneg %p727
      $region122: #{heart_tcn_forward.1} parent=11 // pred_check_branch
        %1355 = sbr.rel (%p1353) target = $region124
      $region123: #{heart_tcn_forward.1} parent=11 // pred_region
        _
      $region124: #{heart_tcn_forward.1} parent=11 // pred_fallthru
        _
      // Predicated region
      $region125: #{heart_tcn_forward.1} parent=11 // pred_check
        %p1356 = pneg %p748
      $region126: #{heart_tcn_forward.1} parent=11 // pred_check_branch
        %1358 = sbr.rel (%p1356) target = $region128
      $region127: #{heart_tcn_forward.1} parent=11 // pred_region
        _
      $region128: #{heart_tcn_forward.1} parent=11 // pred_fallthru
        _
      // Predicated region
      $region129: #{heart_tcn_forward.1} parent=11 // pred_check
        %p1359 = pneg %p769
      $region130: #{heart_tcn_forward.1} parent=11 // pred_check_branch
        %1361 = sbr.rel (%p1359) target = $region132
      $region131: #{heart_tcn_forward.1} parent=11 // pred_region
        _
      $region132: #{heart_tcn_forward.1} parent=11 // pred_fallthru
        _
      // Predicated region
      $region133: #{heart_tcn_forward.1} parent=11 // pred_check
        %p1362 = pneg %p790
      $region134: #{heart_tcn_forward.1} parent=11 // pred_check_branch
        %1364 = sbr.rel (%p1362) target = $region136
      $region135: #{heart_tcn_forward.1} parent=11 // pred_region
        _
      $region136: #{heart_tcn_forward.1} parent=11 // pred_fallthru
        _
      // Predicated region
      $region137: #{heart_tcn_forward.1} parent=11 // pred_check
        %p1365 = pneg %p811
      $region138: #{heart_tcn_forward.1} parent=11 // pred_check_branch
        %1367 = sbr.rel (%p1365) target = $region140
      $region139: #{heart_tcn_forward.1} parent=11 // pred_region
        _
      $region140: #{heart_tcn_forward.1} parent=11 // pred_fallthru
        _
      // Predicated region
      $region141: #{heart_tcn_forward.1} parent=11 // pred_check
        %p1368 = pneg %p832
      $region142: #{heart_tcn_forward.1} parent=11 // pred_check_branch
        %1370 = sbr.rel (%p1368) target = $region144
      $region143: #{heart_tcn_forward.1} parent=11 // pred_region
        _
      $region144: #{heart_tcn_forward.1} parent=11 // pred_fallthru
        _
      // Predicated region
      $region145: #{heart_tcn_forward.1} parent=11 // pred_check
        %p1371 = pneg %p853
      $region146: #{heart_tcn_forward.1} parent=11 // pred_check_branch
        %1373 = sbr.rel (%p1371) target = $region148
      $region147: #{heart_tcn_forward.1} parent=11 // pred_region
        _
      $region148: #{heart_tcn_forward.1} parent=11 // pred_fallthru
        _
      // Predicated region
      $region149: #{heart_tcn_forward.1} parent=11 // pred_check
        %p1374 = pneg %p874
      $region150: #{heart_tcn_forward.1} parent=11 // pred_check_branch
        %1376 = sbr.rel (%p1374) target = $region152
      $region151: #{heart_tcn_forward.1} parent=11 // pred_region
        _
      $region152: #{heart_tcn_forward.1} parent=11 // pred_fallthru
        _
      // Predicated region
      $region153: #{heart_tcn_forward.1} parent=11 // pred_check
        %p1377 = pneg %p895
      $region154: #{heart_tcn_forward.1} parent=11 // pred_check_branch
        %1379 = sbr.rel (%p1377) target = $region156
      $region155: #{heart_tcn_forward.1} parent=11 // pred_region
        _
      $region156: #{heart_tcn_forward.1} parent=11 // pred_fallthru
        _
      // Predicated region
      $region157: #{heart_tcn_forward.1} parent=11 // pred_check
        %p1380 = pneg %p916
      $region158: #{heart_tcn_forward.1} parent=11 // pred_check_branch
        %1382 = sbr.rel (%p1380) target = $region160
      $region159: #{heart_tcn_forward.1} parent=11 // pred_region
        _
      $region160: #{heart_tcn_forward.1} parent=11 // pred_fallthru
        _
      // Predicated region
      $region161: #{heart_tcn_forward.1} parent=11 // pred_check
        %p1383 = pneg %p937
      $region162: #{heart_tcn_forward.1} parent=11 // pred_check_branch
        %1385 = sbr.rel (%p1383) target = $region164
      $region163: #{heart_tcn_forward.1} parent=11 // pred_region
        _
      $region164: #{heart_tcn_forward.1} parent=11 // pred_fallthru
        _
      // Predicated region
      $region165: #{heart_tcn_forward.1} parent=11 // pred_check
        %p1386 = pneg %p958
      $region166: #{heart_tcn_forward.1} parent=11 // pred_check_branch
        %1388 = sbr.rel (%p1386) target = $region168
      $region167: #{heart_tcn_forward.1} parent=11 // pred_region
        _
      $region168: #{heart_tcn_forward.1} parent=11 // pred_fallthru
        _
      // Predicated region
      $region169: #{heart_tcn_forward.1} parent=11 // pred_check
        %p1389 = pneg %p979
      $region170: #{heart_tcn_forward.1} parent=11 // pred_check_branch
        %1391 = sbr.rel (%p1389) target = $region172
      $region171: #{heart_tcn_forward.1} parent=11 // pred_region
        _
      $region172: #{heart_tcn_forward.1} parent=11 // pred_fallthru
        _
      // Predicated region
      $region173: #{heart_tcn_forward.1} parent=11 // pred_check
        %p1392 = pneg %p1000
      $region174: #{heart_tcn_forward.1} parent=11 // pred_check_branch
        %1394 = sbr.rel (%p1392) target = $region176
      $region175: #{heart_tcn_forward.1} parent=11 // pred_region
        _
      $region176: #{heart_tcn_forward.1} parent=11 // pred_fallthru
        _
      // Predicated region
      $region177: #{heart_tcn_forward.1} parent=11 // pred_check
        %p1395 = pneg %p1021
      $region178: #{heart_tcn_forward.1} parent=11 // pred_check_branch
        %1397 = sbr.rel (%p1395) target = $region180
      $region179: #{heart_tcn_forward.1} parent=11 // pred_region
        _
      $region180: #{heart_tcn_forward.1} parent=11 // pred_fallthru
        _
      // Predicated region
      $region181: #{heart_tcn_forward.1} parent=11 // pred_check
        %p1398 = pneg %p1042
      $region182: #{heart_tcn_forward.1} parent=11 // pred_check_branch
        %1400 = sbr.rel (%p1398) target = $region184
      $region183: #{heart_tcn_forward.1} parent=11 // pred_region
        _
      $region184: #{heart_tcn_forward.1} parent=11 // pred_fallthru
        _
      // Predicated region
      $region185: #{heart_tcn_forward.1} parent=11 // pred_check
        %p1401 = pneg %p1063
      $region186: #{heart_tcn_forward.1} parent=11 // pred_check_branch
        %1403 = sbr.rel (%p1401) target = $region188
      $region187: #{heart_tcn_forward.1} parent=11 // pred_region
        _
      $region188: #{heart_tcn_forward.1} parent=11 // pred_fallthru
        _
      // Predicated region
      $region189: #{heart_tcn_forward.1} parent=11 // pred_check
        %p1404 = pneg %p1084
      $region190: #{heart_tcn_forward.1} parent=11 // pred_check_branch
        %1406 = sbr.rel (%p1404) target = $region192
      $region191: #{heart_tcn_forward.1} parent=11 // pred_region
        _
      $region192: #{heart_tcn_forward.1} parent=11 // pred_fallthru
        _
      // Predicated region
      $region193: #{heart_tcn_forward.1} parent=11 // pred_check
        %p1407 = pneg %p1105
      $region194: #{heart_tcn_forward.1} parent=11 // pred_check_branch
        %1409 = sbr.rel (%p1407) target = $region196
      $region195: #{heart_tcn_forward.1} parent=11 // pred_region
        _
      $region196: #{heart_tcn_forward.1} parent=11 // pred_fallthru
        _
      // Predicated region
      $region197: #{heart_tcn_forward.1} parent=11 // pred_check
        %p1410 = pneg %p1126
      $region198: #{heart_tcn_forward.1} parent=11 // pred_check_branch
        %1412 = sbr.rel (%p1410) target = $region200
      $region199: #{heart_tcn_forward.1} parent=11 // pred_region
        _
      $region200: #{heart_tcn_forward.1} parent=11 // pred_fallthru
        _
      // Predicated region
      $region201: #{heart_tcn_forward.1} parent=11 // pred_check
        %p1413 = pneg %p1147
      $region202: #{heart_tcn_forward.1} parent=11 // pred_check_branch
        %1415 = sbr.rel (%p1413) target = $region204
      $region203: #{heart_tcn_forward.1} parent=11 // pred_region
        _
      $region204: #{heart_tcn_forward.1} parent=11 // pred_fallthru
        _
      // Predicated region
      $region205: #{heart_tcn_forward.1} parent=11 // pred_check
        %p1416 = pneg %p1168
      $region206: #{heart_tcn_forward.1} parent=11 // pred_check_branch
        %1418 = sbr.rel (%p1416) target = $region208
      $region207: #{heart_tcn_forward.1} parent=11 // pred_region
        _
      $region208: #{heart_tcn_forward.1} parent=11 // pred_fallthru
        _
      // Predicated region
      $region209: #{heart_tcn_forward.1} parent=11 // pred_check
        %p1419 = pneg %p1189
      $region210: #{heart_tcn_forward.1} parent=11 // pred_check_branch
        %1421 = sbr.rel (%p1419) target = $region212
      $region211: #{heart_tcn_forward.1} parent=11 // pred_region
        _
      $region212: #{heart_tcn_forward.1} parent=11 // pred_fallthru
        _
      // Predicated region
      $region213: #{heart_tcn_forward.1} parent=11 // pred_check
        %p1422 = pneg %p1210
      $region214: #{heart_tcn_forward.1} parent=11 // pred_check_branch
        %1424 = sbr.rel (%p1422) target = $region216
      $region215: #{heart_tcn_forward.1} parent=11 // pred_region
        _
      $region216: #{heart_tcn_forward.1} parent=11 // pred_fallthru
        _
      // Predicated region
      $region217: #{heart_tcn_forward.1} parent=11 // pred_check
        %p1425 = pneg %p1231
      $region218: #{heart_tcn_forward.1} parent=11 // pred_check_branch
        %1427 = sbr.rel (%p1425) target = $region220
      $region219: #{heart_tcn_forward.1} parent=11 // pred_region
        _
      $region220: #{heart_tcn_forward.1} parent=11 // pred_fallthru
        _
    $region12: #{heart_tcn_forward.1} parent=5 // pred_fallthru
      _
    %p1428 = scmp.lt.s32.totalorder %s113, 2
    // Predicated region
    $region221: #{heart_tcn_forward.1} parent=5 // pred_check
      %p1429 = pneg %p1428
    $region222: #{heart_tcn_forward.1} parent=5 // pred_check_branch
      %1431 = sbr.rel (%p1429) target = $region224
    $region223: #{heart_tcn_forward.1} parent=5 // pred_region
      // Predicated region
      $region225: #{heart_tcn_forward.1} parent=223 // pred_check
        %p1432 = pneg %p133
      $region226: #{heart_tcn_forward.1} parent=223 // pred_check_branch
        %1434 = sbr.rel (%p1432) target = $region228
      $region227: #{heart_tcn_forward.1} parent=223 // pred_region
        %p1435 = scmp.lt.s32.totalorder %s113, 1
        %s1436 = scalar_select %p1435, %s113, 1
        %s1437 = smul.addr %s1436, 2
        %s1438 = scalar_lea.vmem %s1, %s1437
      $region228: #{heart_tcn_forward.1} parent=223 // pred_fallthru
        _
    $region224: #{heart_tcn_forward.1} parent=5 // pred_fallthru
      _
    %p1439 = scmp.le.s32.totalorder 1, %s113
    %p1440 = scmp.lt.s32.totalorder %s113, 3
    %p1441 = pnand %p1439, %p1440
    %p1442 = pneg %p1441
    // Predicated region
    $region229: #{heart_tcn_forward.1} parent=5 // pred_check
      _
    $region230: #{heart_tcn_forward.1} parent=5 // pred_check_branch
      %1444 = sbr.rel (%p1441) target = $region232
    $region231: #{heart_tcn_forward.1} parent=5 // pred_region
      %s1445 = ssub.s32 %s113, 1
      %p1446 = scmp.lt.s32.totalorder %s118, 1
      %s1447 = scalar_select %p1446, %s118, 1
      %s1448 = smul.addr %s1447, 2
      %s1449 = scalar_lea.vmem %s1, %s1448
      %p1450 = pneg %p139
      %p1451 = pneg %p136
      %p1452 = pneg %p160
      %p1453 = pneg %p157
      %p1454 = pneg %p181
      %p1455 = pneg %p178
      %p1456 = pneg %p202
      %p1457 = pneg %p199
      %p1458 = pneg %p223
      %p1459 = pneg %p220
      %p1460 = pneg %p244
      %p1461 = pneg %p241
      %p1462 = pneg %p265
      %p1463 = pneg %p262
      %p1464 = pneg %p286
      %p1465 = pneg %p283
      %p1466 = pneg %p307
      %p1467 = pneg %p304
      %p1468 = pneg %p328
      %p1469 = pneg %p325
      %p1470 = pneg %p349
      %p1471 = pneg %p346
      %p1472 = pneg %p370
      %p1473 = pneg %p367
      %p1474 = pneg %p391
      %p1475 = pneg %p388
      %p1476 = pneg %p412
      %p1477 = pneg %p409
      %p1478 = pneg %p433
      %p1479 = pneg %p430
      %p1480 = pneg %p454
      %p1481 = pneg %p451
      %p1482 = pneg %p475
      %p1483 = pneg %p472
      %p1484 = pneg %p496
      %p1485 = pneg %p493
      %p1486 = pneg %p517
      %p1487 = pneg %p514
      %p1488 = pneg %p538
      %p1489 = pneg %p535
      %p1490 = pneg %p559
      %p1491 = pneg %p556
      %p1492 = pneg %p580
      %p1493 = pneg %p577
      %p1494 = pneg %p601
      %p1495 = pneg %p598
      %p1496 = pneg %p622
      %p1497 = pneg %p619
      %p1498 = pneg %p643
      %p1499 = pneg %p640
      %p1500 = pneg %p664
      %p1501 = pneg %p661
      %p1502 = pneg %p685
      %p1503 = pneg %p682
      %p1504 = pneg %p706
      %p1505 = pneg %p703
      %p1506 = pneg %p727
      %p1507 = pneg %p724
      %p1508 = pneg %p748
      %p1509 = pneg %p745
      %p1510 = pneg %p769
      %p1511 = pneg %p766
      %p1512 = pneg %p790
      %p1513 = pneg %p787
      %p1514 = pneg %p811
      %p1515 = pneg %p808
      %p1516 = pneg %p832
      %p1517 = pneg %p829
      %p1518 = pneg %p853
      %p1519 = pneg %p850
      %p1520 = pneg %p874
      %p1521 = pneg %p871
      %p1522 = pneg %p895
      %p1523 = pneg %p892
      %p1524 = pneg %p916
      %p1525 = pneg %p913
      %p1526 = pneg %p937
      %p1527 = pneg %p934
      %p1528 = pneg %p958
      %p1529 = pneg %p955
      %p1530 = pneg %p979
      %p1531 = pneg %p976
      %p1532 = pneg %p1000
      %p1533 = pneg %p997
      %p1534 = pneg %p1021
      %p1535 = pneg %p1018
      %p1536 = pneg %p1042
      %p1537 = pneg %p1039
      %p1538 = pneg %p1063
      %p1539 = pneg %p1060
      %p1540 = pneg %p1084
      %p1541 = pneg %p1081
      %p1542 = pneg %p1105
      %p1543 = pneg %p1102
      %p1544 = pneg %p1126
      %p1545 = pneg %p1123
      %p1546 = pneg %p1147
      %p1547 = pneg %p1144
      %p1548 = pneg %p1168
      %p1549 = pneg %p1165
      %p1550 = pneg %p1189
      %p1551 = pneg %p1186
      %p1552 = pneg %p1210
      %p1553 = pneg %p1207
      %p1554 = pneg %p1231
      %p1555 = pneg %p1228
      %p1556 = pneg %p1257
      %p1557 = pneg %p1254
      %p1558 = scmp.lt.s32.totalorder %s118, 1
      %s1559 = scalar_select %p1558, %s118, 1
      %s1560 = scalar_lea.vmem %s107, %s1559
      %p1561 = scmp.lt.s32.totalorder %s118, 1
      %s1562 = scalar_select %p1561, %s118, 1
      %s1563 = smul.addr %s1562, 2
      %s1564 = scalar_lea.vmem %s1, %s1563
      %p1565 = scmp.lt.s32.totalorder %s118, 1
      %s1566 = scalar_select %p1565, %s118, 1
      %s1567 = scalar_lea.vmem %s107, %s1566
      %v1569 = vld [vmem:[%s1564] sm:$0x3]
      %v1570 = vld [vmem:[%s5] sm:$0xff]
      %v1571 = vld [vmem:[%s5 + $0x8] sm:$0xff]
      %v1572 = vld [vmem:[%s5 + $0x10] sm:$0xff]
      %v1573 = vld [vmem:[%s5 + $0x18] sm:$0xff]
      %v1574 = vld [vmem:[%s5 + $0x20] sm:$0xff]
      %1576 = vset.pattern.permute.xlu0 0
      %1577 = vperm.xlu0 %1576, %v1570
      %v1578 = vpop.permute.xlu0 %1577
      %1581 = vset.pattern.permute.xlu0 0
      %1582 = vperm.xlu0 %1581, %v1571
      %v1583 = vpop.permute.xlu0 %1582
      %1586 = vset.pattern.permute.xlu0 0
      %1587 = vperm.xlu0 %1586, %v1572
      %v1588 = vpop.permute.xlu0 %1587
      %1591 = vset.pattern.permute.xlu0 0
      %1592 = vperm.xlu0 %1591, %v1573
      %v1593 = vpop.permute.xlu0 %1592
      %1596 = vset.pattern.permute.xlu0 0
      %1597 = vperm.xlu0 %1596, %v1574
      %v1598 = vpop.permute.xlu0 %1597
      %v1601 = vlaneseq
      %v1602 = vshrl.u32 %v1601, 7
      %v1603 = vsub.s32 0, %v1602
      %v1604 = vrot.slane %v1569, %v1603
      %v1605 = vlaneseq
      %v1606 = vshrl.u32 %v1605, 7
      %v1607 = vsub.s32 1, %v1606
      %v1608 = vrot.slane %v1569, %v1607
      %v1611 = vmul.f32 %v1578, %v1604
      %v1612 = vmul.f32 %v1578, %v1608
      %v1613 = vmul.f32 %v1583, %v1604
      %v1614 = vmul.f32 %v1583, %v1608
      %v1615 = vmul.f32 %v1588, %v1604
      %v1616 = vmul.f32 %v1588, %v1608
      %v1617 = vmul.f32 %v1593, %v1604
      %v1618 = vmul.f32 %v1593, %v1608
      %v1619 = vmul.f32 %v1598, %v1604
      %v1620 = vmul.f32 %v1598, %v1608
      %v1621 = vld [vmem:[%s7] sm:$0xff]
      %v1622 = vld [vmem:[%s7 + $0x8] sm:$0xff]
      %v1623 = vld [vmem:[%s7 + $0x10] sm:$0xff]
      %v1624 = vld [vmem:[%s7 + $0x18] sm:$0xff]
      %v1625 = vld [vmem:[%s7 + $0x20] sm:$0xff]
      %1627 = vset.pattern.permute.xlu0 0
      %1628 = vperm.xlu0 %1627, %v1621
      %v1629 = vpop.permute.xlu0 %1628
      %1632 = vset.pattern.permute.xlu0 0
      %1633 = vperm.xlu0 %1632, %v1622
      %v1634 = vpop.permute.xlu0 %1633
      %1637 = vset.pattern.permute.xlu0 0
      %1638 = vperm.xlu0 %1637, %v1623
      %v1639 = vpop.permute.xlu0 %1638
      %1642 = vset.pattern.permute.xlu0 0
      %1643 = vperm.xlu0 %1642, %v1624
      %v1644 = vpop.permute.xlu0 %1643
      %1647 = vset.pattern.permute.xlu0 0
      %1648 = vperm.xlu0 %1647, %v1625
      %v1649 = vpop.permute.xlu0 %1648
      %v1651 = vmul.f32 %v1611, %v1629
      %v1652 = vmul.f32 %v1612, %v1629
      %v1653 = vmul.f32 %v1613, %v1634
      %v1654 = vmul.f32 %v1614, %v1634
      %v1655 = vmul.f32 %v1615, %v1639
      %v1656 = vmul.f32 %v1616, %v1639
      %v1657 = vmul.f32 %v1617, %v1644
      %v1658 = vmul.f32 %v1618, %v1644
      %v1659 = vmul.f32 %v1619, %v1649
      %v1660 = vmul.f32 %v1620, %v1649
      %1661 = vset.pattern.permute.xlu0 1
      %1662 = vperm.xlu0 %1661, %v1621
      %v1663 = vpop.permute.xlu0 %1662
      %1665 = vset.pattern.permute.xlu0 1
      %1666 = vperm.xlu0 %1665, %v1622
      %v1667 = vpop.permute.xlu0 %1666
      %1669 = vset.pattern.permute.xlu0 1
      %1670 = vperm.xlu0 %1669, %v1623
      %v1671 = vpop.permute.xlu0 %1670
      %1673 = vset.pattern.permute.xlu0 1
      %1674 = vperm.xlu0 %1673, %v1624
      %v1675 = vpop.permute.xlu0 %1674
      %1677 = vset.pattern.permute.xlu0 1
      %1678 = vperm.xlu0 %1677, %v1625
      %v1679 = vpop.permute.xlu0 %1678
      %v1681 = vadd.f32 %v1651, %v1663
      %v1682 = vadd.f32 %v1652, %v1663
      %v1683 = vadd.f32 %v1653, %v1667
      %v1684 = vadd.f32 %v1654, %v1667
      %v1685 = vadd.f32 %v1655, %v1671
      %v1686 = vadd.f32 %v1656, %v1671
      %v1687 = vadd.f32 %v1657, %v1675
      %v1688 = vadd.f32 %v1658, %v1675
      %v1689 = vadd.f32 %v1659, %v1679
      %v1690 = vadd.f32 %v1660, %v1679
      %v1691 = vxor.u32 %v1681, 2147483648
      %v1692 = vxor.u32 %v1682, 2147483648
      %v1693 = vmul.f32 %v1691, 1.442695
      %v1694 = vpow.pop %v1693
      %v1695 = vmul.f32 %v1692, 1.442695
      %v1696 = vpow.pop %v1695
      %v1697 = vadd.f32 %v1694, 1.0
      %v1698 = vadd.f32 %v1696, 1.0
      %v1699 = vrcp.pop %v1697
      %v1700 = vmul.f32 1.0, %v1699
      %v1701 = vrcp.pop %v1698
      %v1702 = vmul.f32 1.0, %v1701
      %v1703 = vmul.f32 %v1681, %v1700
      %v1704 = vmul.f32 %v1682, %v1702
      %1705 = vst [vmem:[#allocation2] sm:$0xff] 0.0
      %1706 = vst [vmem:[#allocation2 + $0x30] sm:$0xff] 0.0
      %1707 = vst [vmem:[#allocation2 + $0x60] sm:$0xff] 0.0
      %1708 = vst [vmem:[#allocation2 + $0x90] sm:$0xff] 0.0
      %1709 = vst [vmem:[#allocation2 + $0xc0] sm:$0xff] 0.0
      %1710 = vst [vmem:[#allocation2 + $0xf0] sm:$0xff] 0.0
      %1711 = vst [vmem:[#allocation2 + $0x120] sm:$0xff] 0.0
      %1712 = vst [vmem:[#allocation2 + $0x150] sm:$0xff] 0.0
      %1713 = vst [vmem:[#allocation2 + $0x180] sm:$0xff] 0.0
      %1714 = vst [vmem:[#allocation2 + $0x1b0] sm:$0xff] 0.0
      %1715 = vst [vmem:[#allocation2 + $0x1e0] sm:$0xff] 0.0
      %vm1716 = vcmask 523264
      %1717 = vst.msk [vmem:[#allocation2 + $0x18] sm:$0xff] %vm1716, 0.0
      %1718 = vst.msk [vmem:[#allocation2 + $0x48] sm:$0xff] %vm1716, 0.0
      %1719 = vst.msk [vmem:[#allocation2 + $0x78] sm:$0xff] %vm1716, 0.0
      %1720 = vst.msk [vmem:[#allocation2 + $0xa8] sm:$0xff] %vm1716, 0.0
      %1721 = vst.msk [vmem:[#allocation2 + $0xd8] sm:$0xff] %vm1716, 0.0
      %1722 = vst.msk [vmem:[#allocation2 + $0x108] sm:$0xff] %vm1716, 0.0
      %1723 = vst.msk [vmem:[#allocation2 + $0x138] sm:$0xff] %vm1716, 0.0
      %1724 = vst.msk [vmem:[#allocation2 + $0x168] sm:$0xff] %vm1716, 0.0
      %1725 = vst.msk [vmem:[#allocation2 + $0x198] sm:$0xff] %vm1716, 0.0
      %1726 = vst.msk [vmem:[#allocation2 + $0x1c8] sm:$0xff] %vm1716, 0.0
      %1727 = vst.msk [vmem:[#allocation2 + $0x1f8] sm:$0xff] %vm1716, 0.0
      %1728 = vst [vmem:[#allocation2 + $0x1b8] sm:$0xff] 0.0
      %1729 = vst [vmem:[#allocation2 + $0x1c0] sm:$0xff] 0.0
      %1730 = vst [vmem:[#allocation2 + $0x1e8] sm:$0xff] %v1703
      %1731 = vst [vmem:[#allocation2 + $0x1f0] sm:$0xff] %v1704
      %v1732 = vld [vmem:[#allocation2 + $0x1e0] sm:$0xff]
      %v1733 = vld [vmem:[#allocation2 + $0x1e8] sm:$0xff]
      %v1734 = vld [vmem:[#allocation2 + $0x1f0] sm:$0xff]
      %v1735 = vld [vmem:[%s3] sm:$0xff]
      %v1736 = vld [vmem:[%s3 + $0x8] sm:$0xff]
      %1739 = vrot.lane.b32.xlu0 %v1735, 124
      %v1740 = vpop.permute.xlu0 %1739
      %1741 = vrot.lane.b32.xlu0 %v1736, 124
      %v1742 = vpop.permute.xlu0 %1741
      %vm1743 = vcmask 1014784
      %v1744 = vsel %vm1743, %v1740, %v1742
      %v1748 = vmul.f32 %v1732, %v1740
      %v1749 = vmul.f32 %v1733, %v1744
      %v1750 = vmul.f32 %v1734, %v1742
      %1754 = vrot.lane.b32.xlu0 %v1748, 4
      %v1755 = vpop.permute.xlu0 %1754
      %1756 = vrot.lane.b32.xlu0 %v1749, 4
      %v1757 = vpop.permute.xlu0 %1756
      %1758 = vrot.lane.b32.xlu0 %v1750, 4
      %v1759 = vpop.permute.xlu0 %1758
      %vm1760 = vcmask 31744
      %v1761 = vsel %vm1760, %v1755, %v1757
      %v1762 = vsel %vm1760, %v1757, %v1759
      %1765 = vst [vmem:[#allocation2 + $0x8] sm:$0xff] %v1761
      %1766 = vst [vmem:[#allocation2 + $0x10] sm:$0xff] %v1762
      %v1767 = vld [vmem:[#allocation2 + $0x1e0] sm:$0xff]
      %v1768 = vld [vmem:[#allocation2 + $0x1e8] sm:$0xff]
      %v1769 = vld [vmem:[#allocation2 + $0x1f0] sm:$0xff]
      %s1770 = scalar_lea.vmem %s3, 16
      %v1771 = vld [vmem:[%s1770] sm:$0xff]
      %v1772 = vld [vmem:[%s1770 + $0x8] sm:$0xff]
      %1775 = vrot.lane.b32.xlu0 %v1771, 125
      %v1776 = vpop.permute.xlu0 %1775
      %1777 = vrot.lane.b32.xlu0 %v1772, 125
      %v1778 = vpop.permute.xlu0 %1777
      %vm1779 = vcmask 1022976
      %v1780 = vsel %vm1779, %v1776, %v1778
      %v1784 = vmul.f32 %v1767, %v1776
      %v1785 = vmul.f32 %v1768, %v1780
      %v1786 = vmul.f32 %v1769, %v1778
      %1790 = vrot.lane.b32.xlu0 %v1784, 3
      %v1791 = vpop.permute.xlu0 %1790
      %1792 = vrot.lane.b32.xlu0 %v1785, 3
      %v1793 = vpop.permute.xlu0 %1792
      %1794 = vrot.lane.b32.xlu0 %v1786, 3
      %v1795 = vpop.permute.xlu0 %1794
      %vm1796 = vcmask 23552
      %v1797 = vsel %vm1796, %v1791, %v1793
      %v1798 = vsel %vm1796, %v1793, %v1795
      %1801 = vst [vmem:[#allocation2 + $0x38] sm:$0xff] %v1797
      %1802 = vst [vmem:[#allocation2 + $0x40] sm:$0xff] %v1798
      %v1803 = vld [vmem:[#allocation2 + $0x1e0] sm:$0xff]
      %v1804 = vld [vmem:[#allocation2 + $0x1e8] sm:$0xff]
      %v1805 = vld [vmem:[#allocation2 + $0x1f0] sm:$0xff]
      %s1806 = scalar_lea.vmem %s3, 32
      %v1807 = vld [vmem:[%s1806] sm:$0xff]
      %v1808 = vld [vmem:[%s1806 + $0x8] sm:$0xff]
      %1811 = vrot.lane.b32.xlu0 %v1807, 126
      %v1812 = vpop.permute.xlu0 %1811
      %1813 = vrot.lane.b32.xlu0 %v1808, 126
      %v1814 = vpop.permute.xlu0 %1813
      %vm1815 = vcmask 1031168
      %v1816 = vsel %vm1815, %v1812, %v1814
      %v1820 = vmul.f32 %v1803, %v1812
      %v1821 = vmul.f32 %v1804, %v1816
      %v1822 = vmul.f32 %v1805, %v1814
      %1826 = vrot.lane.b32.xlu0 %v1820, 2
      %v1827 = vpop.permute.xlu0 %1826
      %1828 = vrot.lane.b32.xlu0 %v1821, 2
      %v1829 = vpop.permute.xlu0 %1828
      %1830 = vrot.lane.b32.xlu0 %v1822, 2
      %v1831 = vpop.permute.xlu0 %1830
      %vm1832 = vcmask 15360
      %v1833 = vsel %vm1832, %v1827, %v1829
      %v1834 = vsel %vm1832, %v1829, %v1831
      %1837 = vst [vmem:[#allocation2 + $0x68] sm:$0xff] %v1833
      %1838 = vst [vmem:[#allocation2 + $0x70] sm:$0xff] %v1834
      %v1839 = vld [vmem:[#allocation2 + $0x1e0] sm:$0xff]
      %v1840 = vld [vmem:[#allocation2 + $0x1e8] sm:$0xff]
      %v1841 = vld [vmem:[#allocation2 + $0x1f0] sm:$0xff]
      %s1842 = scalar_lea.vmem %s3, 48
      %v1843 = vld [vmem:[%s1842] sm:$0xff]
      %v1844 = vld [vmem:[%s1842 + $0x8] sm:$0xff]
      %1847 = vrot.lane.b32.xlu0 %v1843, 127
      %v1848 = vpop.permute.xlu0 %1847
      %1849 = vrot.lane.b32.xlu0 %v1844, 127
      %v1850 = vpop.permute.xlu0 %1849
      %vm1851 = vcmask 1039360
      %v1852 = vsel %vm1851, %v1848, %v1850
      %v1856 = vmul.f32 %v1839, %v1848
      %v1857 = vmul.f32 %v1840, %v1852
      %v1858 = vmul.f32 %v1841, %v1850
      %1862 = vrot.lane.b32.xlu0 %v1856, 1
      %v1863 = vpop.permute.xlu0 %1862
      %1864 = vrot.lane.b32.xlu0 %v1857, 1
      %v1865 = vpop.permute.xlu0 %1864
      %1866 = vrot.lane.b32.xlu0 %v1858, 1
      %v1867 = vpop.permute.xlu0 %1866
      %vm1868 = vcmask 7168
      %v1869 = vsel %vm1868, %v1863, %v1865
      %v1870 = vsel %vm1868, %v1865, %v1867
      %1873 = vst [vmem:[#allocation2 + $0x98] sm:$0xff] %v1869
      %1874 = vst [vmem:[#allocation2 + $0xa0] sm:$0xff] %v1870
      %v1875 = vld [vmem:[#allocation2 + $0x1e8] sm:$0xff]
      %v1876 = vld [vmem:[#allocation2 + $0x1f0] sm:$0xff]
      %1877 = vst [vmem:[#allocation2 + $0xc8] sm:$0xff] %v1875
      %1878 = vst [vmem:[#allocation2 + $0xd0] sm:$0xff] %v1876
      %v1879 = vld [vmem:[#allocation2 + $0x1e8] sm:$0xff]
      %v1880 = vld [vmem:[#allocation2 + $0x1f0] sm:$0xff]
      %v1881 = vld [vmem:[#allocation2 + $0x1f8] sm:$0xff]
      %s1882 = scalar_lea.vmem %s3, 64
      %v1883 = vld [vmem:[%s1882] sm:$0xff]
      %v1884 = vld [vmem:[%s1882 + $0x8] sm:$0xff]
      %1887 = vrot.lane.b32.xlu0 %v1883, 1
      %v1888 = vpop.permute.xlu0 %1887
      %1889 = vrot.lane.b32.xlu0 %v1884, 1
      %v1890 = vpop.permute.xlu0 %1889
      %v1891 = vsel %vm1868, %v1888, %v1890
      %v1895 = vmul.f32 %v1879, %v1888
      %v1896 = vmul.f32 %v1880, %v1891
      %v1897 = vmul.f32 %v1881, %v1890
      %1901 = vrot.lane.b32.xlu0 %v1895, 127
      %v1902 = vpop.permute.xlu0 %1901
      %1903 = vrot.lane.b32.xlu0 %v1896, 127
      %v1904 = vpop.permute.xlu0 %1903
      %1905 = vrot.lane.b32.xlu0 %v1897, 127
      %v1906 = vpop.permute.xlu0 %1905
      %v1907 = vsel %vm1851, %v1902, %v1904
      %v1908 = vsel %vm1851, %v1904, %v1906
      %1911 = vst [vmem:[#allocation2 + $0xf8] sm:$0xff] %v1907
      %1912 = vst [vmem:[#allocation2 + $0x100] sm:$0xff] %v1908
      %v1913 = vld [vmem:[#allocation2 + $0x1e8] sm:$0xff]
      %v1914 = vld [vmem:[#allocation2 + $0x1f0] sm:$0xff]
      %v1915 = vld [vmem:[#allocation2 + $0x1f8] sm:$0xff]
      %s1916 = scalar_lea.vmem %s3, 80
      %v1917 = vld [vmem:[%s1916] sm:$0xff]
      %v1918 = vld [vmem:[%s1916 + $0x8] sm:$0xff]
      %1921 = vrot.lane.b32.xlu0 %v1917, 2
      %v1922 = vpop.permute.xlu0 %1921
      %1923 = vrot.lane.b32.xlu0 %v1918, 2
      %v1924 = vpop.permute.xlu0 %1923
      %v1925 = vsel %vm1832, %v1922, %v1924
      %v1929 = vmul.f32 %v1913, %v1922
      %v1930 = vmul.f32 %v1914, %v1925
      %v1931 = vmul.f32 %v1915, %v1924
      %1935 = vrot.lane.b32.xlu0 %v1929, 126
      %v1936 = vpop.permute.xlu0 %1935
      %1937 = vrot.lane.b32.xlu0 %v1930, 126
      %v1938 = vpop.permute.xlu0 %1937
      %1939 = vrot.lane.b32.xlu0 %v1931, 126
      %v1940 = vpop.permute.xlu0 %1939
      %v1941 = vsel %vm1815, %v1936, %v1938
      %v1942 = vsel %vm1815, %v1938, %v1940
      %1945 = vst [vmem:[#allocation2 + $0x128] sm:$0xff] %v1941
      %1946 = vst [vmem:[#allocation2 + $0x130] sm:$0xff] %v1942
      %v1947 = vld [vmem:[#allocation2 + $0x1e8] sm:$0xff]
      %v1948 = vld [vmem:[#allocation2 + $0x1f0] sm:$0xff]
      %v1949 = vld [vmem:[#allocation2 + $0x1f8] sm:$0xff]
      %s1950 = scalar_lea.vmem %s3, 96
      %v1951 = vld [vmem:[%s1950] sm:$0xff]
      %v1952 = vld [vmem:[%s1950 + $0x8] sm:$0xff]
      %1955 = vrot.lane.b32.xlu0 %v1951, 3
      %v1956 = vpop.permute.xlu0 %1955
      %1957 = vrot.lane.b32.xlu0 %v1952, 3
      %v1958 = vpop.permute.xlu0 %1957
      %v1959 = vsel %vm1796, %v1956, %v1958
      %v1963 = vmul.f32 %v1947, %v1956
      %v1964 = vmul.f32 %v1948, %v1959
      %v1965 = vmul.f32 %v1949, %v1958
      %1969 = vrot.lane.b32.xlu0 %v1963, 125
      %v1970 = vpop.permute.xlu0 %1969
      %1971 = vrot.lane.b32.xlu0 %v1964, 125
      %v1972 = vpop.permute.xlu0 %1971
      %1973 = vrot.lane.b32.xlu0 %v1965, 125
      %v1974 = vpop.permute.xlu0 %1973
      %v1975 = vsel %vm1779, %v1970, %v1972
      %v1976 = vsel %vm1779, %v1972, %v1974
      %1979 = vst [vmem:[#allocation2 + $0x158] sm:$0xff] %v1975
      %1980 = vst [vmem:[#allocation2 + $0x160] sm:$0xff] %v1976
      %v1981 = vld [vmem:[#allocation2 + $0x1e8] sm:$0xff]
      %v1982 = vld [vmem:[#allocation2 + $0x1f0] sm:$0xff]
      %v1983 = vld [vmem:[#allocation2 + $0x1f8] sm:$0xff]
      %s1984 = scalar_lea.vmem %s3, 112
      %v1985 = vld [vmem:[%s1984] sm:$0xff]
      %v1986 = vld [vmem:[%s1984 + $0x8] sm:$0xff]
      %1989 = vrot.lane.b32.xlu0 %v1985, 4
      %v1990 = vpop.permute.xlu0 %1989
      %1991 = vrot.lane.b32.xlu0 %v1986, 4
      %v1992 = vpop.permute.xlu0 %1991
      %v1993 = vsel %vm1760, %v1990, %v1992
      %v1997 = vmul.f32 %v1981, %v1990
      %v1998 = vmul.f32 %v1982, %v1993
      %v1999 = vmul.f32 %v1983, %v1992
      %2003 = vrot.lane.b32.xlu0 %v1997, 124
      %v2004 = vpop.permute.xlu0 %2003
      %2005 = vrot.lane.b32.xlu0 %v1998, 124
      %v2006 = vpop.permute.xlu0 %2005
      %2007 = vrot.lane.b32.xlu0 %v1999, 124
      %v2008 = vpop.permute.xlu0 %2007
      %v2009 = vsel %vm1743, %v2004, %v2006
      %v2010 = vsel %vm1743, %v2006, %v2008
      %2013 = vst [vmem:[#allocation2 + $0x188] sm:$0xff] %v2009
      %2014 = vst [vmem:[#allocation2 + $0x190] sm:$0xff] %v2010
      %v2015 = vld [vmem:[#allocation2] sm:$0xff]
      %v2016 = vld [vmem:[#allocation2 + $0x8] sm:$0xff]
      %v2017 = vld [vmem:[#allocation2 + $0x10] sm:$0xff]
      %v2018 = vld [vmem:[#allocation2 + $0x30] sm:$0xff]
      %v2019 = vld [vmem:[#allocation2 + $0x38] sm:$0xff]
      %v2020 = vld [vmem:[#allocation2 + $0x40] sm:$0xff]
      %v2021 = vld [vmem:[#allocation2 + $0x60] sm:$0xff]
      %v2022 = vld [vmem:[#allocation2 + $0x68] sm:$0xff]
      %v2023 = vld [vmem:[#allocation2 + $0x70] sm:$0xff]
      %v2024 = vld [vmem:[#allocation2 + $0x90] sm:$0xff]
      %v2025 = vld [vmem:[#allocation2 + $0x98] sm:$0xff]
      %v2026 = vld [vmem:[#allocation2 + $0xa0] sm:$0xff]
      %v2027 = vld [vmem:[#allocation2 + $0xc0] sm:$0xff]
      %v2028 = vld [vmem:[#allocation2 + $0xc8] sm:$0xff]
      %v2029 = vld [vmem:[#allocation2 + $0xd0] sm:$0xff]
      %v2030 = vld [vmem:[#allocation2 + $0xf0] sm:$0xff]
      %v2031 = vld [vmem:[#allocation2 + $0xf8] sm:$0xff]
      %v2032 = vld [vmem:[#allocation2 + $0x100] sm:$0xff]
      %v2033 = vld [vmem:[#allocation2 + $0x120] sm:$0xff]
      %v2034 = vld [vmem:[#allocation2 + $0x128] sm:$0xff]
      %v2035 = vld [vmem:[#allocation2 + $0x130] sm:$0xff]
      %v2036 = vld [vmem:[#allocation2 + $0x150] sm:$0xff]
      %v2037 = vld [vmem:[#allocation2 + $0x158] sm:$0xff]
      %v2038 = vld [vmem:[#allocation2 + $0x160] sm:$0xff]
      %v2039 = vld [vmem:[#allocation2 + $0x180] sm:$0xff]
      %v2040 = vld [vmem:[#allocation2 + $0x188] sm:$0xff]
      %v2041 = vld [vmem:[#allocation2 + $0x190] sm:$0xff]
      %v2042 = vld [vmem:[#allocation2 + $0x1b0] sm:$0xff]
      %v2043 = vld [vmem:[#allocation2 + $0x1b8] sm:$0xff]
      %v2044 = vld [vmem:[#allocation2 + $0x1c0] sm:$0xff]
      %v2045 = vpack.c.bf16 %v2018, %v2015
      %v2046 = vpack.c.bf16 %v2019, %v2016
      %v2047 = vpack.c.bf16 %v2020, %v2017
      %v2048 = vpack.c.bf16 %v2024, %v2021
      %v2049 = vpack.c.bf16 %v2025, %v2022
      %v2050 = vpack.c.bf16 %v2026, %v2023
      %v2051 = vpack.c.bf16 %v2030, %v2027
      %v2052 = vpack.c.bf16 %v2031, %v2028
      %v2053 = vpack.c.bf16 %v2032, %v2029
      %v2054 = vpack.c.bf16 %v2036, %v2033
      %v2055 = vpack.c.bf16 %v2037, %v2034
      %v2056 = vpack.c.bf16 %v2038, %v2035
      %v2057 = vpack.c.bf16 %v2042, %v2039
      %v2058 = vpack.c.bf16 %v2043, %v2040
      %v2059 = vpack.c.bf16 %v2044, %v2041
      %2075 = vrot.lane.b32.xlu0 %v2045, 64
      %v2076 = vpop.permute.xlu0 %2075
      %2077 = vrot.lane.b32.xlu0 %v2046, 64
      %v2078 = vpop.permute.xlu0 %2077
      %2079 = vrot.lane.b32.xlu0 %v2047, 64
      %v2080 = vpop.permute.xlu0 %2079
      %2081 = vrot.lane.b32.xlu0 %v2048, 64
      %v2082 = vpop.permute.xlu0 %2081
      %2083 = vrot.lane.b32.xlu0 %v2049, 64
      %v2084 = vpop.permute.xlu0 %2083
      %2085 = vrot.lane.b32.xlu0 %v2050, 64
      %v2086 = vpop.permute.xlu0 %2085
      %2087 = vrot.lane.b32.xlu0 %v2051, 64
      %v2088 = vpop.permute.xlu0 %2087
      %2089 = vrot.lane.b32.xlu0 %v2052, 64
      %v2090 = vpop.permute.xlu0 %2089
      %2091 = vrot.lane.b32.xlu0 %v2053, 64
      %v2092 = vpop.permute.xlu0 %2091
      %2093 = vrot.lane.b32.xlu0 %v2054, 64
      %v2094 = vpop.permute.xlu0 %2093
      %2095 = vrot.lane.b32.xlu0 %v2055, 64
      %v2096 = vpop.permute.xlu0 %2095
      %2097 = vrot.lane.b32.xlu0 %v2056, 64
      %v2098 = vpop.permute.xlu0 %2097
      %2099 = vrot.lane.b32.xlu0 %v2057, 64
      %v2100 = vpop.permute.xlu0 %2099
      %2101 = vrot.lane.b32.xlu0 %v2058, 64
      %v2102 = vpop.permute.xlu0 %2101
      %2103 = vrot.lane.b32.xlu0 %v2059, 64
      %v2104 = vpop.permute.xlu0 %2103
      %vm2105 = vcmask 523264
      %v2106 = vsel %vm2105, %v2076, %v2078
      %v2107 = vsel %vm2105, %v2078, %v2080
      %v2108 = vsel %vm2105, %v2082, %v2084
      %v2109 = vsel %vm2105, %v2084, %v2086
      %v2110 = vsel %vm2105, %v2088, %v2090
      %v2111 = vsel %vm2105, %v2090, %v2092
      %v2112 = vsel %vm2105, %v2094, %v2096
      %v2113 = vsel %vm2105, %v2096, %v2098
      %v2114 = vsel %vm2105, %v2100, %v2102
      %v2115 = vsel %vm2105, %v2102, %v2104
      %2126 = vst [vmem:[#allocation3] sm:$0xff] %v2106
      %2127 = vst [vmem:[#allocation3 + $0x8] sm:$0xff] %v2107
      %2128 = vst [vmem:[#allocation3 + $0x10] sm:$0xff] %v2108
      %2129 = vst [vmem:[#allocation3 + $0x18] sm:$0xff] %v2109
      %2130 = vst [vmem:[#allocation3 + $0x20] sm:$0xff] %v2110
      %2131 = vst [vmem:[#allocation3 + $0x28] sm:$0xff] %v2111
      %2132 = vst [vmem:[#allocation3 + $0x30] sm:$0xff] %v2112
      %2133 = vst [vmem:[#allocation3 + $0x38] sm:$0xff] %v2113
      %2134 = vst [vmem:[#allocation3 + $0x40] sm:$0xff] %v2114
      %2135 = vst [vmem:[#allocation3 + $0x48] sm:$0xff] %v2115
      %v2136 = vld [vmem:[#allocation2] sm:$0xff]
      %v2137 = vld [vmem:[#allocation2 + $0x8] sm:$0xff]
      %v2138 = vld [vmem:[#allocation2 + $0x10] sm:$0xff]
      %v2139 = vld [vmem:[#allocation2 + $0x30] sm:$0xff]
      %v2140 = vld [vmem:[#allocation2 + $0x38] sm:$0xff]
      %v2141 = vld [vmem:[#allocation2 + $0x40] sm:$0xff]
      %v2142 = vld [vmem:[#allocation2 + $0x60] sm:$0xff]
      %v2143 = vld [vmem:[#allocation2 + $0x68] sm:$0xff]
      %v2144 = vld [vmem:[#allocation2 + $0x70] sm:$0xff]
      %v2145 = vld [vmem:[#allocation2 + $0x90] sm:$0xff]
      %v2146 = vld [vmem:[#allocation2 + $0x98] sm:$0xff]
      %v2147 = vld [vmem:[#allocation2 + $0xa0] sm:$0xff]
      %v2148 = vld [vmem:[#allocation2 + $0xc0] sm:$0xff]
      %v2149 = vld [vmem:[#allocation2 + $0xc8] sm:$0xff]
      %v2150 = vld [vmem:[#allocation2 + $0xd0] sm:$0xff]
      %v2151 = vld [vmem:[#allocation2 + $0xf0] sm:$0xff]
      %v2152 = vld [vmem:[#allocation2 + $0xf8] sm:$0xff]
      %v2153 = vld [vmem:[#allocation2 + $0x100] sm:$0xff]
      %v2154 = vld [vmem:[#allocation2 + $0x120] sm:$0xff]
      %v2155 = vld [vmem:[#allocation2 + $0x128] sm:$0xff]
      %v2156 = vld [vmem:[#allocation2 + $0x130] sm:$0xff]
      %v2157 = vld [vmem:[#allocation2 + $0x150] sm:$0xff]
      %v2158 = vld [vmem:[#allocation2 + $0x158] sm:$0xff]
      %v2159 = vld [vmem:[#allocation2 + $0x160] sm:$0xff]
      %v2160 = vld [vmem:[#allocation2 + $0x180] sm:$0xff]
      %v2161 = vld [vmem:[#allocation2 + $0x188] sm:$0xff]
      %v2162 = vld [vmem:[#allocation2 + $0x190] sm:$0xff]
      %v2163 = vld [vmem:[#allocation2 + $0x1b0] sm:$0xff]
      %v2164 = vld [vmem:[#allocation2 + $0x1b8] sm:$0xff]
      %v2165 = vld [vmem:[#allocation2 + $0x1c0] sm:$0xff]
      %v2166 = vpack.c.bf16 %v2139, %v2136
      %v2167 = vpack.c.bf16 %v2140, %v2137
      %v2168 = vpack.c.bf16 %v2141, %v2138
      %v2169 = vpack.c.bf16 %v2145, %v2142
      %v2170 = vpack.c.bf16 %v2146, %v2143
      %v2171 = vpack.c.bf16 %v2147, %v2144
      %v2172 = vpack.c.bf16 %v2151, %v2148
      %v2173 = vpack.c.bf16 %v2152, %v2149
      %v2174 = vpack.c.bf16 %v2153, %v2150
      %v2175 = vpack.c.bf16 %v2157, %v2154
      %v2176 = vpack.c.bf16 %v2158, %v2155
      %v2177 = vpack.c.bf16 %v2159, %v2156
      %v2178 = vpack.c.bf16 %v2163, %v2160
      %v2179 = vpack.c.bf16 %v2164, %v2161
      %v2180 = vpack.c.bf16 %v2165, %v2162
      %2196 = vrot.lane.b32.xlu0 %v2166, 48
      %v2197 = vpop.permute.xlu0 %2196
      %2198 = vrot.lane.b32.xlu0 %v2167, 48
      %v2199 = vpop.permute.xlu0 %2198
      %2200 = vrot.lane.b32.xlu0 %v2168, 48
      %v2201 = vpop.permute.xlu0 %2200
      %2202 = vrot.lane.b32.xlu0 %v2169, 48
      %v2203 = vpop.permute.xlu0 %2202
      %2204 = vrot.lane.b32.xlu0 %v2170, 48
      %v2205 = vpop.permute.xlu0 %2204
      %2206 = vrot.lane.b32.xlu0 %v2171, 48
      %v2207 = vpop.permute.xlu0 %2206
      %2208 = vrot.lane.b32.xlu0 %v2172, 48
      %v2209 = vpop.permute.xlu0 %2208
      %2210 = vrot.lane.b32.xlu0 %v2173, 48
      %v2211 = vpop.permute.xlu0 %2210
      %2212 = vrot.lane.b32.xlu0 %v2174, 48
      %v2213 = vpop.permute.xlu0 %2212
      %2214 = vrot.lane.b32.xlu0 %v2175, 48
      %v2215 = vpop.permute.xlu0 %2214
      %2216 = vrot.lane.b32.xlu0 %v2176, 48
      %v2217 = vpop.permute.xlu0 %2216
      %2218 = vrot.lane.b32.xlu0 %v2177, 48
      %v2219 = vpop.permute.xlu0 %2218
      %2220 = vrot.lane.b32.xlu0 %v2178, 48
      %v2221 = vpop.permute.xlu0 %2220
      %2222 = vrot.lane.b32.xlu0 %v2179, 48
      %v2223 = vpop.permute.xlu0 %2222
      %2224 = vrot.lane.b32.xlu0 %v2180, 48
      %v2225 = vpop.permute.xlu0 %2224
      %vm2226 = vcmask 392192
      %v2227 = vsel %vm2226, %v2197, %v2199
      %v2228 = vsel %vm2226, %v2199, %v2201
      %v2229 = vsel %vm2226, %v2203, %v2205
      %v2230 = vsel %vm2226, %v2205, %v2207
      %v2231 = vsel %vm2226, %v2209, %v2211
      %v2232 = vsel %vm2226, %v2211, %v2213
      %v2233 = vsel %vm2226, %v2215, %v2217
      %v2234 = vsel %vm2226, %v2217, %v2219
      %v2235 = vsel %vm2226, %v2221, %v2223
      %v2236 = vsel %vm2226, %v2223, %v2225
      %2247 = vst [vmem:[#allocation3 + $0x50] sm:$0xff] %v2227
      %2248 = vst [vmem:[#allocation3 + $0x58] sm:$0xff] %v2228
      %2249 = vst [vmem:[#allocation3 + $0x60] sm:$0xff] %v2229
      %2250 = vst [vmem:[#allocation3 + $0x68] sm:$0xff] %v2230
      %2251 = vst [vmem:[#allocation3 + $0x70] sm:$0xff] %v2231
      %2252 = vst [vmem:[#allocation3 + $0x78] sm:$0xff] %v2232
      %2253 = vst [vmem:[#allocation3 + $0x80] sm:$0xff] %v2233
      %2254 = vst [vmem:[#allocation3 + $0x88] sm:$0xff] %v2234
      %2255 = vst [vmem:[#allocation3 + $0x90] sm:$0xff] %v2235
      %2256 = vst [vmem:[#allocation3 + $0x98] sm:$0xff] %v2236
      %v2257 = vld [vmem:[#allocation2] sm:$0xff]
      %v2258 = vld [vmem:[#allocation2 + $0x8] sm:$0xff]
      %v2259 = vld [vmem:[#allocation2 + $0x10] sm:$0xff]
      %v2260 = vld [vmem:[#allocation2 + $0x30] sm:$0xff]
      %v2261 = vld [vmem:[#allocation2 + $0x38] sm:$0xff]
      %v2262 = vld [vmem:[#allocation2 + $0x40] sm:$0xff]
      %v2263 = vld [vmem:[#allocation2 + $0x60] sm:$0xff]
      %v2264 = vld [vmem:[#allocation2 + $0x68] sm:$0xff]
      %v2265 = vld [vmem:[#allocation2 + $0x70] sm:$0xff]
      %v2266 = vld [vmem:[#allocation2 + $0x90] sm:$0xff]
      %v2267 = vld [vmem:[#allocation2 + $0x98] sm:$0xff]
      %v2268 = vld [vmem:[#allocation2 + $0xa0] sm:$0xff]
      %v2269 = vld [vmem:[#allocation2 + $0xc0] sm:$0xff]
      %v2270 = vld [vmem:[#allocation2 + $0xc8] sm:$0xff]
      %v2271 = vld [vmem:[#allocation2 + $0xd0] sm:$0xff]
      %v2272 = vld [vmem:[#allocation2 + $0xf0] sm:$0xff]
      %v2273 = vld [vmem:[#allocation2 + $0xf8] sm:$0xff]
      %v2274 = vld [vmem:[#allocation2 + $0x100] sm:$0xff]
      %v2275 = vld [vmem:[#allocation2 + $0x120] sm:$0xff]
      %v2276 = vld [vmem:[#allocation2 + $0x128] sm:$0xff]
      %v2277 = vld [vmem:[#allocation2 + $0x130] sm:$0xff]
      %v2278 = vld [vmem:[#allocation2 + $0x150] sm:$0xff]
      %v2279 = vld [vmem:[#allocation2 + $0x158] sm:$0xff]
      %v2280 = vld [vmem:[#allocation2 + $0x160] sm:$0xff]
      %v2281 = vld [vmem:[#allocation2 + $0x180] sm:$0xff]
      %v2282 = vld [vmem:[#allocation2 + $0x188] sm:$0xff]
      %v2283 = vld [vmem:[#allocation2 + $0x190] sm:$0xff]
      %v2284 = vld [vmem:[#allocation2 + $0x1b0] sm:$0xff]
      %v2285 = vld [vmem:[#allocation2 + $0x1b8] sm:$0xff]
      %v2286 = vld [vmem:[#allocation2 + $0x1c0] sm:$0xff]
      %v2287 = vpack.c.bf16 %v2260, %v2257
      %v2288 = vpack.c.bf16 %v2261, %v2258
      %v2289 = vpack.c.bf16 %v2262, %v2259
      %v2290 = vpack.c.bf16 %v2266, %v2263
      %v2291 = vpack.c.bf16 %v2267, %v2264
      %v2292 = vpack.c.bf16 %v2268, %v2265
      %v2293 = vpack.c.bf16 %v2272, %v2269
      %v2294 = vpack.c.bf16 %v2273, %v2270
      %v2295 = vpack.c.bf16 %v2274, %v2271
      %v2296 = vpack.c.bf16 %v2278, %v2275
      %v2297 = vpack.c.bf16 %v2279, %v2276
      %v2298 = vpack.c.bf16 %v2280, %v2277
      %v2299 = vpack.c.bf16 %v2284, %v2281
      %v2300 = vpack.c.bf16 %v2285, %v2282
      %v2301 = vpack.c.bf16 %v2286, %v2283
      %2317 = vrot.lane.b32.xlu0 %v2287, 32
      %v2318 = vpop.permute.xlu0 %2317
      %2319 = vrot.lane.b32.xlu0 %v2288, 32
      %v2320 = vpop.permute.xlu0 %2319
      %2321 = vrot.lane.b32.xlu0 %v2289, 32
      %v2322 = vpop.permute.xlu0 %2321
      %2323 = vrot.lane.b32.xlu0 %v2290, 32
      %v2324 = vpop.permute.xlu0 %2323
      %2325 = vrot.lane.b32.xlu0 %v2291, 32
      %v2326 = vpop.permute.xlu0 %2325
      %2327 = vrot.lane.b32.xlu0 %v2292, 32
      %v2328 = vpop.permute.xlu0 %2327
      %2329 = vrot.lane.b32.xlu0 %v2293, 32
      %v2330 = vpop.permute.xlu0 %2329
      %2331 = vrot.lane.b32.xlu0 %v2294, 32
      %v2332 = vpop.permute.xlu0 %2331
      %2333 = vrot.lane.b32.xlu0 %v2295, 32
      %v2334 = vpop.permute.xlu0 %2333
      %2335 = vrot.lane.b32.xlu0 %v2296, 32
      %v2336 = vpop.permute.xlu0 %2335
      %2337 = vrot.lane.b32.xlu0 %v2297, 32
      %v2338 = vpop.permute.xlu0 %2337
      %2339 = vrot.lane.b32.xlu0 %v2298, 32
      %v2340 = vpop.permute.xlu0 %2339
      %2341 = vrot.lane.b32.xlu0 %v2299, 32
      %v2342 = vpop.permute.xlu0 %2341
      %2343 = vrot.lane.b32.xlu0 %v2300, 32
      %v2344 = vpop.permute.xlu0 %2343
      %2345 = vrot.lane.b32.xlu0 %v2301, 32
      %v2346 = vpop.permute.xlu0 %2345
      %vm2347 = vcmask 261120
      %v2348 = vsel %vm2347, %v2318, %v2320
      %v2349 = vsel %vm2347, %v2320, %v2322
      %v2350 = vsel %vm2347, %v2324, %v2326
      %v2351 = vsel %vm2347, %v2326, %v2328
      %v2352 = vsel %vm2347, %v2330, %v2332
      %v2353 = vsel %vm2347, %v2332, %v2334
      %v2354 = vsel %vm2347, %v2336, %v2338
      %v2355 = vsel %vm2347, %v2338, %v2340
      %v2356 = vsel %vm2347, %v2342, %v2344
      %v2357 = vsel %vm2347, %v2344, %v2346
      %2368 = vst [vmem:[#allocation3 + $0xa0] sm:$0xff] %v2348
      %2369 = vst [vmem:[#allocation3 + $0xa8] sm:$0xff] %v2349
      %2370 = vst [vmem:[#allocation3 + $0xb0] sm:$0xff] %v2350
      %2371 = vst [vmem:[#allocation3 + $0xb8] sm:$0xff] %v2351
      %2372 = vst [vmem:[#allocation3 + $0xc0] sm:$0xff] %v2352
      %2373 = vst [vmem:[#allocation3 + $0xc8] sm:$0xff] %v2353
      %2374 = vst [vmem:[#allocation3 + $0xd0] sm:$0xff] %v2354
      %2375 = vst [vmem:[#allocation3 + $0xd8] sm:$0xff] %v2355
      %2376 = vst [vmem:[#allocation3 + $0xe0] sm:$0xff] %v2356
      %2377 = vst [vmem:[#allocation3 + $0xe8] sm:$0xff] %v2357
      %v2378 = vld [vmem:[#allocation2] sm:$0xff]
      %v2379 = vld [vmem:[#allocation2 + $0x8] sm:$0xff]
      %v2380 = vld [vmem:[#allocation2 + $0x10] sm:$0xff]
      %v2381 = vld [vmem:[#allocation2 + $0x30] sm:$0xff]
      %v2382 = vld [vmem:[#allocation2 + $0x38] sm:$0xff]
      %v2383 = vld [vmem:[#allocation2 + $0x40] sm:$0xff]
      %v2384 = vld [vmem:[#allocation2 + $0x60] sm:$0xff]
      %v2385 = vld [vmem:[#allocation2 + $0x68] sm:$0xff]
      %v2386 = vld [vmem:[#allocation2 + $0x70] sm:$0xff]
      %v2387 = vld [vmem:[#allocation2 + $0x90] sm:$0xff]
      %v2388 = vld [vmem:[#allocation2 + $0x98] sm:$0xff]
      %v2389 = vld [vmem:[#allocation2 + $0xa0] sm:$0xff]
      %v2390 = vld [vmem:[#allocation2 + $0xc0] sm:$0xff]
      %v2391 = vld [vmem:[#allocation2 + $0xc8] sm:$0xff]
      %v2392 = vld [vmem:[#allocation2 + $0xd0] sm:$0xff]
      %v2393 = vld [vmem:[#allocation2 + $0xf0] sm:$0xff]
      %v2394 = vld [vmem:[#allocation2 + $0xf8] sm:$0xff]
      %v2395 = vld [vmem:[#allocation2 + $0x100] sm:$0xff]
      %v2396 = vld [vmem:[#allocation2 + $0x120] sm:$0xff]
      %v2397 = vld [vmem:[#allocation2 + $0x128] sm:$0xff]
      %v2398 = vld [vmem:[#allocation2 + $0x130] sm:$0xff]
      %v2399 = vld [vmem:[#allocation2 + $0x150] sm:$0xff]
      %v2400 = vld [vmem:[#allocation2 + $0x158] sm:$0xff]
      %v2401 = vld [vmem:[#allocation2 + $0x160] sm:$0xff]
      %v2402 = vld [vmem:[#allocation2 + $0x180] sm:$0xff]
      %v2403 = vld [vmem:[#allocation2 + $0x188] sm:$0xff]
      %v2404 = vld [vmem:[#allocation2 + $0x190] sm:$0xff]
      %v2405 = vld [vmem:[#allocation2 + $0x1b0] sm:$0xff]
      %v2406 = vld [vmem:[#allocation2 + $0x1b8] sm:$0xff]
      %v2407 = vld [vmem:[#allocation2 + $0x1c0] sm:$0xff]
      %v2408 = vpack.c.bf16 %v2381, %v2378
      %v2409 = vpack.c.bf16 %v2382, %v2379
      %v2410 = vpack.c.bf16 %v2383, %v2380
      %v2411 = vpack.c.bf16 %v2387, %v2384
      %v2412 = vpack.c.bf16 %v2388, %v2385
      %v2413 = vpack.c.bf16 %v2389, %v2386
      %v2414 = vpack.c.bf16 %v2393, %v2390
      %v2415 = vpack.c.bf16 %v2394, %v2391
      %v2416 = vpack.c.bf16 %v2395, %v2392
      %v2417 = vpack.c.bf16 %v2399, %v2396
      %v2418 = vpack.c.bf16 %v2400, %v2397
      %v2419 = vpack.c.bf16 %v2401, %v2398
      %v2420 = vpack.c.bf16 %v2405, %v2402
      %v2421 = vpack.c.bf16 %v2406, %v2403
      %v2422 = vpack.c.bf16 %v2407, %v2404
      %2438 = vrot.lane.b32.xlu0 %v2408, 16
      %v2439 = vpop.permute.xlu0 %2438
      %2440 = vrot.lane.b32.xlu0 %v2409, 16
      %v2441 = vpop.permute.xlu0 %2440
      %2442 = vrot.lane.b32.xlu0 %v2410, 16
      %v2443 = vpop.permute.xlu0 %2442
      %2444 = vrot.lane.b32.xlu0 %v2411, 16
      %v2445 = vpop.permute.xlu0 %2444
      %2446 = vrot.lane.b32.xlu0 %v2412, 16
      %v2447 = vpop.permute.xlu0 %2446
      %2448 = vrot.lane.b32.xlu0 %v2413, 16
      %v2449 = vpop.permute.xlu0 %2448
      %2450 = vrot.lane.b32.xlu0 %v2414, 16
      %v2451 = vpop.permute.xlu0 %2450
      %2452 = vrot.lane.b32.xlu0 %v2415, 16
      %v2453 = vpop.permute.xlu0 %2452
      %2454 = vrot.lane.b32.xlu0 %v2416, 16
      %v2455 = vpop.permute.xlu0 %2454
      %2456 = vrot.lane.b32.xlu0 %v2417, 16
      %v2457 = vpop.permute.xlu0 %2456
      %2458 = vrot.lane.b32.xlu0 %v2418, 16
      %v2459 = vpop.permute.xlu0 %2458
      %2460 = vrot.lane.b32.xlu0 %v2419, 16
      %v2461 = vpop.permute.xlu0 %2460
      %2462 = vrot.lane.b32.xlu0 %v2420, 16
      %v2463 = vpop.permute.xlu0 %2462
      %2464 = vrot.lane.b32.xlu0 %v2421, 16
      %v2465 = vpop.permute.xlu0 %2464
      %2466 = vrot.lane.b32.xlu0 %v2422, 16
      %v2467 = vpop.permute.xlu0 %2466
      %vm2468 = vcmask 130048
      %v2469 = vsel %vm2468, %v2439, %v2441
      %v2470 = vsel %vm2468, %v2441, %v2443
      %v2471 = vsel %vm2468, %v2445, %v2447
      %v2472 = vsel %vm2468, %v2447, %v2449
      %v2473 = vsel %vm2468, %v2451, %v2453
      %v2474 = vsel %vm2468, %v2453, %v2455
      %v2475 = vsel %vm2468, %v2457, %v2459
      %v2476 = vsel %vm2468, %v2459, %v2461
      %v2477 = vsel %vm2468, %v2463, %v2465
      %v2478 = vsel %vm2468, %v2465, %v2467
      %2489 = vst [vmem:[#allocation3 + $0xf0] sm:$0xff] %v2469
      %2490 = vst [vmem:[#allocation3 + $0xf8] sm:$0xff] %v2470
      %2491 = vst [vmem:[#allocation3 + $0x100] sm:$0xff] %v2471
      %2492 = vst [vmem:[#allocation3 + $0x108] sm:$0xff] %v2472
      %2493 = vst [vmem:[#allocation3 + $0x110] sm:$0xff] %v2473
      %2494 = vst [vmem:[#allocation3 + $0x118] sm:$0xff] %v2474
      %2495 = vst [vmem:[#allocation3 + $0x120] sm:$0xff] %v2475
      %2496 = vst [vmem:[#allocation3 + $0x128] sm:$0xff] %v2476
      %2497 = vst [vmem:[#allocation3 + $0x130] sm:$0xff] %v2477
      %2498 = vst [vmem:[#allocation3 + $0x138] sm:$0xff] %v2478
      %v2499 = vld [vmem:[#allocation2 + $0x8] sm:$0xff]
      %v2500 = vld [vmem:[#allocation2 + $0x10] sm:$0xff]
      %v2501 = vld [vmem:[#allocation2 + $0x38] sm:$0xff]
      %v2502 = vld [vmem:[#allocation2 + $0x40] sm:$0xff]
      %v2503 = vld [vmem:[#allocation2 + $0x68] sm:$0xff]
      %v2504 = vld [vmem:[#allocation2 + $0x70] sm:$0xff]
      %v2505 = vld [vmem:[#allocation2 + $0x98] sm:$0xff]
      %v2506 = vld [vmem:[#allocation2 + $0xa0] sm:$0xff]
      %v2507 = vld [vmem:[#allocation2 + $0xc8] sm:$0xff]
      %v2508 = vld [vmem:[#allocation2 + $0xd0] sm:$0xff]
      %v2509 = vld [vmem:[#allocation2 + $0xf8] sm:$0xff]
      %v2510 = vld [vmem:[#allocation2 + $0x100] sm:$0xff]
      %v2511 = vld [vmem:[#allocation2 + $0x128] sm:$0xff]
      %v2512 = vld [vmem:[#allocation2 + $0x130] sm:$0xff]
      %v2513 = vld [vmem:[#allocation2 + $0x158] sm:$0xff]
      %v2514 = vld [vmem:[#allocation2 + $0x160] sm:$0xff]
      %v2515 = vld [vmem:[#allocation2 + $0x188] sm:$0xff]
      %v2516 = vld [vmem:[#allocation2 + $0x190] sm:$0xff]
      %v2517 = vld [vmem:[#allocation2 + $0x1b8] sm:$0xff]
      %v2518 = vld [vmem:[#allocation2 + $0x1c0] sm:$0xff]
      %v2519 = vpack.c.bf16 %v2501, %v2499
      %v2520 = vpack.c.bf16 %v2502, %v2500
      %v2521 = vpack.c.bf16 %v2505, %v2503
      %v2522 = vpack.c.bf16 %v2506, %v2504
      %v2523 = vpack.c.bf16 %v2509, %v2507
      %v2524 = vpack.c.bf16 %v2510, %v2508
      %v2525 = vpack.c.bf16 %v2513, %v2511
      %v2526 = vpack.c.bf16 %v2514, %v2512
      %v2527 = vpack.c.bf16 %v2517, %v2515
      %v2528 = vpack.c.bf16 %v2518, %v2516
      %2529 = vst [vmem:[#allocation3 + $0x140] sm:$0xff] %v2519
      %2530 = vst [vmem:[#allocation3 + $0x148] sm:$0xff] %v2520
      %2531 = vst [vmem:[#allocation3 + $0x150] sm:$0xff] %v2521
      %2532 = vst [vmem:[#allocation3 + $0x158] sm:$0xff] %v2522
      %2533 = vst [vmem:[#allocation3 + $0x160] sm:$0xff] %v2523
      %2534 = vst [vmem:[#allocation3 + $0x168] sm:$0xff] %v2524
      %2535 = vst [vmem:[#allocation3 + $0x170] sm:$0xff] %v2525
      %2536 = vst [vmem:[#allocation3 + $0x178] sm:$0xff] %v2526
      %2537 = vst [vmem:[#allocation3 + $0x180] sm:$0xff] %v2527
      %2538 = vst [vmem:[#allocation3 + $0x188] sm:$0xff] %v2528
      %v2539 = vld [vmem:[#allocation2 + $0x8] sm:$0xff]
      %v2540 = vld [vmem:[#allocation2 + $0x10] sm:$0xff]
      %v2541 = vld [vmem:[#allocation2 + $0x18] sm:$0xff]
      %v2542 = vld [vmem:[#allocation2 + $0x38] sm:$0xff]
      %v2543 = vld [vmem:[#allocation2 + $0x40] sm:$0xff]
      %v2544 = vld [vmem:[#allocation2 + $0x48] sm:$0xff]
      %v2545 = vld [vmem:[#allocation2 + $0x68] sm:$0xff]
      %v2546 = vld [vmem:[#allocation2 + $0x70] sm:$0xff]
      %v2547 = vld [vmem:[#allocation2 + $0x78] sm:$0xff]
      %v2548 = vld [vmem:[#allocation2 + $0x98] sm:$0xff]
      %v2549 = vld [vmem:[#allocation2 + $0xa0] sm:$0xff]
      %v2550 = vld [vmem:[#allocation2 + $0xa8] sm:$0xff]
      %v2551 = vld [vmem:[#allocation2 + $0xc8] sm:$0xff]
      %v2552 = vld [vmem:[#allocation2 + $0xd0] sm:$0xff]
      %v2553 = vld [vmem:[#allocation2 + $0xd8] sm:$0xff]
      %v2554 = vld [vmem:[#allocation2 + $0xf8] sm:$0xff]
      %v2555 = vld [vmem:[#allocation2 + $0x100] sm:$0xff]
      %v2556 = vld [vmem:[#allocation2 + $0x108] sm:$0xff]
      %v2557 = vld [vmem:[#allocation2 + $0x128] sm:$0xff]
      %v2558 = vld [vmem:[#allocation2 + $0x130] sm:$0xff]
      %v2559 = vld [vmem:[#allocation2 + $0x138] sm:$0xff]
      %v2560 = vld [vmem:[#allocation2 + $0x158] sm:$0xff]
      %v2561 = vld [vmem:[#allocation2 + $0x160] sm:$0xff]
      %v2562 = vld [vmem:[#allocation2 + $0x168] sm:$0xff]
      %v2563 = vld [vmem:[#allocation2 + $0x188] sm:$0xff]
      %v2564 = vld [vmem:[#allocation2 + $0x190] sm:$0xff]
      %v2565 = vld [vmem:[#allocation2 + $0x198] sm:$0xff]
      %v2566 = vld [vmem:[#allocation2 + $0x1b8] sm:$0xff]
      %v2567 = vld [vmem:[#allocation2 + $0x1c0] sm:$0xff]
      %v2568 = vld [vmem:[#allocation2 + $0x1c8] sm:$0xff]
      %v2569 = vpack.c.bf16 %v2542, %v2539
      %v2570 = vpack.c.bf16 %v2543, %v2540
      %v2571 = vpack.c.bf16 %v2544, %v2541
      %v2572 = vpack.c.bf16 %v2548, %v2545
      %v2573 = vpack.c.bf16 %v2549, %v2546
      %v2574 = vpack.c.bf16 %v2550, %v2547
      %v2575 = vpack.c.bf16 %v2554, %v2551
      %v2576 = vpack.c.bf16 %v2555, %v2552
      %v2577 = vpack.c.bf16 %v2556, %v2553
      %v2578 = vpack.c.bf16 %v2560, %v2557
      %v2579 = vpack.c.bf16 %v2561, %v2558
      %v2580 = vpack.c.bf16 %v2562, %v2559
      %v2581 = vpack.c.bf16 %v2566, %v2563
      %v2582 = vpack.c.bf16 %v2567, %v2564
      %v2583 = vpack.c.bf16 %v2568, %v2565
      %2599 = vrot.lane.b32.xlu0 %v2569, 112
      %v2600 = vpop.permute.xlu0 %2599
      %2601 = vrot.lane.b32.xlu0 %v2570, 112
      %v2602 = vpop.permute.xlu0 %2601
      %2603 = vrot.lane.b32.xlu0 %v2571, 112
      %v2604 = vpop.permute.xlu0 %2603
      %2605 = vrot.lane.b32.xlu0 %v2572, 112
      %v2606 = vpop.permute.xlu0 %2605
      %2607 = vrot.lane.b32.xlu0 %v2573, 112
      %v2608 = vpop.permute.xlu0 %2607
      %2609 = vrot.lane.b32.xlu0 %v2574, 112
      %v2610 = vpop.permute.xlu0 %2609
      %2611 = vrot.lane.b32.xlu0 %v2575, 112
      %v2612 = vpop.permute.xlu0 %2611
      %2613 = vrot.lane.b32.xlu0 %v2576, 112
      %v2614 = vpop.permute.xlu0 %2613
      %2615 = vrot.lane.b32.xlu0 %v2577, 112
      %v2616 = vpop.permute.xlu0 %2615
      %2617 = vrot.lane.b32.xlu0 %v2578, 112
      %v2618 = vpop.permute.xlu0 %2617
      %2619 = vrot.lane.b32.xlu0 %v2579, 112
      %v2620 = vpop.permute.xlu0 %2619
      %2621 = vrot.lane.b32.xlu0 %v2580, 112
      %v2622 = vpop.permute.xlu0 %2621
      %2623 = vrot.lane.b32.xlu0 %v2581, 112
      %v2624 = vpop.permute.xlu0 %2623
      %2625 = vrot.lane.b32.xlu0 %v2582, 112
      %v2626 = vpop.permute.xlu0 %2625
      %2627 = vrot.lane.b32.xlu0 %v2583, 112
      %v2628 = vpop.permute.xlu0 %2627
      %vm2629 = vcmask 916480
      %v2630 = vsel %vm2629, %v2600, %v2602
      %v2631 = vsel %vm2629, %v2602, %v2604
      %v2632 = vsel %vm2629, %v2606, %v2608
      %v2633 = vsel %vm2629, %v2608, %v2610
      %v2634 = vsel %vm2629, %v2612, %v2614
      %v2635 = vsel %vm2629, %v2614, %v2616
      %v2636 = vsel %vm2629, %v2618, %v2620
      %v2637 = vsel %vm2629, %v2620, %v2622
      %v2638 = vsel %vm2629, %v2624, %v2626
      %v2639 = vsel %vm2629, %v2626, %v2628
      %2650 = vst [vmem:[#allocation3 + $0x190] sm:$0xff] %v2630
      %2651 = vst [vmem:[#allocation3 + $0x198] sm:$0xff] %v2631
      %2652 = vst [vmem:[#allocation3 + $0x1a0] sm:$0xff] %v2632
      %2653 = vst [vmem:[#allocation3 + $0x1a8] sm:$0xff] %v2633
      %2654 = vst [vmem:[#allocation3 + $0x1b0] sm:$0xff] %v2634
      %2655 = vst [vmem:[#allocation3 + $0x1b8] sm:$0xff] %v2635
      %2656 = vst [vmem:[#allocation3 + $0x1c0] sm:$0xff] %v2636
      %2657 = vst [vmem:[#allocation3 + $0x1c8] sm:$0xff] %v2637
      %2658 = vst [vmem:[#allocation3 + $0x1d0] sm:$0xff] %v2638
      %2659 = vst [vmem:[#allocation3 + $0x1d8] sm:$0xff] %v2639
      %v2660 = vld [vmem:[#allocation2 + $0x8] sm:$0xff]
      %v2661 = vld [vmem:[#allocation2 + $0x10] sm:$0xff]
      %v2662 = vld [vmem:[#allocation2 + $0x18] sm:$0xff]
      %v2663 = vld [vmem:[#allocation2 + $0x38] sm:$0xff]
      %v2664 = vld [vmem:[#allocation2 + $0x40] sm:$0xff]
      %v2665 = vld [vmem:[#allocation2 + $0x48] sm:$0xff]
      %v2666 = vld [vmem:[#allocation2 + $0x68] sm:$0xff]
      %v2667 = vld [vmem:[#allocation2 + $0x70] sm:$0xff]
      %v2668 = vld [vmem:[#allocation2 + $0x78] sm:$0xff]
      %v2669 = vld [vmem:[#allocation2 + $0x98] sm:$0xff]
      %v2670 = vld [vmem:[#allocation2 + $0xa0] sm:$0xff]
      %v2671 = vld [vmem:[#allocation2 + $0xa8] sm:$0xff]
      %v2672 = vld [vmem:[#allocation2 + $0xc8] sm:$0xff]
      %v2673 = vld [vmem:[#allocation2 + $0xd0] sm:$0xff]
      %v2674 = vld [vmem:[#allocation2 + $0xd8] sm:$0xff]
      %v2675 = vld [vmem:[#allocation2 + $0xf8] sm:$0xff]
      %v2676 = vld [vmem:[#allocation2 + $0x100] sm:$0xff]
      %v2677 = vld [vmem:[#allocation2 + $0x108] sm:$0xff]
      %v2678 = vld [vmem:[#allocation2 + $0x128] sm:$0xff]
      %v2679 = vld [vmem:[#allocation2 + $0x130] sm:$0xff]
      %v2680 = vld [vmem:[#allocation2 + $0x138] sm:$0xff]
      %v2681 = vld [vmem:[#allocation2 + $0x158] sm:$0xff]
      %v2682 = vld [vmem:[#allocation2 + $0x160] sm:$0xff]
      %v2683 = vld [vmem:[#allocation2 + $0x168] sm:$0xff]
      %v2684 = vld [vmem:[#allocation2 + $0x188] sm:$0xff]
      %v2685 = vld [vmem:[#allocation2 + $0x190] sm:$0xff]
      %v2686 = vld [vmem:[#allocation2 + $0x198] sm:$0xff]
      %v2687 = vld [vmem:[#allocation2 + $0x1b8] sm:$0xff]
      %v2688 = vld [vmem:[#allocation2 + $0x1c0] sm:$0xff]
      %v2689 = vld [vmem:[#allocation2 + $0x1c8] sm:$0xff]
      %v2690 = vpack.c.bf16 %v2663, %v2660
      %v2691 = vpack.c.bf16 %v2664, %v2661
      %v2692 = vpack.c.bf16 %v2665, %v2662
      %v2693 = vpack.c.bf16 %v2669, %v2666
      %v2694 = vpack.c.bf16 %v2670, %v2667
      %v2695 = vpack.c.bf16 %v2671, %v2668
      %v2696 = vpack.c.bf16 %v2675, %v2672
      %v2697 = vpack.c.bf16 %v2676, %v2673
      %v2698 = vpack.c.bf16 %v2677, %v2674
      %v2699 = vpack.c.bf16 %v2681, %v2678
      %v2700 = vpack.c.bf16 %v2682, %v2679
      %v2701 = vpack.c.bf16 %v2683, %v2680
      %v2702 = vpack.c.bf16 %v2687, %v2684
      %v2703 = vpack.c.bf16 %v2688, %v2685
      %v2704 = vpack.c.bf16 %v2689, %v2686
      %2720 = vrot.lane.b32.xlu0 %v2690, 96
      %v2721 = vpop.permute.xlu0 %2720
      %2722 = vrot.lane.b32.xlu0 %v2691, 96
      %v2723 = vpop.permute.xlu0 %2722
      %2724 = vrot.lane.b32.xlu0 %v2692, 96
      %v2725 = vpop.permute.xlu0 %2724
      %2726 = vrot.lane.b32.xlu0 %v2693, 96
      %v2727 = vpop.permute.xlu0 %2726
      %2728 = vrot.lane.b32.xlu0 %v2694, 96
      %v2729 = vpop.permute.xlu0 %2728
      %2730 = vrot.lane.b32.xlu0 %v2695, 96
      %v2731 = vpop.permute.xlu0 %2730
      %2732 = vrot.lane.b32.xlu0 %v2696, 96
      %v2733 = vpop.permute.xlu0 %2732
      %2734 = vrot.lane.b32.xlu0 %v2697, 96
      %v2735 = vpop.permute.xlu0 %2734
      %2736 = vrot.lane.b32.xlu0 %v2698, 96
      %v2737 = vpop.permute.xlu0 %2736
      %2738 = vrot.lane.b32.xlu0 %v2699, 96
      %v2739 = vpop.permute.xlu0 %2738
      %2740 = vrot.lane.b32.xlu0 %v2700, 96
      %v2741 = vpop.permute.xlu0 %2740
      %2742 = vrot.lane.b32.xlu0 %v2701, 96
      %v2743 = vpop.permute.xlu0 %2742
      %2744 = vrot.lane.b32.xlu0 %v2702, 96
      %v2745 = vpop.permute.xlu0 %2744
      %2746 = vrot.lane.b32.xlu0 %v2703, 96
      %v2747 = vpop.permute.xlu0 %2746
      %2748 = vrot.lane.b32.xlu0 %v2704, 96
      %v2749 = vpop.permute.xlu0 %2748
      %vm2750 = vcmask 785408
      %v2751 = vsel %vm2750, %v2721, %v2723
      %v2752 = vsel %vm2750, %v2723, %v2725
      %v2753 = vsel %vm2750, %v2727, %v2729
      %v2754 = vsel %vm2750, %v2729, %v2731
      %v2755 = vsel %vm2750, %v2733, %v2735
      %v2756 = vsel %vm2750, %v2735, %v2737
      %v2757 = vsel %vm2750, %v2739, %v2741
      %v2758 = vsel %vm2750, %v2741, %v2743
      %v2759 = vsel %vm2750, %v2745, %v2747
      %v2760 = vsel %vm2750, %v2747, %v2749
      %2771 = vst [vmem:[#allocation3 + $0x1e0] sm:$0xff] %v2751
      %2772 = vst [vmem:[#allocation3 + $0x1e8] sm:$0xff] %v2752
      %2773 = vst [vmem:[#allocation3 + $0x1f0] sm:$0xff] %v2753
      %2774 = vst [vmem:[#allocation3 + $0x1f8] sm:$0xff] %v2754
      %2775 = vst [vmem:[#allocation3 + $0x200] sm:$0xff] %v2755
      %2776 = vst [vmem:[#allocation3 + $0x208] sm:$0xff] %v2756
      %2777 = vst [vmem:[#allocation3 + $0x210] sm:$0xff] %v2757
      %2778 = vst [vmem:[#allocation3 + $0x218] sm:$0xff] %v2758
      %2779 = vst [vmem:[#allocation3 + $0x220] sm:$0xff] %v2759
      %2780 = vst [vmem:[#allocation3 + $0x228] sm:$0xff] %v2760
      %v2781 = vld [vmem:[#allocation2 + $0x8] sm:$0xff]
      %v2782 = vld [vmem:[#allocation2 + $0x10] sm:$0xff]
      %v2783 = vld [vmem:[#allocation2 + $0x18] sm:$0xff]
      %v2784 = vld [vmem:[#allocation2 + $0x38] sm:$0xff]
      %v2785 = vld [vmem:[#allocation2 + $0x40] sm:$0xff]
      %v2786 = vld [vmem:[#allocation2 + $0x48] sm:$0xff]
      %v2787 = vld [vmem:[#allocation2 + $0x68] sm:$0xff]
      %v2788 = vld [vmem:[#allocation2 + $0x70] sm:$0xff]
      %v2789 = vld [vmem:[#allocation2 + $0x78] sm:$0xff]
      %v2790 = vld [vmem:[#allocation2 + $0x98] sm:$0xff]
      %v2791 = vld [vmem:[#allocation2 + $0xa0] sm:$0xff]
      %v2792 = vld [vmem:[#allocation2 + $0xa8] sm:$0xff]
      %v2793 = vld [vmem:[#allocation2 + $0xc8] sm:$0xff]
      %v2794 = vld [vmem:[#allocation2 + $0xd0] sm:$0xff]
      %v2795 = vld [vmem:[#allocation2 + $0xd8] sm:$0xff]
      %v2796 = vld [vmem:[#allocation2 + $0xf8] sm:$0xff]
      %v2797 = vld [vmem:[#allocation2 + $0x100] sm:$0xff]
      %v2798 = vld [vmem:[#allocation2 + $0x108] sm:$0xff]
      %v2799 = vld [vmem:[#allocation2 + $0x128] sm:$0xff]
      %v2800 = vld [vmem:[#allocation2 + $0x130] sm:$0xff]
      %v2801 = vld [vmem:[#allocation2 + $0x138] sm:$0xff]
      %v2802 = vld [vmem:[#allocation2 + $0x158] sm:$0xff]
      %v2803 = vld [vmem:[#allocation2 + $0x160] sm:$0xff]
      %v2804 = vld [vmem:[#allocation2 + $0x168] sm:$0xff]
      %v2805 = vld [vmem:[#allocation2 + $0x188] sm:$0xff]
      %v2806 = vld [vmem:[#allocation2 + $0x190] sm:$0xff]
      %v2807 = vld [vmem:[#allocation2 + $0x198] sm:$0xff]
      %v2808 = vld [vmem:[#allocation2 + $0x1b8] sm:$0xff]
      %v2809 = vld [vmem:[#allocation2 + $0x1c0] sm:$0xff]
      %v2810 = vld [vmem:[#allocation2 + $0x1c8] sm:$0xff]
      %v2811 = vpack.c.bf16 %v2784, %v2781
      %v2812 = vpack.c.bf16 %v2785, %v2782
      %v2813 = vpack.c.bf16 %v2786, %v2783
      %v2814 = vpack.c.bf16 %v2790, %v2787
      %v2815 = vpack.c.bf16 %v2791, %v2788
      %v2816 = vpack.c.bf16 %v2792, %v2789
      %v2817 = vpack.c.bf16 %v2796, %v2793
      %v2818 = vpack.c.bf16 %v2797, %v2794
      %v2819 = vpack.c.bf16 %v2798, %v2795
      %v2820 = vpack.c.bf16 %v2802, %v2799
      %v2821 = vpack.c.bf16 %v2803, %v2800
      %v2822 = vpack.c.bf16 %v2804, %v2801
      %v2823 = vpack.c.bf16 %v2808, %v2805
      %v2824 = vpack.c.bf16 %v2809, %v2806
      %v2825 = vpack.c.bf16 %v2810, %v2807
      %2841 = vrot.lane.b32.xlu0 %v2811, 80
      %v2842 = vpop.permute.xlu0 %2841
      %2843 = vrot.lane.b32.xlu0 %v2812, 80
      %v2844 = vpop.permute.xlu0 %2843
      %2845 = vrot.lane.b32.xlu0 %v2813, 80
      %v2846 = vpop.permute.xlu0 %2845
      %2847 = vrot.lane.b32.xlu0 %v2814, 80
      %v2848 = vpop.permute.xlu0 %2847
      %2849 = vrot.lane.b32.xlu0 %v2815, 80
      %v2850 = vpop.permute.xlu0 %2849
      %2851 = vrot.lane.b32.xlu0 %v2816, 80
      %v2852 = vpop.permute.xlu0 %2851
      %2853 = vrot.lane.b32.xlu0 %v2817, 80
      %v2854 = vpop.permute.xlu0 %2853
      %2855 = vrot.lane.b32.xlu0 %v2818, 80
      %v2856 = vpop.permute.xlu0 %2855
      %2857 = vrot.lane.b32.xlu0 %v2819, 80
      %v2858 = vpop.permute.xlu0 %2857
      %2859 = vrot.lane.b32.xlu0 %v2820, 80
      %v2860 = vpop.permute.xlu0 %2859
      %2861 = vrot.lane.b32.xlu0 %v2821, 80
      %v2862 = vpop.permute.xlu0 %2861
      %2863 = vrot.lane.b32.xlu0 %v2822, 80
      %v2864 = vpop.permute.xlu0 %2863
      %2865 = vrot.lane.b32.xlu0 %v2823, 80
      %v2866 = vpop.permute.xlu0 %2865
      %2867 = vrot.lane.b32.xlu0 %v2824, 80
      %v2868 = vpop.permute.xlu0 %2867
      %2869 = vrot.lane.b32.xlu0 %v2825, 80
      %v2870 = vpop.permute.xlu0 %2869
      %vm2871 = vcmask 654336
      %v2872 = vsel %vm2871, %v2842, %v2844
      %v2873 = vsel %vm2871, %v2844, %v2846
      %v2874 = vsel %vm2871, %v2848, %v2850
      %v2875 = vsel %vm2871, %v2850, %v2852
      %v2876 = vsel %vm2871, %v2854, %v2856
      %v2877 = vsel %vm2871, %v2856, %v2858
      %v2878 = vsel %vm2871, %v2860, %v2862
      %v2879 = vsel %vm2871, %v2862, %v2864
      %v2880 = vsel %vm2871, %v2866, %v2868
      %v2881 = vsel %vm2871, %v2868, %v2870
      %2892 = vst [vmem:[#allocation3 + $0x230] sm:$0xff] %v2872
      %2893 = vst [vmem:[#allocation3 + $0x238] sm:$0xff] %v2873
      %2894 = vst [vmem:[#allocation3 + $0x240] sm:$0xff] %v2874
      %2895 = vst [vmem:[#allocation3 + $0x248] sm:$0xff] %v2875
      %2896 = vst [vmem:[#allocation3 + $0x250] sm:$0xff] %v2876
      %2897 = vst [vmem:[#allocation3 + $0x258] sm:$0xff] %v2877
      %2898 = vst [vmem:[#allocation3 + $0x260] sm:$0xff] %v2878
      %2899 = vst [vmem:[#allocation3 + $0x268] sm:$0xff] %v2879
      %2900 = vst [vmem:[#allocation3 + $0x270] sm:$0xff] %v2880
      %2901 = vst [vmem:[#allocation3 + $0x278] sm:$0xff] %v2881
      %v2902 = vld [vmem:[#allocation2 + $0x8] sm:$0xff]
      %v2903 = vld [vmem:[#allocation2 + $0x10] sm:$0xff]
      %v2904 = vld [vmem:[#allocation2 + $0x18] sm:$0xff]
      %v2905 = vld [vmem:[#allocation2 + $0x38] sm:$0xff]
      %v2906 = vld [vmem:[#allocation2 + $0x40] sm:$0xff]
      %v2907 = vld [vmem:[#allocation2 + $0x48] sm:$0xff]
      %v2908 = vld [vmem:[#allocation2 + $0x68] sm:$0xff]
      %v2909 = vld [vmem:[#allocation2 + $0x70] sm:$0xff]
      %v2910 = vld [vmem:[#allocation2 + $0x78] sm:$0xff]
      %v2911 = vld [vmem:[#allocation2 + $0x98] sm:$0xff]
      %v2912 = vld [vmem:[#allocation2 + $0xa0] sm:$0xff]
      %v2913 = vld [vmem:[#allocation2 + $0xa8] sm:$0xff]
      %v2914 = vld [vmem:[#allocation2 + $0xc8] sm:$0xff]
      %v2915 = vld [vmem:[#allocation2 + $0xd0] sm:$0xff]
      %v2916 = vld [vmem:[#allocation2 + $0xd8] sm:$0xff]
      %v2917 = vld [vmem:[#allocation2 + $0xf8] sm:$0xff]
      %v2918 = vld [vmem:[#allocation2 + $0x100] sm:$0xff]
      %v2919 = vld [vmem:[#allocation2 + $0x108] sm:$0xff]
      %v2920 = vld [vmem:[#allocation2 + $0x128] sm:$0xff]
      %v2921 = vld [vmem:[#allocation2 + $0x130] sm:$0xff]
      %v2922 = vld [vmem:[#allocation2 + $0x138] sm:$0xff]
      %v2923 = vld [vmem:[#allocation2 + $0x158] sm:$0xff]
      %v2924 = vld [vmem:[#allocation2 + $0x160] sm:$0xff]
      %v2925 = vld [vmem:[#allocation2 + $0x168] sm:$0xff]
      %v2926 = vld [vmem:[#allocation2 + $0x188] sm:$0xff]
      %v2927 = vld [vmem:[#allocation2 + $0x190] sm:$0xff]
      %v2928 = vld [vmem:[#allocation2 + $0x198] sm:$0xff]
      %v2929 = vld [vmem:[#allocation2 + $0x1b8] sm:$0xff]
      %v2930 = vld [vmem:[#allocation2 + $0x1c0] sm:$0xff]
      %v2931 = vld [vmem:[#allocation2 + $0x1c8] sm:$0xff]
      %v2932 = vpack.c.bf16 %v2905, %v2902
      %v2933 = vpack.c.bf16 %v2906, %v2903
      %v2934 = vpack.c.bf16 %v2907, %v2904
      %v2935 = vpack.c.bf16 %v2911, %v2908
      %v2936 = vpack.c.bf16 %v2912, %v2909
      %v2937 = vpack.c.bf16 %v2913, %v2910
      %v2938 = vpack.c.bf16 %v2917, %v2914
      %v2939 = vpack.c.bf16 %v2918, %v2915
      %v2940 = vpack.c.bf16 %v2919, %v2916
      %v2941 = vpack.c.bf16 %v2923, %v2920
      %v2942 = vpack.c.bf16 %v2924, %v2921
      %v2943 = vpack.c.bf16 %v2925, %v2922
      %v2944 = vpack.c.bf16 %v2929, %v2926
      %v2945 = vpack.c.bf16 %v2930, %v2927
      %v2946 = vpack.c.bf16 %v2931, %v2928
      %2962 = vrot.lane.b32.xlu0 %v2932, 64
      %v2963 = vpop.permute.xlu0 %2962
      %2964 = vrot.lane.b32.xlu0 %v2933, 64
      %v2965 = vpop.permute.xlu0 %2964
      %2966 = vrot.lane.b32.xlu0 %v2934, 64
      %v2967 = vpop.permute.xlu0 %2966
      %2968 = vrot.lane.b32.xlu0 %v2935, 64
      %v2969 = vpop.permute.xlu0 %2968
      %2970 = vrot.lane.b32.xlu0 %v2936, 64
      %v2971 = vpop.permute.xlu0 %2970
      %2972 = vrot.lane.b32.xlu0 %v2937, 64
      %v2973 = vpop.permute.xlu0 %2972
      %2974 = vrot.lane.b32.xlu0 %v2938, 64
      %v2975 = vpop.permute.xlu0 %2974
      %2976 = vrot.lane.b32.xlu0 %v2939, 64
      %v2977 = vpop.permute.xlu0 %2976
      %2978 = vrot.lane.b32.xlu0 %v2940, 64
      %v2979 = vpop.permute.xlu0 %2978
      %2980 = vrot.lane.b32.xlu0 %v2941, 64
      %v2981 = vpop.permute.xlu0 %2980
      %2982 = vrot.lane.b32.xlu0 %v2942, 64
      %v2983 = vpop.permute.xlu0 %2982
      %2984 = vrot.lane.b32.xlu0 %v2943, 64
      %v2985 = vpop.permute.xlu0 %2984
      %2986 = vrot.lane.b32.xlu0 %v2944, 64
      %v2987 = vpop.permute.xlu0 %2986
      %2988 = vrot.lane.b32.xlu0 %v2945, 64
      %v2989 = vpop.permute.xlu0 %2988
      %2990 = vrot.lane.b32.xlu0 %v2946, 64
      %v2991 = vpop.permute.xlu0 %2990
      %v2992 = vsel %vm2105, %v2963, %v2965
      %v2993 = vsel %vm2105, %v2965, %v2967
      %v2994 = vsel %vm2105, %v2969, %v2971
      %v2995 = vsel %vm2105, %v2971, %v2973
      %v2996 = vsel %vm2105, %v2975, %v2977
      %v2997 = vsel %vm2105, %v2977, %v2979
      %v2998 = vsel %vm2105, %v2981, %v2983
      %v2999 = vsel %vm2105, %v2983, %v2985
      %v3000 = vsel %vm2105, %v2987, %v2989
      %v3001 = vsel %vm2105, %v2989, %v2991
      %3012 = vst [vmem:[#allocation3 + $0x280] sm:$0xff] %v2992
      %3013 = vst [vmem:[#allocation3 + $0x288] sm:$0xff] %v2993
      %3014 = vst [vmem:[#allocation3 + $0x290] sm:$0xff] %v2994
      %3015 = vst [vmem:[#allocation3 + $0x298] sm:$0xff] %v2995
      %3016 = vst [vmem:[#allocation3 + $0x2a0] sm:$0xff] %v2996
      %3017 = vst [vmem:[#allocation3 + $0x2a8] sm:$0xff] %v2997
      %3018 = vst [vmem:[#allocation3 + $0x2b0] sm:$0xff] %v2998
      %3019 = vst [vmem:[#allocation3 + $0x2b8] sm:$0xff] %v2999
      %3020 = vst [vmem:[#allocation3 + $0x2c0] sm:$0xff] %v3000
      %3021 = vst [vmem:[#allocation3 + $0x2c8] sm:$0xff] %v3001
      %v3022 = vld [vmem:[%s9] sm:$0xff]
      %v3023 = vld [vmem:[%s9 + $0x8] sm:$0xff]
      %v3024 = vld [vmem:[%s9 + $0x10] sm:$0xff]
      %v3025 = vld [vmem:[#allocation3] sm:$0xff]
      %v3026 = vld [vmem:[#allocation3 + $0x8] sm:$0xff]
      %v3027 = vld [vmem:[#allocation3 + $0x10] sm:$0xff]
      %v3028 = vld [vmem:[#allocation3 + $0x18] sm:$0xff]
      %v3029 = vld [vmem:[#allocation3 + $0x20] sm:$0xff]
      %v3030 = vld [vmem:[#allocation3 + $0x28] sm:$0xff]
      %v3031 = vld [vmem:[#allocation3 + $0x30] sm:$0xff]
      %v3032 = vld [vmem:[#allocation3 + $0x38] sm:$0xff]
      %v3033 = vld [vmem:[#allocation3 + $0x40] sm:$0xff]
      %v3034 = vld [vmem:[#allocation3 + $0x48] sm:$0xff]
      %v3035 = vld [vmem:[#allocation3 + $0x50] sm:$0xff]
      %v3036 = vld [vmem:[#allocation3 + $0x58] sm:$0xff]
      %v3037 = vld [vmem:[#allocation3 + $0x60] sm:$0xff]
      %v3038 = vld [vmem:[#allocation3 + $0x68] sm:$0xff]
      %v3039 = vld [vmem:[#allocation3 + $0x70] sm:$0xff]
      %v3040 = vld [vmem:[#allocation3 + $0x78] sm:$0xff]
      %v3041 = vld [vmem:[#allocation3 + $0x80] sm:$0xff]
      %v3042 = vld [vmem:[#allocation3 + $0x88] sm:$0xff]
      %v3043 = vld [vmem:[#allocation3 + $0x90] sm:$0xff]
      %v3044 = vld [vmem:[#allocation3 + $0x98] sm:$0xff]
      %v3045 = vld [vmem:[#allocation3 + $0xa0] sm:$0xff]
      %v3046 = vld [vmem:[#allocation3 + $0xa8] sm:$0xff]
      %v3047 = vld [vmem:[#allocation3 + $0xb0] sm:$0xff]
      %v3048 = vld [vmem:[#allocation3 + $0xb8] sm:$0xff]
      %v3049 = vld [vmem:[#allocation3 + $0xc0] sm:$0xff]
      %v3050 = vld [vmem:[#allocation3 + $0xc8] sm:$0xff]
      %v3051 = vld [vmem:[#allocation3 + $0xd0] sm:$0xff]
      %v3052 = vld [vmem:[#allocation3 + $0xd8] sm:$0xff]
      %v3053 = vld [vmem:[#allocation3 + $0xe0] sm:$0xff]
      %v3054 = vld [vmem:[#allocation3 + $0xe8] sm:$0xff]
      %v3055 = vld [vmem:[#allocation3 + $0xf0] sm:$0xff]
      %v3056 = vld [vmem:[#allocation3 + $0xf8] sm:$0xff]
      %v3057 = vld [vmem:[#allocation3 + $0x100] sm:$0xff]
      %v3058 = vld [vmem:[#allocation3 + $0x108] sm:$0xff]
      %v3059 = vld [vmem:[#allocation3 + $0x110] sm:$0xff]
      %v3060 = vld [vmem:[#allocation3 + $0x118] sm:$0xff]
      %v3061 = vld [vmem:[#allocation3 + $0x120] sm:$0xff]
      %v3062 = vld [vmem:[#allocation3 + $0x128] sm:$0xff]
      %v3063 = vld [vmem:[#allocation3 + $0x130] sm:$0xff]
      %v3064 = vld [vmem:[#allocation3 + $0x138] sm:$0xff]
      %v3065 = vld [vmem:[#allocation3 + $0x140] sm:$0xff]
      %v3066 = vld [vmem:[#allocation3 + $0x148] sm:$0xff]
      %v3067 = vld [vmem:[#allocation3 + $0x150] sm:$0xff]
      %v3068 = vld [vmem:[#allocation3 + $0x158] sm:$0xff]
      %v3069 = vld [vmem:[#allocation3 + $0x160] sm:$0xff]
      %v3070 = vld [vmem:[#allocation3 + $0x168] sm:$0xff]
      %v3071 = vld [vmem:[#allocation3 + $0x170] sm:$0xff]
      %v3072 = vld [vmem:[#allocation3 + $0x178] sm:$0xff]
      %v3073 = vld [vmem:[#allocation3 + $0x180] sm:$0xff]
      %v3074 = vld [vmem:[#allocation3 + $0x188] sm:$0xff]
      %v3075 = vld [vmem:[#allocation3 + $0x190] sm:$0xff]
      %v3076 = vld [vmem:[#allocation3 + $0x198] sm:$0xff]
      %v3077 = vld [vmem:[#allocation3 + $0x1a0] sm:$0xff]
      %v3078 = vld [vmem:[#allocation3 + $0x1a8] sm:$0xff]
      %v3079 = vld [vmem:[#allocation3 + $0x1b0] sm:$0xff]
      %v3080 = vld [vmem:[#allocation3 + $0x1b8] sm:$0xff]
      %v3081 = vld [vmem:[#allocation3 + $0x1c0] sm:$0xff]
      %v3082 = vld [vmem:[#allocation3 + $0x1c8] sm:$0xff]
      %v3083 = vld [vmem:[#allocation3 + $0x1d0] sm:$0xff]
      %v3084 = vld [vmem:[#allocation3 + $0x1d8] sm:$0xff]
      %v3085 = vld [vmem:[#allocation3 + $0x1e0] sm:$0xff]
      %v3086 = vld [vmem:[#allocation3 + $0x1e8] sm:$0xff]
      %v3087 = vld [vmem:[#allocation3 + $0x1f0] sm:$0xff]
      %v3088 = vld [vmem:[#allocation3 + $0x1f8] sm:$0xff]
      %v3089 = vld [vmem:[#allocation3 + $0x200] sm:$0xff]
      %v3090 = vld [vmem:[#allocation3 + $0x208] sm:$0xff]
      %v3091 = vld [vmem:[#allocation3 + $0x210] sm:$0xff]
      %v3092 = vld [vmem:[#allocation3 + $0x218] sm:$0xff]
      %v3093 = vld [vmem:[#allocation3 + $0x220] sm:$0xff]
      %v3094 = vld [vmem:[#allocation3 + $0x228] sm:$0xff]
      %v3095 = vld [vmem:[#allocation3 + $0x230] sm:$0xff]
      %v3096 = vld [vmem:[#allocation3 + $0x238] sm:$0xff]
      %v3097 = vld [vmem:[#allocation3 + $0x240] sm:$0xff]
      %v3098 = vld [vmem:[#allocation3 + $0x248] sm:$0xff]
      %v3099 = vld [vmem:[#allocation3 + $0x250] sm:$0xff]
      %v3100 = vld [vmem:[#allocation3 + $0x258] sm:$0xff]
      %v3101 = vld [vmem:[#allocation3 + $0x260] sm:$0xff]
      %v3102 = vld [vmem:[#allocation3 + $0x268] sm:$0xff]
      %v3103 = vld [vmem:[#allocation3 + $0x270] sm:$0xff]
      %v3104 = vld [vmem:[#allocation3 + $0x278] sm:$0xff]
      %v3105 = vld [vmem:[#allocation3 + $0x280] sm:$0xff]
      %v3106 = vld [vmem:[#allocation3 + $0x288] sm:$0xff]
      %v3107 = vld [vmem:[#allocation3 + $0x290] sm:$0xff]
      %v3108 = vld [vmem:[#allocation3 + $0x298] sm:$0xff]
      %v3109 = vld [vmem:[#allocation3 + $0x2a0] sm:$0xff]
      %v3110 = vld [vmem:[#allocation3 + $0x2a8] sm:$0xff]
      %v3111 = vld [vmem:[#allocation3 + $0x2b0] sm:$0xff]
      %v3112 = vld [vmem:[#allocation3 + $0x2b8] sm:$0xff]
      %v3113 = vld [vmem:[#allocation3 + $0x2c0] sm:$0xff]
      %v3114 = vld [vmem:[#allocation3 + $0x2c8] sm:$0xff]
      %v3118 = vunpack.c.l.b16 %v3022
      %v3119 = vunpack.c.h.b16 %v3022
      %v3120 = vunpack.c.l.b16 %v3023
      %v3121 = vunpack.c.h.b16 %v3023
      %v3122 = vunpack.c.l.b16 %v3024
      %v3123 = vunpack.c.h.b16 %v3024
      %v3124 = vpack.c.b16 %v3118, %v3118
      %v3125 = vpack.c.b16 %v3119, %v3119
      %v3126 = vpack.c.b16 %v3120, %v3120
      %v3127 = vpack.c.b16 %v3121, %v3121
      %v3128 = vpack.c.b16 %v3122, %v3122
      %v3129 = vpack.c.b16 %v3123, %v3123
      %vm3135 = vcmask 654336
      %v3137 = vsel %vm3135, %v3129, 0
      %3139 = vmatprep.subr.bf16.mxu0 %v3026
      %3140 = vmatpush1.bf16.msra.mxu0 %v3025
      %3141 = vmatprep.subr.bf16.mxu0 %v3028
      %3142 = vmatpush1.bf16.msra.mxu0 %v3027
      %3143 = vmatprep.subr.bf16.mxu0 %v3030
      %3144 = vmatpush1.bf16.msra.mxu0 %v3029
      %3145 = vmatprep.subr.bf16.mxu0 %v3032
      %3146 = vmatpush1.bf16.msra.mxu0 %v3031
      %3147 = vmatprep.subr.bf16.mxu0 %v3034
      %3148 = vmatpush1.bf16.msra.mxu0 %v3033
      %3149 = vmatprep.subr.bf16.mxu0 %v3036
      %3150 = vmatpush1.bf16.msra.mxu0 %v3035
      %3151 = vmatprep.subr.bf16.mxu0 %v3038
      %3152 = vmatpush1.bf16.msra.mxu0 %v3037
      %3153 = vmatprep.subr.bf16.mxu0 %v3040
      %3154 = vmatpush1.bf16.msra.mxu0 %v3039
      %3155 = vmatprep.subr.bf16.mxu0 %v3042
      %3156 = vmatpush1.bf16.msra.mxu0 %v3041
      %3157 = vmatprep.subr.bf16.mxu0 %v3044
      %3158 = vmatpush1.bf16.msra.mxu0 %v3043
      %3159 = vmatprep.subr.bf16.mxu0 %v3046
      %3160 = vmatpush1.bf16.msra.mxu0 %v3045
      %3161 = vmatprep.subr.bf16.mxu0 %v3048
      %3162 = vmatpush1.bf16.msra.mxu0 %v3047
      %3163 = vmatprep.subr.bf16.mxu0 %v3050
      %3164 = vmatpush1.bf16.msra.mxu0 %v3049
      %3165 = vmatprep.subr.bf16.mxu0 %v3052
      %3166 = vmatpush1.bf16.msra.mxu0 %v3051
      %3167 = vmatprep.subr.bf16.mxu0 %v3054
      %3168 = vmatpush1.bf16.msra.mxu0 %v3053
      %3169 = vmatprep.subr.bf16.mxu0 %v3056
      %3170 = vmatpush1.bf16.msra.mxu0 %v3055
      %3171 = vmatprep.mubr.bf16.mxu0 %v3125
      %3172 = vmatmul.mubr.bf16.gmra.mrb[0].mxu0 %v3124
      %v3173 = vpop.f32.mrb[0].mxu0
      %v3174 = vadd.f32 0.0, %v3173
      %v3175 = vpop.f32.mrb[0].mxu0
      %v3176 = vadd.f32 0.0, %v3175
      %v3177 = vpop.f32.mrb[0].mxu0
      %v3178 = vpop.f32.mrb[0].mxu0
      %3179 = vdwg.mxu0
      %3180 = vmatprep.subr.bf16.mxu0 %v3058
      %3181 = vmatpush1.bf16.msra.mxu0 %v3057
      %3182 = vmatprep.subr.bf16.mxu0 %v3060
      %3183 = vmatpush1.bf16.msra.mxu0 %v3059
      %3184 = vmatprep.subr.bf16.mxu0 %v3062
      %3185 = vmatpush1.bf16.msra.mxu0 %v3061
      %3186 = vmatprep.subr.bf16.mxu0 %v3064
      %3187 = vmatpush1.bf16.msra.mxu0 %v3063
      %3188 = vmatprep.subr.bf16.mxu0 %v3066
      %3189 = vmatpush1.bf16.msra.mxu0 %v3065
      %3190 = vmatprep.subr.bf16.mxu0 %v3068
      %3191 = vmatpush1.bf16.msra.mxu0 %v3067
      %3192 = vmatprep.subr.bf16.mxu0 %v3070
      %3193 = vmatpush1.bf16.msra.mxu0 %v3069
      %3194 = vmatprep.subr.bf16.mxu0 %v3072
      %3195 = vmatpush1.bf16.msra.mxu0 %v3071
      %3196 = vmatprep.subr.bf16.mxu0 %v3074
      %3197 = vmatpush1.bf16.msra.mxu0 %v3073
      %3198 = vmatprep.subr.bf16.mxu0 %v3076
      %3199 = vmatpush1.bf16.msra.mxu0 %v3075
      %3200 = vmatprep.subr.bf16.mxu0 %v3078
      %3201 = vmatpush1.bf16.msra.mxu0 %v3077
      %3202 = vmatprep.subr.bf16.mxu0 %v3080
      %3203 = vmatpush1.bf16.msra.mxu0 %v3079
      %3204 = vmatprep.subr.bf16.mxu0 %v3082
      %3205 = vmatpush1.bf16.msra.mxu0 %v3081
      %3206 = vmatprep.subr.bf16.mxu0 %v3084
      %3207 = vmatpush1.bf16.msra.mxu0 %v3083
      %3208 = vmatprep.subr.bf16.mxu0 %v3086
      %3209 = vmatpush1.bf16.msra.mxu0 %v3085
      %3210 = vmatprep.subr.bf16.mxu0 %v3088
      %3211 = vmatpush1.bf16.msra.mxu0 %v3087
      %3212 = vmatprep.mubr.bf16.mxu0 %v3127
      %3213 = vmatmul.mubr.bf16.gmra.mrb[0].mxu0 %v3126
      %v3214 = vpop.f32.mrb[0].mxu0
      %v3215 = vadd.f32 %v3174, %v3214
      %v3216 = vpop.f32.mrb[0].mxu0
      %v3217 = vadd.f32 %v3176, %v3216
      %v3218 = vpop.f32.mrb[0].mxu0
      %v3219 = vpop.f32.mrb[0].mxu0
      %3220 = vdwg.mxu0
      %3221 = vmatprep.subr.bf16.mxu0 %v3090
      %3222 = vmatpush1.bf16.msra.mxu0 %v3089
      %3223 = vmatprep.subr.bf16.mxu0 %v3092
      %3224 = vmatpush1.bf16.msra.mxu0 %v3091
      %3225 = vmatprep.subr.bf16.mxu0 %v3094
      %3226 = vmatpush1.bf16.msra.mxu0 %v3093
      %3227 = vmatprep.subr.bf16.mxu0 %v3096
      %3228 = vmatpush1.bf16.msra.mxu0 %v3095
      %3229 = vmatprep.subr.bf16.mxu0 %v3098
      %3230 = vmatpush1.bf16.msra.mxu0 %v3097
      %3231 = vmatprep.subr.bf16.mxu0 %v3100
      %3232 = vmatpush1.bf16.msra.mxu0 %v3099
      %3233 = vmatprep.subr.bf16.mxu0 %v3102
      %3234 = vmatpush1.bf16.msra.mxu0 %v3101
      %3235 = vmatprep.subr.bf16.mxu0 %v3104
      %3236 = vmatpush1.bf16.msra.mxu0 %v3103
      %3237 = vmatprep.subr.bf16.mxu0 %v3106
      %3238 = vmatpush1.bf16.msra.mxu0 %v3105
      %3239 = vmatprep.subr.bf16.mxu0 %v3108
      %3240 = vmatpush1.bf16.msra.mxu0 %v3107
      %3241 = vmatprep.subr.bf16.mxu0 %v3110
      %3242 = vmatpush1.bf16.msra.mxu0 %v3109
      %3243 = vmatprep.subr.bf16.mxu0 %v3112
      %3244 = vmatpush1.bf16.msra.mxu0 %v3111
      %3245 = vmatprep.subr.bf16.mxu0 %v3114
      %3246 = vmatpush1.bf16.msra.mxu0 %v3113
      %3247 = vmatprep.subr.bf16.mxu0 0
      %3248 = vmatpush1.bf16.msra.mxu0 0
      %3249 = vmatprep.subr.bf16.mxu0 0
      %3250 = vmatpush1.bf16.msra.mxu0 0
      %3251 = vmatprep.subr.bf16.mxu0 0
      %3252 = vmatpush1.bf16.msra.mxu0 0
      %3253 = vmatprep.mubr.bf16.mxu0 %v3137
      %3254 = vmatmul.mubr.bf16.gmra.mrb[0].mxu0 %v3128
      %v3255 = vpop.f32.mrb[0].mxu0
      %v3256 = vadd.f32 %v3215, %v3255
      %v3257 = vpop.f32.mrb[0].mxu0
      %v3258 = vadd.f32 %v3217, %v3257
      %v3259 = vpop.f32.mrb[0].mxu0
      %v3260 = vpop.f32.mrb[0].mxu0
      %3261 = vdwg.mxu0
      %v3262 = vld [vmem:[%s11] sm:$0xff]
      %3264 = vset.pattern.permute.xlu0 0
      %3265 = vperm.xlu0 %3264, %v3262
      %v3266 = vpop.permute.xlu0 %3265
      %v3268 = vmul.f32 %v3256, %v3266
      %v3269 = vmul.f32 %v3258, %v3266
      %3270 = vset.pattern.permute.xlu0 1
      %3271 = vperm.xlu0 %3270, %v3262
      %v3272 = vpop.permute.xlu0 %3271
      %v3274 = vadd.f32 %v3268, %v3272
      %v3275 = vadd.f32 %v3269, %v3272
      %v3276 = vxor.u32 %v3274, 2147483648
      %v3277 = vxor.u32 %v3275, 2147483648
      %v3278 = vmul.f32 %v3276, 1.442695
      %v3279 = vpow.pop %v3278
      %v3280 = vmul.f32 %v3277, 1.442695
      %v3281 = vpow.pop %v3280
      %v3282 = vadd.f32 %v3279, 1.0
      %v3283 = vadd.f32 %v3281, 1.0
      %v3284 = vrcp.pop %v3282
      %v3285 = vmul.f32 1.0, %v3284
      %v3286 = vrcp.pop %v3283
      %v3287 = vmul.f32 1.0, %v3286
      %v3288 = vmul.f32 %v3274, %v3285
      %v3289 = vmul.f32 %v3275, %v3287
      %v3290 = vadd.f32 %v3288, %v3289
      %3291 = vadd.xlane.f32.xlu0 %v3290
      %v3292 = vpop.xlane.xlu0 %3291
      %v3293 = vrcp.pop 256.0
      %v3294 = vmul.f32 %v3292, %v3293
      %v3295 = vld [vmem:[%s13] sm:$0xff]
      %v3296 = vmul.f32 %v3295, %v3294
      %vm3297 = vcmask 64512
      %v3298 = vsel %vm3297, %v3296, 0.0
      %v3299 = vrot.slane %v3298, 4
      %v3300 = vadd.f32 %v3298, %v3299
      %v3301 = vrot.slane %v3300, 2
      %v3302 = vadd.f32 %v3300, %v3301
      %v3303 = vrot.slane %v3302, 1
      %v3304 = vadd.f32 %v3302, %v3303
      %v3305 = vld [vmem:[%s17] sm:$0x1]
      %v3306 = vadd.f32 %v3304, %v3305
      %v3307 = vmax.f32 %v3306, 0.0
      %v3308 = vld [vmem:[%s15] sm:$0xff]
      %v3309 = vlaneseq
      %v3310 = vshrl.u32 %v3309, 7
      %v3311 = vsub.s32 0, %v3310
      %v3312 = vrot.slane %v3307, %v3311
      %v3313 = vmul.f32 %v3308, %v3312
      %v3314 = vsel %vm3297, %v3313, 0.0
      %3315 = vadd.xlane.f32.xlu0 %v3314
      %v3316 = vpop.xlane.xlu0 %3315
      %v3317 = vld [vmem:[%s19] sm:$0xff]
      %v3318 = vadd.f32 %v3316, %v3317
      %v3319 = vxor.u32 %v3318, 2147483648
      %v3320 = vmul.f32 %v3319, 1.442695
      %v3321 = vpow.pop %v3320
      %v3322 = vadd.f32 %v3321, 1.0
      %v3323 = vrcp.pop %v3322
      %v3324 = vmul.f32 1.0, %v3323
      %3326 = vset.pattern.permute.xlu0 0
      %3327 = vperm.xlu0 %3326, %v3324
      %v3328 = vpop.permute.xlu0 %3327
      %v3330 = vmul.f32 %v3288, %v3328
      %v3331 = vmul.f32 %v3289, %v3328
      %v3332 = vld [vmem:[%s21] sm:$0xf]
      %v3333 = vld [vmem:[%s21 + $0x4] sm:$0xf]
      %v3334 = vld [vmem:[%s21 + $0x8] sm:$0xf]
      %v3335 = vld [vmem:[%s21 + $0xc] sm:$0xf]
      %v3336 = vpack.c.bf16 %v3330, %v3330
      %v3337 = vpack.c.bf16 %v3331, %v3331
      %v3342 = vunpack.c.l.b16 %v3332
      %v3343 = vunpack.c.l.b16 %v3333
      %v3344 = vunpack.c.l.b16 %v3334
      %v3345 = vunpack.c.l.b16 %v3335
      %v3346 = vpack.c.b16 %v3343, %v3342
      %v3347 = vpack.c.b16 %v3345, %v3344
      %v3349 = vsel %vm3297, %v3346, 0
      %v3352 = vsel %vm3297, %v3347, 0
      %vm3354 = vcmask 1043456
      %v3356 = vsel %vm3354, %v3336, 0
      %v3359 = vsel %vm3354, %v3337, 0
      %3361 = vmatprep.subr.bf16.mxu0 %v3359
      %3362 = vmatpush1.bf16.msra.mxu0 %v3356
      %3363 = vmatprep.subr.bf16.mxu0 0
      %3364 = vmatpush1.bf16.msra.mxu0 0
      %3365 = vmatprep.subr.bf16.mxu0 0
      %3366 = vmatpush1.bf16.msra.mxu0 0
      %3367 = vmatprep.subr.bf16.mxu0 0
      %3368 = vmatpush1.bf16.msra.mxu0 0
      %3369 = vmatprep.subr.bf16.mxu0 0
      %3370 = vmatpush1.bf16.msra.mxu0 0
      %3371 = vmatprep.subr.bf16.mxu0 0
      %3372 = vmatpush1.bf16.msra.mxu0 0
      %3373 = vmatprep.subr.bf16.mxu0 0
      %3374 = vmatpush1.bf16.msra.mxu0 0
      %3375 = vmatprep.subr.bf16.mxu0 0
      %3376 = vmatpush1.bf16.msra.mxu0 0
      %3377 = vmatprep.subr.bf16.mxu0 0
      %3378 = vmatpush1.bf16.msra.mxu0 0
      %3379 = vmatprep.subr.bf16.mxu0 0
      %3380 = vmatpush1.bf16.msra.mxu0 0
      %3381 = vmatprep.subr.bf16.mxu0 0
      %3382 = vmatpush1.bf16.msra.mxu0 0
      %3383 = vmatprep.subr.bf16.mxu0 0
      %3384 = vmatpush1.bf16.msra.mxu0 0
      %3385 = vmatprep.subr.bf16.mxu0 0
      %3386 = vmatpush1.bf16.msra.mxu0 0
      %3387 = vmatprep.subr.bf16.mxu0 0
      %3388 = vmatpush1.bf16.msra.mxu0 0
      %3389 = vmatprep.subr.bf16.mxu0 0
      %3390 = vmatpush1.bf16.msra.mxu0 0
      %3391 = vmatprep.subr.bf16.mxu0 0
      %3392 = vmatpush1.bf16.msra.mxu0 0
      %3393 = vmatprep.mubr.bf16.mxu0 0
      %3394 = vmatmul.mubr.bf16.gmra.mrb[0].mxu0 %v3349
      %v3395 = vpop.f32.mrb[0].mxu0
      %v3396 = vadd.f32 0.0, %v3395
      %v3397 = vpop.f32.mrb[0].mxu0
      %v3398 = vadd.f32 0.0, %v3397
      %v3399 = vpop.f32.mrb[0].mxu0
      %v3400 = vadd.f32 0.0, %v3399
      %v3401 = vpop.f32.mrb[0].mxu0
      %v3402 = vadd.f32 0.0, %v3401
      %3403 = vmatprep.mubr.bf16.mxu0 0
      %3404 = vmatmul.mubr.bf16.gmra.mrb[0].mxu0 %v3352
      %v3405 = vpop.f32.mrb[0].mxu0
      %v3406 = vadd.f32 0.0, %v3405
      %v3407 = vpop.f32.mrb[0].mxu0
      %v3408 = vadd.f32 0.0, %v3407
      %v3409 = vpop.f32.mrb[0].mxu0
      %v3410 = vadd.f32 0.0, %v3409
      %v3411 = vpop.f32.mrb[0].mxu0
      %v3412 = vadd.f32 0.0, %v3411
      %3413 = vdwg.mxu0
      %v3414 = vld [vmem:[%s23] sm:$0xff]
      %v3415 = vld [vmem:[%s23 + $0x8] sm:$0xff]
      %v3416 = vld [vmem:[%s23 + $0x10] sm:$0xff]
      %v3417 = vld [vmem:[%s23 + $0x18] sm:$0xff]
      %3419 = vset.pattern.permute.xlu0 0
      %3420 = vperm.xlu0 %3419, %v3414
      %v3421 = vpop.permute.xlu0 %3420
      %3424 = vset.pattern.permute.xlu0 0
      %3425 = vperm.xlu0 %3424, %v3415
      %v3426 = vpop.permute.xlu0 %3425
      %3429 = vset.pattern.permute.xlu0 0
      %3430 = vperm.xlu0 %3429, %v3416
      %v3431 = vpop.permute.xlu0 %3430
      %3434 = vset.pattern.permute.xlu0 0
      %3435 = vperm.xlu0 %3434, %v3417
      %v3436 = vpop.permute.xlu0 %3435
      %v3438 = vmul.f32 %v3396, %v3421
      %v3439 = vmul.f32 %v3398, %v3421
      %v3440 = vmul.f32 %v3400, %v3426
      %v3441 = vmul.f32 %v3402, %v3426
      %v3442 = vmul.f32 %v3406, %v3431
      %v3443 = vmul.f32 %v3408, %v3431
      %v3444 = vmul.f32 %v3410, %v3436
      %v3445 = vmul.f32 %v3412, %v3436
      %3446 = vset.pattern.permute.xlu0 1
      %3447 = vperm.xlu0 %3446, %v3414
      %v3448 = vpop.permute.xlu0 %3447
      %3450 = vset.pattern.permute.xlu0 1
      %3451 = vperm.xlu0 %3450, %v3415
      %v3452 = vpop.permute.xlu0 %3451
      %3454 = vset.pattern.permute.xlu0 1
      %3455 = vperm.xlu0 %3454, %v3416
      %v3456 = vpop.permute.xlu0 %3455
      %3458 = vset.pattern.permute.xlu0 1
      %3459 = vperm.xlu0 %3458, %v3417
      %v3460 = vpop.permute.xlu0 %3459
      %v3462 = vadd.f32 %v3438, %v3448
      %v3463 = vadd.f32 %v3439, %v3448
      %v3464 = vadd.f32 %v3440, %v3452
      %v3465 = vadd.f32 %v3441, %v3452
      %v3466 = vadd.f32 %v3442, %v3456
      %v3467 = vadd.f32 %v3443, %v3456
      %v3468 = vadd.f32 %v3444, %v3460
      %v3469 = vadd.f32 %v3445, %v3460
      %v3470 = vadd.f32 %v3462, %v1683
      %v3471 = vadd.f32 %v3463, %v1684
      %v3472 = vadd.f32 %v3464, %v1685
      %v3473 = vadd.f32 %v3465, %v1686
      %v3474 = vadd.f32 %v3466, %v1687
      %v3475 = vadd.f32 %v3467, %v1688
      %v3476 = vadd.f32 %v3468, %v1689
      %v3477 = vadd.f32 %v3469, %v1690
      %v3478 = vxor.u32 %v3470, 2147483648
      %v3479 = vxor.u32 %v3471, 2147483648
      %v3480 = vxor.u32 %v3472, 2147483648
      %v3481 = vxor.u32 %v3473, 2147483648
      %v3482 = vxor.u32 %v3474, 2147483648
      %v3483 = vxor.u32 %v3475, 2147483648
      %v3484 = vxor.u32 %v3476, 2147483648
      %v3485 = vxor.u32 %v3477, 2147483648
      %v3486 = vmul.f32 %v3478, 1.442695
      %v3487 = vpow.pop %v3486
      %v3488 = vmul.f32 %v3479, 1.442695
      %v3489 = vpow.pop %v3488
      %v3490 = vmul.f32 %v3480, 1.442695
      %v3491 = vpow.pop %v3490
      %v3492 = vmul.f32 %v3481, 1.442695
      %v3493 = vpow.pop %v3492
      %v3494 = vmul.f32 %v3482, 1.442695
      %v3495 = vpow.pop %v3494
      %v3496 = vmul.f32 %v3483, 1.442695
      %v3497 = vpow.pop %v3496
      %v3498 = vmul.f32 %v3484, 1.442695
      %v3499 = vpow.pop %v3498
      %v3500 = vmul.f32 %v3485, 1.442695
      %v3501 = vpow.pop %v3500
      %v3502 = vadd.f32 %v3487, 1.0
      %v3503 = vadd.f32 %v3489, 1.0
      %v3504 = vadd.f32 %v3491, 1.0
      %v3505 = vadd.f32 %v3493, 1.0
      %v3506 = vadd.f32 %v3495, 1.0
      %v3507 = vadd.f32 %v3497, 1.0
      %v3508 = vadd.f32 %v3499, 1.0
      %v3509 = vadd.f32 %v3501, 1.0
      %v3510 = vrcp.pop %v3502
      %v3511 = vmul.f32 1.0, %v3510
      %v3512 = vrcp.pop %v3503
      %v3513 = vmul.f32 1.0, %v3512
      %v3514 = vrcp.pop %v3504
      %v3515 = vmul.f32 1.0, %v3514
      %v3516 = vrcp.pop %v3505
      %v3517 = vmul.f32 1.0, %v3516
      %v3518 = vrcp.pop %v3506
      %v3519 = vmul.f32 1.0, %v3518
      %v3520 = vrcp.pop %v3507
      %v3521 = vmul.f32 1.0, %v3520
      %v3522 = vrcp.pop %v3508
      %v3523 = vmul.f32 1.0, %v3522
      %v3524 = vrcp.pop %v3509
      %v3525 = vmul.f32 1.0, %v3524
      %v3526 = vmul.f32 %v3470, %v3511
      %v3527 = vmul.f32 %v3471, %v3513
      %v3528 = vmul.f32 %v3472, %v3515
      %v3529 = vmul.f32 %v3473, %v3517
      %v3530 = vmul.f32 %v3474, %v3519
      %v3531 = vmul.f32 %v3475, %v3521
      %v3532 = vmul.f32 %v3476, %v3523
      %v3533 = vmul.f32 %v3477, %v3525
      %v3534 = vld [vmem:[%s25] sm:$0xf]
      %v3535 = vld [vmem:[%s25 + $0x4] sm:$0xf]
      %v3536 = vld [vmem:[%s25 + $0x8] sm:$0xf]
      %v3537 = vld [vmem:[%s25 + $0xc] sm:$0xf]
      %v3538 = vld [vmem:[%s25 + $0x10] sm:$0xf]
      %v3539 = vpack.c.bf16 %v3528, %v3526
      %v3540 = vpack.c.bf16 %v3529, %v3527
      %v3541 = vpack.c.bf16 %v3532, %v3530
      %v3542 = vpack.c.bf16 %v3533, %v3531
      %v3548 = vunpack.c.l.b16 %v3534
      %v3549 = vunpack.c.l.b16 %v3535
      %v3550 = vunpack.c.l.b16 %v3536
      %v3551 = vunpack.c.l.b16 %v3537
      %v3552 = vunpack.c.l.b16 %v3538
      %v3553 = vpack.c.b16 %v3549, %v3548
      %v3554 = vpack.c.b16 %v3551, %v3550
      %v3555 = vpack.c.b16 %v3552, %v3552
      %vm3556 = vcmask 261120
      %v3558 = vsel %vm3556, %v3553, 0
      %v3561 = vsel %vm3556, %v3554, 0
      %v3564 = vsel %vm3556, %v3555, 0
      %3566 = vmatprep.subr.bf16.mxu0 %v3540
      %3567 = vmatpush1.bf16.msra.mxu0 %v3539
      %3568 = vmatprep.subr.bf16.mxu0 %v3542
      %3569 = vmatpush1.bf16.msra.mxu0 %v3541
      %3570 = vmatprep.subr.bf16.mxu0 0
      %3571 = vmatpush1.bf16.msra.mxu0 0
      %3572 = vmatprep.subr.bf16.mxu0 0
      %3573 = vmatpush1.bf16.msra.mxu0 0
      %3574 = vmatprep.subr.bf16.mxu0 0
      %3575 = vmatpush1.bf16.msra.mxu0 0
      %3576 = vmatprep.subr.bf16.mxu0 0
      %3577 = vmatpush1.bf16.msra.mxu0 0
      %3578 = vmatprep.subr.bf16.mxu0 0
      %3579 = vmatpush1.bf16.msra.mxu0 0
      %3580 = vmatprep.subr.bf16.mxu0 0
      %3581 = vmatpush1.bf16.msra.mxu0 0
      %3582 = vmatprep.subr.bf16.mxu0 0
      %3583 = vmatpush1.bf16.msra.mxu0 0
      %3584 = vmatprep.subr.bf16.mxu0 0
      %3585 = vmatpush1.bf16.msra.mxu0 0
      %3586 = vmatprep.subr.bf16.mxu0 0
      %3587 = vmatpush1.bf16.msra.mxu0 0
      %3588 = vmatprep.subr.bf16.mxu0 0
      %3589 = vmatpush1.bf16.msra.mxu0 0
      %3590 = vmatprep.subr.bf16.mxu0 0
      %3591 = vmatpush1.bf16.msra.mxu0 0
      %3592 = vmatprep.subr.bf16.mxu0 0
      %3593 = vmatpush1.bf16.msra.mxu0 0
      %3594 = vmatprep.subr.bf16.mxu0 0
      %3595 = vmatpush1.bf16.msra.mxu0 0
      %3596 = vmatprep.subr.bf16.mxu0 0
      %3597 = vmatpush1.bf16.msra.mxu0 0
      %3598 = vmatprep.mubr.bf16.mxu0 0
      %3599 = vmatmul.mubr.bf16.gmra.mrb[0].mxu0 %v3558
      %v3600 = vpop.f32.mrb[0].mxu0
      %v3601 = vadd.f32 0.0, %v3600
      %v3602 = vpop.f32.mrb[0].mxu0
      %v3603 = vadd.f32 0.0, %v3602
      %v3604 = vpop.f32.mrb[0].mxu0
      %v3605 = vadd.f32 0.0, %v3604
      %v3606 = vpop.f32.mrb[0].mxu0
      %v3607 = vadd.f32 0.0, %v3606
      %3608 = vmatprep.mubr.bf16.mxu0 0
      %3609 = vmatmul.mubr.bf16.gmra.mrb[0].mxu0 %v3561
      %v3610 = vpop.f32.mrb[0].mxu0
      %v3611 = vadd.f32 0.0, %v3610
      %v3612 = vpop.f32.mrb[0].mxu0
      %v3613 = vadd.f32 0.0, %v3612
      %v3614 = vpop.f32.mrb[0].mxu0
      %v3615 = vadd.f32 0.0, %v3614
      %v3616 = vpop.f32.mrb[0].mxu0
      %v3617 = vadd.f32 0.0, %v3616
      %3618 = vmatprep.mubr.bf16.mxu0 0
      %3619 = vmatmul.mubr.bf16.gmra.mrb[0].mxu0 %v3564
      %v3620 = vpop.f32.mrb[0].mxu0
      %v3621 = vadd.f32 0.0, %v3620
      %v3622 = vpop.f32.mrb[0].mxu0
      %v3623 = vadd.f32 0.0, %v3622
      %v3624 = vpop.f32.mrb[0].mxu0
      %v3625 = vpop.f32.mrb[0].mxu0
      %3626 = vdwg.mxu0
      %v3627 = vld [vmem:[%s27] sm:$0xff]
      %v3628 = vld [vmem:[%s27 + $0x8] sm:$0xff]
      %v3629 = vld [vmem:[%s27 + $0x10] sm:$0xff]
      %v3630 = vld [vmem:[%s27 + $0x18] sm:$0xff]
      %v3631 = vld [vmem:[%s27 + $0x20] sm:$0xff]
      %3633 = vset.pattern.permute.xlu0 0
      %3634 = vperm.xlu0 %3633, %v3627
      %v3635 = vpop.permute.xlu0 %3634
      %3638 = vset.pattern.permute.xlu0 0
      %3639 = vperm.xlu0 %3638, %v3628
      %v3640 = vpop.permute.xlu0 %3639
      %3643 = vset.pattern.permute.xlu0 0
      %3644 = vperm.xlu0 %3643, %v3629
      %v3645 = vpop.permute.xlu0 %3644
      %3648 = vset.pattern.permute.xlu0 0
      %3649 = vperm.xlu0 %3648, %v3630
      %v3650 = vpop.permute.xlu0 %3649
      %3653 = vset.pattern.permute.xlu0 0
      %3654 = vperm.xlu0 %3653, %v3631
      %v3655 = vpop.permute.xlu0 %3654
      %v3657 = vmul.f32 %v3601, %v3635
      %v3658 = vmul.f32 %v3603, %v3635
      %v3659 = vmul.f32 %v3605, %v3640
      %v3660 = vmul.f32 %v3607, %v3640
      %v3661 = vmul.f32 %v3611, %v3645
      %v3662 = vmul.f32 %v3613, %v3645
      %v3663 = vmul.f32 %v3615, %v3650
      %v3664 = vmul.f32 %v3617, %v3650
      %v3665 = vmul.f32 %v3621, %v3655
      %v3666 = vmul.f32 %v3623, %v3655
      %3667 = vset.pattern.permute.xlu0 1
      %3668 = vperm.xlu0 %3667, %v3627
      %v3669 = vpop.permute.xlu0 %3668
      %3671 = vset.pattern.permute.xlu0 1
      %3672 = vperm.xlu0 %3671, %v3628
      %v3673 = vpop.permute.xlu0 %3672
      %3675 = vset.pattern.permute.xlu0 1
      %3676 = vperm.xlu0 %3675, %v3629
      %v3677 = vpop.permute.xlu0 %3676
      %3679 = vset.pattern.permute.xlu0 1
      %3680 = vperm.xlu0 %3679, %v3630
      %v3681 = vpop.permute.xlu0 %3680
      %3683 = vset.pattern.permute.xlu0 1
      %3684 = vperm.xlu0 %3683, %v3631
      %v3685 = vpop.permute.xlu0 %3684
      %v3687 = vadd.f32 %v3657, %v3669
      %v3688 = vadd.f32 %v3658, %v3669
      %v3689 = vadd.f32 %v3659, %v3673
      %v3690 = vadd.f32 %v3660, %v3673
      %v3691 = vadd.f32 %v3661, %v3677
      %v3692 = vadd.f32 %v3662, %v3677
      %v3693 = vadd.f32 %v3663, %v3681
      %v3694 = vadd.f32 %v3664, %v3681
      %v3695 = vadd.f32 %v3665, %v3685
      %v3696 = vadd.f32 %v3666, %v3685
      %v3697 = vxor.u32 %v3687, 2147483648
      %v3698 = vxor.u32 %v3688, 2147483648
      %v3699 = vmul.f32 %v3697, 1.442695
      %v3700 = vpow.pop %v3699
      %v3701 = vmul.f32 %v3698, 1.442695
      %v3702 = vpow.pop %v3701
      %v3703 = vadd.f32 %v3700, 1.0
      %v3704 = vadd.f32 %v3702, 1.0
      %v3705 = vrcp.pop %v3703
      %v3706 = vmul.f32 1.0, %v3705
      %v3707 = vrcp.pop %v3704
      %v3708 = vmul.f32 1.0, %v3707
      %v3709 = vmul.f32 %v3687, %v3706
      %v3710 = vmul.f32 %v3688, %v3708
      %3711 = vst [vmem:[#allocation2] sm:$0xff] 0.0
      %3712 = vst [vmem:[#allocation2 + $0x30] sm:$0xff] 0.0
      %3713 = vst [vmem:[#allocation2 + $0x60] sm:$0xff] 0.0
      %3714 = vst [vmem:[#allocation2 + $0x90] sm:$0xff] 0.0
      %3715 = vst [vmem:[#allocation2 + $0xc0] sm:$0xff] 0.0
      %3716 = vst [vmem:[#allocation2 + $0xf0] sm:$0xff] 0.0
      %3717 = vst [vmem:[#allocation2 + $0x120] sm:$0xff] 0.0
      %3718 = vst [vmem:[#allocation2 + $0x150] sm:$0xff] 0.0
      %3719 = vst [vmem:[#allocation2 + $0x180] sm:$0xff] 0.0
      %3720 = vst [vmem:[#allocation2 + $0x1b0] sm:$0xff] 0.0
      %3721 = vst [vmem:[#allocation2 + $0x1e0] sm:$0xff] 0.0
      %3722 = vst [vmem:[#allocation2 + $0x18] sm:$0xff] 0.0
      %3723 = vst [vmem:[#allocation2 + $0x48] sm:$0xff] 0.0
      %3724 = vst [vmem:[#allocation2 + $0x78] sm:$0xff] 0.0
      %3725 = vst [vmem:[#allocation2 + $0xa8] sm:$0xff] 0.0
      %3726 = vst [vmem:[#allocation2 + $0xd8] sm:$0xff] 0.0
      %3727 = vst [vmem:[#allocation2 + $0x108] sm:$0xff] 0.0
      %3728 = vst [vmem:[#allocation2 + $0x138] sm:$0xff] 0.0
      %3729 = vst [vmem:[#allocation2 + $0x168] sm:$0xff] 0.0
      %3730 = vst [vmem:[#allocation2 + $0x198] sm:$0xff] 0.0
      %3731 = vst [vmem:[#allocation2 + $0x1c8] sm:$0xff] 0.0
      %3732 = vst [vmem:[#allocation2 + $0x1f8] sm:$0xff] 0.0
      %3733 = vst [vmem:[#allocation2 + $0x1b8] sm:$0xff] 0.0
      %3734 = vst [vmem:[#allocation2 + $0x1c0] sm:$0xff] 0.0
      %3735 = vst [vmem:[#allocation2 + $0x1e8] sm:$0xff] %v3709
      %3736 = vst [vmem:[#allocation2 + $0x1f0] sm:$0xff] %v3710
      %v3737 = vld [vmem:[#allocation2 + $0x1e0] sm:$0xff]
      %v3738 = vld [vmem:[#allocation2 + $0x1e8] sm:$0xff]
      %v3739 = vld [vmem:[#allocation2 + $0x1f0] sm:$0xff]
      %s3740 = scalar_lea.vmem %s3, 128
      %v3741 = vld [vmem:[%s3740] sm:$0xff]
      %v3742 = vld [vmem:[%s3740 + $0x8] sm:$0xff]
      %3745 = vrot.lane.b32.xlu0 %v3741, 120
      %v3746 = vpop.permute.xlu0 %3745
      %3747 = vrot.lane.b32.xlu0 %v3742, 120
      %v3748 = vpop.permute.xlu0 %3747
      %vm3749 = vcmask 982016
      %v3750 = vsel %vm3749, %v3746, %v3748
      %v3754 = vmul.f32 %v3737, %v3746
      %v3755 = vmul.f32 %v3738, %v3750
      %v3756 = vmul.f32 %v3739, %v3748
      %3760 = vrot.lane.b32.xlu0 %v3754, 8
      %v3761 = vpop.permute.xlu0 %3760
      %3762 = vrot.lane.b32.xlu0 %v3755, 8
      %v3763 = vpop.permute.xlu0 %3762
      %3764 = vrot.lane.b32.xlu0 %v3756, 8
      %v3765 = vpop.permute.xlu0 %3764
      %v3766 = vsel %vm3297, %v3761, %v3763
      %v3767 = vsel %vm3297, %v3763, %v3765
      %3770 = vst [vmem:[#allocation2 + $0x8] sm:$0xff] %v3766
      %3771 = vst [vmem:[#allocation2 + $0x10] sm:$0xff] %v3767
      %v3772 = vld [vmem:[#allocation2 + $0x1e0] sm:$0xff]
      %v3773 = vld [vmem:[#allocation2 + $0x1e8] sm:$0xff]
      %v3774 = vld [vmem:[#allocation2 + $0x1f0] sm:$0xff]
      %s3775 = scalar_lea.vmem %s3, 144
      %v3776 = vld [vmem:[%s3775] sm:$0xff]
      %v3777 = vld [vmem:[%s3775 + $0x8] sm:$0xff]
      %3780 = vrot.lane.b32.xlu0 %v3776, 122
      %v3781 = vpop.permute.xlu0 %3780
      %3782 = vrot.lane.b32.xlu0 %v3777, 122
      %v3783 = vpop.permute.xlu0 %3782
      %vm3784 = vcmask 998400
      %v3785 = vsel %vm3784, %v3781, %v3783
      %v3789 = vmul.f32 %v3772, %v3781
      %v3790 = vmul.f32 %v3773, %v3785
      %v3791 = vmul.f32 %v3774, %v3783
      %3795 = vrot.lane.b32.xlu0 %v3789, 6
      %v3796 = vpop.permute.xlu0 %3795
      %3797 = vrot.lane.b32.xlu0 %v3790, 6
      %v3798 = vpop.permute.xlu0 %3797
      %3799 = vrot.lane.b32.xlu0 %v3791, 6
      %v3800 = vpop.permute.xlu0 %3799
      %vm3801 = vcmask 48128
      %v3802 = vsel %vm3801, %v3796, %v3798
      %v3803 = vsel %vm3801, %v3798, %v3800
      %3806 = vst [vmem:[#allocation2 + $0x38] sm:$0xff] %v3802
      %3807 = vst [vmem:[#allocation2 + $0x40] sm:$0xff] %v3803
      %v3808 = vld [vmem:[#allocation2 + $0x1e0] sm:$0xff]
      %v3809 = vld [vmem:[#allocation2 + $0x1e8] sm:$0xff]
      %v3810 = vld [vmem:[#allocation2 + $0x1f0] sm:$0xff]
      %v3811 = vld [vmem:[%s3] sm:$0xff]
      %v3812 = vld [vmem:[%s3 + $0x8] sm:$0xff]
      %3815 = vrot.lane.b32.xlu0 %v3811, 124
      %v3816 = vpop.permute.xlu0 %3815
      %3817 = vrot.lane.b32.xlu0 %v3812, 124
      %v3818 = vpop.permute.xlu0 %3817
      %v3819 = vsel %vm1743, %v3816, %v3818
      %v3823 = vmul.f32 %v3808, %v3816
      %v3824 = vmul.f32 %v3809, %v3819
      %v3825 = vmul.f32 %v3810, %v3818
      %3829 = vrot.lane.b32.xlu0 %v3823, 4
      %v3830 = vpop.permute.xlu0 %3829
      %3831 = vrot.lane.b32.xlu0 %v3824, 4
      %v3832 = vpop.permute.xlu0 %3831
      %3833 = vrot.lane.b32.xlu0 %v3825, 4
      %v3834 = vpop.permute.xlu0 %3833
      %v3835 = vsel %vm1760, %v3830, %v3832
      %v3836 = vsel %vm1760, %v3832, %v3834
      %3839 = vst [vmem:[#allocation2 + $0x68] sm:$0xff] %v3835
      %3840 = vst [vmem:[#allocation2 + $0x70] sm:$0xff] %v3836
      %v3841 = vld [vmem:[#allocation2 + $0x1e0] sm:$0xff]
      %v3842 = vld [vmem:[#allocation2 + $0x1e8] sm:$0xff]
      %v3843 = vld [vmem:[#allocation2 + $0x1f0] sm:$0xff]
      %v3844 = vld [vmem:[%s1806] sm:$0xff]
      %v3845 = vld [vmem:[%s1806 + $0x8] sm:$0xff]
      %3848 = vrot.lane.b32.xlu0 %v3844, 126
      %v3849 = vpop.permute.xlu0 %3848
      %3850 = vrot.lane.b32.xlu0 %v3845, 126
      %v3851 = vpop.permute.xlu0 %3850
      %v3852 = vsel %vm1815, %v3849, %v3851
      %v3856 = vmul.f32 %v3841, %v3849
      %v3857 = vmul.f32 %v3842, %v3852
      %v3858 = vmul.f32 %v3843, %v3851
      %3862 = vrot.lane.b32.xlu0 %v3856, 2
      %v3863 = vpop.permute.xlu0 %3862
      %3864 = vrot.lane.b32.xlu0 %v3857, 2
      %v3865 = vpop.permute.xlu0 %3864
      %3866 = vrot.lane.b32.xlu0 %v3858, 2
      %v3867 = vpop.permute.xlu0 %3866
      %v3868 = vsel %vm1832, %v3863, %v3865
      %v3869 = vsel %vm1832, %v3865, %v3867
      %3872 = vst [vmem:[#allocation2 + $0x98] sm:$0xff] %v3868
      %3873 = vst [vmem:[#allocation2 + $0xa0] sm:$0xff] %v3869
      %v3874 = vld [vmem:[#allocation2 + $0x1e8] sm:$0xff]
      %v3875 = vld [vmem:[#allocation2 + $0x1f0] sm:$0xff]
      %3876 = vst [vmem:[#allocation2 + $0xc8] sm:$0xff] %v3874
      %3877 = vst [vmem:[#allocation2 + $0xd0] sm:$0xff] %v3875
      %v3878 = vld [vmem:[#allocation2 + $0x1e8] sm:$0xff]
      %v3879 = vld [vmem:[#allocation2 + $0x1f0] sm:$0xff]
      %v3880 = vld [vmem:[#allocation2 + $0x1f8] sm:$0xff]
      %v3881 = vld [vmem:[%s1916] sm:$0xff]
      %v3882 = vld [vmem:[%s1916 + $0x8] sm:$0xff]
      %3885 = vrot.lane.b32.xlu0 %v3881, 2
      %v3886 = vpop.permute.xlu0 %3885
      %3887 = vrot.lane.b32.xlu0 %v3882, 2
      %v3888 = vpop.permute.xlu0 %3887
      %v3889 = vsel %vm1832, %v3886, %v3888
      %v3893 = vmul.f32 %v3878, %v3886
      %v3894 = vmul.f32 %v3879, %v3889
      %v3895 = vmul.f32 %v3880, %v3888
      %3899 = vrot.lane.b32.xlu0 %v3893, 126
      %v3900 = vpop.permute.xlu0 %3899
      %3901 = vrot.lane.b32.xlu0 %v3894, 126
      %v3902 = vpop.permute.xlu0 %3901
      %3903 = vrot.lane.b32.xlu0 %v3895, 126
      %v3904 = vpop.permute.xlu0 %3903
      %v3905 = vsel %vm1815, %v3900, %v3902
      %v3906 = vsel %vm1815, %v3902, %v3904
      %3909 = vst [vmem:[#allocation2 + $0xf8] sm:$0xff] %v3905
      %3910 = vst [vmem:[#allocation2 + $0x100] sm:$0xff] %v3906
      %v3911 = vld [vmem:[#allocation2 + $0x1e8] sm:$0xff]
      %v3912 = vld [vmem:[#allocation2 + $0x1f0] sm:$0xff]
      %v3913 = vld [vmem:[#allocation2 + $0x1f8] sm:$0xff]
      %v3914 = vld [vmem:[%s1984] sm:$0xff]
      %v3915 = vld [vmem:[%s1984 + $0x8] sm:$0xff]
      %3918 = vrot.lane.b32.xlu0 %v3914, 4
      %v3919 = vpop.permute.xlu0 %3918
      %3920 = vrot.lane.b32.xlu0 %v3915, 4
      %v3921 = vpop.permute.xlu0 %3920
      %v3922 = vsel %vm1760, %v3919, %v3921
      %v3926 = vmul.f32 %v3911, %v3919
      %v3927 = vmul.f32 %v3912, %v3922
      %v3928 = vmul.f32 %v3913, %v3921
      %3932 = vrot.lane.b32.xlu0 %v3926, 124
      %v3933 = vpop.permute.xlu0 %3932
      %3934 = vrot.lane.b32.xlu0 %v3927, 124
      %v3935 = vpop.permute.xlu0 %3934
      %3936 = vrot.lane.b32.xlu0 %v3928, 124
      %v3937 = vpop.permute.xlu0 %3936
      %v3938 = vsel %vm1743, %v3933, %v3935
      %v3939 = vsel %vm1743, %v3935, %v3937
      %3942 = vst [vmem:[#allocation2 + $0x128] sm:$0xff] %v3938
      %3943 = vst [vmem:[#allocation2 + $0x130] sm:$0xff] %v3939
      %v3944 = vld [vmem:[#allocation2 + $0x1e8] sm:$0xff]
      %v3945 = vld [vmem:[#allocation2 + $0x1f0] sm:$0xff]
      %v3946 = vld [vmem:[#allocation2 + $0x1f8] sm:$0xff]
      %s3947 = scalar_lea.vmem %s3, 160
      %v3948 = vld [vmem:[%s3947] sm:$0xff]
      %v3949 = vld [vmem:[%s3947 + $0x8] sm:$0xff]
      %3952 = vrot.lane.b32.xlu0 %v3948, 6
      %v3953 = vpop.permute.xlu0 %3952
      %3954 = vrot.lane.b32.xlu0 %v3949, 6
      %v3955 = vpop.permute.xlu0 %3954
      %v3956 = vsel %vm3801, %v3953, %v3955
      %v3960 = vmul.f32 %v3944, %v3953
      %v3961 = vmul.f32 %v3945, %v3956
      %v3962 = vmul.f32 %v3946, %v3955
      %3966 = vrot.lane.b32.xlu0 %v3960, 122
      %v3967 = vpop.permute.xlu0 %3966
      %3968 = vrot.lane.b32.xlu0 %v3961, 122
      %v3969 = vpop.permute.xlu0 %3968
      %3970 = vrot.lane.b32.xlu0 %v3962, 122
      %v3971 = vpop.permute.xlu0 %3970
      %v3972 = vsel %vm3784, %v3967, %v3969
      %v3973 = vsel %vm3784, %v3969, %v3971
      %3976 = vst [vmem:[#allocation2 + $0x158] sm:$0xff] %v3972
      %3977 = vst [vmem:[#allocation2 + $0x160] sm:$0xff] %v3973
      %v3978 = vld [vmem:[#allocation2 + $0x1e8] sm:$0xff]
      %v3979 = vld [vmem:[#allocation2 + $0x1f0] sm:$0xff]
      %v3980 = vld [vmem:[#allocation2 + $0x1f8] sm:$0xff]
      %s3981 = scalar_lea.vmem %s3, 176
      %v3982 = vld [vmem:[%s3981] sm:$0xff]
      %v3983 = vld [vmem:[%s3981 + $0x8] sm:$0xff]
      %3986 = vrot.lane.b32.xlu0 %v3982, 8
      %v3987 = vpop.permute.xlu0 %3986
      %3988 = vrot.lane.b32.xlu0 %v3983, 8
      %v3989 = vpop.permute.xlu0 %3988
      %v3990 = vsel %vm3297, %v3987, %v3989
      %v3994 = vmul.f32 %v3978, %v3987
      %v3995 = vmul.f32 %v3979, %v3990
      %v3996 = vmul.f32 %v3980, %v3989
      %4000 = vrot.lane.b32.xlu0 %v3994, 120
      %v4001 = vpop.permute.xlu0 %4000
      %4002 = vrot.lane.b32.xlu0 %v3995, 120
      %v4003 = vpop.permute.xlu0 %4002
      %4004 = vrot.lane.b32.xlu0 %v3996, 120
      %v4005 = vpop.permute.xlu0 %4004
      %v4006 = vsel %vm3749, %v4001, %v4003
      %v4007 = vsel %vm3749, %v4003, %v4005
      %4010 = vst [vmem:[#allocation2 + $0x188] sm:$0xff] %v4006
      %4011 = vst [vmem:[#allocation2 + $0x190] sm:$0xff] %v4007
      %v4012 = vld [vmem:[#allocation2] sm:$0xff]
      %v4013 = vld [vmem:[#allocation2 + $0x8] sm:$0xff]
      %v4014 = vld [vmem:[#allocation2 + $0x30] sm:$0xff]
      %v4015 = vld [vmem:[#allocation2 + $0x38] sm:$0xff]
      %v4016 = vld [vmem:[#allocation2 + $0x60] sm:$0xff]
      %v4017 = vld [vmem:[#allocation2 + $0x68] sm:$0xff]
      %v4018 = vld [vmem:[#allocation2 + $0x90] sm:$0xff]
      %v4019 = vld [vmem:[#allocation2 + $0x98] sm:$0xff]
      %v4020 = vld [vmem:[#allocation2 + $0xc0] sm:$0xff]
      %v4021 = vld [vmem:[#allocation2 + $0xc8] sm:$0xff]
      %v4022 = vld [vmem:[#allocation2 + $0xf0] sm:$0xff]
      %v4023 = vld [vmem:[#allocation2 + $0xf8] sm:$0xff]
      %v4024 = vld [vmem:[#allocation2 + $0x120] sm:$0xff]
      %v4025 = vld [vmem:[#allocation2 + $0x128] sm:$0xff]
      %v4026 = vld [vmem:[#allocation2 + $0x150] sm:$0xff]
      %v4027 = vld [vmem:[#allocation2 + $0x158] sm:$0xff]
      %v4028 = vld [vmem:[#allocation2 + $0x180] sm:$0xff]
      %v4029 = vld [vmem:[#allocation2 + $0x188] sm:$0xff]
      %v4030 = vld [vmem:[#allocation2 + $0x1b0] sm:$0xff]
      %v4031 = vld [vmem:[#allocation2 + $0x1b8] sm:$0xff]
      %v4032 = vpack.c.bf16 %v4014, %v4012
      %v4033 = vpack.c.bf16 %v4015, %v4013
      %v4034 = vpack.c.bf16 %v4018, %v4016
      %v4035 = vpack.c.bf16 %v4019, %v4017
      %v4036 = vpack.c.bf16 %v4022, %v4020
      %v4037 = vpack.c.bf16 %v4023, %v4021
      %v4038 = vpack.c.bf16 %v4026, %v4024
      %v4039 = vpack.c.bf16 %v4027, %v4025
      %v4040 = vpack.c.bf16 %v4030, %v4028
      %v4041 = vpack.c.bf16 %v4031, %v4029
      %4042 = vst [vmem:[#allocation3] sm:$0xff] %v4032
      %4043 = vst [vmem:[#allocation3 + $0x8] sm:$0xff] %v4033
      %4044 = vst [vmem:[#allocation3 + $0x10] sm:$0xff] %v4034
      %4045 = vst [vmem:[#allocation3 + $0x18] sm:$0xff] %v4035
      %4046 = vst [vmem:[#allocation3 + $0x20] sm:$0xff] %v4036
      %4047 = vst [vmem:[#allocation3 + $0x28] sm:$0xff] %v4037
      %4048 = vst [vmem:[#allocation3 + $0x30] sm:$0xff] %v4038
      %4049 = vst [vmem:[#allocation3 + $0x38] sm:$0xff] %v4039
      %4050 = vst [vmem:[#allocation3 + $0x40] sm:$0xff] %v4040
      %4051 = vst [vmem:[#allocation3 + $0x48] sm:$0xff] %v4041
      %v4052 = vld [vmem:[#allocation2] sm:$0xff]
      %v4053 = vld [vmem:[#allocation2 + $0x8] sm:$0xff]
      %v4054 = vld [vmem:[#allocation2 + $0x10] sm:$0xff]
      %v4055 = vld [vmem:[#allocation2 + $0x30] sm:$0xff]
      %v4056 = vld [vmem:[#allocation2 + $0x38] sm:$0xff]
      %v4057 = vld [vmem:[#allocation2 + $0x40] sm:$0xff]
      %v4058 = vld [vmem:[#allocation2 + $0x60] sm:$0xff]
      %v4059 = vld [vmem:[#allocation2 + $0x68] sm:$0xff]
      %v4060 = vld [vmem:[#allocation2 + $0x70] sm:$0xff]
      %v4061 = vld [vmem:[#allocation2 + $0x90] sm:$0xff]
      %v4062 = vld [vmem:[#allocation2 + $0x98] sm:$0xff]
      %v4063 = vld [vmem:[#allocation2 + $0xa0] sm:$0xff]
      %v4064 = vld [vmem:[#allocation2 + $0xc0] sm:$0xff]
      %v4065 = vld [vmem:[#allocation2 + $0xc8] sm:$0xff]
      %v4066 = vld [vmem:[#allocation2 + $0xd0] sm:$0xff]
      %v4067 = vld [vmem:[#allocation2 + $0xf0] sm:$0xff]
      %v4068 = vld [vmem:[#allocation2 + $0xf8] sm:$0xff]
      %v4069 = vld [vmem:[#allocation2 + $0x100] sm:$0xff]
      %v4070 = vld [vmem:[#allocation2 + $0x120] sm:$0xff]
      %v4071 = vld [vmem:[#allocation2 + $0x128] sm:$0xff]
      %v4072 = vld [vmem:[#allocation2 + $0x130] sm:$0xff]
      %v4073 = vld [vmem:[#allocation2 + $0x150] sm:$0xff]
      %v4074 = vld [vmem:[#allocation2 + $0x158] sm:$0xff]
      %v4075 = vld [vmem:[#allocation2 + $0x160] sm:$0xff]
      %v4076 = vld [vmem:[#allocation2 + $0x180] sm:$0xff]
      %v4077 = vld [vmem:[#allocation2 + $0x188] sm:$0xff]
      %v4078 = vld [vmem:[#allocation2 + $0x190] sm:$0xff]
      %v4079 = vld [vmem:[#allocation2 + $0x1b0] sm:$0xff]
      %v4080 = vld [vmem:[#allocation2 + $0x1b8] sm:$0xff]
      %v4081 = vld [vmem:[#allocation2 + $0x1c0] sm:$0xff]
      %v4082 = vpack.c.bf16 %v4055, %v4052
      %v4083 = vpack.c.bf16 %v4056, %v4053
      %v4084 = vpack.c.bf16 %v4057, %v4054
      %v4085 = vpack.c.bf16 %v4061, %v4058
      %v4086 = vpack.c.bf16 %v4062, %v4059
      %v4087 = vpack.c.bf16 %v4063, %v4060
      %v4088 = vpack.c.bf16 %v4067, %v4064
      %v4089 = vpack.c.bf16 %v4068, %v4065
      %v4090 = vpack.c.bf16 %v4069, %v4066
      %v4091 = vpack.c.bf16 %v4073, %v4070
      %v4092 = vpack.c.bf16 %v4074, %v4071
      %v4093 = vpack.c.bf16 %v4075, %v4072
      %v4094 = vpack.c.bf16 %v4079, %v4076
      %v4095 = vpack.c.bf16 %v4080, %v4077
      %v4096 = vpack.c.bf16 %v4081, %v4078
      %4112 = vrot.lane.b32.xlu0 %v4082, 96
      %v4113 = vpop.permute.xlu0 %4112
      %4114 = vrot.lane.b32.xlu0 %v4083, 96
      %v4115 = vpop.permute.xlu0 %4114
      %4116 = vrot.lane.b32.xlu0 %v4084, 96
      %v4117 = vpop.permute.xlu0 %4116
      %4118 = vrot.lane.b32.xlu0 %v4085, 96
      %v4119 = vpop.permute.xlu0 %4118
      %4120 = vrot.lane.b32.xlu0 %v4086, 96
      %v4121 = vpop.permute.xlu0 %4120
      %4122 = vrot.lane.b32.xlu0 %v4087, 96
      %v4123 = vpop.permute.xlu0 %4122
      %4124 = vrot.lane.b32.xlu0 %v4088, 96
      %v4125 = vpop.permute.xlu0 %4124
      %4126 = vrot.lane.b32.xlu0 %v4089, 96
      %v4127 = vpop.permute.xlu0 %4126
      %4128 = vrot.lane.b32.xlu0 %v4090, 96
      %v4129 = vpop.permute.xlu0 %4128
      %4130 = vrot.lane.b32.xlu0 %v4091, 96
      %v4131 = vpop.permute.xlu0 %4130
      %4132 = vrot.lane.b32.xlu0 %v4092, 96
      %v4133 = vpop.permute.xlu0 %4132
      %4134 = vrot.lane.b32.xlu0 %v4093, 96
      %v4135 = vpop.permute.xlu0 %4134
      %4136 = vrot.lane.b32.xlu0 %v4094, 96
      %v4137 = vpop.permute.xlu0 %4136
      %4138 = vrot.lane.b32.xlu0 %v4095, 96
      %v4139 = vpop.permute.xlu0 %4138
      %4140 = vrot.lane.b32.xlu0 %v4096, 96
      %v4141 = vpop.permute.xlu0 %4140
      %v4142 = vsel %vm2750, %v4113, %v4115
      %v4143 = vsel %vm2750, %v4115, %v4117
      %v4144 = vsel %vm2750, %v4119, %v4121
      %v4145 = vsel %vm2750, %v4121, %v4123
      %v4146 = vsel %vm2750, %v4125, %v4127
      %v4147 = vsel %vm2750, %v4127, %v4129
      %v4148 = vsel %vm2750, %v4131, %v4133
      %v4149 = vsel %vm2750, %v4133, %v4135
      %v4150 = vsel %vm2750, %v4137, %v4139
      %v4151 = vsel %vm2750, %v4139, %v4141
      %4162 = vst [vmem:[#allocation3 + $0x50] sm:$0xff] %v4142
      %4163 = vst [vmem:[#allocation3 + $0x58] sm:$0xff] %v4143
      %4164 = vst [vmem:[#allocation3 + $0x60] sm:$0xff] %v4144
      %4165 = vst [vmem:[#allocation3 + $0x68] sm:$0xff] %v4145
      %4166 = vst [vmem:[#allocation3 + $0x70] sm:$0xff] %v4146
      %4167 = vst [vmem:[#allocation3 + $0x78] sm:$0xff] %v4147
      %4168 = vst [vmem:[#allocation3 + $0x80] sm:$0xff] %v4148
      %4169 = vst [vmem:[#allocation3 + $0x88] sm:$0xff] %v4149
      %4170 = vst [vmem:[#allocation3 + $0x90] sm:$0xff] %v4150
      %4171 = vst [vmem:[#allocation3 + $0x98] sm:$0xff] %v4151
      %v4172 = vld [vmem:[#allocation2] sm:$0xff]
      %v4173 = vld [vmem:[#allocation2 + $0x8] sm:$0xff]
      %v4174 = vld [vmem:[#allocation2 + $0x10] sm:$0xff]
      %v4175 = vld [vmem:[#allocation2 + $0x30] sm:$0xff]
      %v4176 = vld [vmem:[#allocation2 + $0x38] sm:$0xff]
      %v4177 = vld [vmem:[#allocation2 + $0x40] sm:$0xff]
      %v4178 = vld [vmem:[#allocation2 + $0x60] sm:$0xff]
      %v4179 = vld [vmem:[#allocation2 + $0x68] sm:$0xff]
      %v4180 = vld [vmem:[#allocation2 + $0x70] sm:$0xff]
      %v4181 = vld [vmem:[#allocation2 + $0x90] sm:$0xff]
      %v4182 = vld [vmem:[#allocation2 + $0x98] sm:$0xff]
      %v4183 = vld [vmem:[#allocation2 + $0xa0] sm:$0xff]
      %v4184 = vld [vmem:[#allocation2 + $0xc0] sm:$0xff]
      %v4185 = vld [vmem:[#allocation2 + $0xc8] sm:$0xff]
      %v4186 = vld [vmem:[#allocation2 + $0xd0] sm:$0xff]
      %v4187 = vld [vmem:[#allocation2 + $0xf0] sm:$0xff]
      %v4188 = vld [vmem:[#allocation2 + $0xf8] sm:$0xff]
      %v4189 = vld [vmem:[#allocation2 + $0x100] sm:$0xff]
      %v4190 = vld [vmem:[#allocation2 + $0x120] sm:$0xff]
      %v4191 = vld [vmem:[#allocation2 + $0x128] sm:$0xff]
      %v4192 = vld [vmem:[#allocation2 + $0x130] sm:$0xff]
      %v4193 = vld [vmem:[#allocation2 + $0x150] sm:$0xff]
      %v4194 = vld [vmem:[#allocation2 + $0x158] sm:$0xff]
      %v4195 = vld [vmem:[#allocation2 + $0x160] sm:$0xff]
      %v4196 = vld [vmem:[#allocation2 + $0x180] sm:$0xff]
      %v4197 = vld [vmem:[#allocation2 + $0x188] sm:$0xff]
      %v4198 = vld [vmem:[#allocation2 + $0x190] sm:$0xff]
      %v4199 = vld [vmem:[#allocation2 + $0x1b0] sm:$0xff]
      %v4200 = vld [vmem:[#allocation2 + $0x1b8] sm:$0xff]
      %v4201 = vld [vmem:[#allocation2 + $0x1c0] sm:$0xff]
      %v4202 = vpack.c.bf16 %v4175, %v4172
      %v4203 = vpack.c.bf16 %v4176, %v4173
      %v4204 = vpack.c.bf16 %v4177, %v4174
      %v4205 = vpack.c.bf16 %v4181, %v4178
      %v4206 = vpack.c.bf16 %v4182, %v4179
      %v4207 = vpack.c.bf16 %v4183, %v4180
      %v4208 = vpack.c.bf16 %v4187, %v4184
      %v4209 = vpack.c.bf16 %v4188, %v4185
      %v4210 = vpack.c.bf16 %v4189, %v4186
      %v4211 = vpack.c.bf16 %v4193, %v4190
      %v4212 = vpack.c.bf16 %v4194, %v4191
      %v4213 = vpack.c.bf16 %v4195, %v4192
      %v4214 = vpack.c.bf16 %v4199, %v4196
      %v4215 = vpack.c.bf16 %v4200, %v4197
      %v4216 = vpack.c.bf16 %v4201, %v4198
      %4232 = vrot.lane.b32.xlu0 %v4202, 64
      %v4233 = vpop.permute.xlu0 %4232
      %4234 = vrot.lane.b32.xlu0 %v4203, 64
      %v4235 = vpop.permute.xlu0 %4234
      %4236 = vrot.lane.b32.xlu0 %v4204, 64
      %v4237 = vpop.permute.xlu0 %4236
      %4238 = vrot.lane.b32.xlu0 %v4205, 64
      %v4239 = vpop.permute.xlu0 %4238
      %4240 = vrot.lane.b32.xlu0 %v4206, 64
      %v4241 = vpop.permute.xlu0 %4240
      %4242 = vrot.lane.b32.xlu0 %v4207, 64
      %v4243 = vpop.permute.xlu0 %4242
      %4244 = vrot.lane.b32.xlu0 %v4208, 64
      %v4245 = vpop.permute.xlu0 %4244
      %4246 = vrot.lane.b32.xlu0 %v4209, 64
      %v4247 = vpop.permute.xlu0 %4246
      %4248 = vrot.lane.b32.xlu0 %v4210, 64
      %v4249 = vpop.permute.xlu0 %4248
      %4250 = vrot.lane.b32.xlu0 %v4211, 64
      %v4251 = vpop.permute.xlu0 %4250
      %4252 = vrot.lane.b32.xlu0 %v4212, 64
      %v4253 = vpop.permute.xlu0 %4252
      %4254 = vrot.lane.b32.xlu0 %v4213, 64
      %v4255 = vpop.permute.xlu0 %4254
      %4256 = vrot.lane.b32.xlu0 %v4214, 64
      %v4257 = vpop.permute.xlu0 %4256
      %4258 = vrot.lane.b32.xlu0 %v4215, 64
      %v4259 = vpop.permute.xlu0 %4258
      %4260 = vrot.lane.b32.xlu0 %v4216, 64
      %v4261 = vpop.permute.xlu0 %4260
      %v4262 = vsel %vm2105, %v4233, %v4235
      %v4263 = vsel %vm2105, %v4235, %v4237
      %v4264 = vsel %vm2105, %v4239, %v4241
      %v4265 = vsel %vm2105, %v4241, %v4243
      %v4266 = vsel %vm2105, %v4245, %v4247
      %v4267 = vsel %vm2105, %v4247, %v4249
      %v4268 = vsel %vm2105, %v4251, %v4253
      %v4269 = vsel %vm2105, %v4253, %v4255
      %v4270 = vsel %vm2105, %v4257, %v4259
      %v4271 = vsel %vm2105, %v4259, %v4261
      %4282 = vst [vmem:[#allocation3 + $0xa0] sm:$0xff] %v4262
      %4283 = vst [vmem:[#allocation3 + $0xa8] sm:$0xff] %v4263
      %4284 = vst [vmem:[#allocation3 + $0xb0] sm:$0xff] %v4264
      %4285 = vst [vmem:[#allocation3 + $0xb8] sm:$0xff] %v4265
      %4286 = vst [vmem:[#allocation3 + $0xc0] sm:$0xff] %v4266
      %4287 = vst [vmem:[#allocation3 + $0xc8] sm:$0xff] %v4267
      %4288 = vst [vmem:[#allocation3 + $0xd0] sm:$0xff] %v4268
      %4289 = vst [vmem:[#allocation3 + $0xd8] sm:$0xff] %v4269
      %4290 = vst [vmem:[#allocation3 + $0xe0] sm:$0xff] %v4270
      %4291 = vst [vmem:[#allocation3 + $0xe8] sm:$0xff] %v4271
      %v4292 = vld [vmem:[#allocation2] sm:$0xff]
      %v4293 = vld [vmem:[#allocation2 + $0x8] sm:$0xff]
      %v4294 = vld [vmem:[#allocation2 + $0x10] sm:$0xff]
      %v4295 = vld [vmem:[#allocation2 + $0x30] sm:$0xff]
      %v4296 = vld [vmem:[#allocation2 + $0x38] sm:$0xff]
      %v4297 = vld [vmem:[#allocation2 + $0x40] sm:$0xff]
      %v4298 = vld [vmem:[#allocation2 + $0x60] sm:$0xff]
      %v4299 = vld [vmem:[#allocation2 + $0x68] sm:$0xff]
      %v4300 = vld [vmem:[#allocation2 + $0x70] sm:$0xff]
      %v4301 = vld [vmem:[#allocation2 + $0x90] sm:$0xff]
      %v4302 = vld [vmem:[#allocation2 + $0x98] sm:$0xff]
      %v4303 = vld [vmem:[#allocation2 + $0xa0] sm:$0xff]
      %v4304 = vld [vmem:[#allocation2 + $0xc0] sm:$0xff]
      %v4305 = vld [vmem:[#allocation2 + $0xc8] sm:$0xff]
      %v4306 = vld [vmem:[#allocation2 + $0xd0] sm:$0xff]
      %v4307 = vld [vmem:[#allocation2 + $0xf0] sm:$0xff]
      %v4308 = vld [vmem:[#allocation2 + $0xf8] sm:$0xff]
      %v4309 = vld [vmem:[#allocation2 + $0x100] sm:$0xff]
      %v4310 = vld [vmem:[#allocation2 + $0x120] sm:$0xff]
      %v4311 = vld [vmem:[#allocation2 + $0x128] sm:$0xff]
      %v4312 = vld [vmem:[#allocation2 + $0x130] sm:$0xff]
      %v4313 = vld [vmem:[#allocation2 + $0x150] sm:$0xff]
      %v4314 = vld [vmem:[#allocation2 + $0x158] sm:$0xff]
      %v4315 = vld [vmem:[#allocation2 + $0x160] sm:$0xff]
      %v4316 = vld [vmem:[#allocation2 + $0x180] sm:$0xff]
      %v4317 = vld [vmem:[#allocation2 + $0x188] sm:$0xff]
      %v4318 = vld [vmem:[#allocation2 + $0x190] sm:$0xff]
      %v4319 = vld [vmem:[#allocation2 + $0x1b0] sm:$0xff]
      %v4320 = vld [vmem:[#allocation2 + $0x1b8] sm:$0xff]
      %v4321 = vld [vmem:[#allocation2 + $0x1c0] sm:$0xff]
      %v4322 = vpack.c.bf16 %v4295, %v4292
      %v4323 = vpack.c.bf16 %v4296, %v4293
      %v4324 = vpack.c.bf16 %v4297, %v4294
      %v4325 = vpack.c.bf16 %v4301, %v4298
      %v4326 = vpack.c.bf16 %v4302, %v4299
      %v4327 = vpack.c.bf16 %v4303, %v4300
      %v4328 = vpack.c.bf16 %v4307, %v4304
      %v4329 = vpack.c.bf16 %v4308, %v4305
      %v4330 = vpack.c.bf16 %v4309, %v4306
      %v4331 = vpack.c.bf16 %v4313, %v4310
      %v4332 = vpack.c.bf16 %v4314, %v4311
      %v4333 = vpack.c.bf16 %v4315, %v4312
      %v4334 = vpack.c.bf16 %v4319, %v4316
      %v4335 = vpack.c.bf16 %v4320, %v4317
      %v4336 = vpack.c.bf16 %v4321, %v4318
      %4352 = vrot.lane.b32.xlu0 %v4322, 32
      %v4353 = vpop.permute.xlu0 %4352
      %4354 = vrot.lane.b32.xlu0 %v4323, 32
      %v4355 = vpop.permute.xlu0 %4354
      %4356 = vrot.lane.b32.xlu0 %v4324, 32
      %v4357 = vpop.permute.xlu0 %4356
      %4358 = vrot.lane.b32.xlu0 %v4325, 32
      %v4359 = vpop.permute.xlu0 %4358
      %4360 = vrot.lane.b32.xlu0 %v4326, 32
      %v4361 = vpop.permute.xlu0 %4360
      %4362 = vrot.lane.b32.xlu0 %v4327, 32
      %v4363 = vpop.permute.xlu0 %4362
      %4364 = vrot.lane.b32.xlu0 %v4328, 32
      %v4365 = vpop.permute.xlu0 %4364
      %4366 = vrot.lane.b32.xlu0 %v4329, 32
      %v4367 = vpop.permute.xlu0 %4366
      %4368 = vrot.lane.b32.xlu0 %v4330, 32
      %v4369 = vpop.permute.xlu0 %4368
      %4370 = vrot.lane.b32.xlu0 %v4331, 32
      %v4371 = vpop.permute.xlu0 %4370
      %4372 = vrot.lane.b32.xlu0 %v4332, 32
      %v4373 = vpop.permute.xlu0 %4372
      %4374 = vrot.lane.b32.xlu0 %v4333, 32
      %v4375 = vpop.permute.xlu0 %4374
      %4376 = vrot.lane.b32.xlu0 %v4334, 32
      %v4377 = vpop.permute.xlu0 %4376
      %4378 = vrot.lane.b32.xlu0 %v4335, 32
      %v4379 = vpop.permute.xlu0 %4378
      %4380 = vrot.lane.b32.xlu0 %v4336, 32
      %v4381 = vpop.permute.xlu0 %4380
      %v4382 = vsel %vm2347, %v4353, %v4355
      %v4383 = vsel %vm2347, %v4355, %v4357
      %v4384 = vsel %vm2347, %v4359, %v4361
      %v4385 = vsel %vm2347, %v4361, %v4363
      %v4386 = vsel %vm2347, %v4365, %v4367
      %v4387 = vsel %vm2347, %v4367, %v4369
      %v4388 = vsel %vm2347, %v4371, %v4373
      %v4389 = vsel %vm2347, %v4373, %v4375
      %v4390 = vsel %vm2347, %v4377, %v4379
      %v4391 = vsel %vm2347, %v4379, %v4381
      %4402 = vst [vmem:[#allocation3 + $0xf0] sm:$0xff] %v4382
      %4403 = vst [vmem:[#allocation3 + $0xf8] sm:$0xff] %v4383
      %4404 = vst [vmem:[#allocation3 + $0x100] sm:$0xff] %v4384
      %4405 = vst [vmem:[#allocation3 + $0x108] sm:$0xff] %v4385
      %4406 = vst [vmem:[#allocation3 + $0x110] sm:$0xff] %v4386
      %4407 = vst [vmem:[#allocation3 + $0x118] sm:$0xff] %v4387
      %4408 = vst [vmem:[#allocation3 + $0x120] sm:$0xff] %v4388
      %4409 = vst [vmem:[#allocation3 + $0x128] sm:$0xff] %v4389
      %4410 = vst [vmem:[#allocation3 + $0x130] sm:$0xff] %v4390
      %4411 = vst [vmem:[#allocation3 + $0x138] sm:$0xff] %v4391
      %v4412 = vld [vmem:[#allocation2 + $0x8] sm:$0xff]
      %v4413 = vld [vmem:[#allocation2 + $0x10] sm:$0xff]
      %v4414 = vld [vmem:[#allocation2 + $0x38] sm:$0xff]
      %v4415 = vld [vmem:[#allocation2 + $0x40] sm:$0xff]
      %v4416 = vld [vmem:[#allocation2 + $0x68] sm:$0xff]
      %v4417 = vld [vmem:[#allocation2 + $0x70] sm:$0xff]
      %v4418 = vld [vmem:[#allocation2 + $0x98] sm:$0xff]
      %v4419 = vld [vmem:[#allocation2 + $0xa0] sm:$0xff]
      %v4420 = vld [vmem:[#allocation2 + $0xc8] sm:$0xff]
      %v4421 = vld [vmem:[#allocation2 + $0xd0] sm:$0xff]
      %v4422 = vld [vmem:[#allocation2 + $0xf8] sm:$0xff]
      %v4423 = vld [vmem:[#allocation2 + $0x100] sm:$0xff]
      %v4424 = vld [vmem:[#allocation2 + $0x128] sm:$0xff]
      %v4425 = vld [vmem:[#allocation2 + $0x130] sm:$0xff]
      %v4426 = vld [vmem:[#allocation2 + $0x158] sm:$0xff]
      %v4427 = vld [vmem:[#allocation2 + $0x160] sm:$0xff]
      %v4428 = vld [vmem:[#allocation2 + $0x188] sm:$0xff]
      %v4429 = vld [vmem:[#allocation2 + $0x190] sm:$0xff]
      %v4430 = vld [vmem:[#allocation2 + $0x1b8] sm:$0xff]
      %v4431 = vld [vmem:[#allocation2 + $0x1c0] sm:$0xff]
      %v4432 = vpack.c.bf16 %v4414, %v4412
      %v4433 = vpack.c.bf16 %v4415, %v4413
      %v4434 = vpack.c.bf16 %v4418, %v4416
      %v4435 = vpack.c.bf16 %v4419, %v4417
      %v4436 = vpack.c.bf16 %v4422, %v4420
      %v4437 = vpack.c.bf16 %v4423, %v4421
      %v4438 = vpack.c.bf16 %v4426, %v4424
      %v4439 = vpack.c.bf16 %v4427, %v4425
      %v4440 = vpack.c.bf16 %v4430, %v4428
      %v4441 = vpack.c.bf16 %v4431, %v4429
      %4442 = vst [vmem:[#allocation3 + $0x140] sm:$0xff] %v4432
      %4443 = vst [vmem:[#allocation3 + $0x148] sm:$0xff] %v4433
      %4444 = vst [vmem:[#allocation3 + $0x150] sm:$0xff] %v4434
      %4445 = vst [vmem:[#allocation3 + $0x158] sm:$0xff] %v4435
      %4446 = vst [vmem:[#allocation3 + $0x160] sm:$0xff] %v4436
      %4447 = vst [vmem:[#allocation3 + $0x168] sm:$0xff] %v4437
      %4448 = vst [vmem:[#allocation3 + $0x170] sm:$0xff] %v4438
      %4449 = vst [vmem:[#allocation3 + $0x178] sm:$0xff] %v4439
      %4450 = vst [vmem:[#allocation3 + $0x180] sm:$0xff] %v4440
      %4451 = vst [vmem:[#allocation3 + $0x188] sm:$0xff] %v4441
      %v4452 = vld [vmem:[#allocation2 + $0x8] sm:$0xff]
      %v4453 = vld [vmem:[#allocation2 + $0x10] sm:$0xff]
      %v4454 = vld [vmem:[#allocation2 + $0x18] sm:$0xff]
      %v4455 = vld [vmem:[#allocation2 + $0x38] sm:$0xff]
      %v4456 = vld [vmem:[#allocation2 + $0x40] sm:$0xff]
      %v4457 = vld [vmem:[#allocation2 + $0x48] sm:$0xff]
      %v4458 = vld [vmem:[#allocation2 + $0x68] sm:$0xff]
      %v4459 = vld [vmem:[#allocation2 + $0x70] sm:$0xff]
      %v4460 = vld [vmem:[#allocation2 + $0x78] sm:$0xff]
      %v4461 = vld [vmem:[#allocation2 + $0x98] sm:$0xff]
      %v4462 = vld [vmem:[#allocation2 + $0xa0] sm:$0xff]
      %v4463 = vld [vmem:[#allocation2 + $0xa8] sm:$0xff]
      %v4464 = vld [vmem:[#allocation2 + $0xc8] sm:$0xff]
      %v4465 = vld [vmem:[#allocation2 + $0xd0] sm:$0xff]
      %v4466 = vld [vmem:[#allocation2 + $0xd8] sm:$0xff]
      %v4467 = vld [vmem:[#allocation2 + $0xf8] sm:$0xff]
      %v4468 = vld [vmem:[#allocation2 + $0x100] sm:$0xff]
      %v4469 = vld [vmem:[#allocation2 + $0x108] sm:$0xff]
      %v4470 = vld [vmem:[#allocation2 + $0x128] sm:$0xff]
      %v4471 = vld [vmem:[#allocation2 + $0x130] sm:$0xff]
      %v4472 = vld [vmem:[#allocation2 + $0x138] sm:$0xff]
      %v4473 = vld [vmem:[#allocation2 + $0x158] sm:$0xff]
      %v4474 = vld [vmem:[#allocation2 + $0x160] sm:$0xff]
      %v4475 = vld [vmem:[#allocation2 + $0x168] sm:$0xff]
      %v4476 = vld [vmem:[#allocation2 + $0x188] sm:$0xff]
      %v4477 = vld [vmem:[#allocation2 + $0x190] sm:$0xff]
      %v4478 = vld [vmem:[#allocation2 + $0x198] sm:$0xff]
      %v4479 = vld [vmem:[#allocation2 + $0x1b8] sm:$0xff]
      %v4480 = vld [vmem:[#allocation2 + $0x1c0] sm:$0xff]
      %v4481 = vld [vmem:[#allocation2 + $0x1c8] sm:$0xff]
      %v4482 = vpack.c.bf16 %v4455, %v4452
      %v4483 = vpack.c.bf16 %v4456, %v4453
      %v4484 = vpack.c.bf16 %v4457, %v4454
      %v4485 = vpack.c.bf16 %v4461, %v4458
      %v4486 = vpack.c.bf16 %v4462, %v4459
      %v4487 = vpack.c.bf16 %v4463, %v4460
      %v4488 = vpack.c.bf16 %v4467, %v4464
      %v4489 = vpack.c.bf16 %v4468, %v4465
      %v4490 = vpack.c.bf16 %v4469, %v4466
      %v4491 = vpack.c.bf16 %v4473, %v4470
      %v4492 = vpack.c.bf16 %v4474, %v4471
      %v4493 = vpack.c.bf16 %v4475, %v4472
      %v4494 = vpack.c.bf16 %v4479, %v4476
      %v4495 = vpack.c.bf16 %v4480, %v4477
      %v4496 = vpack.c.bf16 %v4481, %v4478
      %4512 = vrot.lane.b32.xlu0 %v4482, 96
      %v4513 = vpop.permute.xlu0 %4512
      %4514 = vrot.lane.b32.xlu0 %v4483, 96
      %v4515 = vpop.permute.xlu0 %4514
      %4516 = vrot.lane.b32.xlu0 %v4484, 96
      %v4517 = vpop.permute.xlu0 %4516
      %4518 = vrot.lane.b32.xlu0 %v4485, 96
      %v4519 = vpop.permute.xlu0 %4518
      %4520 = vrot.lane.b32.xlu0 %v4486, 96
      %v4521 = vpop.permute.xlu0 %4520
      %4522 = vrot.lane.b32.xlu0 %v4487, 96
      %v4523 = vpop.permute.xlu0 %4522
      %4524 = vrot.lane.b32.xlu0 %v4488, 96
      %v4525 = vpop.permute.xlu0 %4524
      %4526 = vrot.lane.b32.xlu0 %v4489, 96
      %v4527 = vpop.permute.xlu0 %4526
      %4528 = vrot.lane.b32.xlu0 %v4490, 96
      %v4529 = vpop.permute.xlu0 %4528
      %4530 = vrot.lane.b32.xlu0 %v4491, 96
      %v4531 = vpop.permute.xlu0 %4530
      %4532 = vrot.lane.b32.xlu0 %v4492, 96
      %v4533 = vpop.permute.xlu0 %4532
      %4534 = vrot.lane.b32.xlu0 %v4493, 96
      %v4535 = vpop.permute.xlu0 %4534
      %4536 = vrot.lane.b32.xlu0 %v4494, 96
      %v4537 = vpop.permute.xlu0 %4536
      %4538 = vrot.lane.b32.xlu0 %v4495, 96
      %v4539 = vpop.permute.xlu0 %4538
      %4540 = vrot.lane.b32.xlu0 %v4496, 96
      %v4541 = vpop.permute.xlu0 %4540
      %v4542 = vsel %vm2750, %v4513, %v4515
      %v4543 = vsel %vm2750, %v4515, %v4517
      %v4544 = vsel %vm2750, %v4519, %v4521
      %v4545 = vsel %vm2750, %v4521, %v4523
      %v4546 = vsel %vm2750, %v4525, %v4527
      %v4547 = vsel %vm2750, %v4527, %v4529
      %v4548 = vsel %vm2750, %v4531, %v4533
      %v4549 = vsel %vm2750, %v4533, %v4535
      %v4550 = vsel %vm2750, %v4537, %v4539
      %v4551 = vsel %vm2750, %v4539, %v4541
      %4562 = vst [vmem:[#allocation3 + $0x190] sm:$0xff] %v4542
      %4563 = vst [vmem:[#allocation3 + $0x198] sm:$0xff] %v4543
      %4564 = vst [vmem:[#allocation3 + $0x1a0] sm:$0xff] %v4544
      %4565 = vst [vmem:[#allocation3 + $0x1a8] sm:$0xff] %v4545
      %4566 = vst [vmem:[#allocation3 + $0x1b0] sm:$0xff] %v4546
      %4567 = vst [vmem:[#allocation3 + $0x1b8] sm:$0xff] %v4547
      %4568 = vst [vmem:[#allocation3 + $0x1c0] sm:$0xff] %v4548
      %4569 = vst [vmem:[#allocation3 + $0x1c8] sm:$0xff] %v4549
      %4570 = vst [vmem:[#allocation3 + $0x1d0] sm:$0xff] %v4550
      %4571 = vst [vmem:[#allocation3 + $0x1d8] sm:$0xff] %v4551
      %v4572 = vld [vmem:[#allocation2 + $0x8] sm:$0xff]
      %v4573 = vld [vmem:[#allocation2 + $0x10] sm:$0xff]
      %v4574 = vld [vmem:[#allocation2 + $0x18] sm:$0xff]
      %v4575 = vld [vmem:[#allocation2 + $0x38] sm:$0xff]
      %v4576 = vld [vmem:[#allocation2 + $0x40] sm:$0xff]
      %v4577 = vld [vmem:[#allocation2 + $0x48] sm:$0xff]
      %v4578 = vld [vmem:[#allocation2 + $0x68] sm:$0xff]
      %v4579 = vld [vmem:[#allocation2 + $0x70] sm:$0xff]
      %v4580 = vld [vmem:[#allocation2 + $0x78] sm:$0xff]
      %v4581 = vld [vmem:[#allocation2 + $0x98] sm:$0xff]
      %v4582 = vld [vmem:[#allocation2 + $0xa0] sm:$0xff]
      %v4583 = vld [vmem:[#allocation2 + $0xa8] sm:$0xff]
      %v4584 = vld [vmem:[#allocation2 + $0xc8] sm:$0xff]
      %v4585 = vld [vmem:[#allocation2 + $0xd0] sm:$0xff]
      %v4586 = vld [vmem:[#allocation2 + $0xd8] sm:$0xff]
      %v4587 = vld [vmem:[#allocation2 + $0xf8] sm:$0xff]
      %v4588 = vld [vmem:[#allocation2 + $0x100] sm:$0xff]
      %v4589 = vld [vmem:[#allocation2 + $0x108] sm:$0xff]
      %v4590 = vld [vmem:[#allocation2 + $0x128] sm:$0xff]
      %v4591 = vld [vmem:[#allocation2 + $0x130] sm:$0xff]
      %v4592 = vld [vmem:[#allocation2 + $0x138] sm:$0xff]
      %v4593 = vld [vmem:[#allocation2 + $0x158] sm:$0xff]
      %v4594 = vld [vmem:[#allocation2 + $0x160] sm:$0xff]
      %v4595 = vld [vmem:[#allocation2 + $0x168] sm:$0xff]
      %v4596 = vld [vmem:[#allocation2 + $0x188] sm:$0xff]
      %v4597 = vld [vmem:[#allocation2 + $0x190] sm:$0xff]
      %v4598 = vld [vmem:[#allocation2 + $0x198] sm:$0xff]
      %v4599 = vld [vmem:[#allocation2 + $0x1b8] sm:$0xff]
      %v4600 = vld [vmem:[#allocation2 + $0x1c0] sm:$0xff]
      %v4601 = vld [vmem:[#allocation2 + $0x1c8] sm:$0xff]
      %v4602 = vpack.c.bf16 %v4575, %v4572
      %v4603 = vpack.c.bf16 %v4576, %v4573
      %v4604 = vpack.c.bf16 %v4577, %v4574
      %v4605 = vpack.c.bf16 %v4581, %v4578
      %v4606 = vpack.c.bf16 %v4582, %v4579
      %v4607 = vpack.c.bf16 %v4583, %v4580
      %v4608 = vpack.c.bf16 %v4587, %v4584
      %v4609 = vpack.c.bf16 %v4588, %v4585
      %v4610 = vpack.c.bf16 %v4589, %v4586
      %v4611 = vpack.c.bf16 %v4593, %v4590
      %v4612 = vpack.c.bf16 %v4594, %v4591
      %v4613 = vpack.c.bf16 %v4595, %v4592
      %v4614 = vpack.c.bf16 %v4599, %v4596
      %v4615 = vpack.c.bf16 %v4600, %v4597
      %v4616 = vpack.c.bf16 %v4601, %v4598
      %4632 = vrot.lane.b32.xlu0 %v4602, 64
      %v4633 = vpop.permute.xlu0 %4632
      %4634 = vrot.lane.b32.xlu0 %v4603, 64
      %v4635 = vpop.permute.xlu0 %4634
      %4636 = vrot.lane.b32.xlu0 %v4604, 64
      %v4637 = vpop.permute.xlu0 %4636
      %4638 = vrot.lane.b32.xlu0 %v4605, 64
      %v4639 = vpop.permute.xlu0 %4638
      %4640 = vrot.lane.b32.xlu0 %v4606, 64
      %v4641 = vpop.permute.xlu0 %4640
      %4642 = vrot.lane.b32.xlu0 %v4607, 64
      %v4643 = vpop.permute.xlu0 %4642
      %4644 = vrot.lane.b32.xlu0 %v4608, 64
      %v4645 = vpop.permute.xlu0 %4644
      %4646 = vrot.lane.b32.xlu0 %v4609, 64
      %v4647 = vpop.permute.xlu0 %4646
      %4648 = vrot.lane.b32.xlu0 %v4610, 64
      %v4649 = vpop.permute.xlu0 %4648
      %4650 = vrot.lane.b32.xlu0 %v4611, 64
      %v4651 = vpop.permute.xlu0 %4650
      %4652 = vrot.lane.b32.xlu0 %v4612, 64
      %v4653 = vpop.permute.xlu0 %4652
      %4654 = vrot.lane.b32.xlu0 %v4613, 64
      %v4655 = vpop.permute.xlu0 %4654
      %4656 = vrot.lane.b32.xlu0 %v4614, 64
      %v4657 = vpop.permute.xlu0 %4656
      %4658 = vrot.lane.b32.xlu0 %v4615, 64
      %v4659 = vpop.permute.xlu0 %4658
      %4660 = vrot.lane.b32.xlu0 %v4616, 64
      %v4661 = vpop.permute.xlu0 %4660
      %v4662 = vsel %vm2105, %v4633, %v4635
      %v4663 = vsel %vm2105, %v4635, %v4637
      %v4664 = vsel %vm2105, %v4639, %v4641
      %v4665 = vsel %vm2105, %v4641, %v4643
      %v4666 = vsel %vm2105, %v4645, %v4647
      %v4667 = vsel %vm2105, %v4647, %v4649
      %v4668 = vsel %vm2105, %v4651, %v4653
      %v4669 = vsel %vm2105, %v4653, %v4655
      %v4670 = vsel %vm2105, %v4657, %v4659
      %v4671 = vsel %vm2105, %v4659, %v4661
      %4682 = vst [vmem:[#allocation3 + $0x1e0] sm:$0xff] %v4662
      %4683 = vst [vmem:[#allocation3 + $0x1e8] sm:$0xff] %v4663
      %4684 = vst [vmem:[#allocation3 + $0x1f0] sm:$0xff] %v4664
      %4685 = vst [vmem:[#allocation3 + $0x1f8] sm:$0xff] %v4665
      %4686 = vst [vmem:[#allocation3 + $0x200] sm:$0xff] %v4666
      %4687 = vst [vmem:[#allocation3 + $0x208] sm:$0xff] %v4667
      %4688 = vst [vmem:[#allocation3 + $0x210] sm:$0xff] %v4668
      %4689 = vst [vmem:[#allocation3 + $0x218] sm:$0xff] %v4669
      %4690 = vst [vmem:[#allocation3 + $0x220] sm:$0xff] %v4670
      %4691 = vst [vmem:[#allocation3 + $0x228] sm:$0xff] %v4671
      %v4692 = vld [vmem:[#allocation2 + $0x8] sm:$0xff]
      %v4693 = vld [vmem:[#allocation2 + $0x10] sm:$0xff]
      %v4694 = vld [vmem:[#allocation2 + $0x18] sm:$0xff]
      %v4695 = vld [vmem:[#allocation2 + $0x38] sm:$0xff]
      %v4696 = vld [vmem:[#allocation2 + $0x40] sm:$0xff]
      %v4697 = vld [vmem:[#allocation2 + $0x48] sm:$0xff]
      %v4698 = vld [vmem:[#allocation2 + $0x68] sm:$0xff]
      %v4699 = vld [vmem:[#allocation2 + $0x70] sm:$0xff]
      %v4700 = vld [vmem:[#allocation2 + $0x78] sm:$0xff]
      %v4701 = vld [vmem:[#allocation2 + $0x98] sm:$0xff]
      %v4702 = vld [vmem:[#allocation2 + $0xa0] sm:$0xff]
      %v4703 = vld [vmem:[#allocation2 + $0xa8] sm:$0xff]
      %v4704 = vld [vmem:[#allocation2 + $0xc8] sm:$0xff]
      %v4705 = vld [vmem:[#allocation2 + $0xd0] sm:$0xff]
      %v4706 = vld [vmem:[#allocation2 + $0xd8] sm:$0xff]
      %v4707 = vld [vmem:[#allocation2 + $0xf8] sm:$0xff]
      %v4708 = vld [vmem:[#allocation2 + $0x100] sm:$0xff]
      %v4709 = vld [vmem:[#allocation2 + $0x108] sm:$0xff]
      %v4710 = vld [vmem:[#allocation2 + $0x128] sm:$0xff]
      %v4711 = vld [vmem:[#allocation2 + $0x130] sm:$0xff]
      %v4712 = vld [vmem:[#allocation2 + $0x138] sm:$0xff]
      %v4713 = vld [vmem:[#allocation2 + $0x158] sm:$0xff]
      %v4714 = vld [vmem:[#allocation2 + $0x160] sm:$0xff]
      %v4715 = vld [vmem:[#allocation2 + $0x168] sm:$0xff]
      %v4716 = vld [vmem:[#allocation2 + $0x188] sm:$0xff]
      %v4717 = vld [vmem:[#allocation2 + $0x190] sm:$0xff]
      %v4718 = vld [vmem:[#allocation2 + $0x198] sm:$0xff]
      %v4719 = vld [vmem:[#allocation2 + $0x1b8] sm:$0xff]
      %v4720 = vld [vmem:[#allocation2 + $0x1c0] sm:$0xff]
      %v4721 = vld [vmem:[#allocation2 + $0x1c8] sm:$0xff]
      %v4722 = vpack.c.bf16 %v4695, %v4692
      %v4723 = vpack.c.bf16 %v4696, %v4693
      %v4724 = vpack.c.bf16 %v4697, %v4694
      %v4725 = vpack.c.bf16 %v4701, %v4698
      %v4726 = vpack.c.bf16 %v4702, %v4699
      %v4727 = vpack.c.bf16 %v4703, %v4700
      %v4728 = vpack.c.bf16 %v4707, %v4704
      %v4729 = vpack.c.bf16 %v4708, %v4705
      %v4730 = vpack.c.bf16 %v4709, %v4706
      %v4731 = vpack.c.bf16 %v4713, %v4710
      %v4732 = vpack.c.bf16 %v4714, %v4711
      %v4733 = vpack.c.bf16 %v4715, %v4712
      %v4734 = vpack.c.bf16 %v4719, %v4716
      %v4735 = vpack.c.bf16 %v4720, %v4717
      %v4736 = vpack.c.bf16 %v4721, %v4718
      %4752 = vrot.lane.b32.xlu0 %v4722, 32
      %v4753 = vpop.permute.xlu0 %4752
      %4754 = vrot.lane.b32.xlu0 %v4723, 32
      %v4755 = vpop.permute.xlu0 %4754
      %4756 = vrot.lane.b32.xlu0 %v4724, 32
      %v4757 = vpop.permute.xlu0 %4756
      %4758 = vrot.lane.b32.xlu0 %v4725, 32
      %v4759 = vpop.permute.xlu0 %4758
      %4760 = vrot.lane.b32.xlu0 %v4726, 32
      %v4761 = vpop.permute.xlu0 %4760
      %4762 = vrot.lane.b32.xlu0 %v4727, 32
      %v4763 = vpop.permute.xlu0 %4762
      %4764 = vrot.lane.b32.xlu0 %v4728, 32
      %v4765 = vpop.permute.xlu0 %4764
      %4766 = vrot.lane.b32.xlu0 %v4729, 32
      %v4767 = vpop.permute.xlu0 %4766
      %4768 = vrot.lane.b32.xlu0 %v4730, 32
      %v4769 = vpop.permute.xlu0 %4768
      %4770 = vrot.lane.b32.xlu0 %v4731, 32
      %v4771 = vpop.permute.xlu0 %4770
      %4772 = vrot.lane.b32.xlu0 %v4732, 32
      %v4773 = vpop.permute.xlu0 %4772
      %4774 = vrot.lane.b32.xlu0 %v4733, 32
      %v4775 = vpop.permute.xlu0 %4774
      %4776 = vrot.lane.b32.xlu0 %v4734, 32
      %v4777 = vpop.permute.xlu0 %4776
      %4778 = vrot.lane.b32.xlu0 %v4735, 32
      %v4779 = vpop.permute.xlu0 %4778
      %4780 = vrot.lane.b32.xlu0 %v4736, 32
      %v4781 = vpop.permute.xlu0 %4780
      %v4782 = vsel %vm2347, %v4753, %v4755
      %v4783 = vsel %vm2347, %v4755, %v4757
      %v4784 = vsel %vm2347, %v4759, %v4761
      %v4785 = vsel %vm2347, %v4761, %v4763
      %v4786 = vsel %vm2347, %v4765, %v4767
      %v4787 = vsel %vm2347, %v4767, %v4769
      %v4788 = vsel %vm2347, %v4771, %v4773
      %v4789 = vsel %vm2347, %v4773, %v4775
      %v4790 = vsel %vm2347, %v4777, %v4779
      %v4791 = vsel %vm2347, %v4779, %v4781
      %4802 = vst [vmem:[#allocation3 + $0x230] sm:$0xff] %v4782
      %4803 = vst [vmem:[#allocation3 + $0x238] sm:$0xff] %v4783
      %4804 = vst [vmem:[#allocation3 + $0x240] sm:$0xff] %v4784
      %4805 = vst [vmem:[#allocation3 + $0x248] sm:$0xff] %v4785
      %4806 = vst [vmem:[#allocation3 + $0x250] sm:$0xff] %v4786
      %4807 = vst [vmem:[#allocation3 + $0x258] sm:$0xff] %v4787
      %4808 = vst [vmem:[#allocation3 + $0x260] sm:$0xff] %v4788
      %4809 = vst [vmem:[#allocation3 + $0x268] sm:$0xff] %v4789
      %4810 = vst [vmem:[#allocation3 + $0x270] sm:$0xff] %v4790
      %4811 = vst [vmem:[#allocation3 + $0x278] sm:$0xff] %v4791
      %v4812 = vld [vmem:[#allocation2 + $0x10] sm:$0xff]
      %v4813 = vld [vmem:[#allocation2 + $0x18] sm:$0xff]
      %v4814 = vld [vmem:[#allocation2 + $0x40] sm:$0xff]
      %v4815 = vld [vmem:[#allocation2 + $0x48] sm:$0xff]
      %v4816 = vld [vmem:[#allocation2 + $0x70] sm:$0xff]
      %v4817 = vld [vmem:[#allocation2 + $0x78] sm:$0xff]
      %v4818 = vld [vmem:[#allocation2 + $0xa0] sm:$0xff]
      %v4819 = vld [vmem:[#allocation2 + $0xa8] sm:$0xff]
      %v4820 = vld [vmem:[#allocation2 + $0xd0] sm:$0xff]
      %v4821 = vld [vmem:[#allocation2 + $0xd8] sm:$0xff]
      %v4822 = vld [vmem:[#allocation2 + $0x100] sm:$0xff]
      %v4823 = vld [vmem:[#allocation2 + $0x108] sm:$0xff]
      %v4824 = vld [vmem:[#allocation2 + $0x130] sm:$0xff]
      %v4825 = vld [vmem:[#allocation2 + $0x138] sm:$0xff]
      %v4826 = vld [vmem:[#allocation2 + $0x160] sm:$0xff]
      %v4827 = vld [vmem:[#allocation2 + $0x168] sm:$0xff]
      %v4828 = vld [vmem:[#allocation2 + $0x190] sm:$0xff]
      %v4829 = vld [vmem:[#allocation2 + $0x198] sm:$0xff]
      %v4830 = vld [vmem:[#allocation2 + $0x1c0] sm:$0xff]
      %v4831 = vld [vmem:[#allocation2 + $0x1c8] sm:$0xff]
      %v4832 = vpack.c.bf16 %v4814, %v4812
      %v4833 = vpack.c.bf16 %v4815, %v4813
      %v4834 = vpack.c.bf16 %v4818, %v4816
      %v4835 = vpack.c.bf16 %v4819, %v4817
      %v4836 = vpack.c.bf16 %v4822, %v4820
      %v4837 = vpack.c.bf16 %v4823, %v4821
      %v4838 = vpack.c.bf16 %v4826, %v4824
      %v4839 = vpack.c.bf16 %v4827, %v4825
      %v4840 = vpack.c.bf16 %v4830, %v4828
      %v4841 = vpack.c.bf16 %v4831, %v4829
      %4842 = vst [vmem:[#allocation3 + $0x280] sm:$0xff] %v4832
      %4843 = vst [vmem:[#allocation3 + $0x288] sm:$0xff] %v4833
      %4844 = vst [vmem:[#allocation3 + $0x290] sm:$0xff] %v4834
      %4845 = vst [vmem:[#allocation3 + $0x298] sm:$0xff] %v4835
      %4846 = vst [vmem:[#allocation3 + $0x2a0] sm:$0xff] %v4836
      %4847 = vst [vmem:[#allocation3 + $0x2a8] sm:$0xff] %v4837
      %4848 = vst [vmem:[#allocation3 + $0x2b0] sm:$0xff] %v4838
      %4849 = vst [vmem:[#allocation3 + $0x2b8] sm:$0xff] %v4839
      %4850 = vst [vmem:[#allocation3 + $0x2c0] sm:$0xff] %v4840
      %4851 = vst [vmem:[#allocation3 + $0x2c8] sm:$0xff] %v4841
      %v4852 = vld [vmem:[%s29] sm:$0xff]
      %v4853 = vld [vmem:[%s29 + $0x8] sm:$0xff]
      %v4854 = vld [vmem:[%s29 + $0x10] sm:$0xff]
      %v4855 = vld [vmem:[#allocation3] sm:$0xff]
      %v4856 = vld [vmem:[#allocation3 + $0x8] sm:$0xff]
      %v4857 = vld [vmem:[#allocation3 + $0x10] sm:$0xff]
      %v4858 = vld [vmem:[#allocation3 + $0x18] sm:$0xff]
      %v4859 = vld [vmem:[#allocation3 + $0x20] sm:$0xff]
      %v4860 = vld [vmem:[#allocation3 + $0x28] sm:$0xff]
      %v4861 = vld [vmem:[#allocation3 + $0x30] sm:$0xff]
      %v4862 = vld [vmem:[#allocation3 + $0x38] sm:$0xff]
      %v4863 = vld [vmem:[#allocation3 + $0x40] sm:$0xff]
      %v4864 = vld [vmem:[#allocation3 + $0x48] sm:$0xff]
      %v4865 = vld [vmem:[#allocation3 + $0x50] sm:$0xff]
      %v4866 = vld [vmem:[#allocation3 + $0x58] sm:$0xff]
      %v4867 = vld [vmem:[#allocation3 + $0x60] sm:$0xff]
      %v4868 = vld [vmem:[#allocation3 + $0x68] sm:$0xff]
      %v4869 = vld [vmem:[#allocation3 + $0x70] sm:$0xff]
      %v4870 = vld [vmem:[#allocation3 + $0x78] sm:$0xff]
      %v4871 = vld [vmem:[#allocation3 + $0x80] sm:$0xff]
      %v4872 = vld [vmem:[#allocation3 + $0x88] sm:$0xff]
      %v4873 = vld [vmem:[#allocation3 + $0x90] sm:$0xff]
      %v4874 = vld [vmem:[#allocation3 + $0x98] sm:$0xff]
      %v4875 = vld [vmem:[#allocation3 + $0xa0] sm:$0xff]
      %v4876 = vld [vmem:[#allocation3 + $0xa8] sm:$0xff]
      %v4877 = vld [vmem:[#allocation3 + $0xb0] sm:$0xff]
      %v4878 = vld [vmem:[#allocation3 + $0xb8] sm:$0xff]
      %v4879 = vld [vmem:[#allocation3 + $0xc0] sm:$0xff]
      %v4880 = vld [vmem:[#allocation3 + $0xc8] sm:$0xff]
      %v4881 = vld [vmem:[#allocation3 + $0xd0] sm:$0xff]
      %v4882 = vld [vmem:[#allocation3 + $0xd8] sm:$0xff]
      %v4883 = vld [vmem:[#allocation3 + $0xe0] sm:$0xff]
      %v4884 = vld [vmem:[#allocation3 + $0xe8] sm:$0xff]
      %v4885 = vld [vmem:[#allocation3 + $0xf0] sm:$0xff]
      %v4886 = vld [vmem:[#allocation3 + $0xf8] sm:$0xff]
      %v4887 = vld [vmem:[#allocation3 + $0x100] sm:$0xff]
      %v4888 = vld [vmem:[#allocation3 + $0x108] sm:$0xff]
      %v4889 = vld [vmem:[#allocation3 + $0x110] sm:$0xff]
      %v4890 = vld [vmem:[#allocation3 + $0x118] sm:$0xff]
      %v4891 = vld [vmem:[#allocation3 + $0x120] sm:$0xff]
      %v4892 = vld [vmem:[#allocation3 + $0x128] sm:$0xff]
      %v4893 = vld [vmem:[#allocation3 + $0x130] sm:$0xff]
      %v4894 = vld [vmem:[#allocation3 + $0x138] sm:$0xff]
      %v4895 = vld [vmem:[#allocation3 + $0x140] sm:$0xff]
      %v4896 = vld [vmem:[#allocation3 + $0x148] sm:$0xff]
      %v4897 = vld [vmem:[#allocation3 + $0x150] sm:$0xff]
      %v4898 = vld [vmem:[#allocation3 + $0x158] sm:$0xff]
      %v4899 = vld [vmem:[#allocation3 + $0x160] sm:$0xff]
      %v4900 = vld [vmem:[#allocation3 + $0x168] sm:$0xff]
      %v4901 = vld [vmem:[#allocation3 + $0x170] sm:$0xff]
      %v4902 = vld [vmem:[#allocation3 + $0x178] sm:$0xff]
      %v4903 = vld [vmem:[#allocation3 + $0x180] sm:$0xff]
      %v4904 = vld [vmem:[#allocation3 + $0x188] sm:$0xff]
      %v4905 = vld [vmem:[#allocation3 + $0x190] sm:$0xff]
      %v4906 = vld [vmem:[#allocation3 + $0x198] sm:$0xff]
      %v4907 = vld [vmem:[#allocation3 + $0x1a0] sm:$0xff]
      %v4908 = vld [vmem:[#allocation3 + $0x1a8] sm:$0xff]
      %v4909 = vld [vmem:[#allocation3 + $0x1b0] sm:$0xff]
      %v4910 = vld [vmem:[#allocation3 + $0x1b8] sm:$0xff]
      %v4911 = vld [vmem:[#allocation3 + $0x1c0] sm:$0xff]
      %v4912 = vld [vmem:[#allocation3 + $0x1c8] sm:$0xff]
      %v4913 = vld [vmem:[#allocation3 + $0x1d0] sm:$0xff]
      %v4914 = vld [vmem:[#allocation3 + $0x1d8] sm:$0xff]
      %v4915 = vld [vmem:[#allocation3 + $0x1e0] sm:$0xff]
      %v4916 = vld [vmem:[#allocation3 + $0x1e8] sm:$0xff]
      %v4917 = vld [vmem:[#allocation3 + $0x1f0] sm:$0xff]
      %v4918 = vld [vmem:[#allocation3 + $0x1f8] sm:$0xff]
      %v4919 = vld [vmem:[#allocation3 + $0x200] sm:$0xff]
      %v4920 = vld [vmem:[#allocation3 + $0x208] sm:$0xff]
      %v4921 = vld [vmem:[#allocation3 + $0x210] sm:$0xff]
      %v4922 = vld [vmem:[#allocation3 + $0x218] sm:$0xff]
      %v4923 = vld [vmem:[#allocation3 + $0x220] sm:$0xff]
      %v4924 = vld [vmem:[#allocation3 + $0x228] sm:$0xff]
      %v4925 = vld [vmem:[#allocation3 + $0x230] sm:$0xff]
      %v4926 = vld [vmem:[#allocation3 + $0x238] sm:$0xff]
      %v4927 = vld [vmem:[#allocation3 + $0x240] sm:$0xff]
      %v4928 = vld [vmem:[#allocation3 + $0x248] sm:$0xff]
      %v4929 = vld [vmem:[#allocation3 + $0x250] sm:$0xff]
      %v4930 = vld [vmem:[#allocation3 + $0x258] sm:$0xff]
      %v4931 = vld [vmem:[#allocation3 + $0x260] sm:$0xff]
      %v4932 = vld [vmem:[#allocation3 + $0x268] sm:$0xff]
      %v4933 = vld [vmem:[#allocation3 + $0x270] sm:$0xff]
      %v4934 = vld [vmem:[#allocation3 + $0x278] sm:$0xff]
      %v4935 = vld [vmem:[#allocation3 + $0x280] sm:$0xff]
      %v4936 = vld [vmem:[#allocation3 + $0x288] sm:$0xff]
      %v4937 = vld [vmem:[#allocation3 + $0x290] sm:$0xff]
      %v4938 = vld [vmem:[#allocation3 + $0x298] sm:$0xff]
      %v4939 = vld [vmem:[#allocation3 + $0x2a0] sm:$0xff]
      %v4940 = vld [vmem:[#allocation3 + $0x2a8] sm:$0xff]
      %v4941 = vld [vmem:[#allocation3 + $0x2b0] sm:$0xff]
      %v4942 = vld [vmem:[#allocation3 + $0x2b8] sm:$0xff]
      %v4943 = vld [vmem:[#allocation3 + $0x2c0] sm:$0xff]
      %v4944 = vld [vmem:[#allocation3 + $0x2c8] sm:$0xff]
      %v4948 = vunpack.c.l.b16 %v4852
      %v4949 = vunpack.c.h.b16 %v4852
      %v4950 = vunpack.c.l.b16 %v4853
      %v4951 = vunpack.c.h.b16 %v4853
      %v4952 = vunpack.c.l.b16 %v4854
      %v4953 = vunpack.c.h.b16 %v4854
      %v4954 = vpack.c.b16 %v4948, %v4948
      %v4955 = vpack.c.b16 %v4949, %v4949
      %v4956 = vpack.c.b16 %v4950, %v4950
      %v4957 = vpack.c.b16 %v4951, %v4951
      %v4958 = vpack.c.b16 %v4952, %v4952
      %v4959 = vpack.c.b16 %v4953, %v4953
      %v4966 = vsel %vm3135, %v4959, 0
      %4968 = vmatprep.subr.bf16.mxu0 %v4856
      %4969 = vmatpush1.bf16.msra.mxu0 %v4855
      %4970 = vmatprep.subr.bf16.mxu0 %v4858
      %4971 = vmatpush1.bf16.msra.mxu0 %v4857
      %4972 = vmatprep.subr.bf16.mxu0 %v4860
      %4973 = vmatpush1.bf16.msra.mxu0 %v4859
      %4974 = vmatprep.subr.bf16.mxu0 %v4862
      %4975 = vmatpush1.bf16.msra.mxu0 %v4861
      %4976 = vmatprep.subr.bf16.mxu0 %v4864
      %4977 = vmatpush1.bf16.msra.mxu0 %v4863
      %4978 = vmatprep.subr.bf16.mxu0 %v4866
      %4979 = vmatpush1.bf16.msra.mxu0 %v4865
      %4980 = vmatprep.subr.bf16.mxu0 %v4868
      %4981 = vmatpush1.bf16.msra.mxu0 %v4867
      %4982 = vmatprep.subr.bf16.mxu0 %v4870
      %4983 = vmatpush1.bf16.msra.mxu0 %v4869
      %4984 = vmatprep.subr.bf16.mxu0 %v4872
      %4985 = vmatpush1.bf16.msra.mxu0 %v4871
      %4986 = vmatprep.subr.bf16.mxu0 %v4874
      %4987 = vmatpush1.bf16.msra.mxu0 %v4873
      %4988 = vmatprep.subr.bf16.mxu0 %v4876
      %4989 = vmatpush1.bf16.msra.mxu0 %v4875
      %4990 = vmatprep.subr.bf16.mxu0 %v4878
      %4991 = vmatpush1.bf16.msra.mxu0 %v4877
      %4992 = vmatprep.subr.bf16.mxu0 %v4880
      %4993 = vmatpush1.bf16.msra.mxu0 %v4879
      %4994 = vmatprep.subr.bf16.mxu0 %v4882
      %4995 = vmatpush1.bf16.msra.mxu0 %v4881
      %4996 = vmatprep.subr.bf16.mxu0 %v4884
      %4997 = vmatpush1.bf16.msra.mxu0 %v4883
      %4998 = vmatprep.subr.bf16.mxu0 %v4886
      %4999 = vmatpush1.bf16.msra.mxu0 %v4885
      %5000 = vmatprep.mubr.bf16.mxu0 %v4955
      %5001 = vmatmul.mubr.bf16.gmra.mrb[0].mxu0 %v4954
      %v5002 = vpop.f32.mrb[0].mxu0
      %v5003 = vadd.f32 0.0, %v5002
      %v5004 = vpop.f32.mrb[0].mxu0
      %v5005 = vadd.f32 0.0, %v5004
      %v5006 = vpop.f32.mrb[0].mxu0
      %v5007 = vpop.f32.mrb[0].mxu0
      %5008 = vdwg.mxu0
      %5009 = vmatprep.subr.bf16.mxu0 %v4888
      %5010 = vmatpush1.bf16.msra.mxu0 %v4887
      %5011 = vmatprep.subr.bf16.mxu0 %v4890
      %5012 = vmatpush1.bf16.msra.mxu0 %v4889
      %5013 = vmatprep.subr.bf16.mxu0 %v4892
      %5014 = vmatpush1.bf16.msra.mxu0 %v4891
      %5015 = vmatprep.subr.bf16.mxu0 %v4894
      %5016 = vmatpush1.bf16.msra.mxu0 %v4893
      %5017 = vmatprep.subr.bf16.mxu0 %v4896
      %5018 = vmatpush1.bf16.msra.mxu0 %v4895
      %5019 = vmatprep.subr.bf16.mxu0 %v4898
      %5020 = vmatpush1.bf16.msra.mxu0 %v4897
      %5021 = vmatprep.subr.bf16.mxu0 %v4900
      %5022 = vmatpush1.bf16.msra.mxu0 %v4899
      %5023 = vmatprep.subr.bf16.mxu0 %v4902
      %5024 = vmatpush1.bf16.msra.mxu0 %v4901
      %5025 = vmatprep.subr.bf16.mxu0 %v4904
      %5026 = vmatpush1.bf16.msra.mxu0 %v4903
      %5027 = vmatprep.subr.bf16.mxu0 %v4906
      %5028 = vmatpush1.bf16.msra.mxu0 %v4905
      %5029 = vmatprep.subr.bf16.mxu0 %v4908
      %5030 = vmatpush1.bf16.msra.mxu0 %v4907
      %5031 = vmatprep.subr.bf16.mxu0 %v4910
      %5032 = vmatpush1.bf16.msra.mxu0 %v4909
      %5033 = vmatprep.subr.bf16.mxu0 %v4912
      %5034 = vmatpush1.bf16.msra.mxu0 %v4911
      %5035 = vmatprep.subr.bf16.mxu0 %v4914
      %5036 = vmatpush1.bf16.msra.mxu0 %v4913
      %5037 = vmatprep.subr.bf16.mxu0 %v4916
      %5038 = vmatpush1.bf16.msra.mxu0 %v4915
      %5039 = vmatprep.subr.bf16.mxu0 %v4918
      %5040 = vmatpush1.bf16.msra.mxu0 %v4917
      %5041 = vmatprep.mubr.bf16.mxu0 %v4957
      %5042 = vmatmul.mubr.bf16.gmra.mrb[0].mxu0 %v4956
      %v5043 = vpop.f32.mrb[0].mxu0
      %v5044 = vadd.f32 %v5003, %v5043
      %v5045 = vpop.f32.mrb[0].mxu0
      %v5046 = vadd.f32 %v5005, %v5045
      %v5047 = vpop.f32.mrb[0].mxu0
      %v5048 = vpop.f32.mrb[0].mxu0
      %5049 = vdwg.mxu0
      %5050 = vmatprep.subr.bf16.mxu0 %v4920
      %5051 = vmatpush1.bf16.msra.mxu0 %v4919
      %5052 = vmatprep.subr.bf16.mxu0 %v4922
      %5053 = vmatpush1.bf16.msra.mxu0 %v4921
      %5054 = vmatprep.subr.bf16.mxu0 %v4924
      %5055 = vmatpush1.bf16.msra.mxu0 %v4923
      %5056 = vmatprep.subr.bf16.mxu0 %v4926
      %5057 = vmatpush1.bf16.msra.mxu0 %v4925
      %5058 = vmatprep.subr.bf16.mxu0 %v4928
      %5059 = vmatpush1.bf16.msra.mxu0 %v4927
      %5060 = vmatprep.subr.bf16.mxu0 %v4930
      %5061 = vmatpush1.bf16.msra.mxu0 %v4929
      %5062 = vmatprep.subr.bf16.mxu0 %v4932
      %5063 = vmatpush1.bf16.msra.mxu0 %v4931
      %5064 = vmatprep.subr.bf16.mxu0 %v4934
      %5065 = vmatpush1.bf16.msra.mxu0 %v4933
      %5066 = vmatprep.subr.bf16.mxu0 %v4936
      %5067 = vmatpush1.bf16.msra.mxu0 %v4935
      %5068 = vmatprep.subr.bf16.mxu0 %v4938
      %5069 = vmatpush1.bf16.msra.mxu0 %v4937
      %5070 = vmatprep.subr.bf16.mxu0 %v4940
      %5071 = vmatpush1.bf16.msra.mxu0 %v4939
      %5072 = vmatprep.subr.bf16.mxu0 %v4942
      %5073 = vmatpush1.bf16.msra.mxu0 %v4941
      %5074 = vmatprep.subr.bf16.mxu0 %v4944
      %5075 = vmatpush1.bf16.msra.mxu0 %v4943
      %5076 = vmatprep.subr.bf16.mxu0 0
      %5077 = vmatpush1.bf16.msra.mxu0 0
      %5078 = vmatprep.subr.bf16.mxu0 0
      %5079 = vmatpush1.bf16.msra.mxu0 0
      %5080 = vmatprep.subr.bf16.mxu0 0
      %5081 = vmatpush1.bf16.msra.mxu0 0
      %5082 = vmatprep.mubr.bf16.mxu0 %v4966
      %5083 = vmatmul.mubr.bf16.gmra.mrb[0].mxu0 %v4958
      %v5084 = vpop.f32.mrb[0].mxu0
      %v5085 = vadd.f32 %v5044, %v5084
      %v5086 = vpop.f32.mrb[0].mxu0
      %v5087 = vadd.f32 %v5046, %v5086
      %v5088 = vpop.f32.mrb[0].mxu0
      %v5089 = vpop.f32.mrb[0].mxu0
      %5090 = vdwg.mxu0
      %v5091 = vld [vmem:[%s31] sm:$0xff]
      %5093 = vset.pattern.permute.xlu0 0
      %5094 = vperm.xlu0 %5093, %v5091
      %v5095 = vpop.permute.xlu0 %5094
      %v5097 = vmul.f32 %v5085, %v5095
      %v5098 = vmul.f32 %v5087, %v5095
      %5099 = vset.pattern.permute.xlu0 1
      %5100 = vperm.xlu0 %5099, %v5091
      %v5101 = vpop.permute.xlu0 %5100
      %v5103 = vadd.f32 %v5097, %v5101
      %v5104 = vadd.f32 %v5098, %v5101
      %v5105 = vxor.u32 %v5103, 2147483648
      %v5106 = vxor.u32 %v5104, 2147483648
      %v5107 = vmul.f32 %v5105, 1.442695
      %v5108 = vpow.pop %v5107
      %v5109 = vmul.f32 %v5106, 1.442695
      %v5110 = vpow.pop %v5109
      %v5111 = vadd.f32 %v5108, 1.0
      %v5112 = vadd.f32 %v5110, 1.0
      %v5113 = vrcp.pop %v5111
      %v5114 = vmul.f32 1.0, %v5113
      %v5115 = vrcp.pop %v5112
      %v5116 = vmul.f32 1.0, %v5115
      %v5117 = vmul.f32 %v5103, %v5114
      %v5118 = vmul.f32 %v5104, %v5116
      %v5119 = vadd.f32 %v5117, %v5118
      %5120 = vadd.xlane.f32.xlu0 %v5119
      %v5121 = vpop.xlane.xlu0 %5120
      %v5122 = vmul.f32 %v5121, %v3293
      %v5123 = vld [vmem:[%s33] sm:$0xff]
      %v5124 = vmul.f32 %v5123, %v5122
      %v5125 = vsel %vm3297, %v5124, 0.0
      %v5126 = vrot.slane %v5125, 4
      %v5127 = vadd.f32 %v5125, %v5126
      %v5128 = vrot.slane %v5127, 2
      %v5129 = vadd.f32 %v5127, %v5128
      %v5130 = vrot.slane %v5129, 1
      %v5131 = vadd.f32 %v5129, %v5130
      %v5132 = vld [vmem:[%s37] sm:$0x1]
      %v5133 = vadd.f32 %v5131, %v5132
      %v5134 = vmax.f32 %v5133, 0.0
      %v5135 = vld [vmem:[%s35] sm:$0xff]
      %v5136 = vlaneseq
      %v5137 = vshrl.u32 %v5136, 7
      %v5138 = vsub.s32 0, %v5137
      %v5139 = vrot.slane %v5134, %v5138
      %v5140 = vmul.f32 %v5135, %v5139
      %v5141 = vsel %vm3297, %v5140, 0.0
      %5142 = vadd.xlane.f32.xlu0 %v5141
      %v5143 = vpop.xlane.xlu0 %5142
      %v5144 = vld [vmem:[%s39] sm:$0xff]
      %v5145 = vadd.f32 %v5143, %v5144
      %v5146 = vxor.u32 %v5145, 2147483648
      %v5147 = vmul.f32 %v5146, 1.442695
      %v5148 = vpow.pop %v5147
      %v5149 = vadd.f32 %v5148, 1.0
      %v5150 = vrcp.pop %v5149
      %v5151 = vmul.f32 1.0, %v5150
      %5153 = vset.pattern.permute.xlu0 0
      %5154 = vperm.xlu0 %5153, %v5151
      %v5155 = vpop.permute.xlu0 %5154
      %v5157 = vmul.f32 %v5117, %v5155
      %v5158 = vmul.f32 %v5118, %v5155
      %v5159 = vld [vmem:[%s41] sm:$0xf]
      %v5160 = vld [vmem:[%s41 + $0x4] sm:$0xf]
      %v5161 = vld [vmem:[%s41 + $0x8] sm:$0xf]
      %v5162 = vld [vmem:[%s41 + $0xc] sm:$0xf]
      %v5163 = vpack.c.bf16 %v5157, %v5157
      %v5164 = vpack.c.bf16 %v5158, %v5158
      %v5169 = vunpack.c.l.b16 %v5159
      %v5170 = vunpack.c.l.b16 %v5160
      %v5171 = vunpack.c.l.b16 %v5161
      %v5172 = vunpack.c.l.b16 %v5162
      %v5173 = vpack.c.b16 %v5170, %v5169
      %v5174 = vpack.c.b16 %v5172, %v5171
      %v5176 = vsel %vm3297, %v5173, 0
      %v5179 = vsel %vm3297, %v5174, 0
      %v5182 = vsel %vm3354, %v5163, 0
      %v5185 = vsel %vm3354, %v5164, 0
      %5187 = vmatprep.subr.bf16.mxu0 %v5185
      %5188 = vmatpush1.bf16.msra.mxu0 %v5182
      %5189 = vmatprep.subr.bf16.mxu0 0
      %5190 = vmatpush1.bf16.msra.mxu0 0
      %5191 = vmatprep.subr.bf16.mxu0 0
      %5192 = vmatpush1.bf16.msra.mxu0 0
      %5193 = vmatprep.subr.bf16.mxu0 0
      %5194 = vmatpush1.bf16.msra.mxu0 0
      %5195 = vmatprep.subr.bf16.mxu0 0
      %5196 = vmatpush1.bf16.msra.mxu0 0
      %5197 = vmatprep.subr.bf16.mxu0 0
      %5198 = vmatpush1.bf16.msra.mxu0 0
      %5199 = vmatprep.subr.bf16.mxu0 0
      %5200 = vmatpush1.bf16.msra.mxu0 0
      %5201 = vmatprep.subr.bf16.mxu0 0
      %5202 = vmatpush1.bf16.msra.mxu0 0
      %5203 = vmatprep.subr.bf16.mxu0 0
      %5204 = vmatpush1.bf16.msra.mxu0 0
      %5205 = vmatprep.subr.bf16.mxu0 0
      %5206 = vmatpush1.bf16.msra.mxu0 0
      %5207 = vmatprep.subr.bf16.mxu0 0
      %5208 = vmatpush1.bf16.msra.mxu0 0
      %5209 = vmatprep.subr.bf16.mxu0 0
      %5210 = vmatpush1.bf16.msra.mxu0 0
      %5211 = vmatprep.subr.bf16.mxu0 0
      %5212 = vmatpush1.bf16.msra.mxu0 0
      %5213 = vmatprep.subr.bf16.mxu0 0
      %5214 = vmatpush1.bf16.msra.mxu0 0
      %5215 = vmatprep.subr.bf16.mxu0 0
      %5216 = vmatpush1.bf16.msra.mxu0 0
      %5217 = vmatprep.subr.bf16.mxu0 0
      %5218 = vmatpush1.bf16.msra.mxu0 0
      %5219 = vmatprep.mubr.bf16.mxu0 0
      %5220 = vmatmul.mubr.bf16.gmra.mrb[0].mxu0 %v5176
      %v5221 = vpop.f32.mrb[0].mxu0
      %v5222 = vadd.f32 0.0, %v5221
      %v5223 = vpop.f32.mrb[0].mxu0
      %v5224 = vadd.f32 0.0, %v5223
      %v5225 = vpop.f32.mrb[0].mxu0
      %v5226 = vadd.f32 0.0, %v5225
      %v5227 = vpop.f32.mrb[0].mxu0
      %v5228 = vadd.f32 0.0, %v5227
      %5229 = vmatprep.mubr.bf16.mxu0 0
      %5230 = vmatmul.mubr.bf16.gmra.mrb[0].mxu0 %v5179
      %v5231 = vpop.f32.mrb[0].mxu0
      %v5232 = vadd.f32 0.0, %v5231
      %v5233 = vpop.f32.mrb[0].mxu0
      %v5234 = vadd.f32 0.0, %v5233
      %v5235 = vpop.f32.mrb[0].mxu0
      %v5236 = vadd.f32 0.0, %v5235
      %v5237 = vpop.f32.mrb[0].mxu0
      %v5238 = vadd.f32 0.0, %v5237
      %5239 = vdwg.mxu0
      %v5240 = vld [vmem:[%s43] sm:$0xff]
      %v5241 = vld [vmem:[%s43 + $0x8] sm:$0xff]
      %v5242 = vld [vmem:[%s43 + $0x10] sm:$0xff]
      %v5243 = vld [vmem:[%s43 + $0x18] sm:$0xff]
      %5245 = vset.pattern.permute.xlu0 0
      %5246 = vperm.xlu0 %5245, %v5240
      %v5247 = vpop.permute.xlu0 %5246
      %5250 = vset.pattern.permute.xlu0 0
      %5251 = vperm.xlu0 %5250, %v5241
      %v5252 = vpop.permute.xlu0 %5251
      %5255 = vset.pattern.permute.xlu0 0
      %5256 = vperm.xlu0 %5255, %v5242
      %v5257 = vpop.permute.xlu0 %5256
      %5260 = vset.pattern.permute.xlu0 0
      %5261 = vperm.xlu0 %5260, %v5243
      %v5262 = vpop.permute.xlu0 %5261
      %v5264 = vmul.f32 %v5222, %v5247
      %v5265 = vmul.f32 %v5224, %v5247
      %v5266 = vmul.f32 %v5226, %v5252
      %v5267 = vmul.f32 %v5228, %v5252
      %v5268 = vmul.f32 %v5232, %v5257
      %v5269 = vmul.f32 %v5234, %v5257
      %v5270 = vmul.f32 %v5236, %v5262
      %v5271 = vmul.f32 %v5238, %v5262
      %5272 = vset.pattern.permute.xlu0 1
      %5273 = vperm.xlu0 %5272, %v5240
      %v5274 = vpop.permute.xlu0 %5273
      %5276 = vset.pattern.permute.xlu0 1
      %5277 = vperm.xlu0 %5276, %v5241
      %v5278 = vpop.permute.xlu0 %5277
      %5280 = vset.pattern.permute.xlu0 1
      %5281 = vperm.xlu0 %5280, %v5242
      %v5282 = vpop.permute.xlu0 %5281
      %5284 = vset.pattern.permute.xlu0 1
      %5285 = vperm.xlu0 %5284, %v5243
      %v5286 = vpop.permute.xlu0 %5285
      %v5288 = vadd.f32 %v5264, %v5274
      %v5289 = vadd.f32 %v5265, %v5274
      %v5290 = vadd.f32 %v5266, %v5278
      %v5291 = vadd.f32 %v5267, %v5278
      %v5292 = vadd.f32 %v5268, %v5282
      %v5293 = vadd.f32 %v5269, %v5282
      %v5294 = vadd.f32 %v5270, %v5286
      %v5295 = vadd.f32 %v5271, %v5286
      %v5296 = vadd.f32 %v5288, %v3689
      %v5297 = vadd.f32 %v5289, %v3690
      %v5298 = vadd.f32 %v5290, %v3691
      %v5299 = vadd.f32 %v5291, %v3692
      %v5300 = vadd.f32 %v5292, %v3693
      %v5301 = vadd.f32 %v5293, %v3694
      %v5302 = vadd.f32 %v5294, %v3695
      %v5303 = vadd.f32 %v5295, %v3696
      %v5304 = vxor.u32 %v5296, 2147483648
      %v5305 = vxor.u32 %v5297, 2147483648
      %v5306 = vxor.u32 %v5298, 2147483648
      %v5307 = vxor.u32 %v5299, 2147483648
      %v5308 = vxor.u32 %v5300, 2147483648
      %v5309 = vxor.u32 %v5301, 2147483648
      %v5310 = vxor.u32 %v5302, 2147483648
      %v5311 = vxor.u32 %v5303, 2147483648
      %v5312 = vmul.f32 %v5304, 1.442695
      %v5313 = vpow.pop %v5312
      %v5314 = vmul.f32 %v5305, 1.442695
      %v5315 = vpow.pop %v5314
      %v5316 = vmul.f32 %v5306, 1.442695
      %v5317 = vpow.pop %v5316
      %v5318 = vmul.f32 %v5307, 1.442695
      %v5319 = vpow.pop %v5318
      %v5320 = vmul.f32 %v5308, 1.442695
      %v5321 = vpow.pop %v5320
      %v5322 = vmul.f32 %v5309, 1.442695
      %v5323 = vpow.pop %v5322
      %v5324 = vmul.f32 %v5310, 1.442695
      %v5325 = vpow.pop %v5324
      %v5326 = vmul.f32 %v5311, 1.442695
      %v5327 = vpow.pop %v5326
      %v5328 = vadd.f32 %v5313, 1.0
      %v5329 = vadd.f32 %v5315, 1.0
      %v5330 = vadd.f32 %v5317, 1.0
      %v5331 = vadd.f32 %v5319, 1.0
      %v5332 = vadd.f32 %v5321, 1.0
      %v5333 = vadd.f32 %v5323, 1.0
      %v5334 = vadd.f32 %v5325, 1.0
      %v5335 = vadd.f32 %v5327, 1.0
      %v5336 = vrcp.pop %v5328
      %v5337 = vmul.f32 1.0, %v5336
      %v5338 = vrcp.pop %v5329
      %v5339 = vmul.f32 1.0, %v5338
      %v5340 = vrcp.pop %v5330
      %v5341 = vmul.f32 1.0, %v5340
      %v5342 = vrcp.pop %v5331
      %v5343 = vmul.f32 1.0, %v5342
      %v5344 = vrcp.pop %v5332
      %v5345 = vmul.f32 1.0, %v5344
      %v5346 = vrcp.pop %v5333
      %v5347 = vmul.f32 1.0, %v5346
      %v5348 = vrcp.pop %v5334
      %v5349 = vmul.f32 1.0, %v5348
      %v5350 = vrcp.pop %v5335
      %v5351 = vmul.f32 1.0, %v5350
      %v5352 = vmul.f32 %v5296, %v5337
      %v5353 = vmul.f32 %v5297, %v5339
      %v5354 = vmul.f32 %v5298, %v5341
      %v5355 = vmul.f32 %v5299, %v5343
      %v5356 = vmul.f32 %v5300, %v5345
      %v5357 = vmul.f32 %v5301, %v5347
      %v5358 = vmul.f32 %v5302, %v5349
      %v5359 = vmul.f32 %v5303, %v5351
      %v5360 = vld [vmem:[%s45] sm:$0xf]
      %v5361 = vld [vmem:[%s45 + $0x4] sm:$0xf]
      %v5362 = vld [vmem:[%s45 + $0x8] sm:$0xf]
      %v5363 = vld [vmem:[%s45 + $0xc] sm:$0xf]
      %v5364 = vld [vmem:[%s45 + $0x10] sm:$0xf]
      %v5365 = vpack.c.bf16 %v5354, %v5352
      %v5366 = vpack.c.bf16 %v5355, %v5353
      %v5367 = vpack.c.bf16 %v5358, %v5356
      %v5368 = vpack.c.bf16 %v5359, %v5357
      %v5374 = vunpack.c.l.b16 %v5360
      %v5375 = vunpack.c.l.b16 %v5361
      %v5376 = vunpack.c.l.b16 %v5362
      %v5377 = vunpack.c.l.b16 %v5363
      %v5378 = vunpack.c.l.b16 %v5364
      %v5379 = vpack.c.b16 %v5375, %v5374
      %v5380 = vpack.c.b16 %v5377, %v5376
      %v5381 = vpack.c.b16 %v5378, %v5378
      %v5383 = vsel %vm3556, %v5379, 0
      %v5386 = vsel %vm3556, %v5380, 0
      %v5389 = vsel %vm3556, %v5381, 0
      %5391 = vmatprep.subr.bf16.mxu0 %v5366
      %5392 = vmatpush1.bf16.msra.mxu0 %v5365
      %5393 = vmatprep.subr.bf16.mxu0 %v5368
      %5394 = vmatpush1.bf16.msra.mxu0 %v5367
      %5395 = vmatprep.subr.bf16.mxu0 0
      %5396 = vmatpush1.bf16.msra.mxu0 0
      %5397 = vmatprep.subr.bf16.mxu0 0
      %5398 = vmatpush1.bf16.msra.mxu0 0
      %5399 = vmatprep.subr.bf16.mxu0 0
      %5400 = vmatpush1.bf16.msra.mxu0 0
      %5401 = vmatprep.subr.bf16.mxu0 0
      %5402 = vmatpush1.bf16.msra.mxu0 0
      %5403 = vmatprep.subr.bf16.mxu0 0
      %5404 = vmatpush1.bf16.msra.mxu0 0
      %5405 = vmatprep.subr.bf16.mxu0 0
      %5406 = vmatpush1.bf16.msra.mxu0 0
      %5407 = vmatprep.subr.bf16.mxu0 0
      %5408 = vmatpush1.bf16.msra.mxu0 0
      %5409 = vmatprep.subr.bf16.mxu0 0
      %5410 = vmatpush1.bf16.msra.mxu0 0
      %5411 = vmatprep.subr.bf16.mxu0 0
      %5412 = vmatpush1.bf16.msra.mxu0 0
      %5413 = vmatprep.subr.bf16.mxu0 0
      %5414 = vmatpush1.bf16.msra.mxu0 0
      %5415 = vmatprep.subr.bf16.mxu0 0
      %5416 = vmatpush1.bf16.msra.mxu0 0
      %5417 = vmatprep.subr.bf16.mxu0 0
      %5418 = vmatpush1.bf16.msra.mxu0 0
      %5419 = vmatprep.subr.bf16.mxu0 0
      %5420 = vmatpush1.bf16.msra.mxu0 0
      %5421 = vmatprep.subr.bf16.mxu0 0
      %5422 = vmatpush1.bf16.msra.mxu0 0
      %5423 = vmatprep.mubr.bf16.mxu0 0
      %5424 = vmatmul.mubr.bf16.gmra.mrb[0].mxu0 %v5383
      %v5425 = vpop.f32.mrb[0].mxu0
      %v5426 = vadd.f32 0.0, %v5425
      %v5427 = vpop.f32.mrb[0].mxu0
      %v5428 = vadd.f32 0.0, %v5427
      %v5429 = vpop.f32.mrb[0].mxu0
      %v5430 = vadd.f32 0.0, %v5429
      %v5431 = vpop.f32.mrb[0].mxu0
      %v5432 = vadd.f32 0.0, %v5431
      %5433 = vmatprep.mubr.bf16.mxu0 0
      %5434 = vmatmul.mubr.bf16.gmra.mrb[0].mxu0 %v5386
      %v5435 = vpop.f32.mrb[0].mxu0
      %v5436 = vadd.f32 0.0, %v5435
      %v5437 = vpop.f32.mrb[0].mxu0
      %v5438 = vadd.f32 0.0, %v5437
      %v5439 = vpop.f32.mrb[0].mxu0
      %v5440 = vadd.f32 0.0, %v5439
      %v5441 = vpop.f32.mrb[0].mxu0
      %v5442 = vadd.f32 0.0, %v5441
      %5443 = vmatprep.mubr.bf16.mxu0 0
      %5444 = vmatmul.mubr.bf16.gmra.mrb[0].mxu0 %v5389
      %v5445 = vpop.f32.mrb[0].mxu0
      %v5446 = vadd.f32 0.0, %v5445
      %v5447 = vpop.f32.mrb[0].mxu0
      %v5448 = vadd.f32 0.0, %v5447
      %v5449 = vpop.f32.mrb[0].mxu0
      %v5450 = vpop.f32.mrb[0].mxu0
      %5451 = vdwg.mxu0
      %v5452 = vld [vmem:[%s47] sm:$0xff]
      %v5453 = vld [vmem:[%s47 + $0x8] sm:$0xff]
      %v5454 = vld [vmem:[%s47 + $0x10] sm:$0xff]
      %v5455 = vld [vmem:[%s47 + $0x18] sm:$0xff]
      %v5456 = vld [vmem:[%s47 + $0x20] sm:$0xff]
      %5458 = vset.pattern.permute.xlu0 0
      %5459 = vperm.xlu0 %5458, %v5452
      %v5460 = vpop.permute.xlu0 %5459
      %5463 = vset.pattern.permute.xlu0 0
      %5464 = vperm.xlu0 %5463, %v5453
      %v5465 = vpop.permute.xlu0 %5464
      %5468 = vset.pattern.permute.xlu0 0
      %5469 = vperm.xlu0 %5468, %v5454
      %v5470 = vpop.permute.xlu0 %5469
      %5473 = vset.pattern.permute.xlu0 0
      %5474 = vperm.xlu0 %5473, %v5455
      %v5475 = vpop.permute.xlu0 %5474
      %5478 = vset.pattern.permute.xlu0 0
      %5479 = vperm.xlu0 %5478, %v5456
      %v5480 = vpop.permute.xlu0 %5479
      %v5482 = vmul.f32 %v5426, %v5460
      %v5483 = vmul.f32 %v5428, %v5460
      %v5484 = vmul.f32 %v5430, %v5465
      %v5485 = vmul.f32 %v5432, %v5465
      %v5486 = vmul.f32 %v5436, %v5470
      %v5487 = vmul.f32 %v5438, %v5470
      %v5488 = vmul.f32 %v5440, %v5475
      %v5489 = vmul.f32 %v5442, %v5475
      %v5490 = vmul.f32 %v5446, %v5480
      %v5491 = vmul.f32 %v5448, %v5480
      %5492 = vset.pattern.permute.xlu0 1
      %5493 = vperm.xlu0 %5492, %v5452
      %v5494 = vpop.permute.xlu0 %5493
      %5496 = vset.pattern.permute.xlu0 1
      %5497 = vperm.xlu0 %5496, %v5453
      %v5498 = vpop.permute.xlu0 %5497
      %5500 = vset.pattern.permute.xlu0 1
      %5501 = vperm.xlu0 %5500, %v5454
      %v5502 = vpop.permute.xlu0 %5501
      %5504 = vset.pattern.permute.xlu0 1
      %5505 = vperm.xlu0 %5504, %v5455
      %v5506 = vpop.permute.xlu0 %5505
      %5508 = vset.pattern.permute.xlu0 1
      %5509 = vperm.xlu0 %5508, %v5456
      %v5510 = vpop.permute.xlu0 %5509
      %v5512 = vadd.f32 %v5482, %v5494
      %v5513 = vadd.f32 %v5483, %v5494
      %v5514 = vadd.f32 %v5484, %v5498
      %v5515 = vadd.f32 %v5485, %v5498
      %v5516 = vadd.f32 %v5486, %v5502
      %v5517 = vadd.f32 %v5487, %v5502
      %v5518 = vadd.f32 %v5488, %v5506
      %v5519 = vadd.f32 %v5489, %v5506
      %v5520 = vadd.f32 %v5490, %v5510
      %v5521 = vadd.f32 %v5491, %v5510
      %v5522 = vxor.u32 %v5512, 2147483648
      %v5523 = vxor.u32 %v5513, 2147483648
      %v5524 = vmul.f32 %v5522, 1.442695
      %v5525 = vpow.pop %v5524
      %v5526 = vmul.f32 %v5523, 1.442695
      %v5527 = vpow.pop %v5526
      %v5528 = vadd.f32 %v5525, 1.0
      %v5529 = vadd.f32 %v5527, 1.0
      %v5530 = vrcp.pop %v5528
      %v5531 = vmul.f32 1.0, %v5530
      %v5532 = vrcp.pop %v5529
      %v5533 = vmul.f32 1.0, %v5532
      %v5534 = vmul.f32 %v5512, %v5531
      %v5535 = vmul.f32 %v5513, %v5533
      %5536 = vst [vmem:[#allocation2] sm:$0xff] 0.0
      %5537 = vst [vmem:[#allocation2 + $0x8] sm:$0xff] 0.0
      %5538 = vst [vmem:[#allocation2 + $0x30] sm:$0xff] 0.0
      %5539 = vst [vmem:[#allocation2 + $0x38] sm:$0xff] 0.0
      %5540 = vst [vmem:[#allocation2 + $0x60] sm:$0xff] 0.0
      %5541 = vst [vmem:[#allocation2 + $0x68] sm:$0xff] 0.0
      %5542 = vst [vmem:[#allocation2 + $0x90] sm:$0xff] 0.0
      %5543 = vst [vmem:[#allocation2 + $0x98] sm:$0xff] 0.0
      %5544 = vst [vmem:[#allocation2 + $0xc0] sm:$0xff] 0.0
      %5545 = vst [vmem:[#allocation2 + $0xc8] sm:$0xff] 0.0
      %5546 = vst [vmem:[#allocation2 + $0xf0] sm:$0xff] 0.0
      %5547 = vst [vmem:[#allocation2 + $0xf8] sm:$0xff] 0.0
      %5548 = vst [vmem:[#allocation2 + $0x120] sm:$0xff] 0.0
      %5549 = vst [vmem:[#allocation2 + $0x128] sm:$0xff] 0.0
      %5550 = vst [vmem:[#allocation2 + $0x150] sm:$0xff] 0.0
      %5551 = vst [vmem:[#allocation2 + $0x158] sm:$0xff] 0.0
      %5552 = vst [vmem:[#allocation2 + $0x180] sm:$0xff] 0.0
      %5553 = vst [vmem:[#allocation2 + $0x188] sm:$0xff] 0.0
      %5554 = vst [vmem:[#allocation2 + $0x20] sm:$0xff] 0.0
      %5555 = vst.msk [vmem:[#allocation2 + $0x28] sm:$0xff] %vm1716, 0.0
      %5556 = vst [vmem:[#allocation2 + $0x50] sm:$0xff] 0.0
      %5557 = vst.msk [vmem:[#allocation2 + $0x58] sm:$0xff] %vm1716, 0.0
      %5558 = vst [vmem:[#allocation2 + $0x80] sm:$0xff] 0.0
      %5559 = vst.msk [vmem:[#allocation2 + $0x88] sm:$0xff] %vm1716, 0.0
      %5560 = vst [vmem:[#allocation2 + $0xb0] sm:$0xff] 0.0
      %5561 = vst.msk [vmem:[#allocation2 + $0xb8] sm:$0xff] %vm1716, 0.0
      %5562 = vst [vmem:[#allocation2 + $0xe0] sm:$0xff] 0.0
      %5563 = vst.msk [vmem:[#allocation2 + $0xe8] sm:$0xff] %vm1716, 0.0
      %5564 = vst [vmem:[#allocation2 + $0x110] sm:$0xff] 0.0
      %5565 = vst.msk [vmem:[#allocation2 + $0x118] sm:$0xff] %vm1716, 0.0
      %5566 = vst [vmem:[#allocation2 + $0x140] sm:$0xff] 0.0
      %5567 = vst.msk [vmem:[#allocation2 + $0x148] sm:$0xff] %vm1716, 0.0
      %5568 = vst [vmem:[#allocation2 + $0x170] sm:$0xff] 0.0
      %5569 = vst.msk [vmem:[#allocation2 + $0x178] sm:$0xff] %vm1716, 0.0
      %5570 = vst [vmem:[#allocation2 + $0x1a0] sm:$0xff] 0.0
      %5571 = vst.msk [vmem:[#allocation2 + $0x1a8] sm:$0xff] %vm1716, 0.0
      %5572 = vst [vmem:[#allocation2 + $0x160] sm:$0xff] 0.0
      %5573 = vst [vmem:[#allocation2 + $0x168] sm:$0xff] 0.0
      %5574 = vst [vmem:[#allocation2 + $0x190] sm:$0xff] %v5534
      %5575 = vst [vmem:[#allocation2 + $0x198] sm:$0xff] %v5535
      %v5576 = vld [vmem:[#allocation2 + $0x188] sm:$0xff]
      %v5577 = vld [vmem:[#allocation2 + $0x190] sm:$0xff]
      %v5578 = vld [vmem:[#allocation2 + $0x198] sm:$0xff]
      %s5579 = scalar_lea.vmem %s3, 192
      %v5580 = vld [vmem:[%s5579] sm:$0xff]
      %v5581 = vld [vmem:[%s5579 + $0x8] sm:$0xff]
      %5584 = vrot.lane.b32.xlu0 %v5580, 116
      %v5585 = vpop.permute.xlu0 %5584
      %5586 = vrot.lane.b32.xlu0 %v5581, 116
      %v5587 = vpop.permute.xlu0 %5586
      %vm5588 = vcmask 949248
      %v5589 = vsel %vm5588, %v5585, %v5587
      %v5593 = vmul.f32 %v5576, %v5585
      %v5594 = vmul.f32 %v5577, %v5589
      %v5595 = vmul.f32 %v5578, %v5587
      %5599 = vrot.lane.b32.xlu0 %v5593, 12
      %v5600 = vpop.permute.xlu0 %5599
      %5601 = vrot.lane.b32.xlu0 %v5594, 12
      %v5602 = vpop.permute.xlu0 %5601
      %5603 = vrot.lane.b32.xlu0 %v5595, 12
      %v5604 = vpop.permute.xlu0 %5603
      %vm5605 = vcmask 97280
      %v5606 = vsel %vm5605, %v5600, %v5602
      %v5607 = vsel %vm5605, %v5602, %v5604
      %5610 = vst [vmem:[#allocation2 + $0x10] sm:$0xff] %v5606
      %5611 = vst [vmem:[#allocation2 + $0x18] sm:$0xff] %v5607
      %v5612 = vld [vmem:[#allocation2 + $0x188] sm:$0xff]
      %v5613 = vld [vmem:[#allocation2 + $0x190] sm:$0xff]
      %v5614 = vld [vmem:[#allocation2 + $0x198] sm:$0xff]
      %v5615 = vld [vmem:[%s3740] sm:$0xff]
      %v5616 = vld [vmem:[%s3740 + $0x8] sm:$0xff]
      %5619 = vrot.lane.b32.xlu0 %v5615, 120
      %v5620 = vpop.permute.xlu0 %5619
      %5621 = vrot.lane.b32.xlu0 %v5616, 120
      %v5622 = vpop.permute.xlu0 %5621
      %v5623 = vsel %vm3749, %v5620, %v5622
      %v5627 = vmul.f32 %v5612, %v5620
      %v5628 = vmul.f32 %v5613, %v5623
      %v5629 = vmul.f32 %v5614, %v5622
      %5633 = vrot.lane.b32.xlu0 %v5627, 8
      %v5634 = vpop.permute.xlu0 %5633
      %5635 = vrot.lane.b32.xlu0 %v5628, 8
      %v5636 = vpop.permute.xlu0 %5635
      %5637 = vrot.lane.b32.xlu0 %v5629, 8
      %v5638 = vpop.permute.xlu0 %5637
      %v5639 = vsel %vm3297, %v5634, %v5636
      %v5640 = vsel %vm3297, %v5636, %v5638
      %5643 = vst [vmem:[#allocation2 + $0x40] sm:$0xff] %v5639
      %5644 = vst [vmem:[#allocation2 + $0x48] sm:$0xff] %v5640
      %v5645 = vld [vmem:[#allocation2 + $0x188] sm:$0xff]
      %v5646 = vld [vmem:[#allocation2 + $0x190] sm:$0xff]
      %v5647 = vld [vmem:[#allocation2 + $0x198] sm:$0xff]
      %v5648 = vld [vmem:[%s3] sm:$0xff]
      %v5649 = vld [vmem:[%s3 + $0x8] sm:$0xff]
      %5652 = vrot.lane.b32.xlu0 %v5648, 124
      %v5653 = vpop.permute.xlu0 %5652
      %5654 = vrot.lane.b32.xlu0 %v5649, 124
      %v5655 = vpop.permute.xlu0 %5654
      %v5656 = vsel %vm1743, %v5653, %v5655
      %v5660 = vmul.f32 %v5645, %v5653
      %v5661 = vmul.f32 %v5646, %v5656
      %v5662 = vmul.f32 %v5647, %v5655
      %5666 = vrot.lane.b32.xlu0 %v5660, 4
      %v5667 = vpop.permute.xlu0 %5666
      %5668 = vrot.lane.b32.xlu0 %v5661, 4
      %v5669 = vpop.permute.xlu0 %5668
      %5670 = vrot.lane.b32.xlu0 %v5662, 4
      %v5671 = vpop.permute.xlu0 %5670
      %v5672 = vsel %vm1760, %v5667, %v5669
      %v5673 = vsel %vm1760, %v5669, %v5671
      %5676 = vst [vmem:[#allocation2 + $0x70] sm:$0xff] %v5672
      %5677 = vst [vmem:[#allocation2 + $0x78] sm:$0xff] %v5673
      %v5678 = vld [vmem:[#allocation2 + $0x190] sm:$0xff]
      %v5679 = vld [vmem:[#allocation2 + $0x198] sm:$0xff]
      %5680 = vst [vmem:[#allocation2 + $0xa0] sm:$0xff] %v5678
      %5681 = vst [vmem:[#allocation2 + $0xa8] sm:$0xff] %v5679
      %v5682 = vld [vmem:[#allocation2 + $0x190] sm:$0xff]
      %v5683 = vld [vmem:[#allocation2 + $0x198] sm:$0xff]
      %v5684 = vld [vmem:[#allocation2 + $0x1a0] sm:$0xff]
      %v5685 = vld [vmem:[%s1984] sm:$0xff]
      %v5686 = vld [vmem:[%s1984 + $0x8] sm:$0xff]
      %5689 = vrot.lane.b32.xlu0 %v5685, 4
      %v5690 = vpop.permute.xlu0 %5689
      %5691 = vrot.lane.b32.xlu0 %v5686, 4
      %v5692 = vpop.permute.xlu0 %5691
      %v5693 = vsel %vm1760, %v5690, %v5692
      %v5697 = vmul.f32 %v5682, %v5690
      %v5698 = vmul.f32 %v5683, %v5693
      %v5699 = vmul.f32 %v5684, %v5692
      %5703 = vrot.lane.b32.xlu0 %v5697, 124
      %v5704 = vpop.permute.xlu0 %5703
      %5705 = vrot.lane.b32.xlu0 %v5698, 124
      %v5706 = vpop.permute.xlu0 %5705
      %5707 = vrot.lane.b32.xlu0 %v5699, 124
      %v5708 = vpop.permute.xlu0 %5707
      %v5709 = vsel %vm1743, %v5704, %v5706
      %v5710 = vsel %vm1743, %v5706, %v5708
      %5713 = vst [vmem:[#allocation2 + $0xd0] sm:$0xff] %v5709
      %5714 = vst [vmem:[#allocation2 + $0xd8] sm:$0xff] %v5710
      %v5715 = vld [vmem:[#allocation2 + $0x190] sm:$0xff]
      %v5716 = vld [vmem:[#allocation2 + $0x198] sm:$0xff]
      %v5717 = vld [vmem:[#allocation2 + $0x1a0] sm:$0xff]
      %v5718 = vld [vmem:[%s3981] sm:$0xff]
      %v5719 = vld [vmem:[%s3981 + $0x8] sm:$0xff]
      %5722 = vrot.lane.b32.xlu0 %v5718, 8
      %v5723 = vpop.permute.xlu0 %5722
      %5724 = vrot.lane.b32.xlu0 %v5719, 8
      %v5725 = vpop.permute.xlu0 %5724
      %v5726 = vsel %vm3297, %v5723, %v5725
      %v5730 = vmul.f32 %v5715, %v5723
      %v5731 = vmul.f32 %v5716, %v5726
      %v5732 = vmul.f32 %v5717, %v5725
      %5736 = vrot.lane.b32.xlu0 %v5730, 120
      %v5737 = vpop.permute.xlu0 %5736
      %5738 = vrot.lane.b32.xlu0 %v5731, 120
      %v5739 = vpop.permute.xlu0 %5738
      %5740 = vrot.lane.b32.xlu0 %v5732, 120
      %v5741 = vpop.permute.xlu0 %5740
      %v5742 = vsel %vm3749, %v5737, %v5739
      %v5743 = vsel %vm3749, %v5739, %v5741
      %5746 = vst [vmem:[#allocation2 + $0x100] sm:$0xff] %v5742
      %5747 = vst [vmem:[#allocation2 + $0x108] sm:$0xff] %v5743
      %v5748 = vld [vmem:[#allocation2 + $0x190] sm:$0xff]
      %v5749 = vld [vmem:[#allocation2 + $0x198] sm:$0xff]
      %v5750 = vld [vmem:[#allocation2 + $0x1a0] sm:$0xff]
      %s5751 = scalar_lea.vmem %s3, 208
      %v5752 = vld [vmem:[%s5751] sm:$0xff]
      %v5753 = vld [vmem:[%s5751 + $0x8] sm:$0xff]
      %5756 = vrot.lane.b32.xlu0 %v5752, 12
      %v5757 = vpop.permute.xlu0 %5756
      %5758 = vrot.lane.b32.xlu0 %v5753, 12
      %v5759 = vpop.permute.xlu0 %5758
      %v5760 = vsel %vm5605, %v5757, %v5759
      %v5764 = vmul.f32 %v5748, %v5757
      %v5765 = vmul.f32 %v5749, %v5760
      %v5766 = vmul.f32 %v5750, %v5759
      %5770 = vrot.lane.b32.xlu0 %v5764, 116
      %v5771 = vpop.permute.xlu0 %5770
      %5772 = vrot.lane.b32.xlu0 %v5765, 116
      %v5773 = vpop.permute.xlu0 %5772
      %5774 = vrot.lane.b32.xlu0 %v5766, 116
      %v5775 = vpop.permute.xlu0 %5774
      %v5776 = vsel %vm5588, %v5771, %v5773
      %v5777 = vsel %vm5588, %v5773, %v5775
      %5780 = vst [vmem:[#allocation2 + $0x130] sm:$0xff] %v5776
      %5781 = vst [vmem:[#allocation2 + $0x138] sm:$0xff] %v5777
      %v5782 = vld [vmem:[#allocation2] sm:$0xff]
      %v5783 = vld [vmem:[#allocation2 + $0x8] sm:$0xff]
      %v5784 = vld [vmem:[#allocation2 + $0x10] sm:$0xff]
      %v5785 = vld [vmem:[#allocation2 + $0x30] sm:$0xff]
      %v5786 = vld [vmem:[#allocation2 + $0x38] sm:$0xff]
      %v5787 = vld [vmem:[#allocation2 + $0x40] sm:$0xff]
      %v5788 = vld [vmem:[#allocation2 + $0x60] sm:$0xff]
      %v5789 = vld [vmem:[#allocation2 + $0x68] sm:$0xff]
      %v5790 = vld [vmem:[#allocation2 + $0x70] sm:$0xff]
      %v5791 = vld [vmem:[#allocation2 + $0x90] sm:$0xff]
      %v5792 = vld [vmem:[#allocation2 + $0x98] sm:$0xff]
      %v5793 = vld [vmem:[#allocation2 + $0xa0] sm:$0xff]
      %v5794 = vld [vmem:[#allocation2 + $0xc0] sm:$0xff]
      %v5795 = vld [vmem:[#allocation2 + $0xc8] sm:$0xff]
      %v5796 = vld [vmem:[#allocation2 + $0xd0] sm:$0xff]
      %v5797 = vld [vmem:[#allocation2 + $0xf0] sm:$0xff]
      %v5798 = vld [vmem:[#allocation2 + $0xf8] sm:$0xff]
      %v5799 = vld [vmem:[#allocation2 + $0x100] sm:$0xff]
      %v5800 = vld [vmem:[#allocation2 + $0x120] sm:$0xff]
      %v5801 = vld [vmem:[#allocation2 + $0x128] sm:$0xff]
      %v5802 = vld [vmem:[#allocation2 + $0x130] sm:$0xff]
      %v5803 = vld [vmem:[#allocation2 + $0x150] sm:$0xff]
      %v5804 = vld [vmem:[#allocation2 + $0x158] sm:$0xff]
      %v5805 = vld [vmem:[#allocation2 + $0x160] sm:$0xff]
      %v5806 = vpack.c.bf16 %v5785, %v5782
      %v5807 = vpack.c.bf16 %v5786, %v5783
      %v5808 = vpack.c.bf16 %v5787, %v5784
      %v5809 = vpack.c.bf16 %v5791, %v5788
      %v5810 = vpack.c.bf16 %v5792, %v5789
      %v5811 = vpack.c.bf16 %v5793, %v5790
      %v5812 = vpack.c.bf16 %v5797, %v5794
      %v5813 = vpack.c.bf16 %v5798, %v5795
      %v5814 = vpack.c.bf16 %v5799, %v5796
      %v5815 = vpack.c.bf16 %v5803, %v5800
      %v5816 = vpack.c.bf16 %v5804, %v5801
      %v5817 = vpack.c.bf16 %v5805, %v5802
      %5830 = vrot.lane.b32.xlu0 %v5806, 64
      %v5831 = vpop.permute.xlu0 %5830
      %5832 = vrot.lane.b32.xlu0 %v5807, 64
      %v5833 = vpop.permute.xlu0 %5832
      %5834 = vrot.lane.b32.xlu0 %v5808, 64
      %v5835 = vpop.permute.xlu0 %5834
      %5836 = vrot.lane.b32.xlu0 %v5809, 64
      %v5837 = vpop.permute.xlu0 %5836
      %5838 = vrot.lane.b32.xlu0 %v5810, 64
      %v5839 = vpop.permute.xlu0 %5838
      %5840 = vrot.lane.b32.xlu0 %v5811, 64
      %v5841 = vpop.permute.xlu0 %5840
      %5842 = vrot.lane.b32.xlu0 %v5812, 64
      %v5843 = vpop.permute.xlu0 %5842
      %5844 = vrot.lane.b32.xlu0 %v5813, 64
      %v5845 = vpop.permute.xlu0 %5844
      %5846 = vrot.lane.b32.xlu0 %v5814, 64
      %v5847 = vpop.permute.xlu0 %5846
      %5848 = vrot.lane.b32.xlu0 %v5815, 64
      %v5849 = vpop.permute.xlu0 %5848
      %5850 = vrot.lane.b32.xlu0 %v5816, 64
      %v5851 = vpop.permute.xlu0 %5850
      %5852 = vrot.lane.b32.xlu0 %v5817, 64
      %v5853 = vpop.permute.xlu0 %5852
      %v5854 = vsel %vm2105, %v5831, %v5833
      %v5855 = vsel %vm2105, %v5833, %v5835
      %v5856 = vsel %vm2105, %v5837, %v5839
      %v5857 = vsel %vm2105, %v5839, %v5841
      %v5858 = vsel %vm2105, %v5843, %v5845
      %v5859 = vsel %vm2105, %v5845, %v5847
      %v5860 = vsel %vm2105, %v5849, %v5851
      %v5861 = vsel %vm2105, %v5851, %v5853
      %5870 = vst [vmem:[#allocation3] sm:$0xff] %v5854
      %5871 = vst [vmem:[#allocation3 + $0x8] sm:$0xff] %v5855
      %5872 = vst [vmem:[#allocation3 + $0x10] sm:$0xff] %v5856
      %5873 = vst [vmem:[#allocation3 + $0x18] sm:$0xff] %v5857
      %5874 = vst [vmem:[#allocation3 + $0x20] sm:$0xff] %v5858
      %5875 = vst [vmem:[#allocation3 + $0x28] sm:$0xff] %v5859
      %5876 = vst [vmem:[#allocation3 + $0x30] sm:$0xff] %v5860
      %5877 = vst [vmem:[#allocation3 + $0x38] sm:$0xff] %v5861
      %v5878 = vld [vmem:[#allocation2 + $0x8] sm:$0xff]
      %v5879 = vld [vmem:[#allocation2 + $0x10] sm:$0xff]
      %v5880 = vld [vmem:[#allocation2 + $0x38] sm:$0xff]
      %v5881 = vld [vmem:[#allocation2 + $0x40] sm:$0xff]
      %v5882 = vld [vmem:[#allocation2 + $0x68] sm:$0xff]
      %v5883 = vld [vmem:[#allocation2 + $0x70] sm:$0xff]
      %v5884 = vld [vmem:[#allocation2 + $0x98] sm:$0xff]
      %v5885 = vld [vmem:[#allocation2 + $0xa0] sm:$0xff]
      %v5886 = vld [vmem:[#allocation2 + $0xc8] sm:$0xff]
      %v5887 = vld [vmem:[#allocation2 + $0xd0] sm:$0xff]
      %v5888 = vld [vmem:[#allocation2 + $0xf8] sm:$0xff]
      %v5889 = vld [vmem:[#allocation2 + $0x100] sm:$0xff]
      %v5890 = vld [vmem:[#allocation2 + $0x128] sm:$0xff]
      %v5891 = vld [vmem:[#allocation2 + $0x130] sm:$0xff]
      %v5892 = vld [vmem:[#allocation2 + $0x158] sm:$0xff]
      %v5893 = vld [vmem:[#allocation2 + $0x160] sm:$0xff]
      %v5894 = vpack.c.bf16 %v5880, %v5878
      %v5895 = vpack.c.bf16 %v5881, %v5879
      %v5896 = vpack.c.bf16 %v5884, %v5882
      %v5897 = vpack.c.bf16 %v5885, %v5883
      %v5898 = vpack.c.bf16 %v5888, %v5886
      %v5899 = vpack.c.bf16 %v5889, %v5887
      %v5900 = vpack.c.bf16 %v5892, %v5890
      %v5901 = vpack.c.bf16 %v5893, %v5891
      %5902 = vst [vmem:[#allocation3 + $0x40] sm:$0xff] %v5894
      %5903 = vst [vmem:[#allocation3 + $0x48] sm:$0xff] %v5895
      %5904 = vst [vmem:[#allocation3 + $0x50] sm:$0xff] %v5896
      %5905 = vst [vmem:[#allocation3 + $0x58] sm:$0xff] %v5897
      %5906 = vst [vmem:[#allocation3 + $0x60] sm:$0xff] %v5898
      %5907 = vst [vmem:[#allocation3 + $0x68] sm:$0xff] %v5899
      %5908 = vst [vmem:[#allocation3 + $0x70] sm:$0xff] %v5900
      %5909 = vst [vmem:[#allocation3 + $0x78] sm:$0xff] %v5901
      %v5910 = vld [vmem:[#allocation2 + $0x8] sm:$0xff]
      %v5911 = vld [vmem:[#allocation2 + $0x10] sm:$0xff]
      %v5912 = vld [vmem:[#allocation2 + $0x18] sm:$0xff]
      %v5913 = vld [vmem:[#allocation2 + $0x38] sm:$0xff]
      %v5914 = vld [vmem:[#allocation2 + $0x40] sm:$0xff]
      %v5915 = vld [vmem:[#allocation2 + $0x48] sm:$0xff]
      %v5916 = vld [vmem:[#allocation2 + $0x68] sm:$0xff]
      %v5917 = vld [vmem:[#allocation2 + $0x70] sm:$0xff]
      %v5918 = vld [vmem:[#allocation2 + $0x78] sm:$0xff]
      %v5919 = vld [vmem:[#allocation2 + $0x98] sm:$0xff]
      %v5920 = vld [vmem:[#allocation2 + $0xa0] sm:$0xff]
      %v5921 = vld [vmem:[#allocation2 + $0xa8] sm:$0xff]
      %v5922 = vld [vmem:[#allocation2 + $0xc8] sm:$0xff]
      %v5923 = vld [vmem:[#allocation2 + $0xd0] sm:$0xff]
      %v5924 = vld [vmem:[#allocation2 + $0xd8] sm:$0xff]
      %v5925 = vld [vmem:[#allocation2 + $0xf8] sm:$0xff]
      %v5926 = vld [vmem:[#allocation2 + $0x100] sm:$0xff]
      %v5927 = vld [vmem:[#allocation2 + $0x108] sm:$0xff]
      %v5928 = vld [vmem:[#allocation2 + $0x128] sm:$0xff]
      %v5929 = vld [vmem:[#allocation2 + $0x130] sm:$0xff]
      %v5930 = vld [vmem:[#allocation2 + $0x138] sm:$0xff]
      %v5931 = vld [vmem:[#allocation2 + $0x158] sm:$0xff]
      %v5932 = vld [vmem:[#allocation2 + $0x160] sm:$0xff]
      %v5933 = vld [vmem:[#allocation2 + $0x168] sm:$0xff]
      %v5934 = vpack.c.bf16 %v5913, %v5910
      %v5935 = vpack.c.bf16 %v5914, %v5911
      %v5936 = vpack.c.bf16 %v5915, %v5912
      %v5937 = vpack.c.bf16 %v5919, %v5916
      %v5938 = vpack.c.bf16 %v5920, %v5917
      %v5939 = vpack.c.bf16 %v5921, %v5918
      %v5940 = vpack.c.bf16 %v5925, %v5922
      %v5941 = vpack.c.bf16 %v5926, %v5923
      %v5942 = vpack.c.bf16 %v5927, %v5924
      %v5943 = vpack.c.bf16 %v5931, %v5928
      %v5944 = vpack.c.bf16 %v5932, %v5929
      %v5945 = vpack.c.bf16 %v5933, %v5930
      %5958 = vrot.lane.b32.xlu0 %v5934, 64
      %v5959 = vpop.permute.xlu0 %5958
      %5960 = vrot.lane.b32.xlu0 %v5935, 64
      %v5961 = vpop.permute.xlu0 %5960
      %5962 = vrot.lane.b32.xlu0 %v5936, 64
      %v5963 = vpop.permute.xlu0 %5962
      %5964 = vrot.lane.b32.xlu0 %v5937, 64
      %v5965 = vpop.permute.xlu0 %5964
      %5966 = vrot.lane.b32.xlu0 %v5938, 64
      %v5967 = vpop.permute.xlu0 %5966
      %5968 = vrot.lane.b32.xlu0 %v5939, 64
      %v5969 = vpop.permute.xlu0 %5968
      %5970 = vrot.lane.b32.xlu0 %v5940, 64
      %v5971 = vpop.permute.xlu0 %5970
      %5972 = vrot.lane.b32.xlu0 %v5941, 64
      %v5973 = vpop.permute.xlu0 %5972
      %5974 = vrot.lane.b32.xlu0 %v5942, 64
      %v5975 = vpop.permute.xlu0 %5974
      %5976 = vrot.lane.b32.xlu0 %v5943, 64
      %v5977 = vpop.permute.xlu0 %5976
      %5978 = vrot.lane.b32.xlu0 %v5944, 64
      %v5979 = vpop.permute.xlu0 %5978
      %5980 = vrot.lane.b32.xlu0 %v5945, 64
      %v5981 = vpop.permute.xlu0 %5980
      %v5982 = vsel %vm2105, %v5959, %v5961
      %v5983 = vsel %vm2105, %v5961, %v5963
      %v5984 = vsel %vm2105, %v5965, %v5967
      %v5985 = vsel %vm2105, %v5967, %v5969
      %v5986 = vsel %vm2105, %v5971, %v5973
      %v5987 = vsel %vm2105, %v5973, %v5975
      %v5988 = vsel %vm2105, %v5977, %v5979
      %v5989 = vsel %vm2105, %v5979, %v5981
      %5998 = vst [vmem:[#allocation3 + $0x80] sm:$0xff] %v5982
      %5999 = vst [vmem:[#allocation3 + $0x88] sm:$0xff] %v5983
      %6000 = vst [vmem:[#allocation3 + $0x90] sm:$0xff] %v5984
      %6001 = vst [vmem:[#allocation3 + $0x98] sm:$0xff] %v5985
      %6002 = vst [vmem:[#allocation3 + $0xa0] sm:$0xff] %v5986
      %6003 = vst [vmem:[#allocation3 + $0xa8] sm:$0xff] %v5987
      %6004 = vst [vmem:[#allocation3 + $0xb0] sm:$0xff] %v5988
      %6005 = vst [vmem:[#allocation3 + $0xb8] sm:$0xff] %v5989
      %v6006 = vld [vmem:[#allocation2 + $0x10] sm:$0xff]
      %v6007 = vld [vmem:[#allocation2 + $0x18] sm:$0xff]
      %v6008 = vld [vmem:[#allocation2 + $0x40] sm:$0xff]
      %v6009 = vld [vmem:[#allocation2 + $0x48] sm:$0xff]
      %v6010 = vld [vmem:[#allocation2 + $0x70] sm:$0xff]
      %v6011 = vld [vmem:[#allocation2 + $0x78] sm:$0xff]
      %v6012 = vld [vmem:[#allocation2 + $0xa0] sm:$0xff]
      %v6013 = vld [vmem:[#allocation2 + $0xa8] sm:$0xff]
      %v6014 = vld [vmem:[#allocation2 + $0xd0] sm:$0xff]
      %v6015 = vld [vmem:[#allocation2 + $0xd8] sm:$0xff]
      %v6016 = vld [vmem:[#allocation2 + $0x100] sm:$0xff]
      %v6017 = vld [vmem:[#allocation2 + $0x108] sm:$0xff]
      %v6018 = vld [vmem:[#allocation2 + $0x130] sm:$0xff]
      %v6019 = vld [vmem:[#allocation2 + $0x138] sm:$0xff]
      %v6020 = vld [vmem:[#allocation2 + $0x160] sm:$0xff]
      %v6021 = vld [vmem:[#allocation2 + $0x168] sm:$0xff]
      %v6022 = vpack.c.bf16 %v6008, %v6006
      %v6023 = vpack.c.bf16 %v6009, %v6007
      %v6024 = vpack.c.bf16 %v6012, %v6010
      %v6025 = vpack.c.bf16 %v6013, %v6011
      %v6026 = vpack.c.bf16 %v6016, %v6014
      %v6027 = vpack.c.bf16 %v6017, %v6015
      %v6028 = vpack.c.bf16 %v6020, %v6018
      %v6029 = vpack.c.bf16 %v6021, %v6019
      %6030 = vst [vmem:[#allocation3 + $0xc0] sm:$0xff] %v6022
      %6031 = vst [vmem:[#allocation3 + $0xc8] sm:$0xff] %v6023
      %6032 = vst [vmem:[#allocation3 + $0xd0] sm:$0xff] %v6024
      %6033 = vst [vmem:[#allocation3 + $0xd8] sm:$0xff] %v6025
      %6034 = vst [vmem:[#allocation3 + $0xe0] sm:$0xff] %v6026
      %6035 = vst [vmem:[#allocation3 + $0xe8] sm:$0xff] %v6027
      %6036 = vst [vmem:[#allocation3 + $0xf0] sm:$0xff] %v6028
      %6037 = vst [vmem:[#allocation3 + $0xf8] sm:$0xff] %v6029
      %v6038 = vld [vmem:[#allocation2 + $0x10] sm:$0xff]
      %v6039 = vld [vmem:[#allocation2 + $0x18] sm:$0xff]
      %v6040 = vld [vmem:[#allocation2 + $0x20] sm:$0xff]
      %v6041 = vld [vmem:[#allocation2 + $0x40] sm:$0xff]
      %v6042 = vld [vmem:[#allocation2 + $0x48] sm:$0xff]
      %v6043 = vld [vmem:[#allocation2 + $0x50] sm:$0xff]
      %v6044 = vld [vmem:[#allocation2 + $0x70] sm:$0xff]
      %v6045 = vld [vmem:[#allocation2 + $0x78] sm:$0xff]
      %v6046 = vld [vmem:[#allocation2 + $0x80] sm:$0xff]
      %v6047 = vld [vmem:[#allocation2 + $0xa0] sm:$0xff]
      %v6048 = vld [vmem:[#allocation2 + $0xa8] sm:$0xff]
      %v6049 = vld [vmem:[#allocation2 + $0xb0] sm:$0xff]
      %v6050 = vld [vmem:[#allocation2 + $0xd0] sm:$0xff]
      %v6051 = vld [vmem:[#allocation2 + $0xd8] sm:$0xff]
      %v6052 = vld [vmem:[#allocation2 + $0xe0] sm:$0xff]
      %v6053 = vld [vmem:[#allocation2 + $0x100] sm:$0xff]
      %v6054 = vld [vmem:[#allocation2 + $0x108] sm:$0xff]
      %v6055 = vld [vmem:[#allocation2 + $0x110] sm:$0xff]
      %v6056 = vld [vmem:[#allocation2 + $0x130] sm:$0xff]
      %v6057 = vld [vmem:[#allocation2 + $0x138] sm:$0xff]
      %v6058 = vld [vmem:[#allocation2 + $0x140] sm:$0xff]
      %v6059 = vld [vmem:[#allocation2 + $0x160] sm:$0xff]
      %v6060 = vld [vmem:[#allocation2 + $0x168] sm:$0xff]
      %v6061 = vld [vmem:[#allocation2 + $0x170] sm:$0xff]
      %v6062 = vpack.c.bf16 %v6041, %v6038
      %v6063 = vpack.c.bf16 %v6042, %v6039
      %v6064 = vpack.c.bf16 %v6043, %v6040
      %v6065 = vpack.c.bf16 %v6047, %v6044
      %v6066 = vpack.c.bf16 %v6048, %v6045
      %v6067 = vpack.c.bf16 %v6049, %v6046
      %v6068 = vpack.c.bf16 %v6053, %v6050
      %v6069 = vpack.c.bf16 %v6054, %v6051
      %v6070 = vpack.c.bf16 %v6055, %v6052
      %v6071 = vpack.c.bf16 %v6059, %v6056
      %v6072 = vpack.c.bf16 %v6060, %v6057
      %v6073 = vpack.c.bf16 %v6061, %v6058
      %6086 = vrot.lane.b32.xlu0 %v6062, 64
      %v6087 = vpop.permute.xlu0 %6086
      %6088 = vrot.lane.b32.xlu0 %v6063, 64
      %v6089 = vpop.permute.xlu0 %6088
      %6090 = vrot.lane.b32.xlu0 %v6064, 64
      %v6091 = vpop.permute.xlu0 %6090
      %6092 = vrot.lane.b32.xlu0 %v6065, 64
      %v6093 = vpop.permute.xlu0 %6092
      %6094 = vrot.lane.b32.xlu0 %v6066, 64
      %v6095 = vpop.permute.xlu0 %6094
      %6096 = vrot.lane.b32.xlu0 %v6067, 64
      %v6097 = vpop.permute.xlu0 %6096
      %6098 = vrot.lane.b32.xlu0 %v6068, 64
      %v6099 = vpop.permute.xlu0 %6098
      %6100 = vrot.lane.b32.xlu0 %v6069, 64
      %v6101 = vpop.permute.xlu0 %6100
      %6102 = vrot.lane.b32.xlu0 %v6070, 64
      %v6103 = vpop.permute.xlu0 %6102
      %6104 = vrot.lane.b32.xlu0 %v6071, 64
      %v6105 = vpop.permute.xlu0 %6104
      %6106 = vrot.lane.b32.xlu0 %v6072, 64
      %v6107 = vpop.permute.xlu0 %6106
      %6108 = vrot.lane.b32.xlu0 %v6073, 64
      %v6109 = vpop.permute.xlu0 %6108
      %v6110 = vsel %vm2105, %v6087, %v6089
      %v6111 = vsel %vm2105, %v6089, %v6091
      %v6112 = vsel %vm2105, %v6093, %v6095
      %v6113 = vsel %vm2105, %v6095, %v6097
      %v6114 = vsel %vm2105, %v6099, %v6101
      %v6115 = vsel %vm2105, %v6101, %v6103
      %v6116 = vsel %vm2105, %v6105, %v6107
      %v6117 = vsel %vm2105, %v6107, %v6109
      %6126 = vst [vmem:[#allocation3 + $0x100] sm:$0xff] %v6110
      %6127 = vst [vmem:[#allocation3 + $0x108] sm:$0xff] %v6111
      %6128 = vst [vmem:[#allocation3 + $0x110] sm:$0xff] %v6112
      %6129 = vst [vmem:[#allocation3 + $0x118] sm:$0xff] %v6113
      %6130 = vst [vmem:[#allocation3 + $0x120] sm:$0xff] %v6114
      %6131 = vst [vmem:[#allocation3 + $0x128] sm:$0xff] %v6115
      %6132 = vst [vmem:[#allocation3 + $0x130] sm:$0xff] %v6116
      %6133 = vst [vmem:[#allocation3 + $0x138] sm:$0xff] %v6117
      %v6134 = vld [vmem:[#allocation2 + $0x18] sm:$0xff]
      %v6135 = vld [vmem:[#allocation2 + $0x20] sm:$0xff]
      %v6136 = vld [vmem:[#allocation2 + $0x48] sm:$0xff]
      %v6137 = vld [vmem:[#allocation2 + $0x50] sm:$0xff]
      %v6138 = vld [vmem:[#allocation2 + $0x78] sm:$0xff]
      %v6139 = vld [vmem:[#allocation2 + $0x80] sm:$0xff]
      %v6140 = vld [vmem:[#allocation2 + $0xa8] sm:$0xff]
      %v6141 = vld [vmem:[#allocation2 + $0xb0] sm:$0xff]
      %v6142 = vld [vmem:[#allocation2 + $0xd8] sm:$0xff]
      %v6143 = vld [vmem:[#allocation2 + $0xe0] sm:$0xff]
      %v6144 = vld [vmem:[#allocation2 + $0x108] sm:$0xff]
      %v6145 = vld [vmem:[#allocation2 + $0x110] sm:$0xff]
      %v6146 = vld [vmem:[#allocation2 + $0x138] sm:$0xff]
      %v6147 = vld [vmem:[#allocation2 + $0x140] sm:$0xff]
      %v6148 = vld [vmem:[#allocation2 + $0x168] sm:$0xff]
      %v6149 = vld [vmem:[#allocation2 + $0x170] sm:$0xff]
      %v6150 = vpack.c.bf16 %v6136, %v6134
      %v6151 = vpack.c.bf16 %v6137, %v6135
      %v6152 = vpack.c.bf16 %v6140, %v6138
      %v6153 = vpack.c.bf16 %v6141, %v6139
      %v6154 = vpack.c.bf16 %v6144, %v6142
      %v6155 = vpack.c.bf16 %v6145, %v6143
      %v6156 = vpack.c.bf16 %v6148, %v6146
      %v6157 = vpack.c.bf16 %v6149, %v6147
      %6158 = vst [vmem:[#allocation3 + $0x140] sm:$0xff] %v6150
      %6159 = vst [vmem:[#allocation3 + $0x148] sm:$0xff] %v6151
      %6160 = vst [vmem:[#allocation3 + $0x150] sm:$0xff] %v6152
      %6161 = vst [vmem:[#allocation3 + $0x158] sm:$0xff] %v6153
      %6162 = vst [vmem:[#allocation3 + $0x160] sm:$0xff] %v6154
      %6163 = vst [vmem:[#allocation3 + $0x168] sm:$0xff] %v6155
      %6164 = vst [vmem:[#allocation3 + $0x170] sm:$0xff] %v6156
      %6165 = vst [vmem:[#allocation3 + $0x178] sm:$0xff] %v6157
      %v6166 = vld [vmem:[#allocation2 + $0x18] sm:$0xff]
      %v6167 = vld [vmem:[#allocation2 + $0x20] sm:$0xff]
      %v6168 = vld [vmem:[#allocation2 + $0x28] sm:$0xff]
      %v6169 = vld [vmem:[#allocation2 + $0x48] sm:$0xff]
      %v6170 = vld [vmem:[#allocation2 + $0x50] sm:$0xff]
      %v6171 = vld [vmem:[#allocation2 + $0x58] sm:$0xff]
      %v6172 = vld [vmem:[#allocation2 + $0x78] sm:$0xff]
      %v6173 = vld [vmem:[#allocation2 + $0x80] sm:$0xff]
      %v6174 = vld [vmem:[#allocation2 + $0x88] sm:$0xff]
      %v6175 = vld [vmem:[#allocation2 + $0xa8] sm:$0xff]
      %v6176 = vld [vmem:[#allocation2 + $0xb0] sm:$0xff]
      %v6177 = vld [vmem:[#allocation2 + $0xb8] sm:$0xff]
      %v6178 = vld [vmem:[#allocation2 + $0xd8] sm:$0xff]
      %v6179 = vld [vmem:[#allocation2 + $0xe0] sm:$0xff]
      %v6180 = vld [vmem:[#allocation2 + $0xe8] sm:$0xff]
      %v6181 = vld [vmem:[#allocation2 + $0x108] sm:$0xff]
      %v6182 = vld [vmem:[#allocation2 + $0x110] sm:$0xff]
      %v6183 = vld [vmem:[#allocation2 + $0x118] sm:$0xff]
      %v6184 = vld [vmem:[#allocation2 + $0x138] sm:$0xff]
      %v6185 = vld [vmem:[#allocation2 + $0x140] sm:$0xff]
      %v6186 = vld [vmem:[#allocation2 + $0x148] sm:$0xff]
      %v6187 = vld [vmem:[#allocation2 + $0x168] sm:$0xff]
      %v6188 = vld [vmem:[#allocation2 + $0x170] sm:$0xff]
      %v6189 = vld [vmem:[#allocation2 + $0x178] sm:$0xff]
      %v6190 = vpack.c.bf16 %v6169, %v6166
      %v6191 = vpack.c.bf16 %v6170, %v6167
      %v6192 = vpack.c.bf16 %v6171, %v6168
      %v6193 = vpack.c.bf16 %v6175, %v6172
      %v6194 = vpack.c.bf16 %v6176, %v6173
      %v6195 = vpack.c.bf16 %v6177, %v6174
      %v6196 = vpack.c.bf16 %v6181, %v6178
      %v6197 = vpack.c.bf16 %v6182, %v6179
      %v6198 = vpack.c.bf16 %v6183, %v6180
      %v6199 = vpack.c.bf16 %v6187, %v6184
      %v6200 = vpack.c.bf16 %v6188, %v6185
      %v6201 = vpack.c.bf16 %v6189, %v6186
      %6214 = vrot.lane.b32.xlu0 %v6190, 64
      %v6215 = vpop.permute.xlu0 %6214
      %6216 = vrot.lane.b32.xlu0 %v6191, 64
      %v6217 = vpop.permute.xlu0 %6216
      %6218 = vrot.lane.b32.xlu0 %v6192, 64
      %v6219 = vpop.permute.xlu0 %6218
      %6220 = vrot.lane.b32.xlu0 %v6193, 64
      %v6221 = vpop.permute.xlu0 %6220
      %6222 = vrot.lane.b32.xlu0 %v6194, 64
      %v6223 = vpop.permute.xlu0 %6222
      %6224 = vrot.lane.b32.xlu0 %v6195, 64
      %v6225 = vpop.permute.xlu0 %6224
      %6226 = vrot.lane.b32.xlu0 %v6196, 64
      %v6227 = vpop.permute.xlu0 %6226
      %6228 = vrot.lane.b32.xlu0 %v6197, 64
      %v6229 = vpop.permute.xlu0 %6228
      %6230 = vrot.lane.b32.xlu0 %v6198, 64
      %v6231 = vpop.permute.xlu0 %6230
      %6232 = vrot.lane.b32.xlu0 %v6199, 64
      %v6233 = vpop.permute.xlu0 %6232
      %6234 = vrot.lane.b32.xlu0 %v6200, 64
      %v6235 = vpop.permute.xlu0 %6234
      %6236 = vrot.lane.b32.xlu0 %v6201, 64
      %v6237 = vpop.permute.xlu0 %6236
      %v6238 = vsel %vm2105, %v6215, %v6217
      %v6239 = vsel %vm2105, %v6217, %v6219
      %v6240 = vsel %vm2105, %v6221, %v6223
      %v6241 = vsel %vm2105, %v6223, %v6225
      %v6242 = vsel %vm2105, %v6227, %v6229
      %v6243 = vsel %vm2105, %v6229, %v6231
      %v6244 = vsel %vm2105, %v6233, %v6235
      %v6245 = vsel %vm2105, %v6235, %v6237
      %6254 = vst [vmem:[#allocation3 + $0x180] sm:$0xff] %v6238
      %6255 = vst [vmem:[#allocation3 + $0x188] sm:$0xff] %v6239
      %6256 = vst [vmem:[#allocation3 + $0x190] sm:$0xff] %v6240
      %6257 = vst [vmem:[#allocation3 + $0x198] sm:$0xff] %v6241
      %6258 = vst [vmem:[#allocation3 + $0x1a0] sm:$0xff] %v6242
      %6259 = vst [vmem:[#allocation3 + $0x1a8] sm:$0xff] %v6243
      %6260 = vst [vmem:[#allocation3 + $0x1b0] sm:$0xff] %v6244
      %6261 = vst [vmem:[#allocation3 + $0x1b8] sm:$0xff] %v6245
      %v6262 = vld [vmem:[%s49] sm:$0xff]
      %v6263 = vld [vmem:[%s49 + $0x8] sm:$0xff]
      %v6264 = vld [vmem:[#allocation3] sm:$0xff]
      %v6265 = vld [vmem:[#allocation3 + $0x8] sm:$0xff]
      %v6266 = vld [vmem:[#allocation3 + $0x10] sm:$0xff]
      %v6267 = vld [vmem:[#allocation3 + $0x18] sm:$0xff]
      %v6268 = vld [vmem:[#allocation3 + $0x20] sm:$0xff]
      %v6269 = vld [vmem:[#allocation3 + $0x28] sm:$0xff]
      %v6270 = vld [vmem:[#allocation3 + $0x30] sm:$0xff]
      %v6271 = vld [vmem:[#allocation3 + $0x38] sm:$0xff]
      %v6272 = vld [vmem:[#allocation3 + $0x40] sm:$0xff]
      %v6273 = vld [vmem:[#allocation3 + $0x48] sm:$0xff]
      %v6274 = vld [vmem:[#allocation3 + $0x50] sm:$0xff]
      %v6275 = vld [vmem:[#allocation3 + $0x58] sm:$0xff]
      %v6276 = vld [vmem:[#allocation3 + $0x60] sm:$0xff]
      %v6277 = vld [vmem:[#allocation3 + $0x68] sm:$0xff]
      %v6278 = vld [vmem:[#allocation3 + $0x70] sm:$0xff]
      %v6279 = vld [vmem:[#allocation3 + $0x78] sm:$0xff]
      %v6280 = vld [vmem:[#allocation3 + $0x80] sm:$0xff]
      %v6281 = vld [vmem:[#allocation3 + $0x88] sm:$0xff]
      %v6282 = vld [vmem:[#allocation3 + $0x90] sm:$0xff]
      %v6283 = vld [vmem:[#allocation3 + $0x98] sm:$0xff]
      %v6284 = vld [vmem:[#allocation3 + $0xa0] sm:$0xff]
      %v6285 = vld [vmem:[#allocation3 + $0xa8] sm:$0xff]
      %v6286 = vld [vmem:[#allocation3 + $0xb0] sm:$0xff]
      %v6287 = vld [vmem:[#allocation3 + $0xb8] sm:$0xff]
      %v6288 = vld [vmem:[#allocation3 + $0xc0] sm:$0xff]
      %v6289 = vld [vmem:[#allocation3 + $0xc8] sm:$0xff]
      %v6290 = vld [vmem:[#allocation3 + $0xd0] sm:$0xff]
      %v6291 = vld [vmem:[#allocation3 + $0xd8] sm:$0xff]
      %v6292 = vld [vmem:[#allocation3 + $0xe0] sm:$0xff]
      %v6293 = vld [vmem:[#allocation3 + $0xe8] sm:$0xff]
      %v6294 = vld [vmem:[#allocation3 + $0xf0] sm:$0xff]
      %v6295 = vld [vmem:[#allocation3 + $0xf8] sm:$0xff]
      %v6296 = vld [vmem:[#allocation3 + $0x100] sm:$0xff]
      %v6297 = vld [vmem:[#allocation3 + $0x108] sm:$0xff]
      %v6298 = vld [vmem:[#allocation3 + $0x110] sm:$0xff]
      %v6299 = vld [vmem:[#allocation3 + $0x118] sm:$0xff]
      %v6300 = vld [vmem:[#allocation3 + $0x120] sm:$0xff]
      %v6301 = vld [vmem:[#allocation3 + $0x128] sm:$0xff]
      %v6302 = vld [vmem:[#allocation3 + $0x130] sm:$0xff]
      %v6303 = vld [vmem:[#allocation3 + $0x138] sm:$0xff]
      %v6304 = vld [vmem:[#allocation3 + $0x140] sm:$0xff]
      %v6305 = vld [vmem:[#allocation3 + $0x148] sm:$0xff]
      %v6306 = vld [vmem:[#allocation3 + $0x150] sm:$0xff]
      %v6307 = vld [vmem:[#allocation3 + $0x158] sm:$0xff]
      %v6308 = vld [vmem:[#allocation3 + $0x160] sm:$0xff]
      %v6309 = vld [vmem:[#allocation3 + $0x168] sm:$0xff]
      %v6310 = vld [vmem:[#allocation3 + $0x170] sm:$0xff]
      %v6311 = vld [vmem:[#allocation3 + $0x178] sm:$0xff]
      %v6312 = vld [vmem:[#allocation3 + $0x180] sm:$0xff]
      %v6313 = vld [vmem:[#allocation3 + $0x188] sm:$0xff]
      %v6314 = vld [vmem:[#allocation3 + $0x190] sm:$0xff]
      %v6315 = vld [vmem:[#allocation3 + $0x198] sm:$0xff]
      %v6316 = vld [vmem:[#allocation3 + $0x1a0] sm:$0xff]
      %v6317 = vld [vmem:[#allocation3 + $0x1a8] sm:$0xff]
      %v6318 = vld [vmem:[#allocation3 + $0x1b0] sm:$0xff]
      %v6319 = vld [vmem:[#allocation3 + $0x1b8] sm:$0xff]
      %v6322 = vunpack.c.l.b16 %v6262
      %v6323 = vunpack.c.h.b16 %v6262
      %v6324 = vunpack.c.l.b16 %v6263
      %v6325 = vunpack.c.h.b16 %v6263
      %v6326 = vpack.c.b16 %v6322, %v6322
      %v6327 = vpack.c.b16 %v6323, %v6323
      %v6328 = vpack.c.b16 %v6324, %v6324
      %v6329 = vpack.c.b16 %v6325, %v6325
      %v6334 = vsel %vm1716, %v6329, 0
      %6336 = vmatprep.subr.bf16.mxu0 %v6265
      %6337 = vmatpush1.bf16.msra.mxu0 %v6264
      %6338 = vmatprep.subr.bf16.mxu0 %v6267
      %6339 = vmatpush1.bf16.msra.mxu0 %v6266
      %6340 = vmatprep.subr.bf16.mxu0 %v6269
      %6341 = vmatpush1.bf16.msra.mxu0 %v6268
      %6342 = vmatprep.subr.bf16.mxu0 %v6271
      %6343 = vmatpush1.bf16.msra.mxu0 %v6270
      %6344 = vmatprep.subr.bf16.mxu0 %v6273
      %6345 = vmatpush1.bf16.msra.mxu0 %v6272
      %6346 = vmatprep.subr.bf16.mxu0 %v6275
      %6347 = vmatpush1.bf16.msra.mxu0 %v6274
      %6348 = vmatprep.subr.bf16.mxu0 %v6277
      %6349 = vmatpush1.bf16.msra.mxu0 %v6276
      %6350 = vmatprep.subr.bf16.mxu0 %v6279
      %6351 = vmatpush1.bf16.msra.mxu0 %v6278
      %6352 = vmatprep.subr.bf16.mxu0 %v6281
      %6353 = vmatpush1.bf16.msra.mxu0 %v6280
      %6354 = vmatprep.subr.bf16.mxu0 %v6283
      %6355 = vmatpush1.bf16.msra.mxu0 %v6282
      %6356 = vmatprep.subr.bf16.mxu0 %v6285
      %6357 = vmatpush1.bf16.msra.mxu0 %v6284
      %6358 = vmatprep.subr.bf16.mxu0 %v6287
      %6359 = vmatpush1.bf16.msra.mxu0 %v6286
      %6360 = vmatprep.subr.bf16.mxu0 %v6289
      %6361 = vmatpush1.bf16.msra.mxu0 %v6288
      %6362 = vmatprep.subr.bf16.mxu0 %v6291
      %6363 = vmatpush1.bf16.msra.mxu0 %v6290
      %6364 = vmatprep.subr.bf16.mxu0 %v6293
      %6365 = vmatpush1.bf16.msra.mxu0 %v6292
      %6366 = vmatprep.subr.bf16.mxu0 %v6295
      %6367 = vmatpush1.bf16.msra.mxu0 %v6294
      %6368 = vmatprep.mubr.bf16.mxu0 %v6327
      %6369 = vmatmul.mubr.bf16.gmra.mrb[0].mxu0 %v6326
      %v6370 = vpop.f32.mrb[0].mxu0
      %v6371 = vadd.f32 0.0, %v6370
      %v6372 = vpop.f32.mrb[0].mxu0
      %v6373 = vadd.f32 0.0, %v6372
      %v6374 = vpop.f32.mrb[0].mxu0
      %v6375 = vpop.f32.mrb[0].mxu0
      %6376 = vdwg.mxu0
      %6377 = vmatprep.subr.bf16.mxu0 %v6297
      %6378 = vmatpush1.bf16.msra.mxu0 %v6296
      %6379 = vmatprep.subr.bf16.mxu0 %v6299
      %6380 = vmatpush1.bf16.msra.mxu0 %v6298
      %6381 = vmatprep.subr.bf16.mxu0 %v6301
      %6382 = vmatpush1.bf16.msra.mxu0 %v6300
      %6383 = vmatprep.subr.bf16.mxu0 %v6303
      %6384 = vmatpush1.bf16.msra.mxu0 %v6302
      %6385 = vmatprep.subr.bf16.mxu0 %v6305
      %6386 = vmatpush1.bf16.msra.mxu0 %v6304
      %6387 = vmatprep.subr.bf16.mxu0 %v6307
      %6388 = vmatpush1.bf16.msra.mxu0 %v6306
      %6389 = vmatprep.subr.bf16.mxu0 %v6309
      %6390 = vmatpush1.bf16.msra.mxu0 %v6308
      %6391 = vmatprep.subr.bf16.mxu0 %v6311
      %6392 = vmatpush1.bf16.msra.mxu0 %v6310
      %6393 = vmatprep.subr.bf16.mxu0 %v6313
      %6394 = vmatpush1.bf16.msra.mxu0 %v6312
      %6395 = vmatprep.subr.bf16.mxu0 %v6315
      %6396 = vmatpush1.bf16.msra.mxu0 %v6314
      %6397 = vmatprep.subr.bf16.mxu0 %v6317
      %6398 = vmatpush1.bf16.msra.mxu0 %v6316
      %6399 = vmatprep.subr.bf16.mxu0 %v6319
      %6400 = vmatpush1.bf16.msra.mxu0 %v6318
      %6401 = vmatprep.subr.bf16.mxu0 0
      %6402 = vmatpush1.bf16.msra.mxu0 0
      %6403 = vmatprep.subr.bf16.mxu0 0
      %6404 = vmatpush1.bf16.msra.mxu0 0
      %6405 = vmatprep.subr.bf16.mxu0 0
      %6406 = vmatpush1.bf16.msra.mxu0 0
      %6407 = vmatprep.subr.bf16.mxu0 0
      %6408 = vmatpush1.bf16.msra.mxu0 0
      %6409 = vmatprep.mubr.bf16.mxu0 %v6334
      %6410 = vmatmul.mubr.bf16.gmra.mrb[0].mxu0 %v6328
      %v6411 = vpop.f32.mrb[0].mxu0
      %v6412 = vadd.f32 %v6371, %v6411
      %v6413 = vpop.f32.mrb[0].mxu0
      %v6414 = vadd.f32 %v6373, %v6413
      %v6415 = vpop.f32.mrb[0].mxu0
      %v6416 = vpop.f32.mrb[0].mxu0
      %6417 = vdwg.mxu0
      %v6418 = vld [vmem:[%s51] sm:$0xff]
      %6420 = vset.pattern.permute.xlu0 0
      %6421 = vperm.xlu0 %6420, %v6418
      %v6422 = vpop.permute.xlu0 %6421
      %v6424 = vmul.f32 %v6412, %v6422
      %v6425 = vmul.f32 %v6414, %v6422
      %6426 = vset.pattern.permute.xlu0 1
      %6427 = vperm.xlu0 %6426, %v6418
      %v6428 = vpop.permute.xlu0 %6427
      %v6430 = vadd.f32 %v6424, %v6428
      %v6431 = vadd.f32 %v6425, %v6428
      %v6432 = vxor.u32 %v6430, 2147483648
      %v6433 = vxor.u32 %v6431, 2147483648
      %v6434 = vmul.f32 %v6432, 1.442695
      %v6435 = vpow.pop %v6434
      %v6436 = vmul.f32 %v6433, 1.442695
      %v6437 = vpow.pop %v6436
      %v6438 = vadd.f32 %v6435, 1.0
      %v6439 = vadd.f32 %v6437, 1.0
      %v6440 = vrcp.pop %v6438
      %v6441 = vmul.f32 1.0, %v6440
      %v6442 = vrcp.pop %v6439
      %v6443 = vmul.f32 1.0, %v6442
      %v6444 = vmul.f32 %v6430, %v6441
      %v6445 = vmul.f32 %v6431, %v6443
      %v6446 = vadd.f32 %v6444, %v6445
      %6447 = vadd.xlane.f32.xlu0 %v6446
      %v6448 = vpop.xlane.xlu0 %6447
      %v6449 = vmul.f32 %v6448, %v3293
      %v6450 = vld [vmem:[%s53] sm:$0xff]
      %v6451 = vmul.f32 %v6450, %v6449
      %v6452 = vsel %vm3297, %v6451, 0.0
      %v6453 = vrot.slane %v6452, 4
      %v6454 = vadd.f32 %v6452, %v6453
      %v6455 = vrot.slane %v6454, 2
      %v6456 = vadd.f32 %v6454, %v6455
      %v6457 = vrot.slane %v6456, 1
      %v6458 = vadd.f32 %v6456, %v6457
      %v6459 = vld [vmem:[%s57] sm:$0x1]
      %v6460 = vadd.f32 %v6458, %v6459
      %v6461 = vmax.f32 %v6460, 0.0
      %v6462 = vld [vmem:[%s55] sm:$0xff]
      %v6463 = vlaneseq
      %v6464 = vshrl.u32 %v6463, 7
      %v6465 = vsub.s32 0, %v6464
      %v6466 = vrot.slane %v6461, %v6465
      %v6467 = vmul.f32 %v6462, %v6466
      %v6468 = vsel %vm3297, %v6467, 0.0
      %6469 = vadd.xlane.f32.xlu0 %v6468
      %v6470 = vpop.xlane.xlu0 %6469
      %v6471 = vld [vmem:[%s59] sm:$0xff]
      %v6472 = vadd.f32 %v6470, %v6471
      %v6473 = vxor.u32 %v6472, 2147483648
      %v6474 = vmul.f32 %v6473, 1.442695
      %v6475 = vpow.pop %v6474
      %v6476 = vadd.f32 %v6475, 1.0
      %v6477 = vrcp.pop %v6476
      %v6478 = vmul.f32 1.0, %v6477
      %6480 = vset.pattern.permute.xlu0 0
      %6481 = vperm.xlu0 %6480, %v6478
      %v6482 = vpop.permute.xlu0 %6481
      %v6484 = vmul.f32 %v6444, %v6482
      %v6485 = vmul.f32 %v6445, %v6482
      %v6486 = vld [vmem:[%s61] sm:$0xf]
      %v6487 = vld [vmem:[%s61 + $0x4] sm:$0xf]
      %v6488 = vld [vmem:[%s61 + $0x8] sm:$0xf]
      %v6489 = vld [vmem:[%s61 + $0xc] sm:$0xf]
      %v6490 = vpack.c.bf16 %v6484, %v6484
      %v6491 = vpack.c.bf16 %v6485, %v6485
      %v6496 = vunpack.c.l.b16 %v6486
      %v6497 = vunpack.c.l.b16 %v6487
      %v6498 = vunpack.c.l.b16 %v6488
      %v6499 = vunpack.c.l.b16 %v6489
      %v6500 = vpack.c.b16 %v6497, %v6496
      %v6501 = vpack.c.b16 %v6499, %v6498
      %v6503 = vsel %vm3297, %v6500, 0
      %v6506 = vsel %vm3297, %v6501, 0
      %v6509 = vsel %vm3354, %v6490, 0
      %v6512 = vsel %vm3354, %v6491, 0
      %6514 = vmatprep.subr.bf16.mxu0 %v6512
      %6515 = vmatpush1.bf16.msra.mxu0 %v6509
      %6516 = vmatprep.subr.bf16.mxu0 0
      %6517 = vmatpush1.bf16.msra.mxu0 0
      %6518 = vmatprep.subr.bf16.mxu0 0
      %6519 = vmatpush1.bf16.msra.mxu0 0
      %6520 = vmatprep.subr.bf16.mxu0 0
      %6521 = vmatpush1.bf16.msra.mxu0 0
      %6522 = vmatprep.subr.bf16.mxu0 0
      %6523 = vmatpush1.bf16.msra.mxu0 0
      %6524 = vmatprep.subr.bf16.mxu0 0
      %6525 = vmatpush1.bf16.msra.mxu0 0
      %6526 = vmatprep.subr.bf16.mxu0 0
      %6527 = vmatpush1.bf16.msra.mxu0 0
      %6528 = vmatprep.subr.bf16.mxu0 0
      %6529 = vmatpush1.bf16.msra.mxu0 0
      %6530 = vmatprep.subr.bf16.mxu0 0
      %6531 = vmatpush1.bf16.msra.mxu0 0
      %6532 = vmatprep.subr.bf16.mxu0 0
      %6533 = vmatpush1.bf16.msra.mxu0 0
      %6534 = vmatprep.subr.bf16.mxu0 0
      %6535 = vmatpush1.bf16.msra.mxu0 0
      %6536 = vmatprep.subr.bf16.mxu0 0
      %6537 = vmatpush1.bf16.msra.mxu0 0
      %6538 = vmatprep.subr.bf16.mxu0 0
      %6539 = vmatpush1.bf16.msra.mxu0 0
      %6540 = vmatprep.subr.bf16.mxu0 0
      %6541 = vmatpush1.bf16.msra.mxu0 0
      %6542 = vmatprep.subr.bf16.mxu0 0
      %6543 = vmatpush1.bf16.msra.mxu0 0
      %6544 = vmatprep.subr.bf16.mxu0 0
      %6545 = vmatpush1.bf16.msra.mxu0 0
      %6546 = vmatprep.mubr.bf16.mxu0 0
      %6547 = vmatmul.mubr.bf16.gmra.mrb[0].mxu0 %v6503
      %v6548 = vpop.f32.mrb[0].mxu0
      %v6549 = vadd.f32 0.0, %v6548
      %v6550 = vpop.f32.mrb[0].mxu0
      %v6551 = vadd.f32 0.0, %v6550
      %v6552 = vpop.f32.mrb[0].mxu0
      %v6553 = vadd.f32 0.0, %v6552
      %v6554 = vpop.f32.mrb[0].mxu0
      %v6555 = vadd.f32 0.0, %v6554
      %6556 = vmatprep.mubr.bf16.mxu0 0
      %6557 = vmatmul.mubr.bf16.gmra.mrb[0].mxu0 %v6506
      %v6558 = vpop.f32.mrb[0].mxu0
      %v6559 = vadd.f32 0.0, %v6558
      %v6560 = vpop.f32.mrb[0].mxu0
      %v6561 = vadd.f32 0.0, %v6560
      %v6562 = vpop.f32.mrb[0].mxu0
      %v6563 = vadd.f32 0.0, %v6562
      %v6564 = vpop.f32.mrb[0].mxu0
      %v6565 = vadd.f32 0.0, %v6564
      %6566 = vdwg.mxu0
      %v6567 = vld [vmem:[%s63] sm:$0xff]
      %v6568 = vld [vmem:[%s63 + $0x8] sm:$0xff]
      %v6569 = vld [vmem:[%s63 + $0x10] sm:$0xff]
      %v6570 = vld [vmem:[%s63 + $0x18] sm:$0xff]
      %6572 = vset.pattern.permute.xlu0 0
      %6573 = vperm.xlu0 %6572, %v6567
      %v6574 = vpop.permute.xlu0 %6573
      %6577 = vset.pattern.permute.xlu0 0
      %6578 = vperm.xlu0 %6577, %v6568
      %v6579 = vpop.permute.xlu0 %6578
      %6582 = vset.pattern.permute.xlu0 0
      %6583 = vperm.xlu0 %6582, %v6569
      %v6584 = vpop.permute.xlu0 %6583
      %6587 = vset.pattern.permute.xlu0 0
      %6588 = vperm.xlu0 %6587, %v6570
      %v6589 = vpop.permute.xlu0 %6588
      %v6591 = vmul.f32 %v6549, %v6574
      %v6592 = vmul.f32 %v6551, %v6574
      %v6593 = vmul.f32 %v6553, %v6579
      %v6594 = vmul.f32 %v6555, %v6579
      %v6595 = vmul.f32 %v6559, %v6584
      %v6596 = vmul.f32 %v6561, %v6584
      %v6597 = vmul.f32 %v6563, %v6589
      %v6598 = vmul.f32 %v6565, %v6589
      %6599 = vset.pattern.permute.xlu0 1
      %6600 = vperm.xlu0 %6599, %v6567
      %v6601 = vpop.permute.xlu0 %6600
      %6603 = vset.pattern.permute.xlu0 1
      %6604 = vperm.xlu0 %6603, %v6568
      %v6605 = vpop.permute.xlu0 %6604
      %6607 = vset.pattern.permute.xlu0 1
      %6608 = vperm.xlu0 %6607, %v6569
      %v6609 = vpop.permute.xlu0 %6608
      %6611 = vset.pattern.permute.xlu0 1
      %6612 = vperm.xlu0 %6611, %v6570
      %v6613 = vpop.permute.xlu0 %6612
      %v6615 = vadd.f32 %v6591, %v6601
      %v6616 = vadd.f32 %v6592, %v6601
      %v6617 = vadd.f32 %v6593, %v6605
      %v6618 = vadd.f32 %v6594, %v6605
      %v6619 = vadd.f32 %v6595, %v6609
      %v6620 = vadd.f32 %v6596, %v6609
      %v6621 = vadd.f32 %v6597, %v6613
      %v6622 = vadd.f32 %v6598, %v6613
      %v6623 = vadd.f32 %v6615, %v5514
      %v6624 = vadd.f32 %v6616, %v5515
      %v6625 = vadd.f32 %v6617, %v5516
      %v6626 = vadd.f32 %v6618, %v5517
      %v6627 = vadd.f32 %v6619, %v5518
      %v6628 = vadd.f32 %v6620, %v5519
      %v6629 = vadd.f32 %v6621, %v5520
      %v6630 = vadd.f32 %v6622, %v5521
      %v6631 = vxor.u32 %v6623, 2147483648
      %v6632 = vxor.u32 %v6624, 2147483648
      %v6633 = vxor.u32 %v6625, 2147483648
      %v6634 = vxor.u32 %v6626, 2147483648
      %v6635 = vxor.u32 %v6627, 2147483648
      %v6636 = vxor.u32 %v6628, 2147483648
      %v6637 = vxor.u32 %v6629, 2147483648
      %v6638 = vxor.u32 %v6630, 2147483648
      %v6639 = vmul.f32 %v6631, 1.442695
      %v6640 = vpow.pop %v6639
      %v6641 = vmul.f32 %v6632, 1.442695
      %v6642 = vpow.pop %v6641
      %v6643 = vmul.f32 %v6633, 1.442695
      %v6644 = vpow.pop %v6643
      %v6645 = vmul.f32 %v6634, 1.442695
      %v6646 = vpow.pop %v6645
      %v6647 = vmul.f32 %v6635, 1.442695
      %v6648 = vpow.pop %v6647
      %v6649 = vmul.f32 %v6636, 1.442695
      %v6650 = vpow.pop %v6649
      %v6651 = vmul.f32 %v6637, 1.442695
      %v6652 = vpow.pop %v6651
      %v6653 = vmul.f32 %v6638, 1.442695
      %v6654 = vpow.pop %v6653
      %v6655 = vadd.f32 %v6640, 1.0
      %v6656 = vadd.f32 %v6642, 1.0
      %v6657 = vadd.f32 %v6644, 1.0
      %v6658 = vadd.f32 %v6646, 1.0
      %v6659 = vadd.f32 %v6648, 1.0
      %v6660 = vadd.f32 %v6650, 1.0
      %v6661 = vadd.f32 %v6652, 1.0
      %v6662 = vadd.f32 %v6654, 1.0
      %v6663 = vrcp.pop %v6655
      %v6664 = vmul.f32 1.0, %v6663
      %v6665 = vrcp.pop %v6656
      %v6666 = vmul.f32 1.0, %v6665
      %v6667 = vrcp.pop %v6657
      %v6668 = vmul.f32 1.0, %v6667
      %v6669 = vrcp.pop %v6658
      %v6670 = vmul.f32 1.0, %v6669
      %v6671 = vrcp.pop %v6659
      %v6672 = vmul.f32 1.0, %v6671
      %v6673 = vrcp.pop %v6660
      %v6674 = vmul.f32 1.0, %v6673
      %v6675 = vrcp.pop %v6661
      %v6676 = vmul.f32 1.0, %v6675
      %v6677 = vrcp.pop %v6662
      %v6678 = vmul.f32 1.0, %v6677
      %v6679 = vmul.f32 %v6623, %v6664
      %v6680 = vmul.f32 %v6624, %v6666
      %v6681 = vmul.f32 %v6625, %v6668
      %v6682 = vmul.f32 %v6626, %v6670
      %v6683 = vmul.f32 %v6627, %v6672
      %v6684 = vmul.f32 %v6628, %v6674
      %v6685 = vmul.f32 %v6629, %v6676
      %v6686 = vmul.f32 %v6630, %v6678
      %v6687 = vld [vmem:[%s65] sm:$0xf]
      %v6688 = vld [vmem:[%s65 + $0x4] sm:$0xf]
      %v6689 = vld [vmem:[%s65 + $0x8] sm:$0xf]
      %v6690 = vld [vmem:[%s65 + $0xc] sm:$0xf]
      %v6691 = vld [vmem:[%s65 + $0x10] sm:$0xf]
      %v6692 = vpack.c.bf16 %v6681, %v6679
      %v6693 = vpack.c.bf16 %v6682, %v6680
      %v6694 = vpack.c.bf16 %v6685, %v6683
      %v6695 = vpack.c.bf16 %v6686, %v6684
      %v6701 = vunpack.c.l.b16 %v6687
      %v6702 = vunpack.c.l.b16 %v6688
      %v6703 = vunpack.c.l.b16 %v6689
      %v6704 = vunpack.c.l.b16 %v6690
      %v6705 = vunpack.c.l.b16 %v6691
      %v6706 = vpack.c.b16 %v6702, %v6701
      %v6707 = vpack.c.b16 %v6704, %v6703
      %v6708 = vpack.c.b16 %v6705, %v6705
      %v6710 = vsel %vm3556, %v6706, 0
      %v6713 = vsel %vm3556, %v6707, 0
      %v6716 = vsel %vm3556, %v6708, 0
      %6718 = vmatprep.subr.bf16.mxu0 %v6693
      %6719 = vmatpush1.bf16.msra.mxu0 %v6692
      %6720 = vmatprep.subr.bf16.mxu0 %v6695
      %6721 = vmatpush1.bf16.msra.mxu0 %v6694
      %6722 = vmatprep.subr.bf16.mxu0 0
      %6723 = vmatpush1.bf16.msra.mxu0 0
      %6724 = vmatprep.subr.bf16.mxu0 0
      %6725 = vmatpush1.bf16.msra.mxu0 0
      %6726 = vmatprep.subr.bf16.mxu0 0
      %6727 = vmatpush1.bf16.msra.mxu0 0
      %6728 = vmatprep.subr.bf16.mxu0 0
      %6729 = vmatpush1.bf16.msra.mxu0 0
      %6730 = vmatprep.subr.bf16.mxu0 0
      %6731 = vmatpush1.bf16.msra.mxu0 0
      %6732 = vmatprep.subr.bf16.mxu0 0
      %6733 = vmatpush1.bf16.msra.mxu0 0
      %6734 = vmatprep.subr.bf16.mxu0 0
      %6735 = vmatpush1.bf16.msra.mxu0 0
      %6736 = vmatprep.subr.bf16.mxu0 0
      %6737 = vmatpush1.bf16.msra.mxu0 0
      %6738 = vmatprep.subr.bf16.mxu0 0
      %6739 = vmatpush1.bf16.msra.mxu0 0
      %6740 = vmatprep.subr.bf16.mxu0 0
      %6741 = vmatpush1.bf16.msra.mxu0 0
      %6742 = vmatprep.subr.bf16.mxu0 0
      %6743 = vmatpush1.bf16.msra.mxu0 0
      %6744 = vmatprep.subr.bf16.mxu0 0
      %6745 = vmatpush1.bf16.msra.mxu0 0
      %6746 = vmatprep.subr.bf16.mxu0 0
      %6747 = vmatpush1.bf16.msra.mxu0 0
      %6748 = vmatprep.subr.bf16.mxu0 0
      %6749 = vmatpush1.bf16.msra.mxu0 0
      %6750 = vmatprep.mubr.bf16.mxu0 0
      %6751 = vmatmul.mubr.bf16.gmra.mrb[0].mxu0 %v6710
      %v6752 = vpop.f32.mrb[0].mxu0
      %v6753 = vadd.f32 0.0, %v6752
      %v6754 = vpop.f32.mrb[0].mxu0
      %v6755 = vadd.f32 0.0, %v6754
      %v6756 = vpop.f32.mrb[0].mxu0
      %v6757 = vadd.f32 0.0, %v6756
      %v6758 = vpop.f32.mrb[0].mxu0
      %v6759 = vadd.f32 0.0, %v6758
      %6760 = vmatprep.mubr.bf16.mxu0 0
      %6761 = vmatmul.mubr.bf16.gmra.mrb[0].mxu0 %v6713
      %v6762 = vpop.f32.mrb[0].mxu0
      %v6763 = vadd.f32 0.0, %v6762
      %v6764 = vpop.f32.mrb[0].mxu0
      %v6765 = vadd.f32 0.0, %v6764
      %v6766 = vpop.f32.mrb[0].mxu0
      %v6767 = vadd.f32 0.0, %v6766
      %v6768 = vpop.f32.mrb[0].mxu0
      %v6769 = vadd.f32 0.0, %v6768
      %6770 = vmatprep.mubr.bf16.mxu0 0
      %6771 = vmatmul.mubr.bf16.gmra.mrb[0].mxu0 %v6716
      %v6772 = vpop.f32.mrb[0].mxu0
      %v6773 = vadd.f32 0.0, %v6772
      %v6774 = vpop.f32.mrb[0].mxu0
      %v6775 = vadd.f32 0.0, %v6774
      %v6776 = vpop.f32.mrb[0].mxu0
      %v6777 = vpop.f32.mrb[0].mxu0
      %6778 = vdwg.mxu0
      %v6779 = vld [vmem:[%s67] sm:$0xff]
      %v6780 = vld [vmem:[%s67 + $0x8] sm:$0xff]
      %v6781 = vld [vmem:[%s67 + $0x10] sm:$0xff]
      %v6782 = vld [vmem:[%s67 + $0x18] sm:$0xff]
      %v6783 = vld [vmem:[%s67 + $0x20] sm:$0xff]
      %6785 = vset.pattern.permute.xlu0 0
      %6786 = vperm.xlu0 %6785, %v6779
      %v6787 = vpop.permute.xlu0 %6786
      %6790 = vset.pattern.permute.xlu0 0
      %6791 = vperm.xlu0 %6790, %v6780
      %v6792 = vpop.permute.xlu0 %6791
      %6795 = vset.pattern.permute.xlu0 0
      %6796 = vperm.xlu0 %6795, %v6781
      %v6797 = vpop.permute.xlu0 %6796
      %6800 = vset.pattern.permute.xlu0 0
      %6801 = vperm.xlu0 %6800, %v6782
      %v6802 = vpop.permute.xlu0 %6801
      %6805 = vset.pattern.permute.xlu0 0
      %6806 = vperm.xlu0 %6805, %v6783
      %v6807 = vpop.permute.xlu0 %6806
      %v6809 = vmul.f32 %v6753, %v6787
      %v6810 = vmul.f32 %v6755, %v6787
      %v6811 = vmul.f32 %v6757, %v6792
      %v6812 = vmul.f32 %v6759, %v6792
      %v6813 = vmul.f32 %v6763, %v6797
      %v6814 = vmul.f32 %v6765, %v6797
      %v6815 = vmul.f32 %v6767, %v6802
      %v6816 = vmul.f32 %v6769, %v6802
      %v6817 = vmul.f32 %v6773, %v6807
      %v6818 = vmul.f32 %v6775, %v6807
      %6819 = vset.pattern.permute.xlu0 1
      %6820 = vperm.xlu0 %6819, %v6779
      %v6821 = vpop.permute.xlu0 %6820
      %6823 = vset.pattern.permute.xlu0 1
      %6824 = vperm.xlu0 %6823, %v6780
      %v6825 = vpop.permute.xlu0 %6824
      %6827 = vset.pattern.permute.xlu0 1
      %6828 = vperm.xlu0 %6827, %v6781
      %v6829 = vpop.permute.xlu0 %6828
      %6831 = vset.pattern.permute.xlu0 1
      %6832 = vperm.xlu0 %6831, %v6782
      %v6833 = vpop.permute.xlu0 %6832
      %6835 = vset.pattern.permute.xlu0 1
      %6836 = vperm.xlu0 %6835, %v6783
      %v6837 = vpop.permute.xlu0 %6836
      %v6839 = vadd.f32 %v6809, %v6821
      %v6840 = vadd.f32 %v6810, %v6821
      %v6841 = vadd.f32 %v6811, %v6825
      %v6842 = vadd.f32 %v6812, %v6825
      %v6843 = vadd.f32 %v6813, %v6829
      %v6844 = vadd.f32 %v6814, %v6829
      %v6845 = vadd.f32 %v6815, %v6833
      %v6846 = vadd.f32 %v6816, %v6833
      %v6847 = vadd.f32 %v6817, %v6837
      %v6848 = vadd.f32 %v6818, %v6837
      %v6849 = vxor.u32 %v6839, 2147483648
      %v6850 = vxor.u32 %v6840, 2147483648
      %v6851 = vmul.f32 %v6849, 1.442695
      %v6852 = vpow.pop %v6851
      %v6853 = vmul.f32 %v6850, 1.442695
      %v6854 = vpow.pop %v6853
      %v6855 = vadd.f32 %v6852, 1.0
      %v6856 = vadd.f32 %v6854, 1.0
      %v6857 = vrcp.pop %v6855
      %v6858 = vmul.f32 1.0, %v6857
      %v6859 = vrcp.pop %v6856
      %v6860 = vmul.f32 1.0, %v6859
      %v6861 = vmul.f32 %v6839, %v6858
      %v6862 = vmul.f32 %v6840, %v6860
      %6863 = vst [vmem:[#allocation2] sm:$0xff] 0.0
      %6864 = vst [vmem:[#allocation2 + $0x30] sm:$0xff] 0.0
      %6865 = vst [vmem:[#allocation2 + $0x60] sm:$0xff] 0.0
      %6866 = vst [vmem:[#allocation2 + $0x90] sm:$0xff] 0.0
      %6867 = vst [vmem:[#allocation2 + $0xc0] sm:$0xff] 0.0
      %6868 = vst [vmem:[#allocation2 + $0x18] sm:$0xff] 0.0
      %6869 = vst [vmem:[#allocation2 + $0x48] sm:$0xff] 0.0
      %6870 = vst [vmem:[#allocation2 + $0x78] sm:$0xff] 0.0
      %6871 = vst [vmem:[#allocation2 + $0xa8] sm:$0xff] 0.0
      %6872 = vst [vmem:[#allocation2 + $0xd8] sm:$0xff] 0.0
      %6873 = vst [vmem:[#allocation2 + $0x98] sm:$0xff] 0.0
      %6874 = vst [vmem:[#allocation2 + $0xa0] sm:$0xff] 0.0
      %6875 = vst [vmem:[#allocation2 + $0xc8] sm:$0xff] %v6861
      %6876 = vst [vmem:[#allocation2 + $0xd0] sm:$0xff] %v6862
      %v6877 = vld [vmem:[#allocation2 + $0xc0] sm:$0xff]
      %v6878 = vld [vmem:[#allocation2 + $0xc8] sm:$0xff]
      %v6879 = vld [vmem:[#allocation2 + $0xd0] sm:$0xff]
      %v6880 = vld [vmem:[%s3740] sm:$0xff]
      %v6881 = vld [vmem:[%s3740 + $0x8] sm:$0xff]
      %6884 = vrot.lane.b32.xlu0 %v6880, 120
      %v6885 = vpop.permute.xlu0 %6884
      %6886 = vrot.lane.b32.xlu0 %v6881, 120
      %v6887 = vpop.permute.xlu0 %6886
      %v6888 = vsel %vm3749, %v6885, %v6887
      %v6892 = vmul.f32 %v6877, %v6885
      %v6893 = vmul.f32 %v6878, %v6888
      %v6894 = vmul.f32 %v6879, %v6887
      %6898 = vrot.lane.b32.xlu0 %v6892, 8
      %v6899 = vpop.permute.xlu0 %6898
      %6900 = vrot.lane.b32.xlu0 %v6893, 8
      %v6901 = vpop.permute.xlu0 %6900
      %6902 = vrot.lane.b32.xlu0 %v6894, 8
      %v6903 = vpop.permute.xlu0 %6902
      %v6904 = vsel %vm3297, %v6899, %v6901
      %v6905 = vsel %vm3297, %v6901, %v6903
      %6908 = vst [vmem:[#allocation2 + $0x8] sm:$0xff] %v6904
      %6909 = vst [vmem:[#allocation2 + $0x10] sm:$0xff] %v6905
      %v6910 = vld [vmem:[#allocation2 + $0xc8] sm:$0xff]
      %v6911 = vld [vmem:[#allocation2 + $0xd0] sm:$0xff]
      %6912 = vst [vmem:[#allocation2 + $0x38] sm:$0xff] %v6910
      %6913 = vst [vmem:[#allocation2 + $0x40] sm:$0xff] %v6911
      %v6914 = vld [vmem:[#allocation2 + $0xc8] sm:$0xff]
      %v6915 = vld [vmem:[#allocation2 + $0xd0] sm:$0xff]
      %v6916 = vld [vmem:[#allocation2 + $0xd8] sm:$0xff]
      %v6917 = vld [vmem:[%s3981] sm:$0xff]
      %v6918 = vld [vmem:[%s3981 + $0x8] sm:$0xff]
      %6921 = vrot.lane.b32.xlu0 %v6917, 8
      %v6922 = vpop.permute.xlu0 %6921
      %6923 = vrot.lane.b32.xlu0 %v6918, 8
      %v6924 = vpop.permute.xlu0 %6923
      %v6925 = vsel %vm3297, %v6922, %v6924
      %v6929 = vmul.f32 %v6914, %v6922
      %v6930 = vmul.f32 %v6915, %v6925
      %v6931 = vmul.f32 %v6916, %v6924
      %6935 = vrot.lane.b32.xlu0 %v6929, 120
      %v6936 = vpop.permute.xlu0 %6935
      %6937 = vrot.lane.b32.xlu0 %v6930, 120
      %v6938 = vpop.permute.xlu0 %6937
      %6939 = vrot.lane.b32.xlu0 %v6931, 120
      %v6940 = vpop.permute.xlu0 %6939
      %v6941 = vsel %vm3749, %v6936, %v6938
      %v6942 = vsel %vm3749, %v6938, %v6940
      %6945 = vst [vmem:[#allocation2 + $0x68] sm:$0xff] %v6941
      %6946 = vst [vmem:[#allocation2 + $0x70] sm:$0xff] %v6942
      %v6947 = vld [vmem:[#allocation2] sm:$0xff]
      %v6948 = vld [vmem:[#allocation2 + $0x8] sm:$0xff]
      %v6949 = vld [vmem:[#allocation2 + $0x30] sm:$0xff]
      %v6950 = vld [vmem:[#allocation2 + $0x38] sm:$0xff]
      %v6951 = vld [vmem:[#allocation2 + $0x60] sm:$0xff]
      %v6952 = vld [vmem:[#allocation2 + $0x68] sm:$0xff]
      %v6953 = vld [vmem:[#allocation2 + $0x90] sm:$0xff]
      %v6954 = vld [vmem:[#allocation2 + $0x98] sm:$0xff]
      %v6955 = vpack.c.bf16 %v6949, %v6947
      %v6956 = vpack.c.bf16 %v6950, %v6948
      %v6957 = vpack.c.bf16 %v6953, %v6951
      %v6958 = vpack.c.bf16 %v6954, %v6952
      %6959 = vst [vmem:[#allocation3] sm:$0xff] %v6955
      %6960 = vst [vmem:[#allocation3 + $0x8] sm:$0xff] %v6956
      %6961 = vst [vmem:[#allocation3 + $0x10] sm:$0xff] %v6957
      %6962 = vst [vmem:[#allocation3 + $0x18] sm:$0xff] %v6958
      %v6963 = vld [vmem:[#allocation2 + $0x8] sm:$0xff]
      %v6964 = vld [vmem:[#allocation2 + $0x10] sm:$0xff]
      %v6965 = vld [vmem:[#allocation2 + $0x38] sm:$0xff]
      %v6966 = vld [vmem:[#allocation2 + $0x40] sm:$0xff]
      %v6967 = vld [vmem:[#allocation2 + $0x68] sm:$0xff]
      %v6968 = vld [vmem:[#allocation2 + $0x70] sm:$0xff]
      %v6969 = vld [vmem:[#allocation2 + $0x98] sm:$0xff]
      %v6970 = vld [vmem:[#allocation2 + $0xa0] sm:$0xff]
      %v6971 = vpack.c.bf16 %v6965, %v6963
      %v6972 = vpack.c.bf16 %v6966, %v6964
      %v6973 = vpack.c.bf16 %v6969, %v6967
      %v6974 = vpack.c.bf16 %v6970, %v6968
      %6975 = vst [vmem:[#allocation3 + $0x20] sm:$0xff] %v6971
      %6976 = vst [vmem:[#allocation3 + $0x28] sm:$0xff] %v6972
      %6977 = vst [vmem:[#allocation3 + $0x30] sm:$0xff] %v6973
      %6978 = vst [vmem:[#allocation3 + $0x38] sm:$0xff] %v6974
      %v6979 = vld [vmem:[#allocation2 + $0x10] sm:$0xff]
      %v6980 = vld [vmem:[#allocation2 + $0x18] sm:$0xff]
      %v6981 = vld [vmem:[#allocation2 + $0x40] sm:$0xff]
      %v6982 = vld [vmem:[#allocation2 + $0x48] sm:$0xff]
      %v6983 = vld [vmem:[#allocation2 + $0x70] sm:$0xff]
      %v6984 = vld [vmem:[#allocation2 + $0x78] sm:$0xff]
      %v6985 = vld [vmem:[#allocation2 + $0xa0] sm:$0xff]
      %v6986 = vld [vmem:[#allocation2 + $0xa8] sm:$0xff]
      %v6987 = vpack.c.bf16 %v6981, %v6979
      %v6988 = vpack.c.bf16 %v6982, %v6980
      %v6989 = vpack.c.bf16 %v6985, %v6983
      %v6990 = vpack.c.bf16 %v6986, %v6984
      %6991 = vst [vmem:[#allocation3 + $0x40] sm:$0xff] %v6987
      %6992 = vst [vmem:[#allocation3 + $0x48] sm:$0xff] %v6988
      %6993 = vst [vmem:[#allocation3 + $0x50] sm:$0xff] %v6989
      %6994 = vst [vmem:[#allocation3 + $0x58] sm:$0xff] %v6990
      %v6995 = vld [vmem:[%s69] sm:$0xf]
      %v6996 = vld [vmem:[#allocation3] sm:$0xff]
      %v6997 = vld [vmem:[#allocation3 + $0x8] sm:$0xff]
      %v6998 = vld [vmem:[#allocation3 + $0x10] sm:$0xff]
      %v6999 = vld [vmem:[#allocation3 + $0x18] sm:$0xff]
      %v7000 = vld [vmem:[#allocation3 + $0x20] sm:$0xff]
      %v7001 = vld [vmem:[#allocation3 + $0x28] sm:$0xff]
      %v7002 = vld [vmem:[#allocation3 + $0x30] sm:$0xff]
      %v7003 = vld [vmem:[#allocation3 + $0x38] sm:$0xff]
      %v7004 = vld [vmem:[#allocation3 + $0x40] sm:$0xff]
      %v7005 = vld [vmem:[#allocation3 + $0x48] sm:$0xff]
      %v7006 = vld [vmem:[#allocation3 + $0x50] sm:$0xff]
      %v7007 = vld [vmem:[#allocation3 + $0x58] sm:$0xff]
      %vm7008 = vcmask 785408
      %v7010 = vsel %vm7008, %v6995, 0
      %7012 = vmatprep.subr.bf16.mxu0 %v6997
      %7013 = vmatpush1.bf16.msra.mxu0 %v6996
      %7014 = vmatprep.subr.bf16.mxu0 %v6999
      %7015 = vmatpush1.bf16.msra.mxu0 %v6998
      %7016 = vmatprep.subr.bf16.mxu0 %v7001
      %7017 = vmatpush1.bf16.msra.mxu0 %v7000
      %7018 = vmatprep.subr.bf16.mxu0 %v7003
      %7019 = vmatpush1.bf16.msra.mxu0 %v7002
      %7020 = vmatprep.subr.bf16.mxu0 %v7005
      %7021 = vmatpush1.bf16.msra.mxu0 %v7004
      %7022 = vmatprep.subr.bf16.mxu0 %v7007
      %7023 = vmatpush1.bf16.msra.mxu0 %v7006
      %7024 = vmatprep.subr.bf16.mxu0 0
      %7025 = vmatpush1.bf16.msra.mxu0 0
      %7026 = vmatprep.subr.bf16.mxu0 0
      %7027 = vmatpush1.bf16.msra.mxu0 0
      %7028 = vmatprep.subr.bf16.mxu0 0
      %7029 = vmatpush1.bf16.msra.mxu0 0
      %7030 = vmatprep.subr.bf16.mxu0 0
      %7031 = vmatpush1.bf16.msra.mxu0 0
      %7032 = vmatprep.subr.bf16.mxu0 0
      %7033 = vmatpush1.bf16.msra.mxu0 0
      %7034 = vmatprep.subr.bf16.mxu0 0
      %7035 = vmatpush1.bf16.msra.mxu0 0
      %7036 = vmatprep.subr.bf16.mxu0 0
      %7037 = vmatpush1.bf16.msra.mxu0 0
      %7038 = vmatprep.subr.bf16.mxu0 0
      %7039 = vmatpush1.bf16.msra.mxu0 0
      %7040 = vmatprep.subr.bf16.mxu0 0
      %7041 = vmatpush1.bf16.msra.mxu0 0
      %7042 = vmatprep.subr.bf16.mxu0 0
      %7043 = vmatpush1.bf16.msra.mxu0 0
      %7044 = vmatprep.mubr.bf16.mxu0 0
      %7045 = vmatmul.mubr.bf16.gmra.mrb[0].mxu0 %v7010
      %v7046 = vpop.f32.mrb[0].mxu0
      %v7047 = vadd.f32 0.0, %v7046
      %v7048 = vpop.f32.mrb[0].mxu0
      %v7049 = vadd.f32 0.0, %v7048
      %v7050 = vpop.f32.mrb[0].mxu0
      %v7051 = vpop.f32.mrb[0].mxu0
      %7052 = vdwg.mxu0
      %v7053 = vld [vmem:[%s71] sm:$0xff]
      %7055 = vset.pattern.permute.xlu0 0
      %7056 = vperm.xlu0 %7055, %v7053
      %v7057 = vpop.permute.xlu0 %7056
      %v7059 = vmul.f32 %v7047, %v7057
      %v7060 = vmul.f32 %v7049, %v7057
      %7061 = vset.pattern.permute.xlu0 1
      %7062 = vperm.xlu0 %7061, %v7053
      %v7063 = vpop.permute.xlu0 %7062
      %v7065 = vadd.f32 %v7059, %v7063
      %v7066 = vadd.f32 %v7060, %v7063
      %v7067 = vxor.u32 %v7065, 2147483648
      %v7068 = vxor.u32 %v7066, 2147483648
      %v7069 = vmul.f32 %v7067, 1.442695
      %v7070 = vpow.pop %v7069
      %v7071 = vmul.f32 %v7068, 1.442695
      %v7072 = vpow.pop %v7071
      %v7073 = vadd.f32 %v7070, 1.0
      %v7074 = vadd.f32 %v7072, 1.0
      %v7075 = vrcp.pop %v7073
      %v7076 = vmul.f32 1.0, %v7075
      %v7077 = vrcp.pop %v7074
      %v7078 = vmul.f32 1.0, %v7077
      %v7079 = vmul.f32 %v7065, %v7076
      %v7080 = vmul.f32 %v7066, %v7078
      %v7081 = vadd.f32 %v7079, %v7080
      %7082 = vadd.xlane.f32.xlu0 %v7081
      %v7083 = vpop.xlane.xlu0 %7082
      %v7084 = vmul.f32 %v7083, %v3293
      %v7085 = vld [vmem:[%s73] sm:$0xff]
      %v7086 = vmul.f32 %v7085, %v7084
      %v7087 = vsel %vm3297, %v7086, 0.0
      %v7088 = vrot.slane %v7087, 4
      %v7089 = vadd.f32 %v7087, %v7088
      %v7090 = vrot.slane %v7089, 2
      %v7091 = vadd.f32 %v7089, %v7090
      %v7092 = vrot.slane %v7091, 1
      %v7093 = vadd.f32 %v7091, %v7092
      %v7094 = vld [vmem:[%s77] sm:$0x1]
      %v7095 = vadd.f32 %v7093, %v7094
      %v7096 = vmax.f32 %v7095, 0.0
      %v7097 = vld [vmem:[%s75] sm:$0xff]
      %v7098 = vlaneseq
      %v7099 = vshrl.u32 %v7098, 7
      %v7100 = vsub.s32 0, %v7099
      %v7101 = vrot.slane %v7096, %v7100
      %v7102 = vmul.f32 %v7097, %v7101
      %v7103 = vsel %vm3297, %v7102, 0.0
      %7104 = vadd.xlane.f32.xlu0 %v7103
      %v7105 = vpop.xlane.xlu0 %7104
      %v7106 = vld [vmem:[%s79] sm:$0xff]
      %v7107 = vadd.f32 %v7105, %v7106
      %v7108 = vxor.u32 %v7107, 2147483648
      %v7109 = vmul.f32 %v7108, 1.442695
      %v7110 = vpow.pop %v7109
      %v7111 = vadd.f32 %v7110, 1.0
      %v7112 = vrcp.pop %v7111
      %v7113 = vmul.f32 1.0, %v7112
      %7115 = vset.pattern.permute.xlu0 0
      %7116 = vperm.xlu0 %7115, %v7113
      %v7117 = vpop.permute.xlu0 %7116
      %v7119 = vmul.f32 %v7079, %v7117
      %v7120 = vmul.f32 %v7080, %v7117
      %v7121 = vld [vmem:[%s81] sm:$0xf]
      %v7122 = vld [vmem:[%s81 + $0x4] sm:$0xf]
      %v7123 = vld [vmem:[%s81 + $0x8] sm:$0xf]
      %v7124 = vld [vmem:[%s81 + $0xc] sm:$0xf]
      %v7125 = vpack.c.bf16 %v7119, %v7119
      %v7126 = vpack.c.bf16 %v7120, %v7120
      %v7131 = vunpack.c.l.b16 %v7121
      %v7132 = vunpack.c.l.b16 %v7122
      %v7133 = vunpack.c.l.b16 %v7123
      %v7134 = vunpack.c.l.b16 %v7124
      %v7135 = vpack.c.b16 %v7132, %v7131
      %v7136 = vpack.c.b16 %v7134, %v7133
      %v7138 = vsel %vm3297, %v7135, 0
      %v7141 = vsel %vm3297, %v7136, 0
      %v7144 = vsel %vm3354, %v7125, 0
      %v7147 = vsel %vm3354, %v7126, 0
      %7149 = vmatprep.subr.bf16.mxu0 %v7147
      %7150 = vmatpush1.bf16.msra.mxu0 %v7144
      %7151 = vmatprep.subr.bf16.mxu0 0
      %7152 = vmatpush1.bf16.msra.mxu0 0
      %7153 = vmatprep.subr.bf16.mxu0 0
      %7154 = vmatpush1.bf16.msra.mxu0 0
      %7155 = vmatprep.subr.bf16.mxu0 0
      %7156 = vmatpush1.bf16.msra.mxu0 0
      %7157 = vmatprep.subr.bf16.mxu0 0
      %7158 = vmatpush1.bf16.msra.mxu0 0
      %7159 = vmatprep.subr.bf16.mxu0 0
      %7160 = vmatpush1.bf16.msra.mxu0 0
      %7161 = vmatprep.subr.bf16.mxu0 0
      %7162 = vmatpush1.bf16.msra.mxu0 0
      %7163 = vmatprep.subr.bf16.mxu0 0
      %7164 = vmatpush1.bf16.msra.mxu0 0
      %7165 = vmatprep.subr.bf16.mxu0 0
      %7166 = vmatpush1.bf16.msra.mxu0 0
      %7167 = vmatprep.subr.bf16.mxu0 0
      %7168 = vmatpush1.bf16.msra.mxu0 0
      %7169 = vmatprep.subr.bf16.mxu0 0
      %7170 = vmatpush1.bf16.msra.mxu0 0
      %7171 = vmatprep.subr.bf16.mxu0 0
      %7172 = vmatpush1.bf16.msra.mxu0 0
      %7173 = vmatprep.subr.bf16.mxu0 0
      %7174 = vmatpush1.bf16.msra.mxu0 0
      %7175 = vmatprep.subr.bf16.mxu0 0
      %7176 = vmatpush1.bf16.msra.mxu0 0
      %7177 = vmatprep.subr.bf16.mxu0 0
      %7178 = vmatpush1.bf16.msra.mxu0 0
      %7179 = vmatprep.subr.bf16.mxu0 0
      %7180 = vmatpush1.bf16.msra.mxu0 0
      %7181 = vmatprep.mubr.bf16.mxu0 0
      %7182 = vmatmul.mubr.bf16.gmra.mrb[0].mxu0 %v7138
      %v7183 = vpop.f32.mrb[0].mxu0
      %v7184 = vadd.f32 0.0, %v7183
      %v7185 = vpop.f32.mrb[0].mxu0
      %v7186 = vadd.f32 0.0, %v7185
      %v7187 = vpop.f32.mrb[0].mxu0
      %v7188 = vadd.f32 0.0, %v7187
      %v7189 = vpop.f32.mrb[0].mxu0
      %v7190 = vadd.f32 0.0, %v7189
      %7191 = vmatprep.mubr.bf16.mxu0 0
      %7192 = vmatmul.mubr.bf16.gmra.mrb[0].mxu0 %v7141
      %v7193 = vpop.f32.mrb[0].mxu0
      %v7194 = vadd.f32 0.0, %v7193
      %v7195 = vpop.f32.mrb[0].mxu0
      %v7196 = vadd.f32 0.0, %v7195
      %v7197 = vpop.f32.mrb[0].mxu0
      %v7198 = vadd.f32 0.0, %v7197
      %v7199 = vpop.f32.mrb[0].mxu0
      %v7200 = vadd.f32 0.0, %v7199
      %7201 = vdwg.mxu0
      %v7202 = vld [vmem:[%s83] sm:$0xff]
      %v7203 = vld [vmem:[%s83 + $0x8] sm:$0xff]
      %v7204 = vld [vmem:[%s83 + $0x10] sm:$0xff]
      %v7205 = vld [vmem:[%s83 + $0x18] sm:$0xff]
      %7207 = vset.pattern.permute.xlu0 0
      %7208 = vperm.xlu0 %7207, %v7202
      %v7209 = vpop.permute.xlu0 %7208
      %7212 = vset.pattern.permute.xlu0 0
      %7213 = vperm.xlu0 %7212, %v7203
      %v7214 = vpop.permute.xlu0 %7213
      %7217 = vset.pattern.permute.xlu0 0
      %7218 = vperm.xlu0 %7217, %v7204
      %v7219 = vpop.permute.xlu0 %7218
      %7222 = vset.pattern.permute.xlu0 0
      %7223 = vperm.xlu0 %7222, %v7205
      %v7224 = vpop.permute.xlu0 %7223
      %v7226 = vmul.f32 %v7184, %v7209
      %v7227 = vmul.f32 %v7186, %v7209
      %v7228 = vmul.f32 %v7188, %v7214
      %v7229 = vmul.f32 %v7190, %v7214
      %v7230 = vmul.f32 %v7194, %v7219
      %v7231 = vmul.f32 %v7196, %v7219
      %v7232 = vmul.f32 %v7198, %v7224
      %v7233 = vmul.f32 %v7200, %v7224
      %7234 = vset.pattern.permute.xlu0 1
      %7235 = vperm.xlu0 %7234, %v7202
      %v7236 = vpop.permute.xlu0 %7235
      %7238 = vset.pattern.permute.xlu0 1
      %7239 = vperm.xlu0 %7238, %v7203
      %v7240 = vpop.permute.xlu0 %7239
      %7242 = vset.pattern.permute.xlu0 1
      %7243 = vperm.xlu0 %7242, %v7204
      %v7244 = vpop.permute.xlu0 %7243
      %7246 = vset.pattern.permute.xlu0 1
      %7247 = vperm.xlu0 %7246, %v7205
      %v7248 = vpop.permute.xlu0 %7247
      %v7250 = vadd.f32 %v7226, %v7236
      %v7251 = vadd.f32 %v7227, %v7236
      %v7252 = vadd.f32 %v7228, %v7240
      %v7253 = vadd.f32 %v7229, %v7240
      %v7254 = vadd.f32 %v7230, %v7244
      %v7255 = vadd.f32 %v7231, %v7244
      %v7256 = vadd.f32 %v7232, %v7248
      %v7257 = vadd.f32 %v7233, %v7248
      %v7258 = vadd.f32 %v7250, %v6841
      %v7259 = vadd.f32 %v7251, %v6842
      %v7260 = vadd.f32 %v7252, %v6843
      %v7261 = vadd.f32 %v7253, %v6844
      %v7262 = vadd.f32 %v7254, %v6845
      %v7263 = vadd.f32 %v7255, %v6846
      %v7264 = vadd.f32 %v7256, %v6847
      %v7265 = vadd.f32 %v7257, %v6848
      %v7266 = vxor.u32 %v7258, 2147483648
      %v7267 = vxor.u32 %v7259, 2147483648
      %v7268 = vxor.u32 %v7260, 2147483648
      %v7269 = vxor.u32 %v7261, 2147483648
      %v7270 = vxor.u32 %v7262, 2147483648
      %v7271 = vxor.u32 %v7263, 2147483648
      %v7272 = vxor.u32 %v7264, 2147483648
      %v7273 = vxor.u32 %v7265, 2147483648
      %v7274 = vmul.f32 %v7266, 1.442695
      %v7275 = vpow.pop %v7274
      %v7276 = vmul.f32 %v7267, 1.442695
      %v7277 = vpow.pop %v7276
      %v7278 = vmul.f32 %v7268, 1.442695
      %v7279 = vpow.pop %v7278
      %v7280 = vmul.f32 %v7269, 1.442695
      %v7281 = vpow.pop %v7280
      %v7282 = vmul.f32 %v7270, 1.442695
      %v7283 = vpow.pop %v7282
      %v7284 = vmul.f32 %v7271, 1.442695
      %v7285 = vpow.pop %v7284
      %v7286 = vmul.f32 %v7272, 1.442695
      %v7287 = vpow.pop %v7286
      %v7288 = vmul.f32 %v7273, 1.442695
      %v7289 = vpow.pop %v7288
      %v7290 = vadd.f32 %v7275, 1.0
      %v7291 = vadd.f32 %v7277, 1.0
      %v7292 = vadd.f32 %v7279, 1.0
      %v7293 = vadd.f32 %v7281, 1.0
      %v7294 = vadd.f32 %v7283, 1.0
      %v7295 = vadd.f32 %v7285, 1.0
      %v7296 = vadd.f32 %v7287, 1.0
      %v7297 = vadd.f32 %v7289, 1.0
      %v7298 = vrcp.pop %v7290
      %v7299 = vmul.f32 1.0, %v7298
      %v7300 = vrcp.pop %v7291
      %v7301 = vmul.f32 1.0, %v7300
      %v7302 = vrcp.pop %v7292
      %v7303 = vmul.f32 1.0, %v7302
      %v7304 = vrcp.pop %v7293
      %v7305 = vmul.f32 1.0, %v7304
      %v7306 = vrcp.pop %v7294
      %v7307 = vmul.f32 1.0, %v7306
      %v7308 = vrcp.pop %v7295
      %v7309 = vmul.f32 1.0, %v7308
      %v7310 = vrcp.pop %v7296
      %v7311 = vmul.f32 1.0, %v7310
      %v7312 = vrcp.pop %v7297
      %v7313 = vmul.f32 1.0, %v7312
      %v7314 = vmul.f32 %v7258, %v7299
      %v7315 = vmul.f32 %v7259, %v7301
      %v7316 = vmul.f32 %v7260, %v7303
      %v7317 = vmul.f32 %v7261, %v7305
      %v7318 = vmul.f32 %v7262, %v7307
      %v7319 = vmul.f32 %v7263, %v7309
      %v7320 = vmul.f32 %v7264, %v7311
      %v7321 = vmul.f32 %v7265, %v7313
      %v7322 = vld [vmem:[%s85] sm:$0xf]
      %v7323 = vld [vmem:[%s85 + $0x4] sm:$0xf]
      %v7324 = vpack.c.bf16 %v7316, %v7314
      %v7325 = vpack.c.bf16 %v7317, %v7315
      %v7326 = vpack.c.bf16 %v7320, %v7318
      %v7327 = vpack.c.bf16 %v7321, %v7319
      %v7330 = vunpack.c.l.b16 %v7322
      %v7331 = vunpack.c.l.b16 %v7323
      %v7332 = vpack.c.b16 %v7331, %v7330
      %v7334 = vsel %vm3556, %v7332, 0
      %7336 = vmatprep.subr.bf16.mxu0 %v7325
      %7337 = vmatpush1.bf16.msra.mxu0 %v7324
      %7338 = vmatprep.subr.bf16.mxu0 %v7327
      %7339 = vmatpush1.bf16.msra.mxu0 %v7326
      %7340 = vmatprep.subr.bf16.mxu0 0
      %7341 = vmatpush1.bf16.msra.mxu0 0
      %7342 = vmatprep.subr.bf16.mxu0 0
      %7343 = vmatpush1.bf16.msra.mxu0 0
      %7344 = vmatprep.subr.bf16.mxu0 0
      %7345 = vmatpush1.bf16.msra.mxu0 0
      %7346 = vmatprep.subr.bf16.mxu0 0
      %7347 = vmatpush1.bf16.msra.mxu0 0
      %7348 = vmatprep.subr.bf16.mxu0 0
      %7349 = vmatpush1.bf16.msra.mxu0 0
      %7350 = vmatprep.subr.bf16.mxu0 0
      %7351 = vmatpush1.bf16.msra.mxu0 0
      %7352 = vmatprep.subr.bf16.mxu0 0
      %7353 = vmatpush1.bf16.msra.mxu0 0
      %7354 = vmatprep.subr.bf16.mxu0 0
      %7355 = vmatpush1.bf16.msra.mxu0 0
      %7356 = vmatprep.subr.bf16.mxu0 0
      %7357 = vmatpush1.bf16.msra.mxu0 0
      %7358 = vmatprep.subr.bf16.mxu0 0
      %7359 = vmatpush1.bf16.msra.mxu0 0
      %7360 = vmatprep.subr.bf16.mxu0 0
      %7361 = vmatpush1.bf16.msra.mxu0 0
      %7362 = vmatprep.subr.bf16.mxu0 0
      %7363 = vmatpush1.bf16.msra.mxu0 0
      %7364 = vmatprep.subr.bf16.mxu0 0
      %7365 = vmatpush1.bf16.msra.mxu0 0
      %7366 = vmatprep.subr.bf16.mxu0 0
      %7367 = vmatpush1.bf16.msra.mxu0 0
      %7368 = vmatprep.mubr.bf16.mxu0 0
      %7369 = vmatmul.mubr.bf16.gmra.mrb[0].mxu0 %v7334
      %v7370 = vpop.f32.mrb[0].mxu0
      %v7371 = vadd.f32 0.0, %v7370
      %v7372 = vpop.f32.mrb[0].mxu0
      %v7373 = vadd.f32 0.0, %v7372
      %v7374 = vpop.f32.mrb[0].mxu0
      %v7375 = vadd.f32 0.0, %v7374
      %v7376 = vpop.f32.mrb[0].mxu0
      %v7377 = vadd.f32 0.0, %v7376
      %7378 = vdwg.mxu0
      %v7379 = vld [vmem:[%s87] sm:$0xff]
      %v7380 = vld [vmem:[%s87 + $0x8] sm:$0xff]
      %7382 = vset.pattern.permute.xlu0 0
      %7383 = vperm.xlu0 %7382, %v7379
      %v7384 = vpop.permute.xlu0 %7383
      %7387 = vset.pattern.permute.xlu0 0
      %7388 = vperm.xlu0 %7387, %v7380
      %v7389 = vpop.permute.xlu0 %7388
      %v7391 = vmul.f32 %v7371, %v7384
      %v7392 = vmul.f32 %v7373, %v7384
      %v7393 = vmul.f32 %v7375, %v7389
      %v7394 = vmul.f32 %v7377, %v7389
      %7395 = vset.pattern.permute.xlu0 1
      %7396 = vperm.xlu0 %7395, %v7379
      %v7397 = vpop.permute.xlu0 %7396
      %7399 = vset.pattern.permute.xlu0 1
      %7400 = vperm.xlu0 %7399, %v7380
      %v7401 = vpop.permute.xlu0 %7400
      %v7403 = vadd.f32 %v7391, %v7397
      %v7404 = vadd.f32 %v7392, %v7397
      %v7405 = vadd.f32 %v7393, %v7401
      %v7406 = vadd.f32 %v7394, %v7401
      %v7407 = vxor.u32 %v7403, 2147483648
      %v7408 = vxor.u32 %v7404, 2147483648
      %v7409 = vmul.f32 %v7407, 1.442695
      %v7410 = vpow.pop %v7409
      %v7411 = vmul.f32 %v7408, 1.442695
      %v7412 = vpow.pop %v7411
      %v7413 = vadd.f32 %v7410, 1.0
      %v7414 = vadd.f32 %v7412, 1.0
      %v7415 = vrcp.pop %v7413
      %v7416 = vmul.f32 1.0, %v7415
      %v7417 = vrcp.pop %v7414
      %v7418 = vmul.f32 1.0, %v7417
      %v7419 = vmul.f32 %v7403, %v7416
      %v7420 = vmul.f32 %v7404, %v7418
      %v7421 = vld [vmem:[%s89] sm:$0xf]
      %v7422 = vpack.c.bf16 %v7419, %v7419
      %v7423 = vpack.c.bf16 %v7420, %v7420
      %v7425 = vsel %vm3297, %v7421, 0
      %v7428 = vsel %vm3354, %v7422, 0
      %v7431 = vsel %vm3354, %v7423, 0
      %7433 = vmatprep.subr.bf16.mxu0 %v7431
      %7434 = vmatpush1.bf16.msra.mxu0 %v7428
      %7435 = vmatprep.subr.bf16.mxu0 0
      %7436 = vmatpush1.bf16.msra.mxu0 0
      %7437 = vmatprep.subr.bf16.mxu0 0
      %7438 = vmatpush1.bf16.msra.mxu0 0
      %7439 = vmatprep.subr.bf16.mxu0 0
      %7440 = vmatpush1.bf16.msra.mxu0 0
      %7441 = vmatprep.subr.bf16.mxu0 0
      %7442 = vmatpush1.bf16.msra.mxu0 0
      %7443 = vmatprep.subr.bf16.mxu0 0
      %7444 = vmatpush1.bf16.msra.mxu0 0
      %7445 = vmatprep.subr.bf16.mxu0 0
      %7446 = vmatpush1.bf16.msra.mxu0 0
      %7447 = vmatprep.subr.bf16.mxu0 0
      %7448 = vmatpush1.bf16.msra.mxu0 0
      %7449 = vmatprep.subr.bf16.mxu0 0
      %7450 = vmatpush1.bf16.msra.mxu0 0
      %7451 = vmatprep.subr.bf16.mxu0 0
      %7452 = vmatpush1.bf16.msra.mxu0 0
      %7453 = vmatprep.subr.bf16.mxu0 0
      %7454 = vmatpush1.bf16.msra.mxu0 0
      %7455 = vmatprep.subr.bf16.mxu0 0
      %7456 = vmatpush1.bf16.msra.mxu0 0
      %7457 = vmatprep.subr.bf16.mxu0 0
      %7458 = vmatpush1.bf16.msra.mxu0 0
      %7459 = vmatprep.subr.bf16.mxu0 0
      %7460 = vmatpush1.bf16.msra.mxu0 0
      %7461 = vmatprep.subr.bf16.mxu0 0
      %7462 = vmatpush1.bf16.msra.mxu0 0
      %7463 = vmatprep.subr.bf16.mxu0 0
      %7464 = vmatpush1.bf16.msra.mxu0 0
      %7465 = vmatprep.mubr.bf16.mxu0 0
      %7466 = vmatmul.mubr.bf16.gmra.mrb[0].mxu0 %v7425
      %v7467 = vpop.f32.mrb[0].mxu0
      %v7468 = vadd.f32 0.0, %v7467
      %v7469 = vpop.f32.mrb[0].mxu0
      %v7470 = vadd.f32 0.0, %v7469
      %v7471 = vpop.f32.mrb[0].mxu0
      %v7472 = vpop.f32.mrb[0].mxu0
      %7473 = vdwg.mxu0
      %v7474 = vld [vmem:[%s91] sm:$0xff]
      %7476 = vset.pattern.permute.xlu0 0
      %7477 = vperm.xlu0 %7476, %v7474
      %v7478 = vpop.permute.xlu0 %7477
      %v7480 = vmul.f32 %v7468, %v7478
      %v7481 = vmul.f32 %v7470, %v7478
      %7482 = vset.pattern.permute.xlu0 1
      %7483 = vperm.xlu0 %7482, %v7474
      %v7484 = vpop.permute.xlu0 %7483
      %v7486 = vadd.f32 %v7480, %v7484
      %v7487 = vadd.f32 %v7481, %v7484
      %v7488 = vxor.u32 %v7486, 2147483648
      %v7489 = vxor.u32 %v7487, 2147483648
      %v7490 = vmul.f32 %v7488, 1.442695
      %v7491 = vpow.pop %v7490
      %v7492 = vmul.f32 %v7489, 1.442695
      %v7493 = vpow.pop %v7492
      %v7494 = vadd.f32 %v7491, 1.0
      %v7495 = vadd.f32 %v7493, 1.0
      %v7496 = vrcp.pop %v7494
      %v7497 = vmul.f32 1.0, %v7496
      %v7498 = vrcp.pop %v7495
      %v7499 = vmul.f32 1.0, %v7498
      %v7500 = vmul.f32 %v7486, %v7497
      %v7501 = vmul.f32 %v7487, %v7499
      %v7502 = vadd.f32 %v7500, %v7501
      %7503 = vadd.xlane.f32.xlu0 %v7502
      %v7504 = vpop.xlane.xlu0 %7503
      %v7505 = vmul.f32 %v7504, %v3293
      %v7506 = vld [vmem:[%s93] sm:$0xff]
      %v7507 = vmul.f32 %v7506, %v7505
      %v7508 = vsel %vm3297, %v7507, 0.0
      %v7509 = vrot.slane %v7508, 4
      %v7510 = vadd.f32 %v7508, %v7509
      %v7511 = vrot.slane %v7510, 2
      %v7512 = vadd.f32 %v7510, %v7511
      %v7513 = vrot.slane %v7512, 1
      %v7514 = vadd.f32 %v7512, %v7513
      %v7515 = vld [vmem:[%s97] sm:$0x1]
      %v7516 = vadd.f32 %v7514, %v7515
      %v7517 = vmax.f32 %v7516, 0.0
      %v7518 = vld [vmem:[%s95] sm:$0xff]
      %v7519 = vlaneseq
      %v7520 = vshrl.u32 %v7519, 7
      %v7521 = vsub.s32 0, %v7520
      %v7522 = vrot.slane %v7517, %v7521
      %v7523 = vmul.f32 %v7518, %v7522
      %v7524 = vsel %vm3297, %v7523, 0.0
      %7525 = vadd.xlane.f32.xlu0 %v7524
      %v7526 = vpop.xlane.xlu0 %7525
      %v7527 = vld [vmem:[%s99] sm:$0xff]
      %v7528 = vadd.f32 %v7526, %v7527
      %v7529 = vxor.u32 %v7528, 2147483648
      %v7530 = vmul.f32 %v7529, 1.442695
      %v7531 = vpow.pop %v7530
      %v7532 = vadd.f32 %v7531, 1.0
      %v7533 = vrcp.pop %v7532
      %v7534 = vmul.f32 1.0, %v7533
      %7536 = vset.pattern.permute.xlu0 0
      %7537 = vperm.xlu0 %7536, %v7534
      %v7538 = vpop.permute.xlu0 %7537
      %v7540 = vmul.f32 %v7500, %v7538
      %v7541 = vmul.f32 %v7501, %v7538
      %v7542 = vld [vmem:[%s101] sm:$0xf]
      %v7543 = vpack.c.bf16 %v7540, %v7540
      %v7544 = vpack.c.bf16 %v7541, %v7541
      %v7546 = vsel %vm3297, %v7542, 0
      %v7549 = vsel %vm3354, %v7543, 0
      %v7552 = vsel %vm3354, %v7544, 0
      %7554 = vmatprep.subr.bf16.mxu0 %v7552
      %7555 = vmatpush1.bf16.msra.mxu0 %v7549
      %7556 = vmatprep.subr.bf16.mxu0 0
      %7557 = vmatpush1.bf16.msra.mxu0 0
      %7558 = vmatprep.subr.bf16.mxu0 0
      %7559 = vmatpush1.bf16.msra.mxu0 0
      %7560 = vmatprep.subr.bf16.mxu0 0
      %7561 = vmatpush1.bf16.msra.mxu0 0
      %7562 = vmatprep.subr.bf16.mxu0 0
      %7563 = vmatpush1.bf16.msra.mxu0 0
      %7564 = vmatprep.subr.bf16.mxu0 0
      %7565 = vmatpush1.bf16.msra.mxu0 0
      %7566 = vmatprep.subr.bf16.mxu0 0
      %7567 = vmatpush1.bf16.msra.mxu0 0
      %7568 = vmatprep.subr.bf16.mxu0 0
      %7569 = vmatpush1.bf16.msra.mxu0 0
      %7570 = vmatprep.subr.bf16.mxu0 0
      %7571 = vmatpush1.bf16.msra.mxu0 0
      %7572 = vmatprep.subr.bf16.mxu0 0
      %7573 = vmatpush1.bf16.msra.mxu0 0
      %7574 = vmatprep.subr.bf16.mxu0 0
      %7575 = vmatpush1.bf16.msra.mxu0 0
      %7576 = vmatprep.subr.bf16.mxu0 0
      %7577 = vmatpush1.bf16.msra.mxu0 0
      %7578 = vmatprep.subr.bf16.mxu0 0
      %7579 = vmatpush1.bf16.msra.mxu0 0
      %7580 = vmatprep.subr.bf16.mxu0 0
      %7581 = vmatpush1.bf16.msra.mxu0 0
      %7582 = vmatprep.subr.bf16.mxu0 0
      %7583 = vmatpush1.bf16.msra.mxu0 0
      %7584 = vmatprep.subr.bf16.mxu0 0
      %7585 = vmatpush1.bf16.msra.mxu0 0
      %7586 = vmatprep.mubr.bf16.mxu0 0
      %7587 = vmatmul.mubr.bf16.gmra.mrb[0].mxu0 %v7546
      %v7588 = vpop.f32.mrb[0].mxu0
      %v7589 = vadd.f32 0.0, %v7588
      %v7590 = vpop.f32.mrb[0].mxu0
      %v7591 = vadd.f32 0.0, %v7590
      %v7592 = vpop.f32.mrb[0].mxu0
      %v7593 = vpop.f32.mrb[0].mxu0
      %7594 = vdwg.mxu0
      %v7595 = vld [vmem:[%s103] sm:$0xff]
      %7597 = vset.pattern.permute.xlu0 0
      %7598 = vperm.xlu0 %7597, %v7595
      %v7599 = vpop.permute.xlu0 %7598
      %v7601 = vmul.f32 %v7589, %v7599
      %v7602 = vmul.f32 %v7591, %v7599
      %7603 = vset.pattern.permute.xlu0 1
      %7604 = vperm.xlu0 %7603, %v7595
      %v7605 = vpop.permute.xlu0 %7604
      %v7607 = vadd.f32 %v7601, %v7605
      %v7608 = vadd.f32 %v7602, %v7605
      %v7609 = vadd.f32 %v7607, %v7405
      %v7610 = vadd.f32 %v7608, %v7406
      %v7611 = vxor.u32 %v7609, 2147483648
      %v7612 = vxor.u32 %v7610, 2147483648
      %v7613 = vmul.f32 %v7611, 1.442695
      %v7614 = vpow.pop %v7613
      %v7615 = vmul.f32 %v7612, 1.442695
      %v7616 = vpow.pop %v7615
      %v7617 = vadd.f32 %v7614, 1.0
      %v7618 = vadd.f32 %v7616, 1.0
      %v7619 = vrcp.pop %v7617
      %v7620 = vmul.f32 1.0, %v7619
      %v7621 = vrcp.pop %v7618
      %v7622 = vmul.f32 1.0, %v7621
      %v7623 = vmul.f32 %v7609, %v7620
      %v7624 = vmul.f32 %v7610, %v7622
      %v7625 = vld [vmem:[%s105] sm:$0xff]
      %v7626 = vadd.f32 %v7623, %v7624
      %7627 = vadd.xlane.f32.xlu0 %v7626
      %v7628 = vpop.xlane.xlu0 %7627
      %v7629 = vmul.f32 %v7628, %v3293
      %v7630 = vmul.f32 %v7625, %v7629
      %v7631 = vsel %vm1868, %v7630, 0.0
      %v7632 = vrot.slane %v7631, 4
      %v7633 = vadd.f32 %v7631, %v7632
      %v7634 = vrot.slane %v7633, 2
      %v7635 = vadd.f32 %v7633, %v7634
      %v7636 = vrot.slane %v7635, 1
      %v7637 = vadd.f32 %v7635, %v7636
      %7639 = vrot.lane.b32.xlu0 %v7625, 127
      %v7640 = vpop.permute.xlu0 %7639
      %v7642 = vadd.f32 %v7637, %v7640
      %vm7643 = vcmask 0
      %7644 = vst.msk [vmem:[%s1567] sm:$0x1] %vm7643, %v7642
      %p7645 = scmp.lt.s32.totalorder %s118, 1
      %s7646 = scalar_select %p7645, %s118, 1
      %s7647 = scalar_lea.vmem %s107, %s7646
      // Predicated region
      $region233: #{heart_tcn_forward.1} parent=231 // pred_check
        %p7648 = pneg %p1254
      $region234: #{heart_tcn_forward.1} parent=231 // pred_check_branch
        %7650 = sbr.rel (%p7648) target = $region236
      $region235: #{heart_tcn_forward.1} parent=231 // pred_region
        _
      $region236: #{heart_tcn_forward.1} parent=231 // pred_fallthru
        _
    $region232: #{heart_tcn_forward.1} parent=5 // pred_fallthru
      _
    %p7651 = scmp.le.s32.totalorder 2, %s113
    // Predicated region
    $region237: #{heart_tcn_forward.1} parent=5 // pred_check
      %p7652 = pneg %p7651
    $region238: #{heart_tcn_forward.1} parent=5 // pred_check_branch
      %7654 = sbr.rel (%p7652) target = $region240
    $region239: #{heart_tcn_forward.1} parent=5 // pred_region
      %s7655 = ssub.s32 %s113, 2
      // Predicated region
      $region241: #{heart_tcn_forward.1} parent=239 // pred_check
        %p7656 = pneg %p1260
      $region242: #{heart_tcn_forward.1} parent=239 // pred_check_branch
        %7658 = sbr.rel (%p7656) target = $region244
      $region243: #{heart_tcn_forward.1} parent=239 // pred_region
        %p7659 = scmp.lt.s32.totalorder %s119, 1
        %s7660 = scalar_select %p7659, %s119, 1
        %s7661 = scalar_lea.vmem %s107, %s7660
      $region244: #{heart_tcn_forward.1} parent=239 // pred_fallthru
        _
    $region240: #{heart_tcn_forward.1} parent=5 // pred_fallthru
      _
  $region6: #{heart_tcn_forward.1} parent=0 // loop_footer
    %s117 = sadd.s32 1, %s113
  $region7: #{heart_tcn_forward.1} parent=0 // loop_footer_branch
    %112 = sbr.rel target = $region3
  $region8: #{heart_tcn_forward.1} parent=0 // loop_exit
    _

</llo_original>
